<compile_context>
chip_gen: v5e
topology: v5e:2x2
jax: 0.10.0
libtpu: 0.0.40
codegen_flags: <defaults>
</compile_context>

<pallas_src>
import math
import functools

import jax
import jax.numpy as jnp
from jax.experimental import pallas as pl
from jax.experimental.pallas import tpu as pltpu

# ----------------------- KANLinear hyper-params (from __init__) ----------------
GRID_SIZE = 5
SPLINE_ORDER = 3
GRID_RANGE = (-1.0, 1.0)
N_COEFF = GRID_SIZE + SPLINE_ORDER                      # 8 spline coefficients / feature
_H = (GRID_RANGE[1] - GRID_RANGE[0]) / GRID_SIZE
# extended knot vector; identical for every input feature (no grid update in fwd)
KNOTS = tuple(GRID_RANGE[0] + _H * (j - SPLINE_ORDER)
              for j in range(GRID_SIZE + 2 * SPLINE_ORDER + 1))   # 12 knots
LN_EPS = 1e-5
BN_EPS = 1e-5

# MXU operand precision (accumulation is always f32). bf16 doubles MXU throughput on
# v6e/v7x and halves weight DMA bytes; use jnp.float32 for bit-strict f32 matmuls.
MXU_DTYPE = jnp.bfloat16


def _vmem_limit_bytes():
    """Generation-aware scoped-VMEM ceiling with headroom for compiler scratch."""
    try:
        phys = int(pltpu.get_tpu_info().vmem_capacity_bytes)
        return max(32 << 20, min(phys - (16 << 20), 104 << 20))
    except Exception:
        return 48 << 20          # safe everywhere (< v7x 64 MiB physical)


VMEM_LIMIT_BYTES = _vmem_limit_bytes()


def _round_up(x, m):
    return ((x + m - 1) // m) * m


def _choose_block_m(M, target=512):
    """Row-tile size: multiple of 8, <= target, and >= 2 grid steps when possible."""
    bm = min(target, _round_up(M, 8))
    if bm >= M and M > 8:            # degenerate 1-step grid -> split for megacore/pipelining
        bm = _round_up(pl.cdiv(M, 2), 8)
    return max(bm, 8)


# =============================== Pallas kernels =================================
def _kan_features(x, out_dtype):
    """(Mb, Cin) f32 -> (Mb, 9*Cin) `out_dtype` slab: [SiLU(x) | spline bases 0..7].

    Strength-reduced Cox-de-Boor:
      * degree-0 bases = ge_j - ge_{j+1} from 12 ">=" compares (half-open intervals, matching
        the efficient-KAN convention),
      * d_j = x - KNOTS[j] computed once and reused at every level,
      * uniform knots -> denominators are the constants k*_H (literal multiplies).
    Elementwise math stays in f32 (v5e has no bf16 VPU); each produced feature is cast to
    `out_dtype` so the concatenated slab never exists in f32.
    """
    silu = (x * jax.nn.sigmoid(x)).astype(out_dtype)
    ge = [(x >= k).astype(jnp.float32) for k in KNOTS]                 # 12 compares
    bases = [ge[j] - ge[j + 1] for j in range(len(KNOTS) - 1)]         # 11 degree-0 bases
    d = [x - k for k in KNOTS]                                         # reused every level
    for k in range(1, SPLINE_ORDER + 1):
        inv = 1.0 / (k * _H)                                           # constant denominator
        bases = [(d[j] * bases[j] - d[j + k + 1] * bases[j + 1]) * inv
                 for j in range(len(bases) - 1)]
    feats = [silu] + [b.astype(out_dtype) for b in bases]              # len == 1 + N_COEFF
    return jnp.concatenate(feats, axis=-1)                             # (Mb, 9*Cin)


def kan_linear_kernel(x_ref, w_ref, o_ref):
    # x_ref: (Mb, Cin)   w_ref: (9*Cin, Cout) pre-fused [base | scaled-spline] weight
    x = x_ref[...].astype(jnp.float32)
    feats = _kan_features(x, MXU_DTYPE)                 # single MXU contraction, K = 9*Cin
    o_ref[...] = jnp.dot(feats, w_ref[...],
                         preferred_element_type=jnp.float32).astype(o_ref.dtype)


def ln_kan_linear_kernel(x_ref, g_ref, b_ref, w_ref, o_ref):
    # LayerNorm fused into the first KANLinear (same (Mb, Cin) tile, saves one HBM round-trip).
    x = x_ref[...].astype(jnp.float32)
    mu = jnp.mean(x, axis=-1, keepdims=True)
    xc = x - mu
    var = jnp.mean(xc * xc, axis=-1, keepdims=True)
    xn = xc * jax.lax.rsqrt(var + LN_EPS) * g_ref[...] + b_ref[...]
    feats = _kan_features(xn, MXU_DTYPE)
    o_ref[...] = jnp.dot(feats, w_ref[...],
                         preferred_element_type=jnp.float32).astype(o_ref.dtype)


def dwconv_bn_relu_kernel(x_ref, w_ref, shift_ref, *rest, H, W):
    # x_ref:     (1, H, W, C) NHWC activation tile (one image)
    # w_ref:     (9, C)       depthwise taps with BN scale folded in, tap index = 3*ky + kx
    # shift_ref: (1, 1, 1, C) folded conv-bias + BN shift
    # rest:      (res_ref, o_ref, acc_ref) when the residual add is fused, else (o_ref, acc_ref)
    if len(rest) == 3:
        res_ref, o_ref, acc_ref = rest
    else:
        o_ref, acc_ref = rest
        res_ref = None

    x = x_ref[...].astype(jnp.float32)
    C = x.shape[-1]

    def tap(idx):                                       # (1, 1, 1, C) tap, static index
        return w_ref[pl.ds(idx, 1), :].astype(jnp.float32).reshape(1, 1, 1, C)

    # W-neighbours: zero-column slice/concat (non-negative shifts only; no HBM pad round-trip).
    zero_col = jnp.zeros((1, H, 1, C), jnp.float32)
    x_m1 = jnp.concatenate([zero_col, x[:, :, :W - 1, :]], axis=2)     # value at j is x[j-1]
    x_p1 = jnp.concatenate([x[:, :, 1:, :], zero_col], axis=2)         # value at j is x[j+1]

    def hrow(r):                                        # horizontal 1x3 conv with tap row r
        return x_m1 * tap(3 * r + 0) + x * tap(3 * r + 1) + x_p1 * tap(3 * r + 2)

    # H-neighbours: slice-aligned accumulation into a VMEM scratch accumulator (no zero-row
    # concats / full-tile copies).  H is an untiled outer dim, so the slices are cheap.
    acc_ref[...] = hrow(1)                              # ky = 1  (dy = 0)
    if H > 1:
        hm1 = hrow(0)                                   # ky = 0: out[i] += hm1[i-1]
        acc_ref[:, 1:] = acc_ref[:, 1:] + hm1[:, :H - 1]
        hp1 = hrow(2)                                   # ky = 2: out[i] += hp1[i+1]
        acc_ref[:, :H - 1] = acc_ref[:, :H - 1] + hp1[:, 1:]

    y = jnp.maximum(acc_ref[...] + shift_ref[...], 0.0)                # folded BN (eval) + ReLU
    if res_ref is not None:                                            # fused residual add
        y = y + res_ref[...].astype(jnp.float32)
    o_ref[...] = y.astype(o_ref.dtype)


# =============================== wrappers =======================================
def kan_linear(x2d, w_fused, *, ln=None, block_m_target=512):
    M, Cin = x2d.shape
    KC, Cout = w_fused.shape                                  # KC == (N_COEFF + 1) * Cin
    bm = _choose_block_m(M, block_m_target)
    Mp = _round_up(M, bm)
    xin = jnp.pad(x2d, ((0, Mp - M), (0, 0))) if Mp != M else x2d

    w_bytes = 2 if MXU_DTYPE == jnp.bfloat16 else 4
    cost = pl.CostEstimate(flops=2 * Mp * KC * Cout,
                           transcendentals=Mp * Cin,          # sigmoid in SiLU
                           bytes_accessed=4 * Mp * (Cin + Cout) + w_bytes * KC * Cout)
    cparams = pltpu.CompilerParams(dimension_semantics=("parallel",),
                                   vmem_limit_bytes=VMEM_LIMIT_BYTES)
    if ln is None:
        kern = kan_linear_kernel
        in_specs = [pl.BlockSpec((bm, Cin), lambda i: (i, 0)),
                    pl.BlockSpec((KC, Cout), lambda i: (0, 0))]
        args = (xin, w_fused)
    else:
        gamma, beta = ln
        kern = ln_kan_linear_kernel
        in_specs = [pl.BlockSpec((bm, Cin), lambda i: (i, 0)),
                    pl.BlockSpec((1, Cin), lambda i: (0, 0)),
                    pl.BlockSpec((1, Cin), lambda i: (0, 0)),
                    pl.BlockSpec((KC, Cout), lambda i: (0, 0))]
        args = (xin, gamma.reshape(1, Cin), beta.reshape(1, Cin), w_fused)
    out = pl.pallas_call(
        kern,
        out_shape=jax.ShapeDtypeStruct((Mp, Cout), x2d.dtype),
        grid=(Mp // bm,),
        in_specs=in_specs,
        out_specs=pl.BlockSpec((bm, Cout), lambda i: (i, 0)),
        compiler_params=cparams,
        cost_estimate=cost,
    )(*args)
    return out if Mp == M else out[:M]


def dwconv_bn_relu(x_bhwc, w_eff, shift_eff, residual=None):
    B, H, W, C = x_bhwc.shape
    kern = functools.partial(dwconv_bn_relu_kernel, H=H, W=W)
    in_specs = [pl.BlockSpec((1, H, W, C), lambda b: (b, 0, 0, 0)),
                pl.BlockSpec((9, C), lambda b: (0, 0)),
                pl.BlockSpec((1, 1, 1, C), lambda b: (0, 0, 0, 0))]
    args = [x_bhwc, w_eff, shift_eff.reshape(1, 1, 1, C)]
    if residual is not None:
        in_specs.append(pl.BlockSpec((1, H, W, C), lambda b: (b, 0, 0, 0)))
        args.append(residual)
    n_stream = 2 + (1 if residual is not None else 0)
    cost = pl.CostEstimate(flops=2 * 9 * B * H * W * C, transcendentals=0,
                           bytes_accessed=4 * (n_stream * B * H * W * C + 10 * C))
    return pl.pallas_call(
        kern,
        out_shape=jax.ShapeDtypeStruct((B, H, W, C), x_bhwc.dtype),
        grid=(B,),
        in_specs=in_specs,
        out_specs=pl.BlockSpec((1, H, W, C), lambda b: (b, 0, 0, 0)),
        scratch_shapes=[pltpu.VMEM((1, H, W, C), jnp.float32)],
        compiler_params=pltpu.CompilerParams(dimension_semantics=("parallel",),
                                             vmem_limit_bytes=VMEM_LIMIT_BYTES),
        cost_estimate=cost,
    )(*args)


def preprocess_params(params):
    """One-time weight fusion (hoisted out of the forward path).

    - KANLinear: W_fused = concat[base_w^T ; (spline_w * scaler) transposed to
      coefficient-major (9*Cin, Cout)], pre-cast to the MXU operand dtype.
    - DW conv:  BN scale folded into the 9 taps; conv bias + BN shift folded into one shift.
    """
    pp = {"ln_gamma": params["ln_gamma"].astype(jnp.float32),
          "ln_beta": params["ln_beta"].astype(jnp.float32)}
    for i in (1, 2, 3):
        fc, dw = params[f"fc{i}"], params[f"dw{i}"]
        Cout, Cin, K = fc["spline_w"].shape
        scaled = fc["spline_w"] * fc["spline_scaler"][..., None]             # (Cout, Cin, K) f32
        w_spline = jnp.transpose(scaled, (2, 1, 0)).reshape(K * Cin, Cout)   # coeff-major blocks
        w_fused = jnp.concatenate([fc["base_w"].T, w_spline], axis=0)        # (9*Cin, Cout)
        s = dw["gamma"] * jax.lax.rsqrt(dw["var"] + BN_EPS)
        pp[f"fc{i}"] = {"w": w_fused.astype(MXU_DTYPE)}
        pp[f"dw{i}"] = {"w": (dw["w"] * s[None, :]).astype(jnp.float32),
                        "shift": ((dw["b"] - dw["mean"]) * s + dw["beta"]).astype(jnp.float32)}
    return pp


def kan_block_forward(x, H, W, fused_params):
    """KANBlock.forward: x + KANLayer(LayerNorm(x), H, W).  x: (B, N, C), N == H*W."""
    B, N, C = x.shape
    assert N == H * W, "token count must equal H*W"
    p = fused_params
    x2d = x.reshape(B * N, C)
    h = kan_linear(x2d, p["fc1"]["w"], ln=(p["ln_gamma"], p["ln_beta"]))     # LN + fc1
    h = dwconv_bn_relu(h.reshape(B, H, W, C), p["dw1"]["w"], p["dw1"]["shift"])
    h = kan_linear(h.reshape(B * N, C), p["fc2"]["w"])
    h = dwconv_bn_relu(h.reshape(B, H, W, C), p["dw2"]["w"], p["dw2"]["shift"])
    h = kan_linear(h.reshape(B * N, C), p["fc3"]["w"])
    out = dwconv_bn_relu(h.reshape(B, H, W, C), p["dw3"]["w"], p["dw3"]["shift"],
                         residual=x.reshape(B, H, W, C))                     # dw3 + residual
    return out.reshape(B, N, C)


# =============================== pure-JAX reference =============================
def _ref_kan_linear(x2d, base_w, spline_w, spline_scaler, matmul_dtype):
    knots = jnp.asarray(KNOTS, jnp.float32)
    silu = x2d * jax.nn.sigmoid(x2d)
    xe = x2d[..., None]
    bases = ((xe >= knots[:-1]) & (xe < knots[1:])).astype(jnp.float32)
    for k in range(1, SPLINE_ORDER + 1):
        bases = ((xe - knots[: -(k + 1)]) / (knots[k:-1] - knots[: -(k + 1)]) * bases[..., :-1]
                 + (knots[k + 1:] - xe) / (knots[k + 1:] - knots[1:-k]) * bases[..., 1:])
    w_sp = (spline_w * spline_scaler[..., None]).reshape(spline_w.shape[0], -1)   # (Cout, Cin*K)
    out = jnp.dot(silu.astype(matmul_dtype), base_w.T.astype(matmul_dtype),
                  preferred_element_type=jnp.float32)
    out = out + jnp.dot(bases.reshape(x2d.shape[0], -1).astype(matmul_dtype),
                        w_sp.T.astype(matmul_dtype), preferred_element_type=jnp.float32)
    return out


def kan_block_ref(x, H, W, params, matmul_dtype=jnp.float32):
    B, N, C = x.shape
    x2d = x.reshape(B * N, C).astype(jnp.float32)
    mu = jnp.mean(x2d, axis=-1, keepdims=True)
    var = jnp.mean((x2d - mu) ** 2, axis=-1, keepdims=True)
    h = (x2d - mu) / jnp.sqrt(var + LN_EPS) * params["ln_gamma"] + params["ln_beta"]
    for i in (1, 2, 3):
        fc, dw = params[f"fc{i}"], params[f"dw{i}"]
        h = _ref_kan_linear(h, fc["base_w"], fc["spline_w"], fc["spline_scaler"], matmul_dtype)
        y = jax.lax.conv_general_dilated(h.reshape(B, H, W, C), dw["w"].reshape(3, 3, 1, C),
                                         (1, 1), "SAME",
                                         dimension_numbers=("NHWC", "HWIO", "NHWC"),
                                         feature_group_count=C)
        y = (y + dw["b"] - dw["mean"]) / jnp.sqrt(dw["var"] + BN_EPS) * dw["gamma"] + dw["beta"]
        h = jnp.maximum(y, 0.0).reshape(B * N, C)
    return (x2d + h).reshape(B, N, C)


# =============================== param init =====================================
def init_params(key, C):
    p = {"ln_gamma": jnp.ones((C,), jnp.float32),
         "ln_beta": jnp.zeros((C,), jnp.float32)}
    for i in (1, 2, 3):
        key, k1, k2, k3, k4, k5, k6, k7, k8, k9 = jax.random.split(key, 10)
        p[f"fc{i}"] = {
            "base_w": 0.1 * jax.random.normal(k1, (C, C), jnp.float32),
            "spline_w": 0.1 * jax.random.normal(k2, (C, C, N_COEFF), jnp.float32),
            "spline_scaler": 1.0 + 0.1 * jax.random.normal(k3, (C, C), jnp.float32),
        }
        p[f"dw{i}"] = {
            "w": math.sqrt(2.0 / 9.0) * jax.random.normal(k4, (9, C), jnp.float32),
            "b": 0.05 * jax.random.normal(k5, (C,), jnp.float32),
            "gamma": 1.0 + 0.1 * jax.random.normal(k6, (C,), jnp.float32),   # BN eval-mode params
            "beta": 0.1 * jax.random.normal(k7, (C,), jnp.float32),
            "mean": 0.1 * jax.random.normal(k8, (C,), jnp.float32),
            "var": 0.5 + jax.random.uniform(k9, (C,), jnp.float32),
        }
    return p


# =============================== main ===========================================
if __name__ == "__main__":
    B, C, H, W = 2, 128, 8, 8          # C multiple of 128 -> lane-dense loads/stores
    N = H * W
    key = jax.random.PRNGKey(0)
    kx, kp = jax.random.split(key)
    x = jax.random.normal(kx, (B, N, C), jnp.float32)
    params = init_params(kp, C)
    fused = preprocess_params(params)   # one-time weight fusion, off the forward path

    fwd = jax.jit(kan_block_forward, static_argnums=(1, 2))
    out = jax.block_until_ready(fwd(x, H, W, fused))

    assert out.shape == (B, N, C)
    assert bool(jnp.all(jnp.isfinite(out))), "non-finite output"

    # Parity check against a pure-JAX reference using the same MXU operand precision as
    # the kernels (bf16 by default). Set MXU_DTYPE = jnp.float32 above for strict f32 parity.
    ref = kan_block_ref(x, H, W, params, matmul_dtype=MXU_DTYPE)
    err = float(jnp.max(jnp.abs(out - ref)))
    assert err < 2e-2, f"mismatch vs reference: max abs err {err}"

    print("KERNEL_OK")
</pallas_src>

<mosaic_0001>
module attributes {stable_mosaic.version = 11 : i64} {
  func.func @dwconv_bn_relu_kernel(%arg0: i32, %arg1: memref<1x8x8x128xf32, #tpu.memory_space<vmem>>, %arg2: memref<9x128xf32, #tpu.memory_space<vmem>>, %arg3: memref<1x1x1x128xf32, #tpu.memory_space<vmem>>, %arg4: memref<1x8x8x128xf32, #tpu.memory_space<vmem>>, %arg5: memref<1x8x8x128xf32, #tpu.memory_space<vmem>>, %arg6: memref<1x8x8x128xf32, #tpu.memory_space<vmem>>) attributes {dimension_semantics = [#tpu.dimension_semantics<parallel>], iteration_bounds = array<i64: 2>, scalar_prefetch = 0 : i64, scratch_operands = 1 : i64, tpu.core_type = #tpu.core_type<tc>, window_params = [{transform_indices = @transform_0, window_bounds = array<i64: 1, 8, 8, 128>}, {pipeline_mode = #tpu.pipeline_mode<synchronous>, transform_indices = @transform_1, window_bounds = array<i64: 9, 128>}, {pipeline_mode = #tpu.pipeline_mode<synchronous>, transform_indices = @transform_2, window_bounds = array<i64: 1, 1, 1, 128>}, {transform_indices = @transform_3, window_bounds = array<i64: 1, 8, 8, 128>}, {transform_indices = @transform_4, window_bounds = array<i64: 1, 8, 8, 128>}]} {
    %c0 = arith.constant 0 : index
    %c0_0 = arith.constant 0 : index
    %c0_1 = arith.constant 0 : index
    %c0_2 = arith.constant 0 : index
    %0 = vector.load %arg1[%c0, %c0_0, %c0_1, %c0_2] : memref<1x8x8x128xf32, #tpu.memory_space<vmem>>, vector<1x8x8x128xf32>
    %cst = arith.constant 0.000000e+00 : f32
    %1 = vector.broadcast %cst : f32 to vector<1x8x1x128xf32>
    %2 = vector.extract_strided_slice %0 {offsets = [0, 0, 0, 0], sizes = [1, 8, 7, 128], strides = [1, 1, 1, 1]} : vector<1x8x8x128xf32> to vector<1x8x7x128xf32>
    %3 = tpu.concatenate %1, %2 in 2 : vector<1x8x1x128xf32>, vector<1x8x7x128xf32> -> vector<1x8x8x128xf32>
    %4 = vector.extract_strided_slice %0 {offsets = [0, 0, 1, 0], sizes = [1, 8, 7, 128], strides = [1, 1, 1, 1]} : vector<1x8x8x128xf32> to vector<1x8x7x128xf32>
    %5 = tpu.concatenate %4, %1 in 2 : vector<1x8x7x128xf32>, vector<1x8x1x128xf32> -> vector<1x8x8x128xf32>
    %c3 = arith.constant 3 : index
    %c0_3 = arith.constant 0 : index
    %6 = vector.load %arg2[%c3, %c0_3] : memref<9x128xf32, #tpu.memory_space<vmem>>, vector<1x128xf32>
    %7 = vector.shape_cast %6 : vector<1x128xf32> to vector<1x1x1x128xf32>
    %8 = vector.broadcast %7 : vector<1x1x1x128xf32> to vector<1x8x8x128xf32>
    %9 = arith.mulf %3, %8 : vector<1x8x8x128xf32>
    %c4 = arith.constant 4 : index
    %c0_4 = arith.constant 0 : index
    %10 = vector.load %arg2[%c4, %c0_4] : memref<9x128xf32, #tpu.memory_space<vmem>>, vector<1x128xf32>
    %11 = vector.shape_cast %10 : vector<1x128xf32> to vector<1x1x1x128xf32>
    %12 = vector.broadcast %11 : vector<1x1x1x128xf32> to vector<1x8x8x128xf32>
    %13 = arith.mulf %0, %12 : vector<1x8x8x128xf32>
    %14 = arith.addf %9, %13 : vector<1x8x8x128xf32>
    %c5 = arith.constant 5 : index
    %c0_5 = arith.constant 0 : index
    %15 = vector.load %arg2[%c5, %c0_5] : memref<9x128xf32, #tpu.memory_space<vmem>>, vector<1x128xf32>
    %16 = vector.shape_cast %15 : vector<1x128xf32> to vector<1x1x1x128xf32>
    %17 = vector.broadcast %16 : vector<1x1x1x128xf32> to vector<1x8x8x128xf32>
    %18 = arith.mulf %5, %17 : vector<1x8x8x128xf32>
    %19 = arith.addf %14, %18 : vector<1x8x8x128xf32>
    %c0_6 = arith.constant 0 : index
    %c0_7 = arith.constant 0 : index
    %c0_8 = arith.constant 0 : index
    %c0_9 = arith.constant 0 : index
    %20 = vector.load %arg6[%c0_6, %c0_7, %c0_8, %c0_9] : memref<1x8x8x128xf32, #tpu.memory_space<vmem>>, vector<1x8x8x128xf32>
    tpu.vector_store %arg6[%c0_6, %c0_7, %c0_8, %c0_9], %19 {strides = array<i32>} : memref<1x8x8x128xf32, #tpu.memory_space<vmem>>, vector<1x8x8x128xf32>,
    %c0_10 = arith.constant 0 : index
    %c0_11 = arith.constant 0 : index
    %21 = vector.load %arg2[%c0_10, %c0_11] : memref<9x128xf32, #tpu.memory_space<vmem>>, vector<1x128xf32>
    %22 = vector.shape_cast %21 : vector<1x128xf32> to vector<1x1x1x128xf32>
    %23 = vector.broadcast %22 : vector<1x1x1x128xf32> to vector<1x8x8x128xf32>
    %24 = arith.mulf %3, %23 : vector<1x8x8x128xf32>
    %c1 = arith.constant 1 : index
    %c0_12 = arith.constant 0 : index
    %25 = vector.load %arg2[%c1, %c0_12] : memref<9x128xf32, #tpu.memory_space<vmem>>, vector<1x128xf32>
    %26 = vector.shape_cast %25 : vector<1x128xf32> to vector<1x1x1x128xf32>
    %27 = vector.broadcast %26 : vector<1x1x1x128xf32> to vector<1x8x8x128xf32>
    %28 = arith.mulf %0, %27 : vector<1x8x8x128xf32>
    %29 = arith.addf %24, %28 : vector<1x8x8x128xf32>
    %c2 = arith.constant 2 : index
    %c0_13 = arith.constant 0 : index
    %30 = vector.load %arg2[%c2, %c0_13] : memref<9x128xf32, #tpu.memory_space<vmem>>, vector<1x128xf32>
    %31 = vector.shape_cast %30 : vector<1x128xf32> to vector<1x1x1x128xf32>
    %32 = vector.broadcast %31 : vector<1x1x1x128xf32> to vector<1x8x8x128xf32>
    %33 = arith.mulf %5, %32 : vector<1x8x8x128xf32>
    %34 = arith.addf %29, %33 : vector<1x8x8x128xf32>
    %c0_14 = arith.constant 0 : index
    %c1_15 = arith.constant 1 : index
    %c0_16 = arith.constant 0 : index
    %c0_17 = arith.constant 0 : index
    %35 = vector.load %arg6[%c0_14, %c1_15, %c0_16, %c0_17] : memref<1x8x8x128xf32, #tpu.memory_space<vmem>>, vector<1x7x8x128xf32>
    %36 = vector.extract_strided_slice %34 {offsets = [0, 0, 0, 0], sizes = [1, 7, 8, 128], strides = [1, 1, 1, 1]} : vector<1x8x8x128xf32> to vector<1x7x8x128xf32>
    %37 = arith.addf %35, %36 : vector<1x7x8x128xf32>
    %c0_18 = arith.constant 0 : index
    %c1_19 = arith.constant 1 : index
    %c0_20 = arith.constant 0 : index
    %c0_21 = arith.constant 0 : index
    %38 = vector.load %arg6[%c0_18, %c1_19, %c0_20, %c0_21] : memref<1x8x8x128xf32, #tpu.memory_space<vmem>>, vector<1x7x8x128xf32>
    tpu.vector_store %arg6[%c0_18, %c1_19, %c0_20, %c0_21], %37 {strides = array<i32>} : memref<1x8x8x128xf32, #tpu.memory_space<vmem>>, vector<1x7x8x128xf32>,
    %c6 = arith.constant 6 : index
    %c0_22 = arith.constant 0 : index
    %39 = vector.load %arg2[%c6, %c0_22] : memref<9x128xf32, #tpu.memory_space<vmem>>, vector<1x128xf32>
    %40 = vector.shape_cast %39 : vector<1x128xf32> to vector<1x1x1x128xf32>
    %41 = vector.broadcast %40 : vector<1x1x1x128xf32> to vector<1x8x8x128xf32>
    %42 = arith.mulf %3, %41 : vector<1x8x8x128xf32>
    %c7 = arith.constant 7 : index
    %c0_23 = arith.constant 0 : index
    %43 = vector.load %arg2[%c7, %c0_23] : memref<9x128xf32, #tpu.memory_space<vmem>>, vector<1x128xf32>
    %44 = vector.shape_cast %43 : vector<1x128xf32> to vector<1x1x1x128xf32>
    %45 = vector.broadcast %44 : vector<1x1x1x128xf32> to vector<1x8x8x128xf32>
    %46 = arith.mulf %0, %45 : vector<1x8x8x128xf32>
    %47 = arith.addf %42, %46 : vector<1x8x8x128xf32>
    %c8 = arith.constant 8 : index
    %c0_24 = arith.constant 0 : index
    %48 = vector.load %arg2[%c8, %c0_24] : memref<9x128xf32, #tpu.memory_space<vmem>>, vector<1x128xf32>
    %49 = vector.shape_cast %48 : vector<1x128xf32> to vector<1x1x1x128xf32>
    %50 = vector.broadcast %49 : vector<1x1x1x128xf32> to vector<1x8x8x128xf32>
    %51 = arith.mulf %5, %50 : vector<1x8x8x128xf32>
    %52 = arith.addf %47, %51 : vector<1x8x8x128xf32>
    %c0_25 = arith.constant 0 : index
    %c0_26 = arith.constant 0 : index
    %c0_27 = arith.constant 0 : index
    %c0_28 = arith.constant 0 : index
    %53 = vector.load %arg6[%c0_25, %c0_26, %c0_27, %c0_28] : memref<1x8x8x128xf32, #tpu.memory_space<vmem>>, vector<1x7x8x128xf32>
    %54 = vector.extract_strided_slice %52 {offsets = [0, 1, 0, 0], sizes = [1, 7, 8, 128], strides = [1, 1, 1, 1]} : vector<1x8x8x128xf32> to vector<1x7x8x128xf32>
    %55 = arith.addf %53, %54 : vector<1x7x8x128xf32>
    %c0_29 = arith.constant 0 : index
    %c0_30 = arith.constant 0 : index
    %c0_31 = arith.constant 0 : index
    %c0_32 = arith.constant 0 : index
    %56 = vector.load %arg6[%c0_29, %c0_30, %c0_31, %c0_32] : memref<1x8x8x128xf32, #tpu.memory_space<vmem>>, vector<1x7x8x128xf32>
    tpu.vector_store %arg6[%c0_29, %c0_30, %c0_31, %c0_32], %55 {strides = array<i32>} : memref<1x8x8x128xf32, #tpu.memory_space<vmem>>, vector<1x7x8x128xf32>,
    %c0_33 = arith.constant 0 : index
    %c0_34 = arith.constant 0 : index
    %c0_35 = arith.constant 0 : index
    %c0_36 = arith.constant 0 : index
    %57 = vector.load %arg6[%c0_33, %c0_34, %c0_35, %c0_36] : memref<1x8x8x128xf32, #tpu.memory_space<vmem>>, vector<1x8x8x128xf32>
    %c0_37 = arith.constant 0 : index
    %c0_38 = arith.constant 0 : index
    %c0_39 = arith.constant 0 : index
    %c0_40 = arith.constant 0 : index
    %58 = vector.load %arg3[%c0_37, %c0_38, %c0_39, %c0_40] : memref<1x1x1x128xf32, #tpu.memory_space<vmem>>, vector<1x1x1x128xf32>
    %59 = vector.broadcast %58 : vector<1x1x1x128xf32> to vector<1x8x8x128xf32>
    %60 = arith.addf %57, %59 : vector<1x8x8x128xf32>
    %cst_41 = arith.constant 0.000000e+00 : f32
    %61 = vector.broadcast %cst_41 : f32 to vector<1x8x8x128xf32>
    %62 = arith.maximumf %60, %61 : vector<1x8x8x128xf32>
    %c0_42 = arith.constant 0 : index
    %c0_43 = arith.constant 0 : index
    %c0_44 = arith.constant 0 : index
    %c0_45 = arith.constant 0 : index
    %63 = vector.load %arg4[%c0_42, %c0_43, %c0_44, %c0_45] : memref<1x8x8x128xf32, #tpu.memory_space<vmem>>, vector<1x8x8x128xf32>
    %64 = arith.addf %62, %63 : vector<1x8x8x128xf32>
    %c0_46 = arith.constant 0 : index
    %c0_47 = arith.constant 0 : index
    %c0_48 = arith.constant 0 : index
    %c0_49 = arith.constant 0 : index
    %65 = vector.load %arg5[%c0_46, %c0_47, %c0_48, %c0_49] : memref<1x8x8x128xf32, #tpu.memory_space<vmem>>, vector<1x8x8x128xf32>
    tpu.vector_store %arg5[%c0_46, %c0_47, %c0_48, %c0_49], %64 {strides = array<i32>} : memref<1x8x8x128xf32, #tpu.memory_space<vmem>>, vector<1x8x8x128xf32>,
    return
  }
  func.func @transform_0(%arg0: i32) -> (i32, i32, i32, i32) {
    %c0_i32 = arith.constant 0 : i32
    %c0_i32_0 = arith.constant 0 : i32
    %c0_i32_1 = arith.constant 0 : i32
    %c0_i32_2 = arith.constant 0 : i32
    return %arg0, %c0_i32, %c0_i32_0, %c0_i32_1 : i32, i32, i32, i32
  }
  func.func @transform_1(%arg0: i32) -> (i32, i32) {
    %c0_i32 = arith.constant 0 : i32
    %c0_i32_0 = arith.constant 0 : i32
    %c0_i32_1 = arith.constant 0 : i32
    return %c0_i32, %c0_i32_0 : i32, i32
  }
  func.func @transform_2(%arg0: i32) -> (i32, i32, i32, i32) {
    %c0_i32 = arith.constant 0 : i32
    %c0_i32_0 = arith.constant 0 : i32
    %c0_i32_1 = arith.constant 0 : i32
    %c0_i32_2 = arith.constant 0 : i32
    %c0_i32_3 = arith.constant 0 : i32
    return %c0_i32, %c0_i32_0, %c0_i32_1, %c0_i32_2 : i32, i32, i32, i32
  }
  func.func @transform_3(%arg0: i32) -> (i32, i32, i32, i32) {
    %c0_i32 = arith.constant 0 : i32
    %c0_i32_0 = arith.constant 0 : i32
    %c0_i32_1 = arith.constant 0 : i32
    %c0_i32_2 = arith.constant 0 : i32
    return %arg0, %c0_i32, %c0_i32_0, %c0_i32_1 : i32, i32, i32, i32
  }
  func.func @transform_4(%arg0: i32) -> (i32, i32, i32, i32) {
    %c0_i32 = arith.constant 0 : i32
    %c0_i32_0 = arith.constant 0 : i32
    %c0_i32_1 = arith.constant 0 : i32
    %c0_i32_2 = arith.constant 0 : i32
    return %arg0, %c0_i32, %c0_i32_0, %c0_i32_1 : i32, i32, i32, i32
  }
}

module attributes {stable_mosaic.version = 11 : i64} {
  func.func @dwconv_bn_relu_kernel(%arg0: i32, %arg1: memref<1x8x8x128xf32, #tpu.memory_space<vmem>>, %arg2: memref<9x128xf32, #tpu.memory_space<vmem>>, %arg3: memref<1x1x1x128xf32, #tpu.memory_space<vmem>>, %arg4: memref<1x8x8x128xf32, #tpu.memory_space<vmem>>, %arg5: memref<1x8x8x128xf32, #tpu.memory_space<vmem>>) attributes {dimension_semantics = [#tpu.dimension_semantics<parallel>], iteration_bounds = array<i64: 2>, scalar_prefetch = 0 : i64, scratch_operands = 1 : i64, tpu.core_type = #tpu.core_type<tc>, window_params = [{transform_indices = @transform_0, window_bounds = array<i64: 1, 8, 8, 128>}, {pipeline_mode = #tpu.pipeline_mode<synchronous>, transform_indices = @transform_1, window_bounds = array<i64: 9, 128>}, {pipeline_mode = #tpu.pipeline_mode<synchronous>, transform_indices = @transform_2, window_bounds = array<i64: 1, 1, 1, 128>}, {transform_indices = @transform_3, window_bounds = array<i64: 1, 8, 8, 128>}]} {
    %c0 = arith.constant 0 : index
    %c0_0 = arith.constant 0 : index
    %c0_1 = arith.constant 0 : index
    %c0_2 = arith.constant 0 : index
    %0 = vector.load %arg1[%c0, %c0_0, %c0_1, %c0_2] : memref<1x8x8x128xf32, #tpu.memory_space<vmem>>, vector<1x8x8x128xf32>
    %cst = arith.constant 0.000000e+00 : f32
    %1 = vector.broadcast %cst : f32 to vector<1x8x1x128xf32>
    %2 = vector.extract_strided_slice %0 {offsets = [0, 0, 0, 0], sizes = [1, 8, 7, 128], strides = [1, 1, 1, 1]} : vector<1x8x8x128xf32> to vector<1x8x7x128xf32>
    %3 = tpu.concatenate %1, %2 in 2 : vector<1x8x1x128xf32>, vector<1x8x7x128xf32> -> vector<1x8x8x128xf32>
    %4 = vector.extract_strided_slice %0 {offsets = [0, 0, 1, 0], sizes = [1, 8, 7, 128], strides = [1, 1, 1, 1]} : vector<1x8x8x128xf32> to vector<1x8x7x128xf32>
    %5 = tpu.concatenate %4, %1 in 2 : vector<1x8x7x128xf32>, vector<1x8x1x128xf32> -> vector<1x8x8x128xf32>
    %c3 = arith.constant 3 : index
    %c0_3 = arith.constant 0 : index
    %6 = vector.load %arg2[%c3, %c0_3] : memref<9x128xf32, #tpu.memory_space<vmem>>, vector<1x128xf32>
    %7 = vector.shape_cast %6 : vector<1x128xf32> to vector<1x1x1x128xf32>
    %8 = vector.broadcast %7 : vector<1x1x1x128xf32> to vector<1x8x8x128xf32>
    %9 = arith.mulf %3, %8 : vector<1x8x8x128xf32>
    %c4 = arith.constant 4 : index
    %c0_4 = arith.constant 0 : index
    %10 = vector.load %arg2[%c4, %c0_4] : memref<9x128xf32, #tpu.memory_space<vmem>>, vector<1x128xf32>
    %11 = vector.shape_cast %10 : vector<1x128xf32> to vector<1x1x1x128xf32>
    %12 = vector.broadcast %11 : vector<1x1x1x128xf32> to vector<1x8x8x128xf32>
    %13 = arith.mulf %0, %12 : vector<1x8x8x128xf32>
    %14 = arith.addf %9, %13 : vector<1x8x8x128xf32>
    %c5 = arith.constant 5 : index
    %c0_5 = arith.constant 0 : index
    %15 = vector.load %arg2[%c5, %c0_5] : memref<9x128xf32, #tpu.memory_space<vmem>>, vector<1x128xf32>
    %16 = vector.shape_cast %15 : vector<1x128xf32> to vector<1x1x1x128xf32>
    %17 = vector.broadcast %16 : vector<1x1x1x128xf32> to vector<1x8x8x128xf32>
    %18 = arith.mulf %5, %17 : vector<1x8x8x128xf32>
    %19 = arith.addf %14, %18 : vector<1x8x8x128xf32>
    %c0_6 = arith.constant 0 : index
    %c0_7 = arith.constant 0 : index
    %c0_8 = arith.constant 0 : index
    %c0_9 = arith.constant 0 : index
    %20 = vector.load %arg5[%c0_6, %c0_7, %c0_8, %c0_9] : memref<1x8x8x128xf32, #tpu.memory_space<vmem>>, vector<1x8x8x128xf32>
    tpu.vector_store %arg5[%c0_6, %c0_7, %c0_8, %c0_9], %19 {strides = array<i32>} : memref<1x8x8x128xf32, #tpu.memory_space<vmem>>, vector<1x8x8x128xf32>,
    %c0_10 = arith.constant 0 : index
    %c0_11 = arith.constant 0 : index
    %21 = vector.load %arg2[%c0_10, %c0_11] : memref<9x128xf32, #tpu.memory_space<vmem>>, vector<1x128xf32>
    %22 = vector.shape_cast %21 : vector<1x128xf32> to vector<1x1x1x128xf32>
    %23 = vector.broadcast %22 : vector<1x1x1x128xf32> to vector<1x8x8x128xf32>
    %24 = arith.mulf %3, %23 : vector<1x8x8x128xf32>
    %c1 = arith.constant 1 : index
    %c0_12 = arith.constant 0 : index
    %25 = vector.load %arg2[%c1, %c0_12] : memref<9x128xf32, #tpu.memory_space<vmem>>, vector<1x128xf32>
    %26 = vector.shape_cast %25 : vector<1x128xf32> to vector<1x1x1x128xf32>
    %27 = vector.broadcast %26 : vector<1x1x1x128xf32> to vector<1x8x8x128xf32>
    %28 = arith.mulf %0, %27 : vector<1x8x8x128xf32>
    %29 = arith.addf %24, %28 : vector<1x8x8x128xf32>
    %c2 = arith.constant 2 : index
    %c0_13 = arith.constant 0 : index
    %30 = vector.load %arg2[%c2, %c0_13] : memref<9x128xf32, #tpu.memory_space<vmem>>, vector<1x128xf32>
    %31 = vector.shape_cast %30 : vector<1x128xf32> to vector<1x1x1x128xf32>
    %32 = vector.broadcast %31 : vector<1x1x1x128xf32> to vector<1x8x8x128xf32>
    %33 = arith.mulf %5, %32 : vector<1x8x8x128xf32>
    %34 = arith.addf %29, %33 : vector<1x8x8x128xf32>
    %c0_14 = arith.constant 0 : index
    %c1_15 = arith.constant 1 : index
    %c0_16 = arith.constant 0 : index
    %c0_17 = arith.constant 0 : index
    %35 = vector.load %arg5[%c0_14, %c1_15, %c0_16, %c0_17] : memref<1x8x8x128xf32, #tpu.memory_space<vmem>>, vector<1x7x8x128xf32>
    %36 = vector.extract_strided_slice %34 {offsets = [0, 0, 0, 0], sizes = [1, 7, 8, 128], strides = [1, 1, 1, 1]} : vector<1x8x8x128xf32> to vector<1x7x8x128xf32>
    %37 = arith.addf %35, %36 : vector<1x7x8x128xf32>
    %c0_18 = arith.constant 0 : index
    %c1_19 = arith.constant 1 : index
    %c0_20 = arith.constant 0 : index
    %c0_21 = arith.constant 0 : index
    %38 = vector.load %arg5[%c0_18, %c1_19, %c0_20, %c0_21] : memref<1x8x8x128xf32, #tpu.memory_space<vmem>>, vector<1x7x8x128xf32>
    tpu.vector_store %arg5[%c0_18, %c1_19, %c0_20, %c0_21], %37 {strides = array<i32>} : memref<1x8x8x128xf32, #tpu.memory_space<vmem>>, vector<1x7x8x128xf32>,
    %c6 = arith.constant 6 : index
    %c0_22 = arith.constant 0 : index
    %39 = vector.load %arg2[%c6, %c0_22] : memref<9x128xf32, #tpu.memory_space<vmem>>, vector<1x128xf32>
    %40 = vector.shape_cast %39 : vector<1x128xf32> to vector<1x1x1x128xf32>
    %41 = vector.broadcast %40 : vector<1x1x1x128xf32> to vector<1x8x8x128xf32>
    %42 = arith.mulf %3, %41 : vector<1x8x8x128xf32>
    %c7 = arith.constant 7 : index
    %c0_23 = arith.constant 0 : index
    %43 = vector.load %arg2[%c7, %c0_23] : memref<9x128xf32, #tpu.memory_space<vmem>>, vector<1x128xf32>
    %44 = vector.shape_cast %43 : vector<1x128xf32> to vector<1x1x1x128xf32>
    %45 = vector.broadcast %44 : vector<1x1x1x128xf32> to vector<1x8x8x128xf32>
    %46 = arith.mulf %0, %45 : vector<1x8x8x128xf32>
    %47 = arith.addf %42, %46 : vector<1x8x8x128xf32>
    %c8 = arith.constant 8 : index
    %c0_24 = arith.constant 0 : index
    %48 = vector.load %arg2[%c8, %c0_24] : memref<9x128xf32, #tpu.memory_space<vmem>>, vector<1x128xf32>
    %49 = vector.shape_cast %48 : vector<1x128xf32> to vector<1x1x1x128xf32>
    %50 = vector.broadcast %49 : vector<1x1x1x128xf32> to vector<1x8x8x128xf32>
    %51 = arith.mulf %5, %50 : vector<1x8x8x128xf32>
    %52 = arith.addf %47, %51 : vector<1x8x8x128xf32>
    %c0_25 = arith.constant 0 : index
    %c0_26 = arith.constant 0 : index
    %c0_27 = arith.constant 0 : index
    %c0_28 = arith.constant 0 : index
    %53 = vector.load %arg5[%c0_25, %c0_26, %c0_27, %c0_28] : memref<1x8x8x128xf32, #tpu.memory_space<vmem>>, vector<1x7x8x128xf32>
    %54 = vector.extract_strided_slice %52 {offsets = [0, 1, 0, 0], sizes = [1, 7, 8, 128], strides = [1, 1, 1, 1]} : vector<1x8x8x128xf32> to vector<1x7x8x128xf32>
    %55 = arith.addf %53, %54 : vector<1x7x8x128xf32>
    %c0_29 = arith.constant 0 : index
    %c0_30 = arith.constant 0 : index
    %c0_31 = arith.constant 0 : index
    %c0_32 = arith.constant 0 : index
    %56 = vector.load %arg5[%c0_29, %c0_30, %c0_31, %c0_32] : memref<1x8x8x128xf32, #tpu.memory_space<vmem>>, vector<1x7x8x128xf32>
    tpu.vector_store %arg5[%c0_29, %c0_30, %c0_31, %c0_32], %55 {strides = array<i32>} : memref<1x8x8x128xf32, #tpu.memory_space<vmem>>, vector<1x7x8x128xf32>,
    %c0_33 = arith.constant 0 : index
    %c0_34 = arith.constant 0 : index
    %c0_35 = arith.constant 0 : index
    %c0_36 = arith.constant 0 : index
    %57 = vector.load %arg5[%c0_33, %c0_34, %c0_35, %c0_36] : memref<1x8x8x128xf32, #tpu.memory_space<vmem>>, vector<1x8x8x128xf32>
    %c0_37 = arith.constant 0 : index
    %c0_38 = arith.constant 0 : index
    %c0_39 = arith.constant 0 : index
    %c0_40 = arith.constant 0 : index
    %58 = vector.load %arg3[%c0_37, %c0_38, %c0_39, %c0_40] : memref<1x1x1x128xf32, #tpu.memory_space<vmem>>, vector<1x1x1x128xf32>
    %59 = vector.broadcast %58 : vector<1x1x1x128xf32> to vector<1x8x8x128xf32>
    %60 = arith.addf %57, %59 : vector<1x8x8x128xf32>
    %cst_41 = arith.constant 0.000000e+00 : f32
    %61 = vector.broadcast %cst_41 : f32 to vector<1x8x8x128xf32>
    %62 = arith.maximumf %60, %61 : vector<1x8x8x128xf32>
    %c0_42 = arith.constant 0 : index
    %c0_43 = arith.constant 0 : index
    %c0_44 = arith.constant 0 : index
    %c0_45 = arith.constant 0 : index
    %63 = vector.load %arg4[%c0_42, %c0_43, %c0_44, %c0_45] : memref<1x8x8x128xf32, #tpu.memory_space<vmem>>, vector<1x8x8x128xf32>
    tpu.vector_store %arg4[%c0_42, %c0_43, %c0_44, %c0_45], %62 {strides = array<i32>} : memref<1x8x8x128xf32, #tpu.memory_space<vmem>>, vector<1x8x8x128xf32>,
    return
  }
  func.func @transform_0(%arg0: i32) -> (i32, i32, i32, i32) {
    %c0_i32 = arith.constant 0 : i32
    %c0_i32_0 = arith.constant 0 : i32
    %c0_i32_1 = arith.constant 0 : i32
    %c0_i32_2 = arith.constant 0 : i32
    return %arg0, %c0_i32, %c0_i32_0, %c0_i32_1 : i32, i32, i32, i32
  }
  func.func @transform_1(%arg0: i32) -> (i32, i32) {
    %c0_i32 = arith.constant 0 : i32
    %c0_i32_0 = arith.constant 0 : i32
    %c0_i32_1 = arith.constant 0 : i32
    return %c0_i32, %c0_i32_0 : i32, i32
  }
  func.func @transform_2(%arg0: i32) -> (i32, i32, i32, i32) {
    %c0_i32 = arith.constant 0 : i32
    %c0_i32_0 = arith.constant 0 : i32
    %c0_i32_1 = arith.constant 0 : i32
    %c0_i32_2 = arith.constant 0 : i32
    %c0_i32_3 = arith.constant 0 : i32
    return %c0_i32, %c0_i32_0, %c0_i32_1, %c0_i32_2 : i32, i32, i32, i32
  }
  func.func @transform_3(%arg0: i32) -> (i32, i32, i32, i32) {
    %c0_i32 = arith.constant 0 : i32
    %c0_i32_0 = arith.constant 0 : i32
    %c0_i32_1 = arith.constant 0 : i32
    %c0_i32_2 = arith.constant 0 : i32
    return %arg0, %c0_i32, %c0_i32_0, %c0_i32_1 : i32, i32, i32, i32
  }
}

module attributes {stable_mosaic.version = 11 : i64} {
  func.func @kan_linear_kernel(%arg0: i32, %arg1: memref<64x128xf32, #tpu.memory_space<vmem>>, %arg2: memref<1152x128xbf16, #tpu.memory_space<vmem>>, %arg3: memref<64x128xf32, #tpu.memory_space<vmem>>) attributes {dimension_semantics = [#tpu.dimension_semantics<parallel>], iteration_bounds = array<i64: 2>, scalar_prefetch = 0 : i64, scratch_operands = 0 : i64, tpu.core_type = #tpu.core_type<tc>, window_params = [{transform_indices = @transform_0, window_bounds = array<i64: 64, 128>}, {pipeline_mode = #tpu.pipeline_mode<synchronous>, transform_indices = @transform_1, window_bounds = array<i64: 1152, 128>}, {transform_indices = @transform_2, window_bounds = array<i64: 64, 128>}]} {
    %c0 = arith.constant 0 : index
    %c0_0 = arith.constant 0 : index
    %0 = vector.load %arg1[%c0, %c0_0] : memref<64x128xf32, #tpu.memory_space<vmem>>, vector<64x128xf32>
    %1 = arith.negf %0 : vector<64x128xf32>
    %2 = math.exp %1 : vector<64x128xf32>
    %cst = arith.constant 1.000000e+00 : f32
    %3 = vector.broadcast %cst : f32 to vector<64x128xf32>
    %4 = arith.addf %3, %2 : vector<64x128xf32>
    %5 = arith.divf %3, %4 : vector<64x128xf32>
    %6 = arith.mulf %0, %5 : vector<64x128xf32>
    %7 = arith.truncf %6 : vector<64x128xf32> to vector<64x128xbf16>
    %cst_1 = arith.constant -2.200000e+00 : f32
    %8 = vector.broadcast %cst_1 : f32 to vector<64x128xf32>
    %9 = arith.cmpf oge, %0, %8 : vector<64x128xf32>
    %10 = arith.extui %9 : vector<64x128xi1> to vector<64x128xi32>
    %11 = arith.sitofp %10 : vector<64x128xi32> to vector<64x128xf32>
    %cst_2 = arith.constant -1.800000e+00 : f32
    %12 = vector.broadcast %cst_2 : f32 to vector<64x128xf32>
    %13 = arith.cmpf oge, %0, %12 : vector<64x128xf32>
    %14 = arith.extui %13 : vector<64x128xi1> to vector<64x128xi32>
    %15 = arith.sitofp %14 : vector<64x128xi32> to vector<64x128xf32>
    %cst_3 = arith.constant -1.400000e+00 : f32
    %16 = vector.broadcast %cst_3 : f32 to vector<64x128xf32>
    %17 = arith.cmpf oge, %0, %16 : vector<64x128xf32>
    %18 = arith.extui %17 : vector<64x128xi1> to vector<64x128xi32>
    %19 = arith.sitofp %18 : vector<64x128xi32> to vector<64x128xf32>
    %cst_4 = arith.constant -1.000000e+00 : f32
    %20 = vector.broadcast %cst_4 : f32 to vector<64x128xf32>
    %21 = arith.cmpf oge, %0, %20 : vector<64x128xf32>
    %22 = arith.extui %21 : vector<64x128xi1> to vector<64x128xi32>
    %23 = arith.sitofp %22 : vector<64x128xi32> to vector<64x128xf32>
    %cst_5 = arith.constant -6.000000e-01 : f32
    %24 = vector.broadcast %cst_5 : f32 to vector<64x128xf32>
    %25 = arith.cmpf oge, %0, %24 : vector<64x128xf32>
    %26 = arith.extui %25 : vector<64x128xi1> to vector<64x128xi32>
    %27 = arith.sitofp %26 : vector<64x128xi32> to vector<64x128xf32>
    %cst_6 = arith.constant -2.000000e-01 : f32
    %28 = vector.broadcast %cst_6 : f32 to vector<64x128xf32>
    %29 = arith.cmpf oge, %0, %28 : vector<64x128xf32>
    %30 = arith.extui %29 : vector<64x128xi1> to vector<64x128xi32>
    %31 = arith.sitofp %30 : vector<64x128xi32> to vector<64x128xf32>
    %cst_7 = arith.constant 2.000000e-01 : f32
    %32 = vector.broadcast %cst_7 : f32 to vector<64x128xf32>
    %33 = arith.cmpf oge, %0, %32 : vector<64x128xf32>
    %34 = arith.extui %33 : vector<64x128xi1> to vector<64x128xi32>
    %35 = arith.sitofp %34 : vector<64x128xi32> to vector<64x128xf32>
    %cst_8 = arith.constant 6.000000e-01 : f32
    %36 = vector.broadcast %cst_8 : f32 to vector<64x128xf32>
    %37 = arith.cmpf oge, %0, %36 : vector<64x128xf32>
    %38 = arith.extui %37 : vector<64x128xi1> to vector<64x128xi32>
    %39 = arith.sitofp %38 : vector<64x128xi32> to vector<64x128xf32>
    %cst_9 = arith.constant 1.000000e+00 : f32
    %40 = vector.broadcast %cst_9 : f32 to vector<64x128xf32>
    %41 = arith.cmpf oge, %0, %40 : vector<64x128xf32>
    %42 = arith.extui %41 : vector<64x128xi1> to vector<64x128xi32>
    %43 = arith.sitofp %42 : vector<64x128xi32> to vector<64x128xf32>
    %cst_10 = arith.constant 1.400000e+00 : f32
    %44 = vector.broadcast %cst_10 : f32 to vector<64x128xf32>
    %45 = arith.cmpf oge, %0, %44 : vector<64x128xf32>
    %46 = arith.extui %45 : vector<64x128xi1> to vector<64x128xi32>
    %47 = arith.sitofp %46 : vector<64x128xi32> to vector<64x128xf32>
    %cst_11 = arith.constant 1.800000e+00 : f32
    %48 = vector.broadcast %cst_11 : f32 to vector<64x128xf32>
    %49 = arith.cmpf oge, %0, %48 : vector<64x128xf32>
    %50 = arith.extui %49 : vector<64x128xi1> to vector<64x128xi32>
    %51 = arith.sitofp %50 : vector<64x128xi32> to vector<64x128xf32>
    %cst_12 = arith.constant 2.200000e+00 : f32
    %52 = vector.broadcast %cst_12 : f32 to vector<64x128xf32>
    %53 = arith.cmpf oge, %0, %52 : vector<64x128xf32>
    %54 = arith.extui %53 : vector<64x128xi1> to vector<64x128xi32>
    %55 = arith.sitofp %54 : vector<64x128xi32> to vector<64x128xf32>
    %56 = arith.subf %11, %15 : vector<64x128xf32>
    %57 = arith.subf %15, %19 : vector<64x128xf32>
    %58 = arith.subf %19, %23 : vector<64x128xf32>
    %59 = arith.subf %23, %27 : vector<64x128xf32>
    %60 = arith.subf %27, %31 : vector<64x128xf32>
    %61 = arith.subf %31, %35 : vector<64x128xf32>
    %62 = arith.subf %35, %39 : vector<64x128xf32>
    %63 = arith.subf %39, %43 : vector<64x128xf32>
    %64 = arith.subf %43, %47 : vector<64x128xf32>
    %65 = arith.subf %47, %51 : vector<64x128xf32>
    %66 = arith.subf %51, %55 : vector<64x128xf32>
    %cst_13 = arith.constant -2.200000e+00 : f32
    %67 = vector.broadcast %cst_13 : f32 to vector<64x128xf32>
    %68 = arith.subf %0, %67 : vector<64x128xf32>
    %cst_14 = arith.constant -1.800000e+00 : f32
    %69 = vector.broadcast %cst_14 : f32 to vector<64x128xf32>
    %70 = arith.subf %0, %69 : vector<64x128xf32>
    %cst_15 = arith.constant -1.400000e+00 : f32
    %71 = vector.broadcast %cst_15 : f32 to vector<64x128xf32>
    %72 = arith.subf %0, %71 : vector<64x128xf32>
    %cst_16 = arith.constant -1.000000e+00 : f32
    %73 = vector.broadcast %cst_16 : f32 to vector<64x128xf32>
    %74 = arith.subf %0, %73 : vector<64x128xf32>
    %cst_17 = arith.constant -6.000000e-01 : f32
    %75 = vector.broadcast %cst_17 : f32 to vector<64x128xf32>
    %76 = arith.subf %0, %75 : vector<64x128xf32>
    %cst_18 = arith.constant -2.000000e-01 : f32
    %77 = vector.broadcast %cst_18 : f32 to vector<64x128xf32>
    %78 = arith.subf %0, %77 : vector<64x128xf32>
    %cst_19 = arith.constant 2.000000e-01 : f32
    %79 = vector.broadcast %cst_19 : f32 to vector<64x128xf32>
    %80 = arith.subf %0, %79 : vector<64x128xf32>
    %cst_20 = arith.constant 6.000000e-01 : f32
    %81 = vector.broadcast %cst_20 : f32 to vector<64x128xf32>
    %82 = arith.subf %0, %81 : vector<64x128xf32>
    %cst_21 = arith.constant 1.000000e+00 : f32
    %83 = vector.broadcast %cst_21 : f32 to vector<64x128xf32>
    %84 = arith.subf %0, %83 : vector<64x128xf32>
    %cst_22 = arith.constant 1.400000e+00 : f32
    %85 = vector.broadcast %cst_22 : f32 to vector<64x128xf32>
    %86 = arith.subf %0, %85 : vector<64x128xf32>
    %cst_23 = arith.constant 1.800000e+00 : f32
    %87 = vector.broadcast %cst_23 : f32 to vector<64x128xf32>
    %88 = arith.subf %0, %87 : vector<64x128xf32>
    %cst_24 = arith.constant 2.200000e+00 : f32
    %89 = vector.broadcast %cst_24 : f32 to vector<64x128xf32>
    %90 = arith.subf %0, %89 : vector<64x128xf32>
    %91 = arith.mulf %68, %56 : vector<64x128xf32>
    %92 = arith.mulf %72, %57 : vector<64x128xf32>
    %93 = arith.subf %91, %92 : vector<64x128xf32>
    %cst_25 = arith.constant 2.500000e+00 : f32
    %94 = vector.broadcast %cst_25 : f32 to vector<64x128xf32>
    %95 = arith.mulf %93, %94 : vector<64x128xf32>
    %96 = arith.mulf %70, %57 : vector<64x128xf32>
    %97 = arith.mulf %74, %58 : vector<64x128xf32>
    %98 = arith.subf %96, %97 : vector<64x128xf32>
    %cst_26 = arith.constant 2.500000e+00 : f32
    %99 = vector.broadcast %cst_26 : f32 to vector<64x128xf32>
    %100 = arith.mulf %98, %99 : vector<64x128xf32>
    %101 = arith.mulf %72, %58 : vector<64x128xf32>
    %102 = arith.mulf %76, %59 : vector<64x128xf32>
    %103 = arith.subf %101, %102 : vector<64x128xf32>
    %cst_27 = arith.constant 2.500000e+00 : f32
    %104 = vector.broadcast %cst_27 : f32 to vector<64x128xf32>
    %105 = arith.mulf %103, %104 : vector<64x128xf32>
    %106 = arith.mulf %74, %59 : vector<64x128xf32>
    %107 = arith.mulf %78, %60 : vector<64x128xf32>
    %108 = arith.subf %106, %107 : vector<64x128xf32>
    %cst_28 = arith.constant 2.500000e+00 : f32
    %109 = vector.broadcast %cst_28 : f32 to vector<64x128xf32>
    %110 = arith.mulf %108, %109 : vector<64x128xf32>
    %111 = arith.mulf %76, %60 : vector<64x128xf32>
    %112 = arith.mulf %80, %61 : vector<64x128xf32>
    %113 = arith.subf %111, %112 : vector<64x128xf32>
    %cst_29 = arith.constant 2.500000e+00 : f32
    %114 = vector.broadcast %cst_29 : f32 to vector<64x128xf32>
    %115 = arith.mulf %113, %114 : vector<64x128xf32>
    %116 = arith.mulf %78, %61 : vector<64x128xf32>
    %117 = arith.mulf %82, %62 : vector<64x128xf32>
    %118 = arith.subf %116, %117 : vector<64x128xf32>
    %cst_30 = arith.constant 2.500000e+00 : f32
    %119 = vector.broadcast %cst_30 : f32 to vector<64x128xf32>
    %120 = arith.mulf %118, %119 : vector<64x128xf32>
    %121 = arith.mulf %80, %62 : vector<64x128xf32>
    %122 = arith.mulf %84, %63 : vector<64x128xf32>
    %123 = arith.subf %121, %122 : vector<64x128xf32>
    %cst_31 = arith.constant 2.500000e+00 : f32
    %124 = vector.broadcast %cst_31 : f32 to vector<64x128xf32>
    %125 = arith.mulf %123, %124 : vector<64x128xf32>
    %126 = arith.mulf %82, %63 : vector<64x128xf32>
    %127 = arith.mulf %86, %64 : vector<64x128xf32>
    %128 = arith.subf %126, %127 : vector<64x128xf32>
    %cst_32 = arith.constant 2.500000e+00 : f32
    %129 = vector.broadcast %cst_32 : f32 to vector<64x128xf32>
    %130 = arith.mulf %128, %129 : vector<64x128xf32>
    %131 = arith.mulf %84, %64 : vector<64x128xf32>
    %132 = arith.mulf %88, %65 : vector<64x128xf32>
    %133 = arith.subf %131, %132 : vector<64x128xf32>
    %cst_33 = arith.constant 2.500000e+00 : f32
    %134 = vector.broadcast %cst_33 : f32 to vector<64x128xf32>
    %135 = arith.mulf %133, %134 : vector<64x128xf32>
    %136 = arith.mulf %86, %65 : vector<64x128xf32>
    %137 = arith.mulf %90, %66 : vector<64x128xf32>
    %138 = arith.subf %136, %137 : vector<64x128xf32>
    %cst_34 = arith.constant 2.500000e+00 : f32
    %139 = vector.broadcast %cst_34 : f32 to vector<64x128xf32>
    %140 = arith.mulf %138, %139 : vector<64x128xf32>
    %141 = arith.mulf %68, %95 : vector<64x128xf32>
    %142 = arith.mulf %74, %100 : vector<64x128xf32>
    %143 = arith.subf %141, %142 : vector<64x128xf32>
    %cst_35 = arith.constant 1.250000e+00 : f32
    %144 = vector.broadcast %cst_35 : f32 to vector<64x128xf32>
    %145 = arith.mulf %143, %144 : vector<64x128xf32>
    %146 = arith.mulf %70, %100 : vector<64x128xf32>
    %147 = arith.mulf %76, %105 : vector<64x128xf32>
    %148 = arith.subf %146, %147 : vector<64x128xf32>
    %cst_36 = arith.constant 1.250000e+00 : f32
    %149 = vector.broadcast %cst_36 : f32 to vector<64x128xf32>
    %150 = arith.mulf %148, %149 : vector<64x128xf32>
    %151 = arith.mulf %72, %105 : vector<64x128xf32>
    %152 = arith.mulf %78, %110 : vector<64x128xf32>
    %153 = arith.subf %151, %152 : vector<64x128xf32>
    %cst_37 = arith.constant 1.250000e+00 : f32
    %154 = vector.broadcast %cst_37 : f32 to vector<64x128xf32>
    %155 = arith.mulf %153, %154 : vector<64x128xf32>
    %156 = arith.mulf %74, %110 : vector<64x128xf32>
    %157 = arith.mulf %80, %115 : vector<64x128xf32>
    %158 = arith.subf %156, %157 : vector<64x128xf32>
    %cst_38 = arith.constant 1.250000e+00 : f32
    %159 = vector.broadcast %cst_38 : f32 to vector<64x128xf32>
    %160 = arith.mulf %158, %159 : vector<64x128xf32>
    %161 = arith.mulf %76, %115 : vector<64x128xf32>
    %162 = arith.mulf %82, %120 : vector<64x128xf32>
    %163 = arith.subf %161, %162 : vector<64x128xf32>
    %cst_39 = arith.constant 1.250000e+00 : f32
    %164 = vector.broadcast %cst_39 : f32 to vector<64x128xf32>
    %165 = arith.mulf %163, %164 : vector<64x128xf32>
    %166 = arith.mulf %78, %120 : vector<64x128xf32>
    %167 = arith.mulf %84, %125 : vector<64x128xf32>
    %168 = arith.subf %166, %167 : vector<64x128xf32>
    %cst_40 = arith.constant 1.250000e+00 : f32
    %169 = vector.broadcast %cst_40 : f32 to vector<64x128xf32>
    %170 = arith.mulf %168, %169 : vector<64x128xf32>
    %171 = arith.mulf %80, %125 : vector<64x128xf32>
    %172 = arith.mulf %86, %130 : vector<64x128xf32>
    %173 = arith.subf %171, %172 : vector<64x128xf32>
    %cst_41 = arith.constant 1.250000e+00 : f32
    %174 = vector.broadcast %cst_41 : f32 to vector<64x128xf32>
    %175 = arith.mulf %173, %174 : vector<64x128xf32>
    %176 = arith.mulf %82, %130 : vector<64x128xf32>
    %177 = arith.mulf %88, %135 : vector<64x128xf32>
    %178 = arith.subf %176, %177 : vector<64x128xf32>
    %cst_42 = arith.constant 1.250000e+00 : f32
    %179 = vector.broadcast %cst_42 : f32 to vector<64x128xf32>
    %180 = arith.mulf %178, %179 : vector<64x128xf32>
    %181 = arith.mulf %84, %135 : vector<64x128xf32>
    %182 = arith.mulf %90, %140 : vector<64x128xf32>
    %183 = arith.subf %181, %182 : vector<64x128xf32>
    %cst_43 = arith.constant 1.250000e+00 : f32
    %184 = vector.broadcast %cst_43 : f32 to vector<64x128xf32>
    %185 = arith.mulf %183, %184 : vector<64x128xf32>
    %186 = arith.mulf %68, %145 : vector<64x128xf32>
    %187 = arith.mulf %76, %150 : vector<64x128xf32>
    %188 = arith.subf %186, %187 : vector<64x128xf32>
    %cst_44 = arith.constant 0.833333313 : f32
    %189 = vector.broadcast %cst_44 : f32 to vector<64x128xf32>
    %190 = arith.mulf %188, %189 : vector<64x128xf32>
    %191 = arith.mulf %70, %150 : vector<64x128xf32>
    %192 = arith.mulf %78, %155 : vector<64x128xf32>
    %193 = arith.subf %191, %192 : vector<64x128xf32>
    %cst_45 = arith.constant 0.833333313 : f32
    %194 = vector.broadcast %cst_45 : f32 to vector<64x128xf32>
    %195 = arith.mulf %193, %194 : vector<64x128xf32>
    %196 = arith.mulf %72, %155 : vector<64x128xf32>
    %197 = arith.mulf %80, %160 : vector<64x128xf32>
    %198 = arith.subf %196, %197 : vector<64x128xf32>
    %cst_46 = arith.constant 0.833333313 : f32
    %199 = vector.broadcast %cst_46 : f32 to vector<64x128xf32>
    %200 = arith.mulf %198, %199 : vector<64x128xf32>
    %201 = arith.mulf %74, %160 : vector<64x128xf32>
    %202 = arith.mulf %82, %165 : vector<64x128xf32>
    %203 = arith.subf %201, %202 : vector<64x128xf32>
    %cst_47 = arith.constant 0.833333313 : f32
    %204 = vector.broadcast %cst_47 : f32 to vector<64x128xf32>
    %205 = arith.mulf %203, %204 : vector<64x128xf32>
    %206 = arith.mulf %76, %165 : vector<64x128xf32>
    %207 = arith.mulf %84, %170 : vector<64x128xf32>
    %208 = arith.subf %206, %207 : vector<64x128xf32>
    %cst_48 = arith.constant 0.833333313 : f32
    %209 = vector.broadcast %cst_48 : f32 to vector<64x128xf32>
    %210 = arith.mulf %208, %209 : vector<64x128xf32>
    %211 = arith.mulf %78, %170 : vector<64x128xf32>
    %212 = arith.mulf %86, %175 : vector<64x128xf32>
    %213 = arith.subf %211, %212 : vector<64x128xf32>
    %cst_49 = arith.constant 0.833333313 : f32
    %214 = vector.broadcast %cst_49 : f32 to vector<64x128xf32>
    %215 = arith.mulf %213, %214 : vector<64x128xf32>
    %216 = arith.mulf %80, %175 : vector<64x128xf32>
    %217 = arith.mulf %88, %180 : vector<64x128xf32>
    %218 = arith.subf %216, %217 : vector<64x128xf32>
    %cst_50 = arith.constant 0.833333313 : f32
    %219 = vector.broadcast %cst_50 : f32 to vector<64x128xf32>
    %220 = arith.mulf %218, %219 : vector<64x128xf32>
    %221 = arith.mulf %82, %180 : vector<64x128xf32>
    %222 = arith.mulf %90, %185 : vector<64x128xf32>
    %223 = arith.subf %221, %222 : vector<64x128xf32>
    %cst_51 = arith.constant 0.833333313 : f32
    %224 = vector.broadcast %cst_51 : f32 to vector<64x128xf32>
    %225 = arith.mulf %223, %224 : vector<64x128xf32>
    %226 = arith.truncf %190 : vector<64x128xf32> to vector<64x128xbf16>
    %227 = arith.truncf %195 : vector<64x128xf32> to vector<64x128xbf16>
    %228 = arith.truncf %200 : vector<64x128xf32> to vector<64x128xbf16>
    %229 = arith.truncf %205 : vector<64x128xf32> to vector<64x128xbf16>
    %230 = arith.truncf %210 : vector<64x128xf32> to vector<64x128xbf16>
    %231 = arith.truncf %215 : vector<64x128xf32> to vector<64x128xbf16>
    %232 = arith.truncf %220 : vector<64x128xf32> to vector<64x128xbf16>
    %233 = arith.truncf %225 : vector<64x128xf32> to vector<64x128xbf16>
    %234 = tpu.concatenate %7, %226, %227, %228, %229, %230, %231, %232, %233 in 1 : vector<64x128xbf16>, vector<64x128xbf16>, vector<64x128xbf16>, vector<64x128xbf16>, vector<64x128xbf16>, vector<64x128xbf16>, vector<64x128xbf16>, vector<64x128xbf16>, vector<64x128xbf16> -> vector<64x1152xbf16>
    %c0_52 = arith.constant 0 : index
    %c0_53 = arith.constant 0 : index
    %235 = vector.load %arg2[%c0_52, %c0_53] : memref<1152x128xbf16, #tpu.memory_space<vmem>>, vector<1152x128xbf16>
    %cst_54 = arith.constant dense<0.000000e+00> : vector<64x128xf32>
    %236 = tpu.matmul %234, %235, %cst_54 {dimension_numbers = #tpu.dot_dimension_numbers<[1], [0], [0], [1], [0, 0, 1, 1], [], []>} : vector<64x1152xbf16>, vector<1152x128xbf16>, vector<64x128xf32> -> vector<64x128xf32>
    %c0_55 = arith.constant 0 : index
    %c0_56 = arith.constant 0 : index
    %237 = vector.load %arg3[%c0_55, %c0_56] : memref<64x128xf32, #tpu.memory_space<vmem>>, vector<64x128xf32>
    tpu.vector_store %arg3[%c0_55, %c0_56], %236 {strides = array<i32>} : memref<64x128xf32, #tpu.memory_space<vmem>>, vector<64x128xf32>,
    return
  }
  func.func @transform_0(%arg0: i32) -> (i32, i32) {
    %c0_i32 = arith.constant 0 : i32
    %c0_i32_0 = arith.constant 0 : i32
    return %arg0, %c0_i32 : i32, i32
  }
  func.func @transform_1(%arg0: i32) -> (i32, i32) {
    %c0_i32 = arith.constant 0 : i32
    %c0_i32_0 = arith.constant 0 : i32
    %c0_i32_1 = arith.constant 0 : i32
    return %c0_i32, %c0_i32_0 : i32, i32
  }
  func.func @transform_2(%arg0: i32) -> (i32, i32) {
    %c0_i32 = arith.constant 0 : i32
    %c0_i32_0 = arith.constant 0 : i32
    return %arg0, %c0_i32 : i32, i32
  }
}

module attributes {stable_mosaic.version = 11 : i64} {
  func.func @ln_kan_linear_kernel(%arg0: i32, %arg1: memref<64x128xf32, #tpu.memory_space<vmem>>, %arg2: memref<1x128xf32, #tpu.memory_space<vmem>>, %arg3: memref<1x128xf32, #tpu.memory_space<vmem>>, %arg4: memref<1152x128xbf16, #tpu.memory_space<vmem>>, %arg5: memref<64x128xf32, #tpu.memory_space<vmem>>) attributes {dimension_semantics = [#tpu.dimension_semantics<parallel>], iteration_bounds = array<i64: 2>, scalar_prefetch = 0 : i64, scratch_operands = 0 : i64, tpu.core_type = #tpu.core_type<tc>, window_params = [{transform_indices = @transform_0, window_bounds = array<i64: 64, 128>}, {pipeline_mode = #tpu.pipeline_mode<synchronous>, transform_indices = @transform_1, window_bounds = array<i64: 1, 128>}, {pipeline_mode = #tpu.pipeline_mode<synchronous>, transform_indices = @transform_2, window_bounds = array<i64: 1, 128>}, {pipeline_mode = #tpu.pipeline_mode<synchronous>, transform_indices = @transform_3, window_bounds = array<i64: 1152, 128>}, {transform_indices = @transform_4, window_bounds = array<i64: 64, 128>}]} {
    %c0 = arith.constant 0 : index
    %c0_0 = arith.constant 0 : index
    %0 = vector.load %arg1[%c0, %c0_0] : memref<64x128xf32, #tpu.memory_space<vmem>>, vector<64x128xf32>
    %cst = arith.constant dense<0.000000e+00> : vector<64xf32>
    %1 = vector.multi_reduction <add>, %0, %cst [1] : vector<64x128xf32> to vector<64xf32>
    %2 = vector.shape_cast %1 : vector<64xf32> to vector<64x1xf32>
    %cst_1 = arith.constant 1.280000e+02 : f32
    %3 = vector.broadcast %cst_1 : f32 to vector<64x1xf32>
    %4 = arith.divf %2, %3 : vector<64x1xf32>
    %5 = vector.broadcast %4 : vector<64x1xf32> to vector<64x128xf32>
    %6 = arith.subf %0, %5 : vector<64x128xf32>
    %7 = arith.mulf %6, %6 : vector<64x128xf32>
    %cst_2 = arith.constant dense<0.000000e+00> : vector<64xf32>
    %8 = vector.multi_reduction <add>, %7, %cst_2 [1] : vector<64x128xf32> to vector<64xf32>
    %9 = vector.shape_cast %8 : vector<64xf32> to vector<64x1xf32>
    %cst_3 = arith.constant 1.280000e+02 : f32
    %10 = vector.broadcast %cst_3 : f32 to vector<64x1xf32>
    %11 = arith.divf %9, %10 : vector<64x1xf32>
    %cst_4 = arith.constant 9.99999974E-6 : f32
    %12 = vector.broadcast %cst_4 : f32 to vector<64x1xf32>
    %13 = arith.addf %11, %12 : vector<64x1xf32>
    %14 = math.rsqrt %13 : vector<64x1xf32>
    %15 = vector.broadcast %14 : vector<64x1xf32> to vector<64x128xf32>
    %16 = arith.mulf %6, %15 : vector<64x128xf32>
    %c0_5 = arith.constant 0 : index
    %c0_6 = arith.constant 0 : index
    %17 = vector.load %arg2[%c0_5, %c0_6] : memref<1x128xf32, #tpu.memory_space<vmem>>, vector<1x128xf32>
    %18 = vector.broadcast %17 : vector<1x128xf32> to vector<64x128xf32>
    %19 = arith.mulf %16, %18 : vector<64x128xf32>
    %c0_7 = arith.constant 0 : index
    %c0_8 = arith.constant 0 : index
    %20 = vector.load %arg3[%c0_7, %c0_8] : memref<1x128xf32, #tpu.memory_space<vmem>>, vector<1x128xf32>
    %21 = vector.broadcast %20 : vector<1x128xf32> to vector<64x128xf32>
    %22 = arith.addf %19, %21 : vector<64x128xf32>
    %23 = arith.negf %22 : vector<64x128xf32>
    %24 = math.exp %23 : vector<64x128xf32>
    %cst_9 = arith.constant 1.000000e+00 : f32
    %25 = vector.broadcast %cst_9 : f32 to vector<64x128xf32>
    %26 = arith.addf %25, %24 : vector<64x128xf32>
    %27 = arith.divf %25, %26 : vector<64x128xf32>
    %28 = arith.mulf %22, %27 : vector<64x128xf32>
    %29 = arith.truncf %28 : vector<64x128xf32> to vector<64x128xbf16>
    %cst_10 = arith.constant -2.200000e+00 : f32
    %30 = vector.broadcast %cst_10 : f32 to vector<64x128xf32>
    %31 = arith.cmpf oge, %22, %30 : vector<64x128xf32>
    %32 = arith.extui %31 : vector<64x128xi1> to vector<64x128xi32>
    %33 = arith.sitofp %32 : vector<64x128xi32> to vector<64x128xf32>
    %cst_11 = arith.constant -1.800000e+00 : f32
    %34 = vector.broadcast %cst_11 : f32 to vector<64x128xf32>
    %35 = arith.cmpf oge, %22, %34 : vector<64x128xf32>
    %36 = arith.extui %35 : vector<64x128xi1> to vector<64x128xi32>
    %37 = arith.sitofp %36 : vector<64x128xi32> to vector<64x128xf32>
    %cst_12 = arith.constant -1.400000e+00 : f32
    %38 = vector.broadcast %cst_12 : f32 to vector<64x128xf32>
    %39 = arith.cmpf oge, %22, %38 : vector<64x128xf32>
    %40 = arith.extui %39 : vector<64x128xi1> to vector<64x128xi32>
    %41 = arith.sitofp %40 : vector<64x128xi32> to vector<64x128xf32>
    %cst_13 = arith.constant -1.000000e+00 : f32
    %42 = vector.broadcast %cst_13 : f32 to vector<64x128xf32>
    %43 = arith.cmpf oge, %22, %42 : vector<64x128xf32>
    %44 = arith.extui %43 : vector<64x128xi1> to vector<64x128xi32>
    %45 = arith.sitofp %44 : vector<64x128xi32> to vector<64x128xf32>
    %cst_14 = arith.constant -6.000000e-01 : f32
    %46 = vector.broadcast %cst_14 : f32 to vector<64x128xf32>
    %47 = arith.cmpf oge, %22, %46 : vector<64x128xf32>
    %48 = arith.extui %47 : vector<64x128xi1> to vector<64x128xi32>
    %49 = arith.sitofp %48 : vector<64x128xi32> to vector<64x128xf32>
    %cst_15 = arith.constant -2.000000e-01 : f32
    %50 = vector.broadcast %cst_15 : f32 to vector<64x128xf32>
    %51 = arith.cmpf oge, %22, %50 : vector<64x128xf32>
    %52 = arith.extui %51 : vector<64x128xi1> to vector<64x128xi32>
    %53 = arith.sitofp %52 : vector<64x128xi32> to vector<64x128xf32>
    %cst_16 = arith.constant 2.000000e-01 : f32
    %54 = vector.broadcast %cst_16 : f32 to vector<64x128xf32>
    %55 = arith.cmpf oge, %22, %54 : vector<64x128xf32>
    %56 = arith.extui %55 : vector<64x128xi1> to vector<64x128xi32>
    %57 = arith.sitofp %56 : vector<64x128xi32> to vector<64x128xf32>
    %cst_17 = arith.constant 6.000000e-01 : f32
    %58 = vector.broadcast %cst_17 : f32 to vector<64x128xf32>
    %59 = arith.cmpf oge, %22, %58 : vector<64x128xf32>
    %60 = arith.extui %59 : vector<64x128xi1> to vector<64x128xi32>
    %61 = arith.sitofp %60 : vector<64x128xi32> to vector<64x128xf32>
    %cst_18 = arith.constant 1.000000e+00 : f32
    %62 = vector.broadcast %cst_18 : f32 to vector<64x128xf32>
    %63 = arith.cmpf oge, %22, %62 : vector<64x128xf32>
    %64 = arith.extui %63 : vector<64x128xi1> to vector<64x128xi32>
    %65 = arith.sitofp %64 : vector<64x128xi32> to vector<64x128xf32>
    %cst_19 = arith.constant 1.400000e+00 : f32
    %66 = vector.broadcast %cst_19 : f32 to vector<64x128xf32>
    %67 = arith.cmpf oge, %22, %66 : vector<64x128xf32>
    %68 = arith.extui %67 : vector<64x128xi1> to vector<64x128xi32>
    %69 = arith.sitofp %68 : vector<64x128xi32> to vector<64x128xf32>
    %cst_20 = arith.constant 1.800000e+00 : f32
    %70 = vector.broadcast %cst_20 : f32 to vector<64x128xf32>
    %71 = arith.cmpf oge, %22, %70 : vector<64x128xf32>
    %72 = arith.extui %71 : vector<64x128xi1> to vector<64x128xi32>
    %73 = arith.sitofp %72 : vector<64x128xi32> to vector<64x128xf32>
    %cst_21 = arith.constant 2.200000e+00 : f32
    %74 = vector.broadcast %cst_21 : f32 to vector<64x128xf32>
    %75 = arith.cmpf oge, %22, %74 : vector<64x128xf32>
    %76 = arith.extui %75 : vector<64x128xi1> to vector<64x128xi32>
    %77 = arith.sitofp %76 : vector<64x128xi32> to vector<64x128xf32>
    %78 = arith.subf %33, %37 : vector<64x128xf32>
    %79 = arith.subf %37, %41 : vector<64x128xf32>
    %80 = arith.subf %41, %45 : vector<64x128xf32>
    %81 = arith.subf %45, %49 : vector<64x128xf32>
    %82 = arith.subf %49, %53 : vector<64x128xf32>
    %83 = arith.subf %53, %57 : vector<64x128xf32>
    %84 = arith.subf %57, %61 : vector<64x128xf32>
    %85 = arith.subf %61, %65 : vector<64x128xf32>
    %86 = arith.subf %65, %69 : vector<64x128xf32>
    %87 = arith.subf %69, %73 : vector<64x128xf32>
    %88 = arith.subf %73, %77 : vector<64x128xf32>
    %cst_22 = arith.constant -2.200000e+00 : f32
    %89 = vector.broadcast %cst_22 : f32 to vector<64x128xf32>
    %90 = arith.subf %22, %89 : vector<64x128xf32>
    %cst_23 = arith.constant -1.800000e+00 : f32
    %91 = vector.broadcast %cst_23 : f32 to vector<64x128xf32>
    %92 = arith.subf %22, %91 : vector<64x128xf32>
    %cst_24 = arith.constant -1.400000e+00 : f32
    %93 = vector.broadcast %cst_24 : f32 to vector<64x128xf32>
    %94 = arith.subf %22, %93 : vector<64x128xf32>
    %cst_25 = arith.constant -1.000000e+00 : f32
    %95 = vector.broadcast %cst_25 : f32 to vector<64x128xf32>
    %96 = arith.subf %22, %95 : vector<64x128xf32>
    %cst_26 = arith.constant -6.000000e-01 : f32
    %97 = vector.broadcast %cst_26 : f32 to vector<64x128xf32>
    %98 = arith.subf %22, %97 : vector<64x128xf32>
    %cst_27 = arith.constant -2.000000e-01 : f32
    %99 = vector.broadcast %cst_27 : f32 to vector<64x128xf32>
    %100 = arith.subf %22, %99 : vector<64x128xf32>
    %cst_28 = arith.constant 2.000000e-01 : f32
    %101 = vector.broadcast %cst_28 : f32 to vector<64x128xf32>
    %102 = arith.subf %22, %101 : vector<64x128xf32>
    %cst_29 = arith.constant 6.000000e-01 : f32
    %103 = vector.broadcast %cst_29 : f32 to vector<64x128xf32>
    %104 = arith.subf %22, %103 : vector<64x128xf32>
    %cst_30 = arith.constant 1.000000e+00 : f32
    %105 = vector.broadcast %cst_30 : f32 to vector<64x128xf32>
    %106 = arith.subf %22, %105 : vector<64x128xf32>
    %cst_31 = arith.constant 1.400000e+00 : f32
    %107 = vector.broadcast %cst_31 : f32 to vector<64x128xf32>
    %108 = arith.subf %22, %107 : vector<64x128xf32>
    %cst_32 = arith.constant 1.800000e+00 : f32
    %109 = vector.broadcast %cst_32 : f32 to vector<64x128xf32>
    %110 = arith.subf %22, %109 : vector<64x128xf32>
    %cst_33 = arith.constant 2.200000e+00 : f32
    %111 = vector.broadcast %cst_33 : f32 to vector<64x128xf32>
    %112 = arith.subf %22, %111 : vector<64x128xf32>
    %113 = arith.mulf %90, %78 : vector<64x128xf32>
    %114 = arith.mulf %94, %79 : vector<64x128xf32>
    %115 = arith.subf %113, %114 : vector<64x128xf32>
    %cst_34 = arith.constant 2.500000e+00 : f32
    %116 = vector.broadcast %cst_34 : f32 to vector<64x128xf32>
    %117 = arith.mulf %115, %116 : vector<64x128xf32>
    %118 = arith.mulf %92, %79 : vector<64x128xf32>
    %119 = arith.mulf %96, %80 : vector<64x128xf32>
    %120 = arith.subf %118, %119 : vector<64x128xf32>
    %cst_35 = arith.constant 2.500000e+00 : f32
    %121 = vector.broadcast %cst_35 : f32 to vector<64x128xf32>
    %122 = arith.mulf %120, %121 : vector<64x128xf32>
    %123 = arith.mulf %94, %80 : vector<64x128xf32>
    %124 = arith.mulf %98, %81 : vector<64x128xf32>
    %125 = arith.subf %123, %124 : vector<64x128xf32>
    %cst_36 = arith.constant 2.500000e+00 : f32
    %126 = vector.broadcast %cst_36 : f32 to vector<64x128xf32>
    %127 = arith.mulf %125, %126 : vector<64x128xf32>
    %128 = arith.mulf %96, %81 : vector<64x128xf32>
    %129 = arith.mulf %100, %82 : vector<64x128xf32>
    %130 = arith.subf %128, %129 : vector<64x128xf32>
    %cst_37 = arith.constant 2.500000e+00 : f32
    %131 = vector.broadcast %cst_37 : f32 to vector<64x128xf32>
    %132 = arith.mulf %130, %131 : vector<64x128xf32>
    %133 = arith.mulf %98, %82 : vector<64x128xf32>
    %134 = arith.mulf %102, %83 : vector<64x128xf32>
    %135 = arith.subf %133, %134 : vector<64x128xf32>
    %cst_38 = arith.constant 2.500000e+00 : f32
    %136 = vector.broadcast %cst_38 : f32 to vector<64x128xf32>
    %137 = arith.mulf %135, %136 : vector<64x128xf32>
    %138 = arith.mulf %100, %83 : vector<64x128xf32>
    %139 = arith.mulf %104, %84 : vector<64x128xf32>
    %140 = arith.subf %138, %139 : vector<64x128xf32>
    %cst_39 = arith.constant 2.500000e+00 : f32
    %141 = vector.broadcast %cst_39 : f32 to vector<64x128xf32>
    %142 = arith.mulf %140, %141 : vector<64x128xf32>
    %143 = arith.mulf %102, %84 : vector<64x128xf32>
    %144 = arith.mulf %106, %85 : vector<64x128xf32>
    %145 = arith.subf %143, %144 : vector<64x128xf32>
    %cst_40 = arith.constant 2.500000e+00 : f32
    %146 = vector.broadcast %cst_40 : f32 to vector<64x128xf32>
    %147 = arith.mulf %145, %146 : vector<64x128xf32>
    %148 = arith.mulf %104, %85 : vector<64x128xf32>
    %149 = arith.mulf %108, %86 : vector<64x128xf32>
    %150 = arith.subf %148, %149 : vector<64x128xf32>
    %cst_41 = arith.constant 2.500000e+00 : f32
    %151 = vector.broadcast %cst_41 : f32 to vector<64x128xf32>
    %152 = arith.mulf %150, %151 : vector<64x128xf32>
    %153 = arith.mulf %106, %86 : vector<64x128xf32>
    %154 = arith.mulf %110, %87 : vector<64x128xf32>
    %155 = arith.subf %153, %154 : vector<64x128xf32>
    %cst_42 = arith.constant 2.500000e+00 : f32
    %156 = vector.broadcast %cst_42 : f32 to vector<64x128xf32>
    %157 = arith.mulf %155, %156 : vector<64x128xf32>
    %158 = arith.mulf %108, %87 : vector<64x128xf32>
    %159 = arith.mulf %112, %88 : vector<64x128xf32>
    %160 = arith.subf %158, %159 : vector<64x128xf32>
    %cst_43 = arith.constant 2.500000e+00 : f32
    %161 = vector.broadcast %cst_43 : f32 to vector<64x128xf32>
    %162 = arith.mulf %160, %161 : vector<64x128xf32>
    %163 = arith.mulf %90, %117 : vector<64x128xf32>
    %164 = arith.mulf %96, %122 : vector<64x128xf32>
    %165 = arith.subf %163, %164 : vector<64x128xf32>
    %cst_44 = arith.constant 1.250000e+00 : f32
    %166 = vector.broadcast %cst_44 : f32 to vector<64x128xf32>
    %167 = arith.mulf %165, %166 : vector<64x128xf32>
    %168 = arith.mulf %92, %122 : vector<64x128xf32>
    %169 = arith.mulf %98, %127 : vector<64x128xf32>
    %170 = arith.subf %168, %169 : vector<64x128xf32>
    %cst_45 = arith.constant 1.250000e+00 : f32
    %171 = vector.broadcast %cst_45 : f32 to vector<64x128xf32>
    %172 = arith.mulf %170, %171 : vector<64x128xf32>
    %173 = arith.mulf %94, %127 : vector<64x128xf32>
    %174 = arith.mulf %100, %132 : vector<64x128xf32>
    %175 = arith.subf %173, %174 : vector<64x128xf32>
    %cst_46 = arith.constant 1.250000e+00 : f32
    %176 = vector.broadcast %cst_46 : f32 to vector<64x128xf32>
    %177 = arith.mulf %175, %176 : vector<64x128xf32>
    %178 = arith.mulf %96, %132 : vector<64x128xf32>
    %179 = arith.mulf %102, %137 : vector<64x128xf32>
    %180 = arith.subf %178, %179 : vector<64x128xf32>
    %cst_47 = arith.constant 1.250000e+00 : f32
    %181 = vector.broadcast %cst_47 : f32 to vector<64x128xf32>
    %182 = arith.mulf %180, %181 : vector<64x128xf32>
    %183 = arith.mulf %98, %137 : vector<64x128xf32>
    %184 = arith.mulf %104, %142 : vector<64x128xf32>
    %185 = arith.subf %183, %184 : vector<64x128xf32>
    %cst_48 = arith.constant 1.250000e+00 : f32
    %186 = vector.broadcast %cst_48 : f32 to vector<64x128xf32>
    %187 = arith.mulf %185, %186 : vector<64x128xf32>
    %188 = arith.mulf %100, %142 : vector<64x128xf32>
    %189 = arith.mulf %106, %147 : vector<64x128xf32>
    %190 = arith.subf %188, %189 : vector<64x128xf32>
    %cst_49 = arith.constant 1.250000e+00 : f32
    %191 = vector.broadcast %cst_49 : f32 to vector<64x128xf32>
    %192 = arith.mulf %190, %191 : vector<64x128xf32>
    %193 = arith.mulf %102, %147 : vector<64x128xf32>
    %194 = arith.mulf %108, %152 : vector<64x128xf32>
    %195 = arith.subf %193, %194 : vector<64x128xf32>
    %cst_50 = arith.constant 1.250000e+00 : f32
    %196 = vector.broadcast %cst_50 : f32 to vector<64x128xf32>
    %197 = arith.mulf %195, %196 : vector<64x128xf32>
    %198 = arith.mulf %104, %152 : vector<64x128xf32>
    %199 = arith.mulf %110, %157 : vector<64x128xf32>
    %200 = arith.subf %198, %199 : vector<64x128xf32>
    %cst_51 = arith.constant 1.250000e+00 : f32
    %201 = vector.broadcast %cst_51 : f32 to vector<64x128xf32>
    %202 = arith.mulf %200, %201 : vector<64x128xf32>
    %203 = arith.mulf %106, %157 : vector<64x128xf32>
    %204 = arith.mulf %112, %162 : vector<64x128xf32>
    %205 = arith.subf %203, %204 : vector<64x128xf32>
    %cst_52 = arith.constant 1.250000e+00 : f32
    %206 = vector.broadcast %cst_52 : f32 to vector<64x128xf32>
    %207 = arith.mulf %205, %206 : vector<64x128xf32>
    %208 = arith.mulf %90, %167 : vector<64x128xf32>
    %209 = arith.mulf %98, %172 : vector<64x128xf32>
    %210 = arith.subf %208, %209 : vector<64x128xf32>
    %cst_53 = arith.constant 0.833333313 : f32
    %211 = vector.broadcast %cst_53 : f32 to vector<64x128xf32>
    %212 = arith.mulf %210, %211 : vector<64x128xf32>
    %213 = arith.mulf %92, %172 : vector<64x128xf32>
    %214 = arith.mulf %100, %177 : vector<64x128xf32>
    %215 = arith.subf %213, %214 : vector<64x128xf32>
    %cst_54 = arith.constant 0.833333313 : f32
    %216 = vector.broadcast %cst_54 : f32 to vector<64x128xf32>
    %217 = arith.mulf %215, %216 : vector<64x128xf32>
    %218 = arith.mulf %94, %177 : vector<64x128xf32>
    %219 = arith.mulf %102, %182 : vector<64x128xf32>
    %220 = arith.subf %218, %219 : vector<64x128xf32>
    %cst_55 = arith.constant 0.833333313 : f32
    %221 = vector.broadcast %cst_55 : f32 to vector<64x128xf32>
    %222 = arith.mulf %220, %221 : vector<64x128xf32>
    %223 = arith.mulf %96, %182 : vector<64x128xf32>
    %224 = arith.mulf %104, %187 : vector<64x128xf32>
    %225 = arith.subf %223, %224 : vector<64x128xf32>
    %cst_56 = arith.constant 0.833333313 : f32
    %226 = vector.broadcast %cst_56 : f32 to vector<64x128xf32>
    %227 = arith.mulf %225, %226 : vector<64x128xf32>
    %228 = arith.mulf %98, %187 : vector<64x128xf32>
    %229 = arith.mulf %106, %192 : vector<64x128xf32>
    %230 = arith.subf %228, %229 : vector<64x128xf32>
    %cst_57 = arith.constant 0.833333313 : f32
    %231 = vector.broadcast %cst_57 : f32 to vector<64x128xf32>
    %232 = arith.mulf %230, %231 : vector<64x128xf32>
    %233 = arith.mulf %100, %192 : vector<64x128xf32>
    %234 = arith.mulf %108, %197 : vector<64x128xf32>
    %235 = arith.subf %233, %234 : vector<64x128xf32>
    %cst_58 = arith.constant 0.833333313 : f32
    %236 = vector.broadcast %cst_58 : f32 to vector<64x128xf32>
    %237 = arith.mulf %235, %236 : vector<64x128xf32>
    %238 = arith.mulf %102, %197 : vector<64x128xf32>
    %239 = arith.mulf %110, %202 : vector<64x128xf32>
    %240 = arith.subf %238, %239 : vector<64x128xf32>
    %cst_59 = arith.constant 0.833333313 : f32
    %241 = vector.broadcast %cst_59 : f32 to vector<64x128xf32>
    %242 = arith.mulf %240, %241 : vector<64x128xf32>
    %243 = arith.mulf %104, %202 : vector<64x128xf32>
    %244 = arith.mulf %112, %207 : vector<64x128xf32>
    %245 = arith.subf %243, %244 : vector<64x128xf32>
    %cst_60 = arith.constant 0.833333313 : f32
    %246 = vector.broadcast %cst_60 : f32 to vector<64x128xf32>
    %247 = arith.mulf %245, %246 : vector<64x128xf32>
    %248 = arith.truncf %212 : vector<64x128xf32> to vector<64x128xbf16>
    %249 = arith.truncf %217 : vector<64x128xf32> to vector<64x128xbf16>
    %250 = arith.truncf %222 : vector<64x128xf32> to vector<64x128xbf16>
    %251 = arith.truncf %227 : vector<64x128xf32> to vector<64x128xbf16>
    %252 = arith.truncf %232 : vector<64x128xf32> to vector<64x128xbf16>
    %253 = arith.truncf %237 : vector<64x128xf32> to vector<64x128xbf16>
    %254 = arith.truncf %242 : vector<64x128xf32> to vector<64x128xbf16>
    %255 = arith.truncf %247 : vector<64x128xf32> to vector<64x128xbf16>
    %256 = tpu.concatenate %29, %248, %249, %250, %251, %252, %253, %254, %255 in 1 : vector<64x128xbf16>, vector<64x128xbf16>, vector<64x128xbf16>, vector<64x128xbf16>, vector<64x128xbf16>, vector<64x128xbf16>, vector<64x128xbf16>, vector<64x128xbf16>, vector<64x128xbf16> -> vector<64x1152xbf16>
    %c0_61 = arith.constant 0 : index
    %c0_62 = arith.constant 0 : index
    %257 = vector.load %arg4[%c0_61, %c0_62] : memref<1152x128xbf16, #tpu.memory_space<vmem>>, vector<1152x128xbf16>
    %cst_63 = arith.constant dense<0.000000e+00> : vector<64x128xf32>
    %258 = tpu.matmul %256, %257, %cst_63 {dimension_numbers = #tpu.dot_dimension_numbers<[1], [0], [0], [1], [0, 0, 1, 1], [], []>} : vector<64x1152xbf16>, vector<1152x128xbf16>, vector<64x128xf32> -> vector<64x128xf32>
    %c0_64 = arith.constant 0 : index
    %c0_65 = arith.constant 0 : index
    %259 = vector.load %arg5[%c0_64, %c0_65] : memref<64x128xf32, #tpu.memory_space<vmem>>, vector<64x128xf32>
    tpu.vector_store %arg5[%c0_64, %c0_65], %258 {strides = array<i32>} : memref<64x128xf32, #tpu.memory_space<vmem>>, vector<64x128xf32>,
    return
  }
  func.func @transform_0(%arg0: i32) -> (i32, i32) {
    %c0_i32 = arith.constant 0 : i32
    %c0_i32_0 = arith.constant 0 : i32
    return %arg0, %c0_i32 : i32, i32
  }
  func.func @transform_1(%arg0: i32) -> (i32, i32) {
    %c0_i32 = arith.constant 0 : i32
    %c0_i32_0 = arith.constant 0 : i32
    %c0_i32_1 = arith.constant 0 : i32
    return %c0_i32, %c0_i32_0 : i32, i32
  }
  func.func @transform_2(%arg0: i32) -> (i32, i32) {
    %c0_i32 = arith.constant 0 : i32
    %c0_i32_0 = arith.constant 0 : i32
    %c0_i32_1 = arith.constant 0 : i32
    return %c0_i32, %c0_i32_0 : i32, i32
  }
  func.func @transform_3(%arg0: i32) -> (i32, i32) {
    %c0_i32 = arith.constant 0 : i32
    %c0_i32_0 = arith.constant 0 : i32
    %c0_i32_1 = arith.constant 0 : i32
    return %c0_i32, %c0_i32_0 : i32, i32
  }
  func.func @transform_4(%arg0: i32) -> (i32, i32) {
    %c0_i32 = arith.constant 0 : i32
    %c0_i32_0 = arith.constant 0 : i32
    return %arg0, %c0_i32 : i32, i32
  }
}

</mosaic_0001>

<llo_original>
// kernel: kan_block_forward.11
$region0: #{kan_block_forward.11}
  #allocation0 [shape = 'u32[]', space=smem, size = 0x4, offset = 0x4, fixed_abs, tag = 'smem constant byte address 0x4 - core index']
  #allocation1 [shape = 'u32[72,128]{1,0:T(1,128)}', space=vmem, size = 0x9000, scoped, tag = 'internal scratch']
  #allocation2 [shape = 'f32[1,8,8,128]{3,2,1,0:T(8,128)}', space=vmem, size = 0x8000, scoped, tag = 'scratch operand']
  %s0 = inlined_call_operand.vmem [shape: f32[2,8,8,128], index: 0, kind: input, shape index: {}]
  %s1 = inlined_call_operand.vmem [shape: f32[9,128], index: 1, kind: input, shape index: {}]
  %s2 = inlined_call_operand.vmem [shape: f32[1,1,1,128], index: 2, kind: input, shape index: {}]
  %s3 = inlined_call_operand.vmem [shape: f32[2,8,8,128], index: 3, kind: input, shape index: {}]
  %s4 = inlined_call_operand.hbm [shape: f32[2,8,8,128], index: 4, kind: output, shape index: {}]
  %s5 = sld [smem:[#allocation0]]
  $region49: #{kan_block_forward.11} parent=0
    _
  %s7 = ssub.s32 1, %s5
  %s8 = scalar_select 0, %s7, %s5
  $region1: #{kan_block_forward.11} parent=0
    #allocation3 [shape = 'u8[65536]{0}', space=vmem, size = 0x10000, scoped, tag = 'output window, operand 0']
    #allocation4 [shape = 's32[2]{0}', space=sflag, size = 0x8, scoped, tag = 'scoped memory for kan_block_forward.11']
    %9 = vsyncpa [#allocation4], 0
    %s10 = scalar_lea.sflag [#allocation4], 1
    %11 = vsyncpa %s10, 0
    loop: start=0, step=1, limit=4
    $region2: #{kan_block_forward.11} parent=1 // loop_pre_header
      _
    $region3: #{kan_block_forward.11} parent=1 // loop_header
      %s13 = sphi 0, %s17
      %p14 = scmp.ge.s32.totalorder %s13, 4
      %s23 = sphi 0, %s25
      %s26 = sphi 0, %s23
      %s27 = sphi 0, %s26
      %s43 = sphi 0, %s27
      %s47 = sphi 0, %s47
      %s49 = sphi 0, %s47
      %s50 = sphi 0, %s49
      %s64 = sphi 0, %s50
      %s68 = sphi 0, %s68
      %s70 = sphi 0, %s68
      %s71 = sphi 0, %s70
      %s85 = sphi 0, %s71
      %s91 = sphi 0, %s93
      %s94 = sphi 0, %s91
      %s95 = sphi 0, %s94
      %s111 = sphi 0, %s95
      %s117 = sphi 0, %s119
      %s120 = sphi 0, %s117
      %s121 = sphi 0, %s120
      %s137 = sphi 0, %s121
    $region4: #{kan_block_forward.11} parent=1 // loop_header_branch
      %16 = sbr.rel (%p14) target = $region8
    $region5: #{kan_block_forward.11} parent=1 // loop_body
      %s18 = ssub.s32 %s13, 1
      %s19 = ssub.s32 %s13, 2
      %s20 = sadd.s32 %s13, 1
      %s21 = ssub.s32 %s13, %s20
      %p22 = scmp.eq.s32.totalorder %s21, 0
      %s24 = sadd.s32 %s23, 1
      %s25 = scalar_select %p22, %s23, %s24
      %p28 = pneg %p22
      %p29 = scmp.eq.s32.totalorder %s13, 1
      %p30 = por %p28, %p29
      %p31 = scmp.ne.s32.totalorder %s23, %s26
      %p32 = scmp.eq.s32.totalorder %s13, 0
      %p33 = por %p31, %p32
      %p34 = scmp.ne.s32.totalorder %s23, %s26
      %p35 = scmp.eq.s32.totalorder %s18, 1
      %p36 = por %p34, %p35
      %p37 = scmp.ne.s32.totalorder %s26, %s27
      %p38 = scmp.eq.s32.totalorder %s18, 0
      %p39 = por %p37, %p38
      %p40 = scmp.ne.s32.totalorder %s26, %s27
      %p41 = scmp.eq.s32.totalorder %s19, 1
      %p42 = por %p40, %p41
      %p44 = scmp.ne.s32.totalorder %s27, %s43
      %p45 = scmp.eq.s32.totalorder %s19, 0
      %p46 = por %p44, %p45
      %s48 = sadd.s32 %s47, 1
      %p51 = scmp.eq.s32.totalorder %s13, 1
      %p52 = scmp.ne.s32.totalorder %s47, %s49
      %p53 = scmp.eq.s32.totalorder %s13, 0
      %p54 = por %p52, %p53
      %p55 = scmp.ne.s32.totalorder %s47, %s49
      %p56 = scmp.eq.s32.totalorder %s18, 1
      %p57 = por %p55, %p56
      %p58 = scmp.ne.s32.totalorder %s49, %s50
      %p59 = scmp.eq.s32.totalorder %s18, 0
      %p60 = por %p58, %p59
      %p61 = scmp.ne.s32.totalorder %s49, %s50
      %p62 = scmp.eq.s32.totalorder %s19, 1
      %p63 = por %p61, %p62
      %p65 = scmp.ne.s32.totalorder %s50, %s64
      %p66 = scmp.eq.s32.totalorder %s19, 0
      %p67 = por %p65, %p66
      %s69 = sadd.s32 %s68, 1
      %p72 = scmp.eq.s32.totalorder %s13, 1
      %p73 = scmp.ne.s32.totalorder %s68, %s70
      %p74 = scmp.eq.s32.totalorder %s13, 0
      %p75 = por %p73, %p74
      %p76 = scmp.ne.s32.totalorder %s68, %s70
      %p77 = scmp.eq.s32.totalorder %s18, 1
      %p78 = por %p76, %p77
      %p79 = scmp.ne.s32.totalorder %s70, %s71
      %p80 = scmp.eq.s32.totalorder %s18, 0
      %p81 = por %p79, %p80
      %p82 = scmp.ne.s32.totalorder %s70, %s71
      %p83 = scmp.eq.s32.totalorder %s19, 1
      %p84 = por %p82, %p83
      %p86 = scmp.ne.s32.totalorder %s71, %s85
      %p87 = scmp.eq.s32.totalorder %s19, 0
      %p88 = por %p86, %p87
      %s89 = ssub.s32 %s13, %s20
      %p90 = scmp.eq.s32.totalorder %s89, 0
      %s92 = sadd.s32 %s91, 1
      %s93 = scalar_select %p90, %s91, %s92
      %p96 = pneg %p90
      %p97 = scmp.eq.s32.totalorder %s13, 1
      %p98 = por %p96, %p97
      %p99 = scmp.ne.s32.totalorder %s91, %s94
      %p100 = scmp.eq.s32.totalorder %s13, 0
      %p101 = por %p99, %p100
      %p102 = scmp.ne.s32.totalorder %s91, %s94
      %p103 = scmp.eq.s32.totalorder %s18, 1
      %p104 = por %p102, %p103
      %p105 = scmp.ne.s32.totalorder %s94, %s95
      %p106 = scmp.eq.s32.totalorder %s18, 0
      %p107 = por %p105, %p106
      %p108 = scmp.ne.s32.totalorder %s94, %s95
      %p109 = scmp.eq.s32.totalorder %s19, 1
      %p110 = por %p108, %p109
      %p112 = scmp.ne.s32.totalorder %s95, %s111
      %p113 = scmp.eq.s32.totalorder %s19, 0
      %p114 = por %p112, %p113
      %s115 = ssub.s32 %s13, %s20
      %p116 = scmp.eq.s32.totalorder %s115, 0
      %s118 = sadd.s32 %s117, 1
      %s119 = scalar_select %p116, %s117, %s118
      %p122 = pneg %p116
      %p123 = scmp.eq.s32.totalorder %s13, 1
      %p124 = por %p122, %p123
      %p125 = scmp.ne.s32.totalorder %s117, %s120
      %p126 = scmp.eq.s32.totalorder %s13, 0
      %p127 = por %p125, %p126
      %p128 = scmp.ne.s32.totalorder %s117, %s120
      %p129 = scmp.eq.s32.totalorder %s18, 1
      %p130 = por %p128, %p129
      %p131 = scmp.ne.s32.totalorder %s120, %s121
      %p132 = scmp.eq.s32.totalorder %s18, 0
      %p133 = por %p131, %p132
      %p134 = scmp.ne.s32.totalorder %s120, %s121
      %p135 = scmp.eq.s32.totalorder %s19, 1
      %p136 = por %p134, %p135
      %p138 = scmp.ne.s32.totalorder %s121, %s137
      %p139 = scmp.eq.s32.totalorder %s19, 0
      %p140 = por %p138, %p139
      %p141 = scmp.le.s32.totalorder 1, %s13
      %p142 = scmp.lt.s32.totalorder %s13, 3
      %p143 = pnand %p141, %p142
      %p144 = pneg %p143
      // Predicated region
      $region9: #{kan_block_forward.11} parent=5 // pred_check
        _
      $region10: #{kan_block_forward.11} parent=5 // pred_check_branch
        %146 = sbr.rel (%p143) target = $region12
      $region11: #{kan_block_forward.11} parent=5 // pred_region
        %s147 = ssub.s32 %s13, 1
        // Predicated region
        $region13: #{kan_block_forward.11} parent=11 // pred_check
          %p148 = pneg %p60
        $region14: #{kan_block_forward.11} parent=11 // pred_check_branch
          %150 = sbr.rel (%p148) target = $region16
        $region15: #{kan_block_forward.11} parent=11 // pred_region
          _
        $region16: #{kan_block_forward.11} parent=11 // pred_fallthru
          _
        // Predicated region
        $region17: #{kan_block_forward.11} parent=11 // pred_check
          %p151 = pneg %p81
        $region18: #{kan_block_forward.11} parent=11 // pred_check_branch
          %153 = sbr.rel (%p151) target = $region20
        $region19: #{kan_block_forward.11} parent=11 // pred_region
          _
        $region20: #{kan_block_forward.11} parent=11 // pred_fallthru
          _
      $region12: #{kan_block_forward.11} parent=5 // pred_fallthru
        _
      %p154 = scmp.lt.s32.totalorder %s13, 2
      // Predicated region
      $region21: #{kan_block_forward.11} parent=5 // pred_check
        %p155 = pneg %p154
      $region22: #{kan_block_forward.11} parent=5 // pred_check_branch
        %157 = sbr.rel (%p155) target = $region24
      $region23: #{kan_block_forward.11} parent=5 // pred_region
        // Predicated region
        $region25: #{kan_block_forward.11} parent=23 // pred_check
          %p158 = pneg %p33
        $region26: #{kan_block_forward.11} parent=23 // pred_check_branch
          %160 = sbr.rel (%p158) target = $region28
        $region27: #{kan_block_forward.11} parent=23 // pred_region
          %p161 = scmp.lt.s32.totalorder %s13, 1
          %s162 = scalar_select %p161, %s13, 1
          %s163 = smul.addr %s162, 8
          %s164 = smul.addr %s163, 8
          %s165 = scalar_lea.vmem %s0, %s164
        $region28: #{kan_block_forward.11} parent=23 // pred_fallthru
          _
        // Predicated region
        $region29: #{kan_block_forward.11} parent=23 // pred_check
          %p166 = pneg %p101
        $region30: #{kan_block_forward.11} parent=23 // pred_check_branch
          %168 = sbr.rel (%p166) target = $region32
        $region31: #{kan_block_forward.11} parent=23 // pred_region
          %p169 = scmp.lt.s32.totalorder %s13, 1
          %s170 = scalar_select %p169, %s13, 1
          %s171 = smul.addr %s170, 8
          %s172 = smul.addr %s171, 8
          %s173 = scalar_lea.vmem %s3, %s172
        $region32: #{kan_block_forward.11} parent=23 // pred_fallthru
          _
      $region24: #{kan_block_forward.11} parent=5 // pred_fallthru
        _
      %p174 = scmp.le.s32.totalorder 1, %s13
      %p175 = scmp.lt.s32.totalorder %s13, 3
      %p176 = pnand %p174, %p175
      %p177 = pneg %p176
      // Predicated region
      $region33: #{kan_block_forward.11} parent=5 // pred_check
        _
      $region34: #{kan_block_forward.11} parent=5 // pred_check_branch
        %179 = sbr.rel (%p176) target = $region36
      $region35: #{kan_block_forward.11} parent=5 // pred_region
        %s180 = ssub.s32 %s13, 1
        %p181 = scmp.lt.s32.totalorder %s18, 1
        %s182 = scalar_select %p181, %s18, 1
        %s183 = smul.addr %s182, 8
        %s184 = smul.addr %s183, 8
        %s185 = scalar_lea.vmem %s0, %s184
        %p186 = pneg %p39
        %p187 = pneg %p36
        %p188 = pneg %p60
        %p189 = pneg %p57
        %p190 = pneg %p81
        %p191 = pneg %p78
        %p192 = scmp.lt.s32.totalorder %s18, 1
        %s193 = scalar_select %p192, %s18, 1
        %s194 = smul.addr %s193, 8
        %s195 = smul.addr %s194, 8
        %s196 = scalar_lea.vmem %s3, %s195
        %p197 = pneg %p107
        %p198 = pneg %p104
        %p199 = pneg %p133
        %p200 = pneg %p130
        %s201 = sand.u32 %s120, 1
        %s202 = scalar_lea.sflag [#allocation4], %s201
        %s203 = sand.u32 %s120, 1
        %s204 = smul.addr %s203, 64
        %s205 = scalar_lea.vmem [#allocation3], %s204
        %p206 = scmp.lt.s32.totalorder %s18, 1
        %s207 = scalar_select %p206, %s18, 1
        %s208 = smul.addr %s207, 8
        %s209 = smul.addr %s208, 8
        %s210 = scalar_lea.vmem %s0, %s209
        %p211 = scmp.lt.s32.totalorder %s18, 1
        %s212 = scalar_select %p211, %s18, 1
        %s213 = smul.addr %s212, 8
        %s214 = smul.addr %s213, 8
        %s215 = scalar_lea.vmem %s3, %s214
        %v216 = vld [vmem:[%s210] sm:$0xff]
        %v217 = vld [vmem:[%s210 + $0x8] sm:$0xff]
        %v218 = vld [vmem:[%s210 + $0x10] sm:$0xff]
        %v219 = vld [vmem:[%s210 + $0x18] sm:$0xff]
        %v220 = vld [vmem:[%s210 + $0x20] sm:$0xff]
        %v221 = vld [vmem:[%s210 + $0x28] sm:$0xff]
        %v222 = vld [vmem:[%s210 + $0x30] sm:$0xff]
        %v223 = vld [vmem:[%s210 + $0x38] sm:$0xff]
        %v232 = vrot.slane %v216, 7
        %v233 = vrot.slane %v217, 7
        %v234 = vrot.slane %v218, 7
        %v235 = vrot.slane %v219, 7
        %v236 = vrot.slane %v220, 7
        %v237 = vrot.slane %v221, 7
        %v238 = vrot.slane %v222, 7
        %v239 = vrot.slane %v223, 7
        %vm248 = vcmask 1040384
        %v249 = vsel %vm248, 0.0, %v232
        %v250 = vsel %vm248, 0.0, %v233
        %v251 = vsel %vm248, 0.0, %v234
        %v252 = vsel %vm248, 0.0, %v235
        %v253 = vsel %vm248, 0.0, %v236
        %v254 = vsel %vm248, 0.0, %v237
        %v255 = vsel %vm248, 0.0, %v238
        %v256 = vsel %vm248, 0.0, %v239
        %v257 = vrot.slane %v216, 1
        %v258 = vrot.slane %v217, 1
        %v259 = vrot.slane %v218, 1
        %v260 = vrot.slane %v219, 1
        %v261 = vrot.slane %v220, 1
        %v262 = vrot.slane %v221, 1
        %v263 = vrot.slane %v222, 1
        %v264 = vrot.slane %v223, 1
        %vm273 = vcmask 1046528
        %v274 = vsel %vm273, %v257, 0.0
        %v275 = vsel %vm273, %v258, 0.0
        %v276 = vsel %vm273, %v259, 0.0
        %v277 = vsel %vm273, %v260, 0.0
        %v278 = vsel %vm273, %v261, 0.0
        %v279 = vsel %vm273, %v262, 0.0
        %v280 = vsel %vm273, %v263, 0.0
        %v281 = vsel %vm273, %v264, 0.0
        %v282 = vld [vmem:[%s1 + $0x3] sm:$0x1]
        %v283 = vperm.slane %v282, 0
        %v284 = vmul.f32 %v249, %v283
        %v285 = vmul.f32 %v250, %v283
        %v286 = vmul.f32 %v251, %v283
        %v287 = vmul.f32 %v252, %v283
        %v288 = vmul.f32 %v253, %v283
        %v289 = vmul.f32 %v254, %v283
        %v290 = vmul.f32 %v255, %v283
        %v291 = vmul.f32 %v256, %v283
        %v292 = vld [vmem:[%s1 + $0x4] sm:$0x1]
        %v293 = vperm.slane %v292, 0
        %v294 = vmul.f32 %v216, %v293
        %v295 = vmul.f32 %v217, %v293
        %v296 = vmul.f32 %v218, %v293
        %v297 = vmul.f32 %v219, %v293
        %v298 = vmul.f32 %v220, %v293
        %v299 = vmul.f32 %v221, %v293
        %v300 = vmul.f32 %v222, %v293
        %v301 = vmul.f32 %v223, %v293
        %v302 = vadd.f32 %v284, %v294
        %v303 = vadd.f32 %v285, %v295
        %v304 = vadd.f32 %v286, %v296
        %v305 = vadd.f32 %v287, %v297
        %v306 = vadd.f32 %v288, %v298
        %v307 = vadd.f32 %v289, %v299
        %v308 = vadd.f32 %v290, %v300
        %v309 = vadd.f32 %v291, %v301
        %v310 = vld [vmem:[%s1 + $0x5] sm:$0x1]
        %v311 = vperm.slane %v310, 0
        %v312 = vmul.f32 %v274, %v311
        %v313 = vmul.f32 %v275, %v311
        %v314 = vmul.f32 %v276, %v311
        %v315 = vmul.f32 %v277, %v311
        %v316 = vmul.f32 %v278, %v311
        %v317 = vmul.f32 %v279, %v311
        %v318 = vmul.f32 %v280, %v311
        %v319 = vmul.f32 %v281, %v311
        %v320 = vadd.f32 %v302, %v312
        %v321 = vadd.f32 %v303, %v313
        %v322 = vadd.f32 %v304, %v314
        %v323 = vadd.f32 %v305, %v315
        %v324 = vadd.f32 %v306, %v316
        %v325 = vadd.f32 %v307, %v317
        %v326 = vadd.f32 %v308, %v318
        %v327 = vadd.f32 %v309, %v319
        %328 = vst [vmem:[#allocation2] sm:$0xff] %v320
        %329 = vst [vmem:[#allocation2 + $0x8] sm:$0xff] %v321
        %330 = vst [vmem:[#allocation2 + $0x10] sm:$0xff] %v322
        %331 = vst [vmem:[#allocation2 + $0x18] sm:$0xff] %v323
        %332 = vst [vmem:[#allocation2 + $0x20] sm:$0xff] %v324
        %333 = vst [vmem:[#allocation2 + $0x28] sm:$0xff] %v325
        %334 = vst [vmem:[#allocation2 + $0x30] sm:$0xff] %v326
        %335 = vst [vmem:[#allocation2 + $0x38] sm:$0xff] %v327
        %v336 = vld [vmem:[%s1] sm:$0x1]
        %v337 = vperm.slane %v336, 0
        %v338 = vmul.f32 %v249, %v337
        %v339 = vmul.f32 %v250, %v337
        %v340 = vmul.f32 %v251, %v337
        %v341 = vmul.f32 %v252, %v337
        %v342 = vmul.f32 %v253, %v337
        %v343 = vmul.f32 %v254, %v337
        %v344 = vmul.f32 %v255, %v337
        %v345 = vld [vmem:[%s1 + $0x1] sm:$0x1]
        %v346 = vperm.slane %v345, 0
        %v347 = vmul.f32 %v216, %v346
        %v348 = vmul.f32 %v217, %v346
        %v349 = vmul.f32 %v218, %v346
        %v350 = vmul.f32 %v219, %v346
        %v351 = vmul.f32 %v220, %v346
        %v352 = vmul.f32 %v221, %v346
        %v353 = vmul.f32 %v222, %v346
        %v354 = vadd.f32 %v338, %v347
        %v355 = vadd.f32 %v339, %v348
        %v356 = vadd.f32 %v340, %v349
        %v357 = vadd.f32 %v341, %v350
        %v358 = vadd.f32 %v342, %v351
        %v359 = vadd.f32 %v343, %v352
        %v360 = vadd.f32 %v344, %v353
        %v361 = vld [vmem:[%s1 + $0x2] sm:$0x1]
        %v362 = vperm.slane %v361, 0
        %v363 = vmul.f32 %v274, %v362
        %v364 = vmul.f32 %v275, %v362
        %v365 = vmul.f32 %v276, %v362
        %v366 = vmul.f32 %v277, %v362
        %v367 = vmul.f32 %v278, %v362
        %v368 = vmul.f32 %v279, %v362
        %v369 = vmul.f32 %v280, %v362
        %v370 = vadd.f32 %v354, %v363
        %v371 = vadd.f32 %v355, %v364
        %v372 = vadd.f32 %v356, %v365
        %v373 = vadd.f32 %v357, %v366
        %v374 = vadd.f32 %v358, %v367
        %v375 = vadd.f32 %v359, %v368
        %v376 = vadd.f32 %v360, %v369
        %s377 = scalar_lea.vmem [#allocation2], 8
        %v378 = vld [vmem:[%s377] sm:$0xff]
        %v379 = vld [vmem:[%s377 + $0x8] sm:$0xff]
        %v380 = vld [vmem:[%s377 + $0x10] sm:$0xff]
        %v381 = vld [vmem:[%s377 + $0x18] sm:$0xff]
        %v382 = vld [vmem:[%s377 + $0x20] sm:$0xff]
        %v383 = vld [vmem:[%s377 + $0x28] sm:$0xff]
        %v384 = vld [vmem:[%s377 + $0x30] sm:$0xff]
        %v385 = vadd.f32 %v378, %v370
        %v386 = vadd.f32 %v379, %v371
        %v387 = vadd.f32 %v380, %v372
        %v388 = vadd.f32 %v381, %v373
        %v389 = vadd.f32 %v382, %v374
        %v390 = vadd.f32 %v383, %v375
        %v391 = vadd.f32 %v384, %v376
        %392 = vst [vmem:[%s377] sm:$0xff] %v385
        %393 = vst [vmem:[%s377 + $0x8] sm:$0xff] %v386
        %394 = vst [vmem:[%s377 + $0x10] sm:$0xff] %v387
        %395 = vst [vmem:[%s377 + $0x18] sm:$0xff] %v388
        %396 = vst [vmem:[%s377 + $0x20] sm:$0xff] %v389
        %397 = vst [vmem:[%s377 + $0x28] sm:$0xff] %v390
        %398 = vst [vmem:[%s377 + $0x30] sm:$0xff] %v391
        %v399 = vld [vmem:[%s1 + $0x6] sm:$0x1]
        %v400 = vperm.slane %v399, 0
        %v401 = vmul.f32 %v250, %v400
        %v402 = vmul.f32 %v251, %v400
        %v403 = vmul.f32 %v252, %v400
        %v404 = vmul.f32 %v253, %v400
        %v405 = vmul.f32 %v254, %v400
        %v406 = vmul.f32 %v255, %v400
        %v407 = vmul.f32 %v256, %v400
        %v408 = vld [vmem:[%s1 + $0x7] sm:$0x1]
        %v409 = vperm.slane %v408, 0
        %v410 = vmul.f32 %v217, %v409
        %v411 = vmul.f32 %v218, %v409
        %v412 = vmul.f32 %v219, %v409
        %v413 = vmul.f32 %v220, %v409
        %v414 = vmul.f32 %v221, %v409
        %v415 = vmul.f32 %v222, %v409
        %v416 = vmul.f32 %v223, %v409
        %v417 = vadd.f32 %v401, %v410
        %v418 = vadd.f32 %v402, %v411
        %v419 = vadd.f32 %v403, %v412
        %v420 = vadd.f32 %v404, %v413
        %v421 = vadd.f32 %v405, %v414
        %v422 = vadd.f32 %v406, %v415
        %v423 = vadd.f32 %v407, %v416
        %v424 = vld [vmem:[%s1 + $0x8] sm:$0x1]
        %v425 = vperm.slane %v424, 0
        %v426 = vmul.f32 %v275, %v425
        %v427 = vmul.f32 %v276, %v425
        %v428 = vmul.f32 %v277, %v425
        %v429 = vmul.f32 %v278, %v425
        %v430 = vmul.f32 %v279, %v425
        %v431 = vmul.f32 %v280, %v425
        %v432 = vmul.f32 %v281, %v425
        %v433 = vadd.f32 %v417, %v426
        %v434 = vadd.f32 %v418, %v427
        %v435 = vadd.f32 %v419, %v428
        %v436 = vadd.f32 %v420, %v429
        %v437 = vadd.f32 %v421, %v430
        %v438 = vadd.f32 %v422, %v431
        %v439 = vadd.f32 %v423, %v432
        %v440 = vld [vmem:[#allocation2] sm:$0xff]
        %v441 = vld [vmem:[#allocation2 + $0x8] sm:$0xff]
        %v442 = vld [vmem:[#allocation2 + $0x10] sm:$0xff]
        %v443 = vld [vmem:[#allocation2 + $0x18] sm:$0xff]
        %v444 = vld [vmem:[#allocation2 + $0x20] sm:$0xff]
        %v445 = vld [vmem:[#allocation2 + $0x28] sm:$0xff]
        %v446 = vld [vmem:[#allocation2 + $0x30] sm:$0xff]
        %v447 = vadd.f32 %v440, %v433
        %v448 = vadd.f32 %v441, %v434
        %v449 = vadd.f32 %v442, %v435
        %v450 = vadd.f32 %v443, %v436
        %v451 = vadd.f32 %v444, %v437
        %v452 = vadd.f32 %v445, %v438
        %v453 = vadd.f32 %v446, %v439
        %454 = vst [vmem:[#allocation2] sm:$0xff] %v447
        %455 = vst [vmem:[#allocation2 + $0x8] sm:$0xff] %v448
        %456 = vst [vmem:[#allocation2 + $0x10] sm:$0xff] %v449
        %457 = vst [vmem:[#allocation2 + $0x18] sm:$0xff] %v450
        %458 = vst [vmem:[#allocation2 + $0x20] sm:$0xff] %v451
        %459 = vst [vmem:[#allocation2 + $0x28] sm:$0xff] %v452
        %460 = vst [vmem:[#allocation2 + $0x30] sm:$0xff] %v453
        %v461 = vld [vmem:[#allocation2] sm:$0xff]
        %v462 = vld [vmem:[#allocation2 + $0x8] sm:$0xff]
        %v463 = vld [vmem:[#allocation2 + $0x10] sm:$0xff]
        %v464 = vld [vmem:[#allocation2 + $0x18] sm:$0xff]
        %v465 = vld [vmem:[#allocation2 + $0x20] sm:$0xff]
        %v466 = vld [vmem:[#allocation2 + $0x28] sm:$0xff]
        %v467 = vld [vmem:[#allocation2 + $0x30] sm:$0xff]
        %v468 = vld [vmem:[#allocation2 + $0x38] sm:$0xff]
        %v469 = vld [vmem:[%s2] sm:$0x1]
        %v471 = vperm.slane %v469, 0
        %v473 = vadd.f32 %v461, %v471
        %v474 = vadd.f32 %v462, %v471
        %v475 = vadd.f32 %v463, %v471
        %v476 = vadd.f32 %v464, %v471
        %v477 = vadd.f32 %v465, %v471
        %v478 = vadd.f32 %v466, %v471
        %v479 = vadd.f32 %v467, %v471
        %v480 = vadd.f32 %v468, %v471
        %v481 = vmax.f32 %v473, 0.0
        %v482 = vmax.f32 %v474, 0.0
        %v483 = vmax.f32 %v475, 0.0
        %v484 = vmax.f32 %v476, 0.0
        %v485 = vmax.f32 %v477, 0.0
        %v486 = vmax.f32 %v478, 0.0
        %v487 = vmax.f32 %v479, 0.0
        %v488 = vmax.f32 %v480, 0.0
        %v489 = vld [vmem:[%s215] sm:$0xff]
        %v490 = vld [vmem:[%s215 + $0x8] sm:$0xff]
        %v491 = vld [vmem:[%s215 + $0x10] sm:$0xff]
        %v492 = vld [vmem:[%s215 + $0x18] sm:$0xff]
        %v493 = vld [vmem:[%s215 + $0x20] sm:$0xff]
        %v494 = vld [vmem:[%s215 + $0x28] sm:$0xff]
        %v495 = vld [vmem:[%s215 + $0x30] sm:$0xff]
        %v496 = vld [vmem:[%s215 + $0x38] sm:$0xff]
        %v497 = vadd.f32 %v481, %v489
        %v498 = vadd.f32 %v482, %v490
        %v499 = vadd.f32 %v483, %v491
        %v500 = vadd.f32 %v484, %v492
        %v501 = vadd.f32 %v485, %v493
        %v502 = vadd.f32 %v486, %v494
        %v503 = vadd.f32 %v487, %v495
        %v504 = vadd.f32 %v488, %v496
        %505 = vst [vmem:[%s205] sm:$0xff] %v497
        %506 = vst [vmem:[%s205 + $0x8] sm:$0xff] %v498
        %507 = vst [vmem:[%s205 + $0x10] sm:$0xff] %v499
        %508 = vst [vmem:[%s205 + $0x18] sm:$0xff] %v500
        %509 = vst [vmem:[%s205 + $0x20] sm:$0xff] %v501
        %510 = vst [vmem:[%s205 + $0x28] sm:$0xff] %v502
        %511 = vst [vmem:[%s205 + $0x30] sm:$0xff] %v503
        %512 = vst [vmem:[%s205 + $0x38] sm:$0xff] %v504
        %s513 = sand.u32 %s120, 1
        %s514 = scalar_lea.sflag [#allocation4], %s513
        %s515 = sand.u32 %s120, 1
        %s516 = smul.addr %s515, 64
        %s517 = scalar_lea.vmem [#allocation3], %s516
        // Predicated region
        $region37: #{kan_block_forward.11} parent=35 // pred_check
          %p518 = pneg %p130
        $region38: #{kan_block_forward.11} parent=35 // pred_check_branch
          %520 = sbr.rel (%p518) target = $region40
        $region39: #{kan_block_forward.11} parent=35 // pred_region
          %522 = vsyncadd %s514, 0
          %s523 = smul.addr %s18, 8
          %s524 = smul.addr %s523, 8
          %s525 = scalar_lea.hbm %s4, %s524
          %s526 = sshll.u32 %s517, 4
          %s527 = int_to_ptr.vmem [resolvable:$true] %s526
          %s528 = sshll.u32 %s525, 4
          %s529 = int_to_ptr.hbm [resolvable:$true] %s528
          %534 = dma.vmem_to_hbm [thread:$0]  %s527, 1024, %s529, %s514, 128, 128, 8
        $region40: #{kan_block_forward.11} parent=35 // pred_fallthru
          _
      $region36: #{kan_block_forward.11} parent=5 // pred_fallthru
        _
      %p535 = scmp.le.s32.totalorder 2, %s13
      // Predicated region
      $region41: #{kan_block_forward.11} parent=5 // pred_check
        %p536 = pneg %p535
      $region42: #{kan_block_forward.11} parent=5 // pred_check_branch
        %538 = sbr.rel (%p536) target = $region44
      $region43: #{kan_block_forward.11} parent=5 // pred_region
        %s539 = ssub.s32 %s13, 2
        // Predicated region
        $region45: #{kan_block_forward.11} parent=43 // pred_check
          %p540 = pneg %p136
        $region46: #{kan_block_forward.11} parent=43 // pred_check_branch
          %542 = sbr.rel (%p540) target = $region48
        $region47: #{kan_block_forward.11} parent=43 // pred_region
          %s543 = sand.u32 %s121, 1
          %s544 = scalar_lea.sflag [#allocation4], %s543
          %s545 = sand.u32 %s121, 1
          %s546 = smul.addr %s545, 64
          %s547 = scalar_lea.vmem [#allocation3], %s546
          %549 = dma.done %s544, 1024
        $region48: #{kan_block_forward.11} parent=43 // pred_fallthru
          _
      $region44: #{kan_block_forward.11} parent=5 // pred_fallthru
        _
    $region6: #{kan_block_forward.11} parent=1 // loop_footer
      %s17 = sadd.s32 1, %s13
    $region7: #{kan_block_forward.11} parent=1 // loop_footer_branch
      %12 = sbr.rel target = $region3
    $region8: #{kan_block_forward.11} parent=1 // loop_exit
      _
    %550 = vsyncpa [#allocation4], 1
    %s551 = scalar_lea.sflag [#allocation4], 1
    %552 = vsyncpa %s551, 1

// kernel: kan_block_forward.7
$region0: #{kan_block_forward.7}
  #allocation0 [shape = 'u32[]', space=smem, size = 0x4, offset = 0x4, fixed_abs, tag = 'smem constant byte address 0x4 - core index']
  #allocation1 [shape = 'u32[72,128]{1,0:T(1,128)}', space=vmem, size = 0x9000, scoped, tag = 'internal scratch']
  #allocation2 [shape = 'f32[1,8,8,128]{3,2,1,0:T(8,128)}', space=vmem, size = 0x8000, scoped, tag = 'scratch operand']
  %s0 = inlined_call_operand.vmem [shape: f32[2,8,8,128], index: 0, kind: input, shape index: {}]
  %s1 = inlined_call_operand.vmem [shape: f32[9,128], index: 1, kind: input, shape index: {}]
  %s2 = inlined_call_operand.vmem [shape: f32[1,1,1,128], index: 2, kind: input, shape index: {}]
  %s3 = inlined_call_operand.vmem [shape: f32[2,8,8,128], index: 3, kind: output, shape index: {}]
  %s4 = sld [smem:[#allocation0]]
  $region45: #{kan_block_forward.7} parent=0
    _
  %s6 = ssub.s32 1, %s4
  %s7 = scalar_select 0, %s6, %s4
  loop: start=0, step=1, limit=4
  $region2: #{kan_block_forward.7} parent=0 // loop_pre_header
    _
  $region3: #{kan_block_forward.7} parent=0 // loop_header
    %s9 = sphi 0, %s13
    %p10 = scmp.ge.s32.totalorder %s9, 4
    %s19 = sphi 0, %s21
    %s22 = sphi 0, %s19
    %s23 = sphi 0, %s22
    %s39 = sphi 0, %s23
    %s43 = sphi 0, %s43
    %s45 = sphi 0, %s43
    %s46 = sphi 0, %s45
    %s60 = sphi 0, %s46
    %s64 = sphi 0, %s64
    %s66 = sphi 0, %s64
    %s67 = sphi 0, %s66
    %s81 = sphi 0, %s67
    %s87 = sphi 0, %s89
    %s90 = sphi 0, %s87
    %s91 = sphi 0, %s90
    %s107 = sphi 0, %s91
  $region4: #{kan_block_forward.7} parent=0 // loop_header_branch
    %12 = sbr.rel (%p10) target = $region8
  $region5: #{kan_block_forward.7} parent=0 // loop_body
    %s14 = ssub.s32 %s9, 1
    %s15 = ssub.s32 %s9, 2
    %s16 = sadd.s32 %s9, 1
    %s17 = ssub.s32 %s9, %s16
    %p18 = scmp.eq.s32.totalorder %s17, 0
    %s20 = sadd.s32 %s19, 1
    %s21 = scalar_select %p18, %s19, %s20
    %p24 = pneg %p18
    %p25 = scmp.eq.s32.totalorder %s9, 1
    %p26 = por %p24, %p25
    %p27 = scmp.ne.s32.totalorder %s19, %s22
    %p28 = scmp.eq.s32.totalorder %s9, 0
    %p29 = por %p27, %p28
    %p30 = scmp.ne.s32.totalorder %s19, %s22
    %p31 = scmp.eq.s32.totalorder %s14, 1
    %p32 = por %p30, %p31
    %p33 = scmp.ne.s32.totalorder %s22, %s23
    %p34 = scmp.eq.s32.totalorder %s14, 0
    %p35 = por %p33, %p34
    %p36 = scmp.ne.s32.totalorder %s22, %s23
    %p37 = scmp.eq.s32.totalorder %s15, 1
    %p38 = por %p36, %p37
    %p40 = scmp.ne.s32.totalorder %s23, %s39
    %p41 = scmp.eq.s32.totalorder %s15, 0
    %p42 = por %p40, %p41
    %s44 = sadd.s32 %s43, 1
    %p47 = scmp.eq.s32.totalorder %s9, 1
    %p48 = scmp.ne.s32.totalorder %s43, %s45
    %p49 = scmp.eq.s32.totalorder %s9, 0
    %p50 = por %p48, %p49
    %p51 = scmp.ne.s32.totalorder %s43, %s45
    %p52 = scmp.eq.s32.totalorder %s14, 1
    %p53 = por %p51, %p52
    %p54 = scmp.ne.s32.totalorder %s45, %s46
    %p55 = scmp.eq.s32.totalorder %s14, 0
    %p56 = por %p54, %p55
    %p57 = scmp.ne.s32.totalorder %s45, %s46
    %p58 = scmp.eq.s32.totalorder %s15, 1
    %p59 = por %p57, %p58
    %p61 = scmp.ne.s32.totalorder %s46, %s60
    %p62 = scmp.eq.s32.totalorder %s15, 0
    %p63 = por %p61, %p62
    %s65 = sadd.s32 %s64, 1
    %p68 = scmp.eq.s32.totalorder %s9, 1
    %p69 = scmp.ne.s32.totalorder %s64, %s66
    %p70 = scmp.eq.s32.totalorder %s9, 0
    %p71 = por %p69, %p70
    %p72 = scmp.ne.s32.totalorder %s64, %s66
    %p73 = scmp.eq.s32.totalorder %s14, 1
    %p74 = por %p72, %p73
    %p75 = scmp.ne.s32.totalorder %s66, %s67
    %p76 = scmp.eq.s32.totalorder %s14, 0
    %p77 = por %p75, %p76
    %p78 = scmp.ne.s32.totalorder %s66, %s67
    %p79 = scmp.eq.s32.totalorder %s15, 1
    %p80 = por %p78, %p79
    %p82 = scmp.ne.s32.totalorder %s67, %s81
    %p83 = scmp.eq.s32.totalorder %s15, 0
    %p84 = por %p82, %p83
    %s85 = ssub.s32 %s9, %s16
    %p86 = scmp.eq.s32.totalorder %s85, 0
    %s88 = sadd.s32 %s87, 1
    %s89 = scalar_select %p86, %s87, %s88
    %p92 = pneg %p86
    %p93 = scmp.eq.s32.totalorder %s9, 1
    %p94 = por %p92, %p93
    %p95 = scmp.ne.s32.totalorder %s87, %s90
    %p96 = scmp.eq.s32.totalorder %s9, 0
    %p97 = por %p95, %p96
    %p98 = scmp.ne.s32.totalorder %s87, %s90
    %p99 = scmp.eq.s32.totalorder %s14, 1
    %p100 = por %p98, %p99
    %p101 = scmp.ne.s32.totalorder %s90, %s91
    %p102 = scmp.eq.s32.totalorder %s14, 0
    %p103 = por %p101, %p102
    %p104 = scmp.ne.s32.totalorder %s90, %s91
    %p105 = scmp.eq.s32.totalorder %s15, 1
    %p106 = por %p104, %p105
    %p108 = scmp.ne.s32.totalorder %s91, %s107
    %p109 = scmp.eq.s32.totalorder %s15, 0
    %p110 = por %p108, %p109
    %p111 = scmp.le.s32.totalorder 1, %s9
    %p112 = scmp.lt.s32.totalorder %s9, 3
    %p113 = pnand %p111, %p112
    %p114 = pneg %p113
    // Predicated region
    $region9: #{kan_block_forward.7} parent=5 // pred_check
      _
    $region10: #{kan_block_forward.7} parent=5 // pred_check_branch
      %116 = sbr.rel (%p113) target = $region12
    $region11: #{kan_block_forward.7} parent=5 // pred_region
      %s117 = ssub.s32 %s9, 1
      // Predicated region
      $region13: #{kan_block_forward.7} parent=11 // pred_check
        %p118 = pneg %p56
      $region14: #{kan_block_forward.7} parent=11 // pred_check_branch
        %120 = sbr.rel (%p118) target = $region16
      $region15: #{kan_block_forward.7} parent=11 // pred_region
        _
      $region16: #{kan_block_forward.7} parent=11 // pred_fallthru
        _
      // Predicated region
      $region17: #{kan_block_forward.7} parent=11 // pred_check
        %p121 = pneg %p77
      $region18: #{kan_block_forward.7} parent=11 // pred_check_branch
        %123 = sbr.rel (%p121) target = $region20
      $region19: #{kan_block_forward.7} parent=11 // pred_region
        _
      $region20: #{kan_block_forward.7} parent=11 // pred_fallthru
        _
    $region12: #{kan_block_forward.7} parent=5 // pred_fallthru
      _
    %p124 = scmp.lt.s32.totalorder %s9, 2
    // Predicated region
    $region21: #{kan_block_forward.7} parent=5 // pred_check
      %p125 = pneg %p124
    $region22: #{kan_block_forward.7} parent=5 // pred_check_branch
      %127 = sbr.rel (%p125) target = $region24
    $region23: #{kan_block_forward.7} parent=5 // pred_region
      // Predicated region
      $region25: #{kan_block_forward.7} parent=23 // pred_check
        %p128 = pneg %p29
      $region26: #{kan_block_forward.7} parent=23 // pred_check_branch
        %130 = sbr.rel (%p128) target = $region28
      $region27: #{kan_block_forward.7} parent=23 // pred_region
        %p131 = scmp.lt.s32.totalorder %s9, 1
        %s132 = scalar_select %p131, %s9, 1
        %s133 = smul.addr %s132, 8
        %s134 = smul.addr %s133, 8
        %s135 = scalar_lea.vmem %s0, %s134
      $region28: #{kan_block_forward.7} parent=23 // pred_fallthru
        _
    $region24: #{kan_block_forward.7} parent=5 // pred_fallthru
      _
    %p136 = scmp.le.s32.totalorder 1, %s9
    %p137 = scmp.lt.s32.totalorder %s9, 3
    %p138 = pnand %p136, %p137
    %p139 = pneg %p138
    // Predicated region
    $region29: #{kan_block_forward.7} parent=5 // pred_check
      _
    $region30: #{kan_block_forward.7} parent=5 // pred_check_branch
      %141 = sbr.rel (%p138) target = $region32
    $region31: #{kan_block_forward.7} parent=5 // pred_region
      %s142 = ssub.s32 %s9, 1
      %p143 = scmp.lt.s32.totalorder %s14, 1
      %s144 = scalar_select %p143, %s14, 1
      %s145 = smul.addr %s144, 8
      %s146 = smul.addr %s145, 8
      %s147 = scalar_lea.vmem %s0, %s146
      %p148 = pneg %p35
      %p149 = pneg %p32
      %p150 = pneg %p56
      %p151 = pneg %p53
      %p152 = pneg %p77
      %p153 = pneg %p74
      %p154 = pneg %p103
      %p155 = pneg %p100
      %p156 = scmp.lt.s32.totalorder %s14, 1
      %s157 = scalar_select %p156, %s14, 1
      %s158 = smul.addr %s157, 8
      %s159 = smul.addr %s158, 8
      %s160 = scalar_lea.vmem %s3, %s159
      %p161 = scmp.lt.s32.totalorder %s14, 1
      %s162 = scalar_select %p161, %s14, 1
      %s163 = smul.addr %s162, 8
      %s164 = smul.addr %s163, 8
      %s165 = scalar_lea.vmem %s0, %s164
      %p166 = scmp.lt.s32.totalorder %s14, 1
      %s167 = scalar_select %p166, %s14, 1
      %s168 = smul.addr %s167, 8
      %s169 = smul.addr %s168, 8
      %s170 = scalar_lea.vmem %s3, %s169
      %v171 = vld [vmem:[%s165] sm:$0xff]
      %v172 = vld [vmem:[%s165 + $0x8] sm:$0xff]
      %v173 = vld [vmem:[%s165 + $0x10] sm:$0xff]
      %v174 = vld [vmem:[%s165 + $0x18] sm:$0xff]
      %v175 = vld [vmem:[%s165 + $0x20] sm:$0xff]
      %v176 = vld [vmem:[%s165 + $0x28] sm:$0xff]
      %v177 = vld [vmem:[%s165 + $0x30] sm:$0xff]
      %v178 = vld [vmem:[%s165 + $0x38] sm:$0xff]
      %v187 = vrot.slane %v171, 7
      %v188 = vrot.slane %v172, 7
      %v189 = vrot.slane %v173, 7
      %v190 = vrot.slane %v174, 7
      %v191 = vrot.slane %v175, 7
      %v192 = vrot.slane %v176, 7
      %v193 = vrot.slane %v177, 7
      %v194 = vrot.slane %v178, 7
      %vm203 = vcmask 1040384
      %v204 = vsel %vm203, 0.0, %v187
      %v205 = vsel %vm203, 0.0, %v188
      %v206 = vsel %vm203, 0.0, %v189
      %v207 = vsel %vm203, 0.0, %v190
      %v208 = vsel %vm203, 0.0, %v191
      %v209 = vsel %vm203, 0.0, %v192
      %v210 = vsel %vm203, 0.0, %v193
      %v211 = vsel %vm203, 0.0, %v194
      %v212 = vrot.slane %v171, 1
      %v213 = vrot.slane %v172, 1
      %v214 = vrot.slane %v173, 1
      %v215 = vrot.slane %v174, 1
      %v216 = vrot.slane %v175, 1
      %v217 = vrot.slane %v176, 1
      %v218 = vrot.slane %v177, 1
      %v219 = vrot.slane %v178, 1
      %vm228 = vcmask 1046528
      %v229 = vsel %vm228, %v212, 0.0
      %v230 = vsel %vm228, %v213, 0.0
      %v231 = vsel %vm228, %v214, 0.0
      %v232 = vsel %vm228, %v215, 0.0
      %v233 = vsel %vm228, %v216, 0.0
      %v234 = vsel %vm228, %v217, 0.0
      %v235 = vsel %vm228, %v218, 0.0
      %v236 = vsel %vm228, %v219, 0.0
      %v237 = vld [vmem:[%s1 + $0x3] sm:$0x1]
      %v238 = vperm.slane %v237, 0
      %v239 = vmul.f32 %v204, %v238
      %v240 = vmul.f32 %v205, %v238
      %v241 = vmul.f32 %v206, %v238
      %v242 = vmul.f32 %v207, %v238
      %v243 = vmul.f32 %v208, %v238
      %v244 = vmul.f32 %v209, %v238
      %v245 = vmul.f32 %v210, %v238
      %v246 = vmul.f32 %v211, %v238
      %v247 = vld [vmem:[%s1 + $0x4] sm:$0x1]
      %v248 = vperm.slane %v247, 0
      %v249 = vmul.f32 %v171, %v248
      %v250 = vmul.f32 %v172, %v248
      %v251 = vmul.f32 %v173, %v248
      %v252 = vmul.f32 %v174, %v248
      %v253 = vmul.f32 %v175, %v248
      %v254 = vmul.f32 %v176, %v248
      %v255 = vmul.f32 %v177, %v248
      %v256 = vmul.f32 %v178, %v248
      %v257 = vadd.f32 %v239, %v249
      %v258 = vadd.f32 %v240, %v250
      %v259 = vadd.f32 %v241, %v251
      %v260 = vadd.f32 %v242, %v252
      %v261 = vadd.f32 %v243, %v253
      %v262 = vadd.f32 %v244, %v254
      %v263 = vadd.f32 %v245, %v255
      %v264 = vadd.f32 %v246, %v256
      %v265 = vld [vmem:[%s1 + $0x5] sm:$0x1]
      %v266 = vperm.slane %v265, 0
      %v267 = vmul.f32 %v229, %v266
      %v268 = vmul.f32 %v230, %v266
      %v269 = vmul.f32 %v231, %v266
      %v270 = vmul.f32 %v232, %v266
      %v271 = vmul.f32 %v233, %v266
      %v272 = vmul.f32 %v234, %v266
      %v273 = vmul.f32 %v235, %v266
      %v274 = vmul.f32 %v236, %v266
      %v275 = vadd.f32 %v257, %v267
      %v276 = vadd.f32 %v258, %v268
      %v277 = vadd.f32 %v259, %v269
      %v278 = vadd.f32 %v260, %v270
      %v279 = vadd.f32 %v261, %v271
      %v280 = vadd.f32 %v262, %v272
      %v281 = vadd.f32 %v263, %v273
      %v282 = vadd.f32 %v264, %v274
      %283 = vst [vmem:[#allocation2] sm:$0xff] %v275
      %284 = vst [vmem:[#allocation2 + $0x8] sm:$0xff] %v276
      %285 = vst [vmem:[#allocation2 + $0x10] sm:$0xff] %v277
      %286 = vst [vmem:[#allocation2 + $0x18] sm:$0xff] %v278
      %287 = vst [vmem:[#allocation2 + $0x20] sm:$0xff] %v279
      %288 = vst [vmem:[#allocation2 + $0x28] sm:$0xff] %v280
      %289 = vst [vmem:[#allocation2 + $0x30] sm:$0xff] %v281
      %290 = vst [vmem:[#allocation2 + $0x38] sm:$0xff] %v282
      %v291 = vld [vmem:[%s1] sm:$0x1]
      %v292 = vperm.slane %v291, 0
      %v293 = vmul.f32 %v204, %v292
      %v294 = vmul.f32 %v205, %v292
      %v295 = vmul.f32 %v206, %v292
      %v296 = vmul.f32 %v207, %v292
      %v297 = vmul.f32 %v208, %v292
      %v298 = vmul.f32 %v209, %v292
      %v299 = vmul.f32 %v210, %v292
      %v300 = vld [vmem:[%s1 + $0x1] sm:$0x1]
      %v301 = vperm.slane %v300, 0
      %v302 = vmul.f32 %v171, %v301
      %v303 = vmul.f32 %v172, %v301
      %v304 = vmul.f32 %v173, %v301
      %v305 = vmul.f32 %v174, %v301
      %v306 = vmul.f32 %v175, %v301
      %v307 = vmul.f32 %v176, %v301
      %v308 = vmul.f32 %v177, %v301
      %v309 = vadd.f32 %v293, %v302
      %v310 = vadd.f32 %v294, %v303
      %v311 = vadd.f32 %v295, %v304
      %v312 = vadd.f32 %v296, %v305
      %v313 = vadd.f32 %v297, %v306
      %v314 = vadd.f32 %v298, %v307
      %v315 = vadd.f32 %v299, %v308
      %v316 = vld [vmem:[%s1 + $0x2] sm:$0x1]
      %v317 = vperm.slane %v316, 0
      %v318 = vmul.f32 %v229, %v317
      %v319 = vmul.f32 %v230, %v317
      %v320 = vmul.f32 %v231, %v317
      %v321 = vmul.f32 %v232, %v317
      %v322 = vmul.f32 %v233, %v317
      %v323 = vmul.f32 %v234, %v317
      %v324 = vmul.f32 %v235, %v317
      %v325 = vadd.f32 %v309, %v318
      %v326 = vadd.f32 %v310, %v319
      %v327 = vadd.f32 %v311, %v320
      %v328 = vadd.f32 %v312, %v321
      %v329 = vadd.f32 %v313, %v322
      %v330 = vadd.f32 %v314, %v323
      %v331 = vadd.f32 %v315, %v324
      %s332 = scalar_lea.vmem [#allocation2], 8
      %v333 = vld [vmem:[%s332] sm:$0xff]
      %v334 = vld [vmem:[%s332 + $0x8] sm:$0xff]
      %v335 = vld [vmem:[%s332 + $0x10] sm:$0xff]
      %v336 = vld [vmem:[%s332 + $0x18] sm:$0xff]
      %v337 = vld [vmem:[%s332 + $0x20] sm:$0xff]
      %v338 = vld [vmem:[%s332 + $0x28] sm:$0xff]
      %v339 = vld [vmem:[%s332 + $0x30] sm:$0xff]
      %v340 = vadd.f32 %v333, %v325
      %v341 = vadd.f32 %v334, %v326
      %v342 = vadd.f32 %v335, %v327
      %v343 = vadd.f32 %v336, %v328
      %v344 = vadd.f32 %v337, %v329
      %v345 = vadd.f32 %v338, %v330
      %v346 = vadd.f32 %v339, %v331
      %347 = vst [vmem:[%s332] sm:$0xff] %v340
      %348 = vst [vmem:[%s332 + $0x8] sm:$0xff] %v341
      %349 = vst [vmem:[%s332 + $0x10] sm:$0xff] %v342
      %350 = vst [vmem:[%s332 + $0x18] sm:$0xff] %v343
      %351 = vst [vmem:[%s332 + $0x20] sm:$0xff] %v344
      %352 = vst [vmem:[%s332 + $0x28] sm:$0xff] %v345
      %353 = vst [vmem:[%s332 + $0x30] sm:$0xff] %v346
      %v354 = vld [vmem:[%s1 + $0x6] sm:$0x1]
      %v355 = vperm.slane %v354, 0
      %v356 = vmul.f32 %v205, %v355
      %v357 = vmul.f32 %v206, %v355
      %v358 = vmul.f32 %v207, %v355
      %v359 = vmul.f32 %v208, %v355
      %v360 = vmul.f32 %v209, %v355
      %v361 = vmul.f32 %v210, %v355
      %v362 = vmul.f32 %v211, %v355
      %v363 = vld [vmem:[%s1 + $0x7] sm:$0x1]
      %v364 = vperm.slane %v363, 0
      %v365 = vmul.f32 %v172, %v364
      %v366 = vmul.f32 %v173, %v364
      %v367 = vmul.f32 %v174, %v364
      %v368 = vmul.f32 %v175, %v364
      %v369 = vmul.f32 %v176, %v364
      %v370 = vmul.f32 %v177, %v364
      %v371 = vmul.f32 %v178, %v364
      %v372 = vadd.f32 %v356, %v365
      %v373 = vadd.f32 %v357, %v366
      %v374 = vadd.f32 %v358, %v367
      %v375 = vadd.f32 %v359, %v368
      %v376 = vadd.f32 %v360, %v369
      %v377 = vadd.f32 %v361, %v370
      %v378 = vadd.f32 %v362, %v371
      %v379 = vld [vmem:[%s1 + $0x8] sm:$0x1]
      %v380 = vperm.slane %v379, 0
      %v381 = vmul.f32 %v230, %v380
      %v382 = vmul.f32 %v231, %v380
      %v383 = vmul.f32 %v232, %v380
      %v384 = vmul.f32 %v233, %v380
      %v385 = vmul.f32 %v234, %v380
      %v386 = vmul.f32 %v235, %v380
      %v387 = vmul.f32 %v236, %v380
      %v388 = vadd.f32 %v372, %v381
      %v389 = vadd.f32 %v373, %v382
      %v390 = vadd.f32 %v374, %v383
      %v391 = vadd.f32 %v375, %v384
      %v392 = vadd.f32 %v376, %v385
      %v393 = vadd.f32 %v377, %v386
      %v394 = vadd.f32 %v378, %v387
      %v395 = vld [vmem:[#allocation2] sm:$0xff]
      %v396 = vld [vmem:[#allocation2 + $0x8] sm:$0xff]
      %v397 = vld [vmem:[#allocation2 + $0x10] sm:$0xff]
      %v398 = vld [vmem:[#allocation2 + $0x18] sm:$0xff]
      %v399 = vld [vmem:[#allocation2 + $0x20] sm:$0xff]
      %v400 = vld [vmem:[#allocation2 + $0x28] sm:$0xff]
      %v401 = vld [vmem:[#allocation2 + $0x30] sm:$0xff]
      %v402 = vadd.f32 %v395, %v388
      %v403 = vadd.f32 %v396, %v389
      %v404 = vadd.f32 %v397, %v390
      %v405 = vadd.f32 %v398, %v391
      %v406 = vadd.f32 %v399, %v392
      %v407 = vadd.f32 %v400, %v393
      %v408 = vadd.f32 %v401, %v394
      %409 = vst [vmem:[#allocation2] sm:$0xff] %v402
      %410 = vst [vmem:[#allocation2 + $0x8] sm:$0xff] %v403
      %411 = vst [vmem:[#allocation2 + $0x10] sm:$0xff] %v404
      %412 = vst [vmem:[#allocation2 + $0x18] sm:$0xff] %v405
      %413 = vst [vmem:[#allocation2 + $0x20] sm:$0xff] %v406
      %414 = vst [vmem:[#allocation2 + $0x28] sm:$0xff] %v407
      %415 = vst [vmem:[#allocation2 + $0x30] sm:$0xff] %v408
      %v416 = vld [vmem:[#allocation2] sm:$0xff]
      %v417 = vld [vmem:[#allocation2 + $0x8] sm:$0xff]
      %v418 = vld [vmem:[#allocation2 + $0x10] sm:$0xff]
      %v419 = vld [vmem:[#allocation2 + $0x18] sm:$0xff]
      %v420 = vld [vmem:[#allocation2 + $0x20] sm:$0xff]
      %v421 = vld [vmem:[#allocation2 + $0x28] sm:$0xff]
      %v422 = vld [vmem:[#allocation2 + $0x30] sm:$0xff]
      %v423 = vld [vmem:[#allocation2 + $0x38] sm:$0xff]
      %v424 = vld [vmem:[%s2] sm:$0x1]
      %v426 = vperm.slane %v424, 0
      %v428 = vadd.f32 %v416, %v426
      %v429 = vadd.f32 %v417, %v426
      %v430 = vadd.f32 %v418, %v426
      %v431 = vadd.f32 %v419, %v426
      %v432 = vadd.f32 %v420, %v426
      %v433 = vadd.f32 %v421, %v426
      %v434 = vadd.f32 %v422, %v426
      %v435 = vadd.f32 %v423, %v426
      %v436 = vmax.f32 %v428, 0.0
      %v437 = vmax.f32 %v429, 0.0
      %v438 = vmax.f32 %v430, 0.0
      %v439 = vmax.f32 %v431, 0.0
      %v440 = vmax.f32 %v432, 0.0
      %v441 = vmax.f32 %v433, 0.0
      %v442 = vmax.f32 %v434, 0.0
      %v443 = vmax.f32 %v435, 0.0
      %444 = vst [vmem:[%s170] sm:$0xff] %v436
      %445 = vst [vmem:[%s170 + $0x8] sm:$0xff] %v437
      %446 = vst [vmem:[%s170 + $0x10] sm:$0xff] %v438
      %447 = vst [vmem:[%s170 + $0x18] sm:$0xff] %v439
      %448 = vst [vmem:[%s170 + $0x20] sm:$0xff] %v440
      %449 = vst [vmem:[%s170 + $0x28] sm:$0xff] %v441
      %450 = vst [vmem:[%s170 + $0x30] sm:$0xff] %v442
      %451 = vst [vmem:[%s170 + $0x38] sm:$0xff] %v443
      %p452 = scmp.lt.s32.totalorder %s14, 1
      %s453 = scalar_select %p452, %s14, 1
      %s454 = smul.addr %s453, 8
      %s455 = smul.addr %s454, 8
      %s456 = scalar_lea.vmem %s3, %s455
      // Predicated region
      $region33: #{kan_block_forward.7} parent=31 // pred_check
        %p457 = pneg %p100
      $region34: #{kan_block_forward.7} parent=31 // pred_check_branch
        %459 = sbr.rel (%p457) target = $region36
      $region35: #{kan_block_forward.7} parent=31 // pred_region
        _
      $region36: #{kan_block_forward.7} parent=31 // pred_fallthru
        _
    $region32: #{kan_block_forward.7} parent=5 // pred_fallthru
      _
    %p460 = scmp.le.s32.totalorder 2, %s9
    // Predicated region
    $region37: #{kan_block_forward.7} parent=5 // pred_check
      %p461 = pneg %p460
    $region38: #{kan_block_forward.7} parent=5 // pred_check_branch
      %463 = sbr.rel (%p461) target = $region40
    $region39: #{kan_block_forward.7} parent=5 // pred_region
      %s464 = ssub.s32 %s9, 2
      // Predicated region
      $region41: #{kan_block_forward.7} parent=39 // pred_check
        %p465 = pneg %p106
      $region42: #{kan_block_forward.7} parent=39 // pred_check_branch
        %467 = sbr.rel (%p465) target = $region44
      $region43: #{kan_block_forward.7} parent=39 // pred_region
        %p468 = scmp.lt.s32.totalorder %s15, 1
        %s469 = scalar_select %p468, %s15, 1
        %s470 = smul.addr %s469, 8
        %s471 = smul.addr %s470, 8
        %s472 = scalar_lea.vmem %s3, %s471
      $region44: #{kan_block_forward.7} parent=39 // pred_fallthru
        _
    $region40: #{kan_block_forward.7} parent=5 // pred_fallthru
      _
  $region6: #{kan_block_forward.7} parent=0 // loop_footer
    %s13 = sadd.s32 1, %s9
  $region7: #{kan_block_forward.7} parent=0 // loop_footer_branch
    %8 = sbr.rel target = $region3
  $region8: #{kan_block_forward.7} parent=0 // loop_exit
    _

// kernel: kan_block_forward.6
$region0: #{kan_block_forward.6}
  #allocation0 [shape = 'u32[]', space=smem, size = 0x4, offset = 0x4, fixed_abs, tag = 'smem constant byte address 0x4 - core index']
  #allocation1 [shape = 'u32[72,128]{1,0:T(1,128)}', space=vmem, size = 0x9000, scoped, tag = 'internal scratch']
  %s0 = inlined_call_operand.hbm [shape: f32[128,128], index: 0, kind: input, shape index: {}]
  %s1 = inlined_call_operand.vmem [shape: f32[1,128], index: 1, kind: input, shape index: {}]
  %s2 = inlined_call_operand.vmem [shape: f32[1,128], index: 2, kind: input, shape index: {}]
  %s3 = inlined_call_operand.hbm [shape: bf16[1152,128], index: 3, kind: input, shape index: {}]
  %s4 = inlined_call_operand.vmem [shape: f32[128,128], index: 4, kind: output, shape index: {}]
  %s5 = sld [smem:[#allocation0]]
  $region57: #{kan_block_forward.6} parent=0
    _
  %s7 = ssub.s32 1, %s5
  %s8 = scalar_select 0, %s7, %s5
  $region1: #{kan_block_forward.6} parent=0
    #allocation2 [shape = 'u8[65536]{0}', space=vmem, size = 0x10000, scoped, tag = 'input window, operand 0']
    #allocation3 [shape = 's32[2]{0}', space=sflag, size = 0x8, scoped, tag = 'scoped memory for kan_block_forward.6']
    #allocation4 [shape = 'u8[294912]{0}', space=vmem, size = 0x48000, scoped, tag = 'input window, operand 3, single buffered']
    #allocation5 [shape = 's32[1]{0}', space=sflag, size = 0x4, scoped, tag = 'scoped memory for kan_block_forward.6']
    %9 = vsyncpa [#allocation3], 0
    %s10 = scalar_lea.sflag [#allocation3], 1
    %11 = vsyncpa %s10, 0
    %12 = vsyncpa [#allocation5], 0
    loop: start=0, step=1, limit=4
    $region2: #{kan_block_forward.6} parent=1 // loop_pre_header
      _
    $region3: #{kan_block_forward.6} parent=1 // loop_header
      %s14 = sphi 0, %s18
      %p15 = scmp.ge.s32.totalorder %s14, 4
      %s24 = sphi 0, %s26
      %s27 = sphi 0, %s24
      %s28 = sphi 0, %s27
      %s44 = sphi 0, %s28
      %s48 = sphi 0, %s48
      %s50 = sphi 0, %s48
      %s51 = sphi 0, %s50
      %s65 = sphi 0, %s51
      %s69 = sphi 0, %s69
      %s71 = sphi 0, %s69
      %s72 = sphi 0, %s71
      %s86 = sphi 0, %s72
      %s90 = sphi 0, %s90
      %s92 = sphi 0, %s90
      %s93 = sphi 0, %s92
      %s107 = sphi 0, %s93
      %s113 = sphi 0, %s115
      %s116 = sphi 0, %s113
      %s117 = sphi 0, %s116
      %s133 = sphi 0, %s117
    $region4: #{kan_block_forward.6} parent=1 // loop_header_branch
      %17 = sbr.rel (%p15) target = $region8
    $region5: #{kan_block_forward.6} parent=1 // loop_body
      %s19 = ssub.s32 %s14, 1
      %s20 = ssub.s32 %s14, 2
      %s21 = sadd.s32 %s14, 1
      %s22 = ssub.s32 %s14, %s21
      %p23 = scmp.eq.s32.totalorder %s22, 0
      %s25 = sadd.s32 %s24, 1
      %s26 = scalar_select %p23, %s24, %s25
      %p29 = pneg %p23
      %p30 = scmp.eq.s32.totalorder %s14, 1
      %p31 = por %p29, %p30
      %p32 = scmp.ne.s32.totalorder %s24, %s27
      %p33 = scmp.eq.s32.totalorder %s14, 0
      %p34 = por %p32, %p33
      %p35 = scmp.ne.s32.totalorder %s24, %s27
      %p36 = scmp.eq.s32.totalorder %s19, 1
      %p37 = por %p35, %p36
      %p38 = scmp.ne.s32.totalorder %s27, %s28
      %p39 = scmp.eq.s32.totalorder %s19, 0
      %p40 = por %p38, %p39
      %p41 = scmp.ne.s32.totalorder %s27, %s28
      %p42 = scmp.eq.s32.totalorder %s20, 1
      %p43 = por %p41, %p42
      %p45 = scmp.ne.s32.totalorder %s28, %s44
      %p46 = scmp.eq.s32.totalorder %s20, 0
      %p47 = por %p45, %p46
      %s49 = sadd.s32 %s48, 1
      %p52 = scmp.eq.s32.totalorder %s14, 1
      %p53 = scmp.ne.s32.totalorder %s48, %s50
      %p54 = scmp.eq.s32.totalorder %s14, 0
      %p55 = por %p53, %p54
      %p56 = scmp.ne.s32.totalorder %s48, %s50
      %p57 = scmp.eq.s32.totalorder %s19, 1
      %p58 = por %p56, %p57
      %p59 = scmp.ne.s32.totalorder %s50, %s51
      %p60 = scmp.eq.s32.totalorder %s19, 0
      %p61 = por %p59, %p60
      %p62 = scmp.ne.s32.totalorder %s50, %s51
      %p63 = scmp.eq.s32.totalorder %s20, 1
      %p64 = por %p62, %p63
      %p66 = scmp.ne.s32.totalorder %s51, %s65
      %p67 = scmp.eq.s32.totalorder %s20, 0
      %p68 = por %p66, %p67
      %s70 = sadd.s32 %s69, 1
      %p73 = scmp.eq.s32.totalorder %s14, 1
      %p74 = scmp.ne.s32.totalorder %s69, %s71
      %p75 = scmp.eq.s32.totalorder %s14, 0
      %p76 = por %p74, %p75
      %p77 = scmp.ne.s32.totalorder %s69, %s71
      %p78 = scmp.eq.s32.totalorder %s19, 1
      %p79 = por %p77, %p78
      %p80 = scmp.ne.s32.totalorder %s71, %s72
      %p81 = scmp.eq.s32.totalorder %s19, 0
      %p82 = por %p80, %p81
      %p83 = scmp.ne.s32.totalorder %s71, %s72
      %p84 = scmp.eq.s32.totalorder %s20, 1
      %p85 = por %p83, %p84
      %p87 = scmp.ne.s32.totalorder %s72, %s86
      %p88 = scmp.eq.s32.totalorder %s20, 0
      %p89 = por %p87, %p88
      %s91 = sadd.s32 %s90, 1
      %p94 = scmp.eq.s32.totalorder %s14, 1
      %p95 = scmp.ne.s32.totalorder %s90, %s92
      %p96 = scmp.eq.s32.totalorder %s14, 0
      %p97 = por %p95, %p96
      %p98 = scmp.ne.s32.totalorder %s90, %s92
      %p99 = scmp.eq.s32.totalorder %s19, 1
      %p100 = por %p98, %p99
      %p101 = scmp.ne.s32.totalorder %s92, %s93
      %p102 = scmp.eq.s32.totalorder %s19, 0
      %p103 = por %p101, %p102
      %p104 = scmp.ne.s32.totalorder %s92, %s93
      %p105 = scmp.eq.s32.totalorder %s20, 1
      %p106 = por %p104, %p105
      %p108 = scmp.ne.s32.totalorder %s93, %s107
      %p109 = scmp.eq.s32.totalorder %s20, 0
      %p110 = por %p108, %p109
      %s111 = ssub.s32 %s14, %s21
      %p112 = scmp.eq.s32.totalorder %s111, 0
      %s114 = sadd.s32 %s113, 1
      %s115 = scalar_select %p112, %s113, %s114
      %p118 = pneg %p112
      %p119 = scmp.eq.s32.totalorder %s14, 1
      %p120 = por %p118, %p119
      %p121 = scmp.ne.s32.totalorder %s113, %s116
      %p122 = scmp.eq.s32.totalorder %s14, 0
      %p123 = por %p121, %p122
      %p124 = scmp.ne.s32.totalorder %s113, %s116
      %p125 = scmp.eq.s32.totalorder %s19, 1
      %p126 = por %p124, %p125
      %p127 = scmp.ne.s32.totalorder %s116, %s117
      %p128 = scmp.eq.s32.totalorder %s19, 0
      %p129 = por %p127, %p128
      %p130 = scmp.ne.s32.totalorder %s116, %s117
      %p131 = scmp.eq.s32.totalorder %s20, 1
      %p132 = por %p130, %p131
      %p134 = scmp.ne.s32.totalorder %s117, %s133
      %p135 = scmp.eq.s32.totalorder %s20, 0
      %p136 = por %p134, %p135
      %p137 = scmp.le.s32.totalorder 1, %s14
      %p138 = scmp.lt.s32.totalorder %s14, 3
      %p139 = pnand %p137, %p138
      %p140 = pneg %p139
      // Predicated region
      $region9: #{kan_block_forward.6} parent=5 // pred_check
        _
      $region10: #{kan_block_forward.6} parent=5 // pred_check_branch
        %142 = sbr.rel (%p139) target = $region12
      $region11: #{kan_block_forward.6} parent=5 // pred_region
        %s143 = ssub.s32 %s14, 1
        // Predicated region
        $region13: #{kan_block_forward.6} parent=11 // pred_check
          %p144 = pneg %p61
        $region14: #{kan_block_forward.6} parent=11 // pred_check_branch
          %146 = sbr.rel (%p144) target = $region16
        $region15: #{kan_block_forward.6} parent=11 // pred_region
          _
        $region16: #{kan_block_forward.6} parent=11 // pred_fallthru
          _
        // Predicated region
        $region17: #{kan_block_forward.6} parent=11 // pred_check
          %p147 = pneg %p82
        $region18: #{kan_block_forward.6} parent=11 // pred_check_branch
          %149 = sbr.rel (%p147) target = $region20
        $region19: #{kan_block_forward.6} parent=11 // pred_region
          _
        $region20: #{kan_block_forward.6} parent=11 // pred_fallthru
          _
        // Predicated region
        $region21: #{kan_block_forward.6} parent=11 // pred_check
          %p150 = pneg %p103
        $region22: #{kan_block_forward.6} parent=11 // pred_check_branch
          %152 = sbr.rel (%p150) target = $region24
        $region23: #{kan_block_forward.6} parent=11 // pred_region
          %154 = vsyncadd [#allocation5], 0
          %s155 = sshll.u32 %s3, 4
          %s156 = int_to_ptr.hbm [resolvable:$true] %s155
          %s157 = sshll.u32 [#allocation4], 4
          %s158 = int_to_ptr.vmem [resolvable:$true] %s157
          %163 = dma.hbm_to_vmem [thread:$0]  %s156, 9216, %s158, [#allocation5], 64, 64, 4
        $region24: #{kan_block_forward.6} parent=11 // pred_fallthru
          _
      $region12: #{kan_block_forward.6} parent=5 // pred_fallthru
        _
      %p164 = scmp.lt.s32.totalorder %s14, 2
      // Predicated region
      $region25: #{kan_block_forward.6} parent=5 // pred_check
        %p165 = pneg %p164
      $region26: #{kan_block_forward.6} parent=5 // pred_check_branch
        %167 = sbr.rel (%p165) target = $region28
      $region27: #{kan_block_forward.6} parent=5 // pred_region
        // Predicated region
        $region29: #{kan_block_forward.6} parent=27 // pred_check
          %p168 = pneg %p34
        $region30: #{kan_block_forward.6} parent=27 // pred_check_branch
          %170 = sbr.rel (%p168) target = $region32
        $region31: #{kan_block_forward.6} parent=27 // pred_region
          %s171 = sand.u32 %s24, 1
          %s172 = scalar_lea.sflag [#allocation3], %s171
          %s173 = sand.u32 %s24, 1
          %s174 = smul.addr %s173, 64
          %s175 = scalar_lea.vmem [#allocation2], %s174
          %s176 = smul.u32 8, %s14
          %178 = vsyncadd %s172, 0
          %s179 = smul.addr %s176, 8
          %s180 = scalar_lea.hbm %s0, %s179
          %s181 = sshll.u32 %s180, 4
          %s182 = int_to_ptr.hbm [resolvable:$true] %s181
          %s183 = sshll.u32 %s175, 4
          %s184 = int_to_ptr.vmem [resolvable:$true] %s183
          %189 = dma.hbm_to_vmem [thread:$0]  %s182, 1024, %s184, %s172, 128, 128, 8
        $region32: #{kan_block_forward.6} parent=27 // pred_fallthru
          _
      $region28: #{kan_block_forward.6} parent=5 // pred_fallthru
        _
      %p190 = scmp.le.s32.totalorder 1, %s14
      %p191 = scmp.lt.s32.totalorder %s14, 3
      %p192 = pnand %p190, %p191
      %p193 = pneg %p192
      // Predicated region
      $region33: #{kan_block_forward.6} parent=5 // pred_check
        _
      $region34: #{kan_block_forward.6} parent=5 // pred_check_branch
        %195 = sbr.rel (%p192) target = $region36
      $region35: #{kan_block_forward.6} parent=5 // pred_region
        %s196 = ssub.s32 %s14, 1
        %s197 = sand.u32 %s27, 1
        %s198 = scalar_lea.sflag [#allocation3], %s197
        %s199 = sand.u32 %s27, 1
        %s200 = smul.addr %s199, 64
        %s201 = scalar_lea.vmem [#allocation2], %s200
        // Predicated region
        $region37: #{kan_block_forward.6} parent=35 // pred_check
          %p202 = pneg %p40
        $region38: #{kan_block_forward.6} parent=35 // pred_check_branch
          %204 = sbr.rel (%p202) target = $region40
        $region39: #{kan_block_forward.6} parent=35 // pred_region
          %206 = dma.done %s198, 1024
        $region40: #{kan_block_forward.6} parent=35 // pred_fallthru
          _
        // Predicated region
        $region41: #{kan_block_forward.6} parent=35 // pred_check
          %p207 = pneg %p103
        $region42: #{kan_block_forward.6} parent=35 // pred_check_branch
          %209 = sbr.rel (%p207) target = $region44
        $region43: #{kan_block_forward.6} parent=35 // pred_region
          %211 = dma.done [#allocation5], 9216
        $region44: #{kan_block_forward.6} parent=35 // pred_fallthru
          _
        %s212 = sand.u32 %s27, 1
        %s213 = scalar_lea.sflag [#allocation3], %s212
        %s214 = sand.u32 %s27, 1
        %s215 = smul.addr %s214, 64
        %s216 = scalar_lea.vmem [#allocation2], %s215
        %p217 = pneg %p40
        %p218 = pneg %p37
        %p219 = pneg %p61
        %p220 = pneg %p58
        %p221 = pneg %p82
        %p222 = pneg %p79
        %p223 = pneg %p103
        %p224 = pneg %p100
        %p225 = pneg %p129
        %p226 = pneg %p126
        %s227 = smul.u32 8, %s19
        %p228 = scmp.lt.s32.totalorder %s227, 15
        %s229 = scalar_select %p228, %s227, 15
        %s230 = smul.addr %s229, 8
        %s231 = scalar_lea.vmem %s4, %s230
        %s232 = smul.u32 8, %s19
        %s233 = smul.u32 8, %s19
        %p234 = scmp.lt.s32.totalorder %s233, 15
        %s235 = scalar_select %p234, %s233, 15
        %s236 = smul.addr %s235, 8
        %s237 = scalar_lea.vmem %s4, %s236
        %s238 = smul.u32 8, %s19
        %v239 = vld [vmem:[%s201] sm:$0xff]
        %v240 = vld [vmem:[%s201 + $0x8] sm:$0xff]
        %v241 = vld [vmem:[%s201 + $0x10] sm:$0xff]
        %v242 = vld [vmem:[%s201 + $0x18] sm:$0xff]
        %v243 = vld [vmem:[%s201 + $0x20] sm:$0xff]
        %v244 = vld [vmem:[%s201 + $0x28] sm:$0xff]
        %v245 = vld [vmem:[%s201 + $0x30] sm:$0xff]
        %v246 = vld [vmem:[%s201 + $0x38] sm:$0xff]
        %247 = vadd.xlane.f32.xlu0 %v239
        %v248 = vpop.xlane.xlu0 %247
        %249 = vadd.xlane.f32.xlu0 %v240
        %v250 = vpop.xlane.xlu0 %249
        %251 = vadd.xlane.f32.xlu0 %v241
        %v252 = vpop.xlane.xlu0 %251
        %253 = vadd.xlane.f32.xlu0 %v242
        %v254 = vpop.xlane.xlu0 %253
        %255 = vadd.xlane.f32.xlu0 %v243
        %v256 = vpop.xlane.xlu0 %255
        %257 = vadd.xlane.f32.xlu0 %v244
        %v258 = vpop.xlane.xlu0 %257
        %259 = vadd.xlane.f32.xlu0 %v245
        %v260 = vpop.xlane.xlu0 %259
        %261 = vadd.xlane.f32.xlu0 %v246
        %v262 = vpop.xlane.xlu0 %261
        %v263 = vrcp.pop 128.0
        %v264 = vmul.f32 128.0, %v263
        %v265 = vsub.f32 1.0, %v264
        %v266 = vmul.f32 %v263, %v265
        %v267 = vadd.f32 %v263, %v266
        %vm268 = vweird.f32 %v263
        %v269 = vsel %vm268, %v263, %v267
        %v270 = vmul.f32 %v248, %v269
        %v271 = vmul.f32 %v250, %v269
        %v272 = vmul.f32 %v252, %v269
        %v273 = vmul.f32 %v254, %v269
        %v274 = vmul.f32 %v256, %v269
        %v275 = vmul.f32 %v258, %v269
        %v276 = vmul.f32 %v260, %v269
        %v277 = vmul.f32 %v262, %v269
        %v278 = vsub.f32 %v239, %v270
        %v279 = vsub.f32 %v240, %v271
        %v280 = vsub.f32 %v241, %v272
        %v281 = vsub.f32 %v242, %v273
        %v282 = vsub.f32 %v243, %v274
        %v283 = vsub.f32 %v244, %v275
        %v284 = vsub.f32 %v245, %v276
        %v285 = vsub.f32 %v246, %v277
        %v286 = vmul.f32 %v278, %v278
        %v287 = vmul.f32 %v279, %v279
        %v288 = vmul.f32 %v280, %v280
        %v289 = vmul.f32 %v281, %v281
        %v290 = vmul.f32 %v282, %v282
        %v291 = vmul.f32 %v283, %v283
        %v292 = vmul.f32 %v284, %v284
        %v293 = vmul.f32 %v285, %v285
        %294 = vadd.xlane.f32.xlu0 %v286
        %v295 = vpop.xlane.xlu0 %294
        %296 = vadd.xlane.f32.xlu0 %v287
        %v297 = vpop.xlane.xlu0 %296
        %298 = vadd.xlane.f32.xlu0 %v288
        %v299 = vpop.xlane.xlu0 %298
        %300 = vadd.xlane.f32.xlu0 %v289
        %v301 = vpop.xlane.xlu0 %300
        %302 = vadd.xlane.f32.xlu0 %v290
        %v303 = vpop.xlane.xlu0 %302
        %304 = vadd.xlane.f32.xlu0 %v291
        %v305 = vpop.xlane.xlu0 %304
        %306 = vadd.xlane.f32.xlu0 %v292
        %v307 = vpop.xlane.xlu0 %306
        %308 = vadd.xlane.f32.xlu0 %v293
        %v309 = vpop.xlane.xlu0 %308
        %v310 = vmul.f32 %v295, %v269
        %v311 = vmul.f32 %v297, %v269
        %v312 = vmul.f32 %v299, %v269
        %v313 = vmul.f32 %v301, %v269
        %v314 = vmul.f32 %v303, %v269
        %v315 = vmul.f32 %v305, %v269
        %v316 = vmul.f32 %v307, %v269
        %v317 = vmul.f32 %v309, %v269
        %v318 = vadd.f32 %v310, 1e-05
        %v319 = vadd.f32 %v311, 1e-05
        %v320 = vadd.f32 %v312, 1e-05
        %v321 = vadd.f32 %v313, 1e-05
        %v322 = vadd.f32 %v314, 1e-05
        %v323 = vadd.f32 %v315, 1e-05
        %v324 = vadd.f32 %v316, 1e-05
        %v325 = vadd.f32 %v317, 1e-05
        %v326 = vrsqrt.pop %v318
        %v327 = vmul.f32 %v326, %v318
        %v328 = vmul.f32 %v327, %v326
        %v329 = vmul.f32 0.5, %v328
        %v330 = vsub.f32 1.5, %v329
        %v331 = vmul.f32 %v326, %v330
        %vm332 = vweird.f32 %v318
        %vm333 = vweird.f32 %v326
        %vm334 = vmor %vm332, %vm333
        %v335 = vsel %vm334, %v326, %v331
        %v336 = vrsqrt.pop %v319
        %v337 = vmul.f32 %v336, %v319
        %v338 = vmul.f32 %v337, %v336
        %v339 = vmul.f32 0.5, %v338
        %v340 = vsub.f32 1.5, %v339
        %v341 = vmul.f32 %v336, %v340
        %vm342 = vweird.f32 %v319
        %vm343 = vweird.f32 %v336
        %vm344 = vmor %vm342, %vm343
        %v345 = vsel %vm344, %v336, %v341
        %v346 = vrsqrt.pop %v320
        %v347 = vmul.f32 %v346, %v320
        %v348 = vmul.f32 %v347, %v346
        %v349 = vmul.f32 0.5, %v348
        %v350 = vsub.f32 1.5, %v349
        %v351 = vmul.f32 %v346, %v350
        %vm352 = vweird.f32 %v320
        %vm353 = vweird.f32 %v346
        %vm354 = vmor %vm352, %vm353
        %v355 = vsel %vm354, %v346, %v351
        %v356 = vrsqrt.pop %v321
        %v357 = vmul.f32 %v356, %v321
        %v358 = vmul.f32 %v357, %v356
        %v359 = vmul.f32 0.5, %v358
        %v360 = vsub.f32 1.5, %v359
        %v361 = vmul.f32 %v356, %v360
        %vm362 = vweird.f32 %v321
        %vm363 = vweird.f32 %v356
        %vm364 = vmor %vm362, %vm363
        %v365 = vsel %vm364, %v356, %v361
        %v366 = vrsqrt.pop %v322
        %v367 = vmul.f32 %v366, %v322
        %v368 = vmul.f32 %v367, %v366
        %v369 = vmul.f32 0.5, %v368
        %v370 = vsub.f32 1.5, %v369
        %v371 = vmul.f32 %v366, %v370
        %vm372 = vweird.f32 %v322
        %vm373 = vweird.f32 %v366
        %vm374 = vmor %vm372, %vm373
        %v375 = vsel %vm374, %v366, %v371
        %v376 = vrsqrt.pop %v323
        %v377 = vmul.f32 %v376, %v323
        %v378 = vmul.f32 %v377, %v376
        %v379 = vmul.f32 0.5, %v378
        %v380 = vsub.f32 1.5, %v379
        %v381 = vmul.f32 %v376, %v380
        %vm382 = vweird.f32 %v323
        %vm383 = vweird.f32 %v376
        %vm384 = vmor %vm382, %vm383
        %v385 = vsel %vm384, %v376, %v381
        %v386 = vrsqrt.pop %v324
        %v387 = vmul.f32 %v386, %v324
        %v388 = vmul.f32 %v387, %v386
        %v389 = vmul.f32 0.5, %v388
        %v390 = vsub.f32 1.5, %v389
        %v391 = vmul.f32 %v386, %v390
        %vm392 = vweird.f32 %v324
        %vm393 = vweird.f32 %v386
        %vm394 = vmor %vm392, %vm393
        %v395 = vsel %vm394, %v386, %v391
        %v396 = vrsqrt.pop %v325
        %v397 = vmul.f32 %v396, %v325
        %v398 = vmul.f32 %v397, %v396
        %v399 = vmul.f32 0.5, %v398
        %v400 = vsub.f32 1.5, %v399
        %v401 = vmul.f32 %v396, %v400
        %vm402 = vweird.f32 %v325
        %vm403 = vweird.f32 %v396
        %vm404 = vmor %vm402, %vm403
        %v405 = vsel %vm404, %v396, %v401
        %v406 = vmul.f32 %v278, %v335
        %v407 = vmul.f32 %v279, %v345
        %v408 = vmul.f32 %v280, %v355
        %v409 = vmul.f32 %v281, %v365
        %v410 = vmul.f32 %v282, %v375
        %v411 = vmul.f32 %v283, %v385
        %v412 = vmul.f32 %v284, %v395
        %v413 = vmul.f32 %v285, %v405
        %v414 = vld [vmem:[%s1] sm:$0x1]
        %v416 = vperm.slane %v414, 0
        %v418 = vmul.f32 %v406, %v416
        %v419 = vmul.f32 %v407, %v416
        %v420 = vmul.f32 %v408, %v416
        %v421 = vmul.f32 %v409, %v416
        %v422 = vmul.f32 %v410, %v416
        %v423 = vmul.f32 %v411, %v416
        %v424 = vmul.f32 %v412, %v416
        %v425 = vmul.f32 %v413, %v416
        %v426 = vld [vmem:[%s2] sm:$0x1]
        %v428 = vperm.slane %v426, 0
        %v430 = vadd.f32 %v418, %v428
        %v431 = vadd.f32 %v419, %v428
        %v432 = vadd.f32 %v420, %v428
        %v433 = vadd.f32 %v421, %v428
        %v434 = vadd.f32 %v422, %v428
        %v435 = vadd.f32 %v423, %v428
        %v436 = vadd.f32 %v424, %v428
        %v437 = vadd.f32 %v425, %v428
        %v438 = vxor.u32 %v430, 2147483648
        %v439 = vxor.u32 %v431, 2147483648
        %v440 = vxor.u32 %v432, 2147483648
        %v441 = vxor.u32 %v433, 2147483648
        %v442 = vxor.u32 %v434, 2147483648
        %v443 = vxor.u32 %v435, 2147483648
        %v444 = vxor.u32 %v436, 2147483648
        %v445 = vxor.u32 %v437, 2147483648
        %v446 = vmul.f32 %v438, 1.442695
        %v447 = vpow.pop %v446
        %v448 = vmul.f32 %v439, 1.442695
        %v449 = vpow.pop %v448
        %v450 = vmul.f32 %v440, 1.442695
        %v451 = vpow.pop %v450
        %v452 = vmul.f32 %v441, 1.442695
        %v453 = vpow.pop %v452
        %v454 = vmul.f32 %v442, 1.442695
        %v455 = vpow.pop %v454
        %v456 = vmul.f32 %v443, 1.442695
        %v457 = vpow.pop %v456
        %v458 = vmul.f32 %v444, 1.442695
        %v459 = vpow.pop %v458
        %v460 = vmul.f32 %v445, 1.442695
        %v461 = vpow.pop %v460
        %v462 = vadd.f32 %v447, 1.0
        %v463 = vadd.f32 %v449, 1.0
        %v464 = vadd.f32 %v451, 1.0
        %v465 = vadd.f32 %v453, 1.0
        %v466 = vadd.f32 %v455, 1.0
        %v467 = vadd.f32 %v457, 1.0
        %v468 = vadd.f32 %v459, 1.0
        %v469 = vadd.f32 %v461, 1.0
        %v470 = vrcp.pop %v462
        %v471 = vmul.f32 %v462, %v470
        %v472 = vsub.f32 1.0, %v471
        %v473 = vmul.f32 %v470, %v472
        %v474 = vadd.f32 %v470, %v473
        %vm475 = vweird.f32 %v462
        %vm476 = vweird.f32 %v470
        %vm477 = vmor %vm475, %vm476
        %v478 = vsel %vm477, %v470, %v474
        %v479 = vand.u32 2147483647, %v462
        %vm480 = vcmp.eq.f32.partialorder %v479, 8.507059e+37
        %v481 = vand.u32 %v462, 2147483648
        %v482 = vor.u32 1.1754944e-38, %v481
        %v483 = vsel %vm480, %v482, %v478
        %v484 = vmul.f32 1.0, %v483
        %v485 = vrcp.pop %v463
        %v486 = vmul.f32 %v463, %v485
        %v487 = vsub.f32 1.0, %v486
        %v488 = vmul.f32 %v485, %v487
        %v489 = vadd.f32 %v485, %v488
        %vm490 = vweird.f32 %v463
        %vm491 = vweird.f32 %v485
        %vm492 = vmor %vm490, %vm491
        %v493 = vsel %vm492, %v485, %v489
        %v494 = vand.u32 2147483647, %v463
        %vm495 = vcmp.eq.f32.partialorder %v494, 8.507059e+37
        %v496 = vand.u32 %v463, 2147483648
        %v497 = vor.u32 1.1754944e-38, %v496
        %v498 = vsel %vm495, %v497, %v493
        %v499 = vmul.f32 1.0, %v498
        %v500 = vrcp.pop %v464
        %v501 = vmul.f32 %v464, %v500
        %v502 = vsub.f32 1.0, %v501
        %v503 = vmul.f32 %v500, %v502
        %v504 = vadd.f32 %v500, %v503
        %vm505 = vweird.f32 %v464
        %vm506 = vweird.f32 %v500
        %vm507 = vmor %vm505, %vm506
        %v508 = vsel %vm507, %v500, %v504
        %v509 = vand.u32 2147483647, %v464
        %vm510 = vcmp.eq.f32.partialorder %v509, 8.507059e+37
        %v511 = vand.u32 %v464, 2147483648
        %v512 = vor.u32 1.1754944e-38, %v511
        %v513 = vsel %vm510, %v512, %v508
        %v514 = vmul.f32 1.0, %v513
        %v515 = vrcp.pop %v465
        %v516 = vmul.f32 %v465, %v515
        %v517 = vsub.f32 1.0, %v516
        %v518 = vmul.f32 %v515, %v517
        %v519 = vadd.f32 %v515, %v518
        %vm520 = vweird.f32 %v465
        %vm521 = vweird.f32 %v515
        %vm522 = vmor %vm520, %vm521
        %v523 = vsel %vm522, %v515, %v519
        %v524 = vand.u32 2147483647, %v465
        %vm525 = vcmp.eq.f32.partialorder %v524, 8.507059e+37
        %v526 = vand.u32 %v465, 2147483648
        %v527 = vor.u32 1.1754944e-38, %v526
        %v528 = vsel %vm525, %v527, %v523
        %v529 = vmul.f32 1.0, %v528
        %v530 = vrcp.pop %v466
        %v531 = vmul.f32 %v466, %v530
        %v532 = vsub.f32 1.0, %v531
        %v533 = vmul.f32 %v530, %v532
        %v534 = vadd.f32 %v530, %v533
        %vm535 = vweird.f32 %v466
        %vm536 = vweird.f32 %v530
        %vm537 = vmor %vm535, %vm536
        %v538 = vsel %vm537, %v530, %v534
        %v539 = vand.u32 2147483647, %v466
        %vm540 = vcmp.eq.f32.partialorder %v539, 8.507059e+37
        %v541 = vand.u32 %v466, 2147483648
        %v542 = vor.u32 1.1754944e-38, %v541
        %v543 = vsel %vm540, %v542, %v538
        %v544 = vmul.f32 1.0, %v543
        %v545 = vrcp.pop %v467
        %v546 = vmul.f32 %v467, %v545
        %v547 = vsub.f32 1.0, %v546
        %v548 = vmul.f32 %v545, %v547
        %v549 = vadd.f32 %v545, %v548
        %vm550 = vweird.f32 %v467
        %vm551 = vweird.f32 %v545
        %vm552 = vmor %vm550, %vm551
        %v553 = vsel %vm552, %v545, %v549
        %v554 = vand.u32 2147483647, %v467
        %vm555 = vcmp.eq.f32.partialorder %v554, 8.507059e+37
        %v556 = vand.u32 %v467, 2147483648
        %v557 = vor.u32 1.1754944e-38, %v556
        %v558 = vsel %vm555, %v557, %v553
        %v559 = vmul.f32 1.0, %v558
        %v560 = vrcp.pop %v468
        %v561 = vmul.f32 %v468, %v560
        %v562 = vsub.f32 1.0, %v561
        %v563 = vmul.f32 %v560, %v562
        %v564 = vadd.f32 %v560, %v563
        %vm565 = vweird.f32 %v468
        %vm566 = vweird.f32 %v560
        %vm567 = vmor %vm565, %vm566
        %v568 = vsel %vm567, %v560, %v564
        %v569 = vand.u32 2147483647, %v468
        %vm570 = vcmp.eq.f32.partialorder %v569, 8.507059e+37
        %v571 = vand.u32 %v468, 2147483648
        %v572 = vor.u32 1.1754944e-38, %v571
        %v573 = vsel %vm570, %v572, %v568
        %v574 = vmul.f32 1.0, %v573
        %v575 = vrcp.pop %v469
        %v576 = vmul.f32 %v469, %v575
        %v577 = vsub.f32 1.0, %v576
        %v578 = vmul.f32 %v575, %v577
        %v579 = vadd.f32 %v575, %v578
        %vm580 = vweird.f32 %v469
        %vm581 = vweird.f32 %v575
        %vm582 = vmor %vm580, %vm581
        %v583 = vsel %vm582, %v575, %v579
        %v584 = vand.u32 2147483647, %v469
        %vm585 = vcmp.eq.f32.partialorder %v584, 8.507059e+37
        %v586 = vand.u32 %v469, 2147483648
        %v587 = vor.u32 1.1754944e-38, %v586
        %v588 = vsel %vm585, %v587, %v583
        %v589 = vmul.f32 1.0, %v588
        %v590 = vmul.f32 %v430, %v484
        %v591 = vmul.f32 %v431, %v499
        %v592 = vmul.f32 %v432, %v514
        %v593 = vmul.f32 %v433, %v529
        %v594 = vmul.f32 %v434, %v544
        %v595 = vmul.f32 %v435, %v559
        %v596 = vmul.f32 %v436, %v574
        %v597 = vmul.f32 %v437, %v589
        %v598 = vpack.c.bf16 %v590, %v590
        %v599 = vpack.c.bf16 %v591, %v591
        %v600 = vpack.c.bf16 %v592, %v592
        %v601 = vpack.c.bf16 %v593, %v593
        %v602 = vpack.c.bf16 %v594, %v594
        %v603 = vpack.c.bf16 %v595, %v595
        %v604 = vpack.c.bf16 %v596, %v596
        %v605 = vpack.c.bf16 %v597, %v597
        %vm606 = vcmp.ge.f32.partialorder %v430, -2.2
        %vm607 = vcmp.ge.f32.partialorder %v431, -2.2
        %vm608 = vcmp.ge.f32.partialorder %v432, -2.2
        %vm609 = vcmp.ge.f32.partialorder %v433, -2.2
        %vm610 = vcmp.ge.f32.partialorder %v434, -2.2
        %vm611 = vcmp.ge.f32.partialorder %v435, -2.2
        %vm612 = vcmp.ge.f32.partialorder %v436, -2.2
        %vm613 = vcmp.ge.f32.partialorder %v437, -2.2
        %v614 = vsel %vm606, 1, 0
        %v615 = vsel %vm607, 1, 0
        %v616 = vsel %vm608, 1, 0
        %v617 = vsel %vm609, 1, 0
        %v618 = vsel %vm610, 1, 0
        %v619 = vsel %vm611, 1, 0
        %v620 = vsel %vm612, 1, 0
        %v621 = vsel %vm613, 1, 0
        %v622 = vcvt.s32.f32 %v614
        %v623 = vcvt.s32.f32 %v615
        %v624 = vcvt.s32.f32 %v616
        %v625 = vcvt.s32.f32 %v617
        %v626 = vcvt.s32.f32 %v618
        %v627 = vcvt.s32.f32 %v619
        %v628 = vcvt.s32.f32 %v620
        %v629 = vcvt.s32.f32 %v621
        %vm630 = vcmp.ge.f32.partialorder %v430, -1.8
        %vm631 = vcmp.ge.f32.partialorder %v431, -1.8
        %vm632 = vcmp.ge.f32.partialorder %v432, -1.8
        %vm633 = vcmp.ge.f32.partialorder %v433, -1.8
        %vm634 = vcmp.ge.f32.partialorder %v434, -1.8
        %vm635 = vcmp.ge.f32.partialorder %v435, -1.8
        %vm636 = vcmp.ge.f32.partialorder %v436, -1.8
        %vm637 = vcmp.ge.f32.partialorder %v437, -1.8
        %v638 = vsel %vm630, 1, 0
        %v639 = vsel %vm631, 1, 0
        %v640 = vsel %vm632, 1, 0
        %v641 = vsel %vm633, 1, 0
        %v642 = vsel %vm634, 1, 0
        %v643 = vsel %vm635, 1, 0
        %v644 = vsel %vm636, 1, 0
        %v645 = vsel %vm637, 1, 0
        %v646 = vcvt.s32.f32 %v638
        %v647 = vcvt.s32.f32 %v639
        %v648 = vcvt.s32.f32 %v640
        %v649 = vcvt.s32.f32 %v641
        %v650 = vcvt.s32.f32 %v642
        %v651 = vcvt.s32.f32 %v643
        %v652 = vcvt.s32.f32 %v644
        %v653 = vcvt.s32.f32 %v645
        %vm654 = vcmp.ge.f32.partialorder %v430, -1.4
        %vm655 = vcmp.ge.f32.partialorder %v431, -1.4
        %vm656 = vcmp.ge.f32.partialorder %v432, -1.4
        %vm657 = vcmp.ge.f32.partialorder %v433, -1.4
        %vm658 = vcmp.ge.f32.partialorder %v434, -1.4
        %vm659 = vcmp.ge.f32.partialorder %v435, -1.4
        %vm660 = vcmp.ge.f32.partialorder %v436, -1.4
        %vm661 = vcmp.ge.f32.partialorder %v437, -1.4
        %v662 = vsel %vm654, 1, 0
        %v663 = vsel %vm655, 1, 0
        %v664 = vsel %vm656, 1, 0
        %v665 = vsel %vm657, 1, 0
        %v666 = vsel %vm658, 1, 0
        %v667 = vsel %vm659, 1, 0
        %v668 = vsel %vm660, 1, 0
        %v669 = vsel %vm661, 1, 0
        %v670 = vcvt.s32.f32 %v662
        %v671 = vcvt.s32.f32 %v663
        %v672 = vcvt.s32.f32 %v664
        %v673 = vcvt.s32.f32 %v665
        %v674 = vcvt.s32.f32 %v666
        %v675 = vcvt.s32.f32 %v667
        %v676 = vcvt.s32.f32 %v668
        %v677 = vcvt.s32.f32 %v669
        %vm678 = vcmp.ge.f32.partialorder %v430, -1.0
        %vm679 = vcmp.ge.f32.partialorder %v431, -1.0
        %vm680 = vcmp.ge.f32.partialorder %v432, -1.0
        %vm681 = vcmp.ge.f32.partialorder %v433, -1.0
        %vm682 = vcmp.ge.f32.partialorder %v434, -1.0
        %vm683 = vcmp.ge.f32.partialorder %v435, -1.0
        %vm684 = vcmp.ge.f32.partialorder %v436, -1.0
        %vm685 = vcmp.ge.f32.partialorder %v437, -1.0
        %v686 = vsel %vm678, 1, 0
        %v687 = vsel %vm679, 1, 0
        %v688 = vsel %vm680, 1, 0
        %v689 = vsel %vm681, 1, 0
        %v690 = vsel %vm682, 1, 0
        %v691 = vsel %vm683, 1, 0
        %v692 = vsel %vm684, 1, 0
        %v693 = vsel %vm685, 1, 0
        %v694 = vcvt.s32.f32 %v686
        %v695 = vcvt.s32.f32 %v687
        %v696 = vcvt.s32.f32 %v688
        %v697 = vcvt.s32.f32 %v689
        %v698 = vcvt.s32.f32 %v690
        %v699 = vcvt.s32.f32 %v691
        %v700 = vcvt.s32.f32 %v692
        %v701 = vcvt.s32.f32 %v693
        %vm702 = vcmp.ge.f32.partialorder %v430, -0.6
        %vm703 = vcmp.ge.f32.partialorder %v431, -0.6
        %vm704 = vcmp.ge.f32.partialorder %v432, -0.6
        %vm705 = vcmp.ge.f32.partialorder %v433, -0.6
        %vm706 = vcmp.ge.f32.partialorder %v434, -0.6
        %vm707 = vcmp.ge.f32.partialorder %v435, -0.6
        %vm708 = vcmp.ge.f32.partialorder %v436, -0.6
        %vm709 = vcmp.ge.f32.partialorder %v437, -0.6
        %v710 = vsel %vm702, 1, 0
        %v711 = vsel %vm703, 1, 0
        %v712 = vsel %vm704, 1, 0
        %v713 = vsel %vm705, 1, 0
        %v714 = vsel %vm706, 1, 0
        %v715 = vsel %vm707, 1, 0
        %v716 = vsel %vm708, 1, 0
        %v717 = vsel %vm709, 1, 0
        %v718 = vcvt.s32.f32 %v710
        %v719 = vcvt.s32.f32 %v711
        %v720 = vcvt.s32.f32 %v712
        %v721 = vcvt.s32.f32 %v713
        %v722 = vcvt.s32.f32 %v714
        %v723 = vcvt.s32.f32 %v715
        %v724 = vcvt.s32.f32 %v716
        %v725 = vcvt.s32.f32 %v717
        %vm726 = vcmp.ge.f32.partialorder %v430, -0.2
        %vm727 = vcmp.ge.f32.partialorder %v431, -0.2
        %vm728 = vcmp.ge.f32.partialorder %v432, -0.2
        %vm729 = vcmp.ge.f32.partialorder %v433, -0.2
        %vm730 = vcmp.ge.f32.partialorder %v434, -0.2
        %vm731 = vcmp.ge.f32.partialorder %v435, -0.2
        %vm732 = vcmp.ge.f32.partialorder %v436, -0.2
        %vm733 = vcmp.ge.f32.partialorder %v437, -0.2
        %v734 = vsel %vm726, 1, 0
        %v735 = vsel %vm727, 1, 0
        %v736 = vsel %vm728, 1, 0
        %v737 = vsel %vm729, 1, 0
        %v738 = vsel %vm730, 1, 0
        %v739 = vsel %vm731, 1, 0
        %v740 = vsel %vm732, 1, 0
        %v741 = vsel %vm733, 1, 0
        %v742 = vcvt.s32.f32 %v734
        %v743 = vcvt.s32.f32 %v735
        %v744 = vcvt.s32.f32 %v736
        %v745 = vcvt.s32.f32 %v737
        %v746 = vcvt.s32.f32 %v738
        %v747 = vcvt.s32.f32 %v739
        %v748 = vcvt.s32.f32 %v740
        %v749 = vcvt.s32.f32 %v741
        %vm750 = vcmp.ge.f32.partialorder %v430, 0.2
        %vm751 = vcmp.ge.f32.partialorder %v431, 0.2
        %vm752 = vcmp.ge.f32.partialorder %v432, 0.2
        %vm753 = vcmp.ge.f32.partialorder %v433, 0.2
        %vm754 = vcmp.ge.f32.partialorder %v434, 0.2
        %vm755 = vcmp.ge.f32.partialorder %v435, 0.2
        %vm756 = vcmp.ge.f32.partialorder %v436, 0.2
        %vm757 = vcmp.ge.f32.partialorder %v437, 0.2
        %v758 = vsel %vm750, 1, 0
        %v759 = vsel %vm751, 1, 0
        %v760 = vsel %vm752, 1, 0
        %v761 = vsel %vm753, 1, 0
        %v762 = vsel %vm754, 1, 0
        %v763 = vsel %vm755, 1, 0
        %v764 = vsel %vm756, 1, 0
        %v765 = vsel %vm757, 1, 0
        %v766 = vcvt.s32.f32 %v758
        %v767 = vcvt.s32.f32 %v759
        %v768 = vcvt.s32.f32 %v760
        %v769 = vcvt.s32.f32 %v761
        %v770 = vcvt.s32.f32 %v762
        %v771 = vcvt.s32.f32 %v763
        %v772 = vcvt.s32.f32 %v764
        %v773 = vcvt.s32.f32 %v765
        %vm774 = vcmp.ge.f32.partialorder %v430, 0.6
        %vm775 = vcmp.ge.f32.partialorder %v431, 0.6
        %vm776 = vcmp.ge.f32.partialorder %v432, 0.6
        %vm777 = vcmp.ge.f32.partialorder %v433, 0.6
        %vm778 = vcmp.ge.f32.partialorder %v434, 0.6
        %vm779 = vcmp.ge.f32.partialorder %v435, 0.6
        %vm780 = vcmp.ge.f32.partialorder %v436, 0.6
        %vm781 = vcmp.ge.f32.partialorder %v437, 0.6
        %v782 = vsel %vm774, 1, 0
        %v783 = vsel %vm775, 1, 0
        %v784 = vsel %vm776, 1, 0
        %v785 = vsel %vm777, 1, 0
        %v786 = vsel %vm778, 1, 0
        %v787 = vsel %vm779, 1, 0
        %v788 = vsel %vm780, 1, 0
        %v789 = vsel %vm781, 1, 0
        %v790 = vcvt.s32.f32 %v782
        %v791 = vcvt.s32.f32 %v783
        %v792 = vcvt.s32.f32 %v784
        %v793 = vcvt.s32.f32 %v785
        %v794 = vcvt.s32.f32 %v786
        %v795 = vcvt.s32.f32 %v787
        %v796 = vcvt.s32.f32 %v788
        %v797 = vcvt.s32.f32 %v789
        %vm798 = vcmp.ge.f32.partialorder %v430, 1.0
        %vm799 = vcmp.ge.f32.partialorder %v431, 1.0
        %vm800 = vcmp.ge.f32.partialorder %v432, 1.0
        %vm801 = vcmp.ge.f32.partialorder %v433, 1.0
        %vm802 = vcmp.ge.f32.partialorder %v434, 1.0
        %vm803 = vcmp.ge.f32.partialorder %v435, 1.0
        %vm804 = vcmp.ge.f32.partialorder %v436, 1.0
        %vm805 = vcmp.ge.f32.partialorder %v437, 1.0
        %v806 = vsel %vm798, 1, 0
        %v807 = vsel %vm799, 1, 0
        %v808 = vsel %vm800, 1, 0
        %v809 = vsel %vm801, 1, 0
        %v810 = vsel %vm802, 1, 0
        %v811 = vsel %vm803, 1, 0
        %v812 = vsel %vm804, 1, 0
        %v813 = vsel %vm805, 1, 0
        %v814 = vcvt.s32.f32 %v806
        %v815 = vcvt.s32.f32 %v807
        %v816 = vcvt.s32.f32 %v808
        %v817 = vcvt.s32.f32 %v809
        %v818 = vcvt.s32.f32 %v810
        %v819 = vcvt.s32.f32 %v811
        %v820 = vcvt.s32.f32 %v812
        %v821 = vcvt.s32.f32 %v813
        %vm822 = vcmp.ge.f32.partialorder %v430, 1.4
        %vm823 = vcmp.ge.f32.partialorder %v431, 1.4
        %vm824 = vcmp.ge.f32.partialorder %v432, 1.4
        %vm825 = vcmp.ge.f32.partialorder %v433, 1.4
        %vm826 = vcmp.ge.f32.partialorder %v434, 1.4
        %vm827 = vcmp.ge.f32.partialorder %v435, 1.4
        %vm828 = vcmp.ge.f32.partialorder %v436, 1.4
        %vm829 = vcmp.ge.f32.partialorder %v437, 1.4
        %v830 = vsel %vm822, 1, 0
        %v831 = vsel %vm823, 1, 0
        %v832 = vsel %vm824, 1, 0
        %v833 = vsel %vm825, 1, 0
        %v834 = vsel %vm826, 1, 0
        %v835 = vsel %vm827, 1, 0
        %v836 = vsel %vm828, 1, 0
        %v837 = vsel %vm829, 1, 0
        %v838 = vcvt.s32.f32 %v830
        %v839 = vcvt.s32.f32 %v831
        %v840 = vcvt.s32.f32 %v832
        %v841 = vcvt.s32.f32 %v833
        %v842 = vcvt.s32.f32 %v834
        %v843 = vcvt.s32.f32 %v835
        %v844 = vcvt.s32.f32 %v836
        %v845 = vcvt.s32.f32 %v837
        %vm846 = vcmp.ge.f32.partialorder %v430, 1.8
        %vm847 = vcmp.ge.f32.partialorder %v431, 1.8
        %vm848 = vcmp.ge.f32.partialorder %v432, 1.8
        %vm849 = vcmp.ge.f32.partialorder %v433, 1.8
        %vm850 = vcmp.ge.f32.partialorder %v434, 1.8
        %vm851 = vcmp.ge.f32.partialorder %v435, 1.8
        %vm852 = vcmp.ge.f32.partialorder %v436, 1.8
        %vm853 = vcmp.ge.f32.partialorder %v437, 1.8
        %v854 = vsel %vm846, 1, 0
        %v855 = vsel %vm847, 1, 0
        %v856 = vsel %vm848, 1, 0
        %v857 = vsel %vm849, 1, 0
        %v858 = vsel %vm850, 1, 0
        %v859 = vsel %vm851, 1, 0
        %v860 = vsel %vm852, 1, 0
        %v861 = vsel %vm853, 1, 0
        %v862 = vcvt.s32.f32 %v854
        %v863 = vcvt.s32.f32 %v855
        %v864 = vcvt.s32.f32 %v856
        %v865 = vcvt.s32.f32 %v857
        %v866 = vcvt.s32.f32 %v858
        %v867 = vcvt.s32.f32 %v859
        %v868 = vcvt.s32.f32 %v860
        %v869 = vcvt.s32.f32 %v861
        %vm870 = vcmp.ge.f32.partialorder %v430, 2.2
        %vm871 = vcmp.ge.f32.partialorder %v431, 2.2
        %vm872 = vcmp.ge.f32.partialorder %v432, 2.2
        %vm873 = vcmp.ge.f32.partialorder %v433, 2.2
        %vm874 = vcmp.ge.f32.partialorder %v434, 2.2
        %vm875 = vcmp.ge.f32.partialorder %v435, 2.2
        %vm876 = vcmp.ge.f32.partialorder %v436, 2.2
        %vm877 = vcmp.ge.f32.partialorder %v437, 2.2
        %v878 = vsel %vm870, 1, 0
        %v879 = vsel %vm871, 1, 0
        %v880 = vsel %vm872, 1, 0
        %v881 = vsel %vm873, 1, 0
        %v882 = vsel %vm874, 1, 0
        %v883 = vsel %vm875, 1, 0
        %v884 = vsel %vm876, 1, 0
        %v885 = vsel %vm877, 1, 0
        %v886 = vcvt.s32.f32 %v878
        %v887 = vcvt.s32.f32 %v879
        %v888 = vcvt.s32.f32 %v880
        %v889 = vcvt.s32.f32 %v881
        %v890 = vcvt.s32.f32 %v882
        %v891 = vcvt.s32.f32 %v883
        %v892 = vcvt.s32.f32 %v884
        %v893 = vcvt.s32.f32 %v885
        %v894 = vsub.f32 %v622, %v646
        %v895 = vsub.f32 %v623, %v647
        %v896 = vsub.f32 %v624, %v648
        %v897 = vsub.f32 %v625, %v649
        %v898 = vsub.f32 %v626, %v650
        %v899 = vsub.f32 %v627, %v651
        %v900 = vsub.f32 %v628, %v652
        %v901 = vsub.f32 %v629, %v653
        %v902 = vsub.f32 %v646, %v670
        %v903 = vsub.f32 %v647, %v671
        %v904 = vsub.f32 %v648, %v672
        %v905 = vsub.f32 %v649, %v673
        %v906 = vsub.f32 %v650, %v674
        %v907 = vsub.f32 %v651, %v675
        %v908 = vsub.f32 %v652, %v676
        %v909 = vsub.f32 %v653, %v677
        %v910 = vsub.f32 %v670, %v694
        %v911 = vsub.f32 %v671, %v695
        %v912 = vsub.f32 %v672, %v696
        %v913 = vsub.f32 %v673, %v697
        %v914 = vsub.f32 %v674, %v698
        %v915 = vsub.f32 %v675, %v699
        %v916 = vsub.f32 %v676, %v700
        %v917 = vsub.f32 %v677, %v701
        %v918 = vsub.f32 %v694, %v718
        %v919 = vsub.f32 %v695, %v719
        %v920 = vsub.f32 %v696, %v720
        %v921 = vsub.f32 %v697, %v721
        %v922 = vsub.f32 %v698, %v722
        %v923 = vsub.f32 %v699, %v723
        %v924 = vsub.f32 %v700, %v724
        %v925 = vsub.f32 %v701, %v725
        %v926 = vsub.f32 %v718, %v742
        %v927 = vsub.f32 %v719, %v743
        %v928 = vsub.f32 %v720, %v744
        %v929 = vsub.f32 %v721, %v745
        %v930 = vsub.f32 %v722, %v746
        %v931 = vsub.f32 %v723, %v747
        %v932 = vsub.f32 %v724, %v748
        %v933 = vsub.f32 %v725, %v749
        %v934 = vsub.f32 %v742, %v766
        %v935 = vsub.f32 %v743, %v767
        %v936 = vsub.f32 %v744, %v768
        %v937 = vsub.f32 %v745, %v769
        %v938 = vsub.f32 %v746, %v770
        %v939 = vsub.f32 %v747, %v771
        %v940 = vsub.f32 %v748, %v772
        %v941 = vsub.f32 %v749, %v773
        %v942 = vsub.f32 %v766, %v790
        %v943 = vsub.f32 %v767, %v791
        %v944 = vsub.f32 %v768, %v792
        %v945 = vsub.f32 %v769, %v793
        %v946 = vsub.f32 %v770, %v794
        %v947 = vsub.f32 %v771, %v795
        %v948 = vsub.f32 %v772, %v796
        %v949 = vsub.f32 %v773, %v797
        %v950 = vsub.f32 %v790, %v814
        %v951 = vsub.f32 %v791, %v815
        %v952 = vsub.f32 %v792, %v816
        %v953 = vsub.f32 %v793, %v817
        %v954 = vsub.f32 %v794, %v818
        %v955 = vsub.f32 %v795, %v819
        %v956 = vsub.f32 %v796, %v820
        %v957 = vsub.f32 %v797, %v821
        %v958 = vsub.f32 %v814, %v838
        %v959 = vsub.f32 %v815, %v839
        %v960 = vsub.f32 %v816, %v840
        %v961 = vsub.f32 %v817, %v841
        %v962 = vsub.f32 %v818, %v842
        %v963 = vsub.f32 %v819, %v843
        %v964 = vsub.f32 %v820, %v844
        %v965 = vsub.f32 %v821, %v845
        %v966 = vsub.f32 %v838, %v862
        %v967 = vsub.f32 %v839, %v863
        %v968 = vsub.f32 %v840, %v864
        %v969 = vsub.f32 %v841, %v865
        %v970 = vsub.f32 %v842, %v866
        %v971 = vsub.f32 %v843, %v867
        %v972 = vsub.f32 %v844, %v868
        %v973 = vsub.f32 %v845, %v869
        %v974 = vsub.f32 %v862, %v886
        %v975 = vsub.f32 %v863, %v887
        %v976 = vsub.f32 %v864, %v888
        %v977 = vsub.f32 %v865, %v889
        %v978 = vsub.f32 %v866, %v890
        %v979 = vsub.f32 %v867, %v891
        %v980 = vsub.f32 %v868, %v892
        %v981 = vsub.f32 %v869, %v893
        %v982 = vsub.f32 %v430, -2.2
        %v983 = vsub.f32 %v431, -2.2
        %v984 = vsub.f32 %v432, -2.2
        %v985 = vsub.f32 %v433, -2.2
        %v986 = vsub.f32 %v434, -2.2
        %v987 = vsub.f32 %v435, -2.2
        %v988 = vsub.f32 %v436, -2.2
        %v989 = vsub.f32 %v437, -2.2
        %v990 = vsub.f32 %v430, -1.8
        %v991 = vsub.f32 %v431, -1.8
        %v992 = vsub.f32 %v432, -1.8
        %v993 = vsub.f32 %v433, -1.8
        %v994 = vsub.f32 %v434, -1.8
        %v995 = vsub.f32 %v435, -1.8
        %v996 = vsub.f32 %v436, -1.8
        %v997 = vsub.f32 %v437, -1.8
        %v998 = vsub.f32 %v430, -1.4
        %v999 = vsub.f32 %v431, -1.4
        %v1000 = vsub.f32 %v432, -1.4
        %v1001 = vsub.f32 %v433, -1.4
        %v1002 = vsub.f32 %v434, -1.4
        %v1003 = vsub.f32 %v435, -1.4
        %v1004 = vsub.f32 %v436, -1.4
        %v1005 = vsub.f32 %v437, -1.4
        %v1006 = vsub.f32 %v430, -1.0
        %v1007 = vsub.f32 %v431, -1.0
        %v1008 = vsub.f32 %v432, -1.0
        %v1009 = vsub.f32 %v433, -1.0
        %v1010 = vsub.f32 %v434, -1.0
        %v1011 = vsub.f32 %v435, -1.0
        %v1012 = vsub.f32 %v436, -1.0
        %v1013 = vsub.f32 %v437, -1.0
        %v1014 = vsub.f32 %v430, -0.6
        %v1015 = vsub.f32 %v431, -0.6
        %v1016 = vsub.f32 %v432, -0.6
        %v1017 = vsub.f32 %v433, -0.6
        %v1018 = vsub.f32 %v434, -0.6
        %v1019 = vsub.f32 %v435, -0.6
        %v1020 = vsub.f32 %v436, -0.6
        %v1021 = vsub.f32 %v437, -0.6
        %v1022 = vsub.f32 %v430, -0.2
        %v1023 = vsub.f32 %v431, -0.2
        %v1024 = vsub.f32 %v432, -0.2
        %v1025 = vsub.f32 %v433, -0.2
        %v1026 = vsub.f32 %v434, -0.2
        %v1027 = vsub.f32 %v435, -0.2
        %v1028 = vsub.f32 %v436, -0.2
        %v1029 = vsub.f32 %v437, -0.2
        %v1030 = vsub.f32 %v430, 0.2
        %v1031 = vsub.f32 %v431, 0.2
        %v1032 = vsub.f32 %v432, 0.2
        %v1033 = vsub.f32 %v433, 0.2
        %v1034 = vsub.f32 %v434, 0.2
        %v1035 = vsub.f32 %v435, 0.2
        %v1036 = vsub.f32 %v436, 0.2
        %v1037 = vsub.f32 %v437, 0.2
        %v1038 = vsub.f32 %v430, 0.6
        %v1039 = vsub.f32 %v431, 0.6
        %v1040 = vsub.f32 %v432, 0.6
        %v1041 = vsub.f32 %v433, 0.6
        %v1042 = vsub.f32 %v434, 0.6
        %v1043 = vsub.f32 %v435, 0.6
        %v1044 = vsub.f32 %v436, 0.6
        %v1045 = vsub.f32 %v437, 0.6
        %v1046 = vsub.f32 %v430, 1.0
        %v1047 = vsub.f32 %v431, 1.0
        %v1048 = vsub.f32 %v432, 1.0
        %v1049 = vsub.f32 %v433, 1.0
        %v1050 = vsub.f32 %v434, 1.0
        %v1051 = vsub.f32 %v435, 1.0
        %v1052 = vsub.f32 %v436, 1.0
        %v1053 = vsub.f32 %v437, 1.0
        %v1054 = vsub.f32 %v430, 1.4
        %v1055 = vsub.f32 %v431, 1.4
        %v1056 = vsub.f32 %v432, 1.4
        %v1057 = vsub.f32 %v433, 1.4
        %v1058 = vsub.f32 %v434, 1.4
        %v1059 = vsub.f32 %v435, 1.4
        %v1060 = vsub.f32 %v436, 1.4
        %v1061 = vsub.f32 %v437, 1.4
        %v1062 = vsub.f32 %v430, 1.8
        %v1063 = vsub.f32 %v431, 1.8
        %v1064 = vsub.f32 %v432, 1.8
        %v1065 = vsub.f32 %v433, 1.8
        %v1066 = vsub.f32 %v434, 1.8
        %v1067 = vsub.f32 %v435, 1.8
        %v1068 = vsub.f32 %v436, 1.8
        %v1069 = vsub.f32 %v437, 1.8
        %v1070 = vsub.f32 %v430, 2.2
        %v1071 = vsub.f32 %v431, 2.2
        %v1072 = vsub.f32 %v432, 2.2
        %v1073 = vsub.f32 %v433, 2.2
        %v1074 = vsub.f32 %v434, 2.2
        %v1075 = vsub.f32 %v435, 2.2
        %v1076 = vsub.f32 %v436, 2.2
        %v1077 = vsub.f32 %v437, 2.2
        %v1078 = vmul.f32 %v982, %v894
        %v1079 = vmul.f32 %v983, %v895
        %v1080 = vmul.f32 %v984, %v896
        %v1081 = vmul.f32 %v985, %v897
        %v1082 = vmul.f32 %v986, %v898
        %v1083 = vmul.f32 %v987, %v899
        %v1084 = vmul.f32 %v988, %v900
        %v1085 = vmul.f32 %v989, %v901
        %v1086 = vmul.f32 %v998, %v902
        %v1087 = vmul.f32 %v999, %v903
        %v1088 = vmul.f32 %v1000, %v904
        %v1089 = vmul.f32 %v1001, %v905
        %v1090 = vmul.f32 %v1002, %v906
        %v1091 = vmul.f32 %v1003, %v907
        %v1092 = vmul.f32 %v1004, %v908
        %v1093 = vmul.f32 %v1005, %v909
        %v1094 = vsub.f32 %v1078, %v1086
        %v1095 = vsub.f32 %v1079, %v1087
        %v1096 = vsub.f32 %v1080, %v1088
        %v1097 = vsub.f32 %v1081, %v1089
        %v1098 = vsub.f32 %v1082, %v1090
        %v1099 = vsub.f32 %v1083, %v1091
        %v1100 = vsub.f32 %v1084, %v1092
        %v1101 = vsub.f32 %v1085, %v1093
        %v1102 = vmul.f32 %v1094, 2.5
        %v1103 = vmul.f32 %v1095, 2.5
        %v1104 = vmul.f32 %v1096, 2.5
        %v1105 = vmul.f32 %v1097, 2.5
        %v1106 = vmul.f32 %v1098, 2.5
        %v1107 = vmul.f32 %v1099, 2.5
        %v1108 = vmul.f32 %v1100, 2.5
        %v1109 = vmul.f32 %v1101, 2.5
        %v1110 = vmul.f32 %v990, %v902
        %v1111 = vmul.f32 %v991, %v903
        %v1112 = vmul.f32 %v992, %v904
        %v1113 = vmul.f32 %v993, %v905
        %v1114 = vmul.f32 %v994, %v906
        %v1115 = vmul.f32 %v995, %v907
        %v1116 = vmul.f32 %v996, %v908
        %v1117 = vmul.f32 %v997, %v909
        %v1118 = vmul.f32 %v1006, %v910
        %v1119 = vmul.f32 %v1007, %v911
        %v1120 = vmul.f32 %v1008, %v912
        %v1121 = vmul.f32 %v1009, %v913
        %v1122 = vmul.f32 %v1010, %v914
        %v1123 = vmul.f32 %v1011, %v915
        %v1124 = vmul.f32 %v1012, %v916
        %v1125 = vmul.f32 %v1013, %v917
        %v1126 = vsub.f32 %v1110, %v1118
        %v1127 = vsub.f32 %v1111, %v1119
        %v1128 = vsub.f32 %v1112, %v1120
        %v1129 = vsub.f32 %v1113, %v1121
        %v1130 = vsub.f32 %v1114, %v1122
        %v1131 = vsub.f32 %v1115, %v1123
        %v1132 = vsub.f32 %v1116, %v1124
        %v1133 = vsub.f32 %v1117, %v1125
        %v1134 = vmul.f32 %v1126, 2.5
        %v1135 = vmul.f32 %v1127, 2.5
        %v1136 = vmul.f32 %v1128, 2.5
        %v1137 = vmul.f32 %v1129, 2.5
        %v1138 = vmul.f32 %v1130, 2.5
        %v1139 = vmul.f32 %v1131, 2.5
        %v1140 = vmul.f32 %v1132, 2.5
        %v1141 = vmul.f32 %v1133, 2.5
        %v1142 = vmul.f32 %v998, %v910
        %v1143 = vmul.f32 %v999, %v911
        %v1144 = vmul.f32 %v1000, %v912
        %v1145 = vmul.f32 %v1001, %v913
        %v1146 = vmul.f32 %v1002, %v914
        %v1147 = vmul.f32 %v1003, %v915
        %v1148 = vmul.f32 %v1004, %v916
        %v1149 = vmul.f32 %v1005, %v917
        %v1150 = vmul.f32 %v1014, %v918
        %v1151 = vmul.f32 %v1015, %v919
        %v1152 = vmul.f32 %v1016, %v920
        %v1153 = vmul.f32 %v1017, %v921
        %v1154 = vmul.f32 %v1018, %v922
        %v1155 = vmul.f32 %v1019, %v923
        %v1156 = vmul.f32 %v1020, %v924
        %v1157 = vmul.f32 %v1021, %v925
        %v1158 = vsub.f32 %v1142, %v1150
        %v1159 = vsub.f32 %v1143, %v1151
        %v1160 = vsub.f32 %v1144, %v1152
        %v1161 = vsub.f32 %v1145, %v1153
        %v1162 = vsub.f32 %v1146, %v1154
        %v1163 = vsub.f32 %v1147, %v1155
        %v1164 = vsub.f32 %v1148, %v1156
        %v1165 = vsub.f32 %v1149, %v1157
        %v1166 = vmul.f32 %v1158, 2.5
        %v1167 = vmul.f32 %v1159, 2.5
        %v1168 = vmul.f32 %v1160, 2.5
        %v1169 = vmul.f32 %v1161, 2.5
        %v1170 = vmul.f32 %v1162, 2.5
        %v1171 = vmul.f32 %v1163, 2.5
        %v1172 = vmul.f32 %v1164, 2.5
        %v1173 = vmul.f32 %v1165, 2.5
        %v1174 = vmul.f32 %v1006, %v918
        %v1175 = vmul.f32 %v1007, %v919
        %v1176 = vmul.f32 %v1008, %v920
        %v1177 = vmul.f32 %v1009, %v921
        %v1178 = vmul.f32 %v1010, %v922
        %v1179 = vmul.f32 %v1011, %v923
        %v1180 = vmul.f32 %v1012, %v924
        %v1181 = vmul.f32 %v1013, %v925
        %v1182 = vmul.f32 %v1022, %v926
        %v1183 = vmul.f32 %v1023, %v927
        %v1184 = vmul.f32 %v1024, %v928
        %v1185 = vmul.f32 %v1025, %v929
        %v1186 = vmul.f32 %v1026, %v930
        %v1187 = vmul.f32 %v1027, %v931
        %v1188 = vmul.f32 %v1028, %v932
        %v1189 = vmul.f32 %v1029, %v933
        %v1190 = vsub.f32 %v1174, %v1182
        %v1191 = vsub.f32 %v1175, %v1183
        %v1192 = vsub.f32 %v1176, %v1184
        %v1193 = vsub.f32 %v1177, %v1185
        %v1194 = vsub.f32 %v1178, %v1186
        %v1195 = vsub.f32 %v1179, %v1187
        %v1196 = vsub.f32 %v1180, %v1188
        %v1197 = vsub.f32 %v1181, %v1189
        %v1198 = vmul.f32 %v1190, 2.5
        %v1199 = vmul.f32 %v1191, 2.5
        %v1200 = vmul.f32 %v1192, 2.5
        %v1201 = vmul.f32 %v1193, 2.5
        %v1202 = vmul.f32 %v1194, 2.5
        %v1203 = vmul.f32 %v1195, 2.5
        %v1204 = vmul.f32 %v1196, 2.5
        %v1205 = vmul.f32 %v1197, 2.5
        %v1206 = vmul.f32 %v1014, %v926
        %v1207 = vmul.f32 %v1015, %v927
        %v1208 = vmul.f32 %v1016, %v928
        %v1209 = vmul.f32 %v1017, %v929
        %v1210 = vmul.f32 %v1018, %v930
        %v1211 = vmul.f32 %v1019, %v931
        %v1212 = vmul.f32 %v1020, %v932
        %v1213 = vmul.f32 %v1021, %v933
        %v1214 = vmul.f32 %v1030, %v934
        %v1215 = vmul.f32 %v1031, %v935
        %v1216 = vmul.f32 %v1032, %v936
        %v1217 = vmul.f32 %v1033, %v937
        %v1218 = vmul.f32 %v1034, %v938
        %v1219 = vmul.f32 %v1035, %v939
        %v1220 = vmul.f32 %v1036, %v940
        %v1221 = vmul.f32 %v1037, %v941
        %v1222 = vsub.f32 %v1206, %v1214
        %v1223 = vsub.f32 %v1207, %v1215
        %v1224 = vsub.f32 %v1208, %v1216
        %v1225 = vsub.f32 %v1209, %v1217
        %v1226 = vsub.f32 %v1210, %v1218
        %v1227 = vsub.f32 %v1211, %v1219
        %v1228 = vsub.f32 %v1212, %v1220
        %v1229 = vsub.f32 %v1213, %v1221
        %v1230 = vmul.f32 %v1222, 2.5
        %v1231 = vmul.f32 %v1223, 2.5
        %v1232 = vmul.f32 %v1224, 2.5
        %v1233 = vmul.f32 %v1225, 2.5
        %v1234 = vmul.f32 %v1226, 2.5
        %v1235 = vmul.f32 %v1227, 2.5
        %v1236 = vmul.f32 %v1228, 2.5
        %v1237 = vmul.f32 %v1229, 2.5
        %v1238 = vmul.f32 %v1022, %v934
        %v1239 = vmul.f32 %v1023, %v935
        %v1240 = vmul.f32 %v1024, %v936
        %v1241 = vmul.f32 %v1025, %v937
        %v1242 = vmul.f32 %v1026, %v938
        %v1243 = vmul.f32 %v1027, %v939
        %v1244 = vmul.f32 %v1028, %v940
        %v1245 = vmul.f32 %v1029, %v941
        %v1246 = vmul.f32 %v1038, %v942
        %v1247 = vmul.f32 %v1039, %v943
        %v1248 = vmul.f32 %v1040, %v944
        %v1249 = vmul.f32 %v1041, %v945
        %v1250 = vmul.f32 %v1042, %v946
        %v1251 = vmul.f32 %v1043, %v947
        %v1252 = vmul.f32 %v1044, %v948
        %v1253 = vmul.f32 %v1045, %v949
        %v1254 = vsub.f32 %v1238, %v1246
        %v1255 = vsub.f32 %v1239, %v1247
        %v1256 = vsub.f32 %v1240, %v1248
        %v1257 = vsub.f32 %v1241, %v1249
        %v1258 = vsub.f32 %v1242, %v1250
        %v1259 = vsub.f32 %v1243, %v1251
        %v1260 = vsub.f32 %v1244, %v1252
        %v1261 = vsub.f32 %v1245, %v1253
        %v1262 = vmul.f32 %v1254, 2.5
        %v1263 = vmul.f32 %v1255, 2.5
        %v1264 = vmul.f32 %v1256, 2.5
        %v1265 = vmul.f32 %v1257, 2.5
        %v1266 = vmul.f32 %v1258, 2.5
        %v1267 = vmul.f32 %v1259, 2.5
        %v1268 = vmul.f32 %v1260, 2.5
        %v1269 = vmul.f32 %v1261, 2.5
        %v1270 = vmul.f32 %v1030, %v942
        %v1271 = vmul.f32 %v1031, %v943
        %v1272 = vmul.f32 %v1032, %v944
        %v1273 = vmul.f32 %v1033, %v945
        %v1274 = vmul.f32 %v1034, %v946
        %v1275 = vmul.f32 %v1035, %v947
        %v1276 = vmul.f32 %v1036, %v948
        %v1277 = vmul.f32 %v1037, %v949
        %v1278 = vmul.f32 %v1046, %v950
        %v1279 = vmul.f32 %v1047, %v951
        %v1280 = vmul.f32 %v1048, %v952
        %v1281 = vmul.f32 %v1049, %v953
        %v1282 = vmul.f32 %v1050, %v954
        %v1283 = vmul.f32 %v1051, %v955
        %v1284 = vmul.f32 %v1052, %v956
        %v1285 = vmul.f32 %v1053, %v957
        %v1286 = vsub.f32 %v1270, %v1278
        %v1287 = vsub.f32 %v1271, %v1279
        %v1288 = vsub.f32 %v1272, %v1280
        %v1289 = vsub.f32 %v1273, %v1281
        %v1290 = vsub.f32 %v1274, %v1282
        %v1291 = vsub.f32 %v1275, %v1283
        %v1292 = vsub.f32 %v1276, %v1284
        %v1293 = vsub.f32 %v1277, %v1285
        %v1294 = vmul.f32 %v1286, 2.5
        %v1295 = vmul.f32 %v1287, 2.5
        %v1296 = vmul.f32 %v1288, 2.5
        %v1297 = vmul.f32 %v1289, 2.5
        %v1298 = vmul.f32 %v1290, 2.5
        %v1299 = vmul.f32 %v1291, 2.5
        %v1300 = vmul.f32 %v1292, 2.5
        %v1301 = vmul.f32 %v1293, 2.5
        %v1302 = vmul.f32 %v1038, %v950
        %v1303 = vmul.f32 %v1039, %v951
        %v1304 = vmul.f32 %v1040, %v952
        %v1305 = vmul.f32 %v1041, %v953
        %v1306 = vmul.f32 %v1042, %v954
        %v1307 = vmul.f32 %v1043, %v955
        %v1308 = vmul.f32 %v1044, %v956
        %v1309 = vmul.f32 %v1045, %v957
        %v1310 = vmul.f32 %v1054, %v958
        %v1311 = vmul.f32 %v1055, %v959
        %v1312 = vmul.f32 %v1056, %v960
        %v1313 = vmul.f32 %v1057, %v961
        %v1314 = vmul.f32 %v1058, %v962
        %v1315 = vmul.f32 %v1059, %v963
        %v1316 = vmul.f32 %v1060, %v964
        %v1317 = vmul.f32 %v1061, %v965
        %v1318 = vsub.f32 %v1302, %v1310
        %v1319 = vsub.f32 %v1303, %v1311
        %v1320 = vsub.f32 %v1304, %v1312
        %v1321 = vsub.f32 %v1305, %v1313
        %v1322 = vsub.f32 %v1306, %v1314
        %v1323 = vsub.f32 %v1307, %v1315
        %v1324 = vsub.f32 %v1308, %v1316
        %v1325 = vsub.f32 %v1309, %v1317
        %v1326 = vmul.f32 %v1318, 2.5
        %v1327 = vmul.f32 %v1319, 2.5
        %v1328 = vmul.f32 %v1320, 2.5
        %v1329 = vmul.f32 %v1321, 2.5
        %v1330 = vmul.f32 %v1322, 2.5
        %v1331 = vmul.f32 %v1323, 2.5
        %v1332 = vmul.f32 %v1324, 2.5
        %v1333 = vmul.f32 %v1325, 2.5
        %v1334 = vmul.f32 %v1046, %v958
        %v1335 = vmul.f32 %v1047, %v959
        %v1336 = vmul.f32 %v1048, %v960
        %v1337 = vmul.f32 %v1049, %v961
        %v1338 = vmul.f32 %v1050, %v962
        %v1339 = vmul.f32 %v1051, %v963
        %v1340 = vmul.f32 %v1052, %v964
        %v1341 = vmul.f32 %v1053, %v965
        %v1342 = vmul.f32 %v1062, %v966
        %v1343 = vmul.f32 %v1063, %v967
        %v1344 = vmul.f32 %v1064, %v968
        %v1345 = vmul.f32 %v1065, %v969
        %v1346 = vmul.f32 %v1066, %v970
        %v1347 = vmul.f32 %v1067, %v971
        %v1348 = vmul.f32 %v1068, %v972
        %v1349 = vmul.f32 %v1069, %v973
        %v1350 = vsub.f32 %v1334, %v1342
        %v1351 = vsub.f32 %v1335, %v1343
        %v1352 = vsub.f32 %v1336, %v1344
        %v1353 = vsub.f32 %v1337, %v1345
        %v1354 = vsub.f32 %v1338, %v1346
        %v1355 = vsub.f32 %v1339, %v1347
        %v1356 = vsub.f32 %v1340, %v1348
        %v1357 = vsub.f32 %v1341, %v1349
        %v1358 = vmul.f32 %v1350, 2.5
        %v1359 = vmul.f32 %v1351, 2.5
        %v1360 = vmul.f32 %v1352, 2.5
        %v1361 = vmul.f32 %v1353, 2.5
        %v1362 = vmul.f32 %v1354, 2.5
        %v1363 = vmul.f32 %v1355, 2.5
        %v1364 = vmul.f32 %v1356, 2.5
        %v1365 = vmul.f32 %v1357, 2.5
        %v1366 = vmul.f32 %v1054, %v966
        %v1367 = vmul.f32 %v1055, %v967
        %v1368 = vmul.f32 %v1056, %v968
        %v1369 = vmul.f32 %v1057, %v969
        %v1370 = vmul.f32 %v1058, %v970
        %v1371 = vmul.f32 %v1059, %v971
        %v1372 = vmul.f32 %v1060, %v972
        %v1373 = vmul.f32 %v1061, %v973
        %v1374 = vmul.f32 %v1070, %v974
        %v1375 = vmul.f32 %v1071, %v975
        %v1376 = vmul.f32 %v1072, %v976
        %v1377 = vmul.f32 %v1073, %v977
        %v1378 = vmul.f32 %v1074, %v978
        %v1379 = vmul.f32 %v1075, %v979
        %v1380 = vmul.f32 %v1076, %v980
        %v1381 = vmul.f32 %v1077, %v981
        %v1382 = vsub.f32 %v1366, %v1374
        %v1383 = vsub.f32 %v1367, %v1375
        %v1384 = vsub.f32 %v1368, %v1376
        %v1385 = vsub.f32 %v1369, %v1377
        %v1386 = vsub.f32 %v1370, %v1378
        %v1387 = vsub.f32 %v1371, %v1379
        %v1388 = vsub.f32 %v1372, %v1380
        %v1389 = vsub.f32 %v1373, %v1381
        %v1390 = vmul.f32 %v1382, 2.5
        %v1391 = vmul.f32 %v1383, 2.5
        %v1392 = vmul.f32 %v1384, 2.5
        %v1393 = vmul.f32 %v1385, 2.5
        %v1394 = vmul.f32 %v1386, 2.5
        %v1395 = vmul.f32 %v1387, 2.5
        %v1396 = vmul.f32 %v1388, 2.5
        %v1397 = vmul.f32 %v1389, 2.5
        %v1398 = vmul.f32 %v982, %v1102
        %v1399 = vmul.f32 %v983, %v1103
        %v1400 = vmul.f32 %v984, %v1104
        %v1401 = vmul.f32 %v985, %v1105
        %v1402 = vmul.f32 %v986, %v1106
        %v1403 = vmul.f32 %v987, %v1107
        %v1404 = vmul.f32 %v988, %v1108
        %v1405 = vmul.f32 %v989, %v1109
        %v1406 = vmul.f32 %v1006, %v1134
        %v1407 = vmul.f32 %v1007, %v1135
        %v1408 = vmul.f32 %v1008, %v1136
        %v1409 = vmul.f32 %v1009, %v1137
        %v1410 = vmul.f32 %v1010, %v1138
        %v1411 = vmul.f32 %v1011, %v1139
        %v1412 = vmul.f32 %v1012, %v1140
        %v1413 = vmul.f32 %v1013, %v1141
        %v1414 = vsub.f32 %v1398, %v1406
        %v1415 = vsub.f32 %v1399, %v1407
        %v1416 = vsub.f32 %v1400, %v1408
        %v1417 = vsub.f32 %v1401, %v1409
        %v1418 = vsub.f32 %v1402, %v1410
        %v1419 = vsub.f32 %v1403, %v1411
        %v1420 = vsub.f32 %v1404, %v1412
        %v1421 = vsub.f32 %v1405, %v1413
        %v1422 = vmul.f32 %v1414, 1.25
        %v1423 = vmul.f32 %v1415, 1.25
        %v1424 = vmul.f32 %v1416, 1.25
        %v1425 = vmul.f32 %v1417, 1.25
        %v1426 = vmul.f32 %v1418, 1.25
        %v1427 = vmul.f32 %v1419, 1.25
        %v1428 = vmul.f32 %v1420, 1.25
        %v1429 = vmul.f32 %v1421, 1.25
        %v1430 = vmul.f32 %v990, %v1134
        %v1431 = vmul.f32 %v991, %v1135
        %v1432 = vmul.f32 %v992, %v1136
        %v1433 = vmul.f32 %v993, %v1137
        %v1434 = vmul.f32 %v994, %v1138
        %v1435 = vmul.f32 %v995, %v1139
        %v1436 = vmul.f32 %v996, %v1140
        %v1437 = vmul.f32 %v997, %v1141
        %v1438 = vmul.f32 %v1014, %v1166
        %v1439 = vmul.f32 %v1015, %v1167
        %v1440 = vmul.f32 %v1016, %v1168
        %v1441 = vmul.f32 %v1017, %v1169
        %v1442 = vmul.f32 %v1018, %v1170
        %v1443 = vmul.f32 %v1019, %v1171
        %v1444 = vmul.f32 %v1020, %v1172
        %v1445 = vmul.f32 %v1021, %v1173
        %v1446 = vsub.f32 %v1430, %v1438
        %v1447 = vsub.f32 %v1431, %v1439
        %v1448 = vsub.f32 %v1432, %v1440
        %v1449 = vsub.f32 %v1433, %v1441
        %v1450 = vsub.f32 %v1434, %v1442
        %v1451 = vsub.f32 %v1435, %v1443
        %v1452 = vsub.f32 %v1436, %v1444
        %v1453 = vsub.f32 %v1437, %v1445
        %v1454 = vmul.f32 %v1446, 1.25
        %v1455 = vmul.f32 %v1447, 1.25
        %v1456 = vmul.f32 %v1448, 1.25
        %v1457 = vmul.f32 %v1449, 1.25
        %v1458 = vmul.f32 %v1450, 1.25
        %v1459 = vmul.f32 %v1451, 1.25
        %v1460 = vmul.f32 %v1452, 1.25
        %v1461 = vmul.f32 %v1453, 1.25
        %v1462 = vmul.f32 %v998, %v1166
        %v1463 = vmul.f32 %v999, %v1167
        %v1464 = vmul.f32 %v1000, %v1168
        %v1465 = vmul.f32 %v1001, %v1169
        %v1466 = vmul.f32 %v1002, %v1170
        %v1467 = vmul.f32 %v1003, %v1171
        %v1468 = vmul.f32 %v1004, %v1172
        %v1469 = vmul.f32 %v1005, %v1173
        %v1470 = vmul.f32 %v1022, %v1198
        %v1471 = vmul.f32 %v1023, %v1199
        %v1472 = vmul.f32 %v1024, %v1200
        %v1473 = vmul.f32 %v1025, %v1201
        %v1474 = vmul.f32 %v1026, %v1202
        %v1475 = vmul.f32 %v1027, %v1203
        %v1476 = vmul.f32 %v1028, %v1204
        %v1477 = vmul.f32 %v1029, %v1205
        %v1478 = vsub.f32 %v1462, %v1470
        %v1479 = vsub.f32 %v1463, %v1471
        %v1480 = vsub.f32 %v1464, %v1472
        %v1481 = vsub.f32 %v1465, %v1473
        %v1482 = vsub.f32 %v1466, %v1474
        %v1483 = vsub.f32 %v1467, %v1475
        %v1484 = vsub.f32 %v1468, %v1476
        %v1485 = vsub.f32 %v1469, %v1477
        %v1486 = vmul.f32 %v1478, 1.25
        %v1487 = vmul.f32 %v1479, 1.25
        %v1488 = vmul.f32 %v1480, 1.25
        %v1489 = vmul.f32 %v1481, 1.25
        %v1490 = vmul.f32 %v1482, 1.25
        %v1491 = vmul.f32 %v1483, 1.25
        %v1492 = vmul.f32 %v1484, 1.25
        %v1493 = vmul.f32 %v1485, 1.25
        %v1494 = vmul.f32 %v1006, %v1198
        %v1495 = vmul.f32 %v1007, %v1199
        %v1496 = vmul.f32 %v1008, %v1200
        %v1497 = vmul.f32 %v1009, %v1201
        %v1498 = vmul.f32 %v1010, %v1202
        %v1499 = vmul.f32 %v1011, %v1203
        %v1500 = vmul.f32 %v1012, %v1204
        %v1501 = vmul.f32 %v1013, %v1205
        %v1502 = vmul.f32 %v1030, %v1230
        %v1503 = vmul.f32 %v1031, %v1231
        %v1504 = vmul.f32 %v1032, %v1232
        %v1505 = vmul.f32 %v1033, %v1233
        %v1506 = vmul.f32 %v1034, %v1234
        %v1507 = vmul.f32 %v1035, %v1235
        %v1508 = vmul.f32 %v1036, %v1236
        %v1509 = vmul.f32 %v1037, %v1237
        %v1510 = vsub.f32 %v1494, %v1502
        %v1511 = vsub.f32 %v1495, %v1503
        %v1512 = vsub.f32 %v1496, %v1504
        %v1513 = vsub.f32 %v1497, %v1505
        %v1514 = vsub.f32 %v1498, %v1506
        %v1515 = vsub.f32 %v1499, %v1507
        %v1516 = vsub.f32 %v1500, %v1508
        %v1517 = vsub.f32 %v1501, %v1509
        %v1518 = vmul.f32 %v1510, 1.25
        %v1519 = vmul.f32 %v1511, 1.25
        %v1520 = vmul.f32 %v1512, 1.25
        %v1521 = vmul.f32 %v1513, 1.25
        %v1522 = vmul.f32 %v1514, 1.25
        %v1523 = vmul.f32 %v1515, 1.25
        %v1524 = vmul.f32 %v1516, 1.25
        %v1525 = vmul.f32 %v1517, 1.25
        %v1526 = vmul.f32 %v1014, %v1230
        %v1527 = vmul.f32 %v1015, %v1231
        %v1528 = vmul.f32 %v1016, %v1232
        %v1529 = vmul.f32 %v1017, %v1233
        %v1530 = vmul.f32 %v1018, %v1234
        %v1531 = vmul.f32 %v1019, %v1235
        %v1532 = vmul.f32 %v1020, %v1236
        %v1533 = vmul.f32 %v1021, %v1237
        %v1534 = vmul.f32 %v1038, %v1262
        %v1535 = vmul.f32 %v1039, %v1263
        %v1536 = vmul.f32 %v1040, %v1264
        %v1537 = vmul.f32 %v1041, %v1265
        %v1538 = vmul.f32 %v1042, %v1266
        %v1539 = vmul.f32 %v1043, %v1267
        %v1540 = vmul.f32 %v1044, %v1268
        %v1541 = vmul.f32 %v1045, %v1269
        %v1542 = vsub.f32 %v1526, %v1534
        %v1543 = vsub.f32 %v1527, %v1535
        %v1544 = vsub.f32 %v1528, %v1536
        %v1545 = vsub.f32 %v1529, %v1537
        %v1546 = vsub.f32 %v1530, %v1538
        %v1547 = vsub.f32 %v1531, %v1539
        %v1548 = vsub.f32 %v1532, %v1540
        %v1549 = vsub.f32 %v1533, %v1541
        %v1550 = vmul.f32 %v1542, 1.25
        %v1551 = vmul.f32 %v1543, 1.25
        %v1552 = vmul.f32 %v1544, 1.25
        %v1553 = vmul.f32 %v1545, 1.25
        %v1554 = vmul.f32 %v1546, 1.25
        %v1555 = vmul.f32 %v1547, 1.25
        %v1556 = vmul.f32 %v1548, 1.25
        %v1557 = vmul.f32 %v1549, 1.25
        %v1558 = vmul.f32 %v1022, %v1262
        %v1559 = vmul.f32 %v1023, %v1263
        %v1560 = vmul.f32 %v1024, %v1264
        %v1561 = vmul.f32 %v1025, %v1265
        %v1562 = vmul.f32 %v1026, %v1266
        %v1563 = vmul.f32 %v1027, %v1267
        %v1564 = vmul.f32 %v1028, %v1268
        %v1565 = vmul.f32 %v1029, %v1269
        %v1566 = vmul.f32 %v1046, %v1294
        %v1567 = vmul.f32 %v1047, %v1295
        %v1568 = vmul.f32 %v1048, %v1296
        %v1569 = vmul.f32 %v1049, %v1297
        %v1570 = vmul.f32 %v1050, %v1298
        %v1571 = vmul.f32 %v1051, %v1299
        %v1572 = vmul.f32 %v1052, %v1300
        %v1573 = vmul.f32 %v1053, %v1301
        %v1574 = vsub.f32 %v1558, %v1566
        %v1575 = vsub.f32 %v1559, %v1567
        %v1576 = vsub.f32 %v1560, %v1568
        %v1577 = vsub.f32 %v1561, %v1569
        %v1578 = vsub.f32 %v1562, %v1570
        %v1579 = vsub.f32 %v1563, %v1571
        %v1580 = vsub.f32 %v1564, %v1572
        %v1581 = vsub.f32 %v1565, %v1573
        %v1582 = vmul.f32 %v1574, 1.25
        %v1583 = vmul.f32 %v1575, 1.25
        %v1584 = vmul.f32 %v1576, 1.25
        %v1585 = vmul.f32 %v1577, 1.25
        %v1586 = vmul.f32 %v1578, 1.25
        %v1587 = vmul.f32 %v1579, 1.25
        %v1588 = vmul.f32 %v1580, 1.25
        %v1589 = vmul.f32 %v1581, 1.25
        %v1590 = vmul.f32 %v1030, %v1294
        %v1591 = vmul.f32 %v1031, %v1295
        %v1592 = vmul.f32 %v1032, %v1296
        %v1593 = vmul.f32 %v1033, %v1297
        %v1594 = vmul.f32 %v1034, %v1298
        %v1595 = vmul.f32 %v1035, %v1299
        %v1596 = vmul.f32 %v1036, %v1300
        %v1597 = vmul.f32 %v1037, %v1301
        %v1598 = vmul.f32 %v1054, %v1326
        %v1599 = vmul.f32 %v1055, %v1327
        %v1600 = vmul.f32 %v1056, %v1328
        %v1601 = vmul.f32 %v1057, %v1329
        %v1602 = vmul.f32 %v1058, %v1330
        %v1603 = vmul.f32 %v1059, %v1331
        %v1604 = vmul.f32 %v1060, %v1332
        %v1605 = vmul.f32 %v1061, %v1333
        %v1606 = vsub.f32 %v1590, %v1598
        %v1607 = vsub.f32 %v1591, %v1599
        %v1608 = vsub.f32 %v1592, %v1600
        %v1609 = vsub.f32 %v1593, %v1601
        %v1610 = vsub.f32 %v1594, %v1602
        %v1611 = vsub.f32 %v1595, %v1603
        %v1612 = vsub.f32 %v1596, %v1604
        %v1613 = vsub.f32 %v1597, %v1605
        %v1614 = vmul.f32 %v1606, 1.25
        %v1615 = vmul.f32 %v1607, 1.25
        %v1616 = vmul.f32 %v1608, 1.25
        %v1617 = vmul.f32 %v1609, 1.25
        %v1618 = vmul.f32 %v1610, 1.25
        %v1619 = vmul.f32 %v1611, 1.25
        %v1620 = vmul.f32 %v1612, 1.25
        %v1621 = vmul.f32 %v1613, 1.25
        %v1622 = vmul.f32 %v1038, %v1326
        %v1623 = vmul.f32 %v1039, %v1327
        %v1624 = vmul.f32 %v1040, %v1328
        %v1625 = vmul.f32 %v1041, %v1329
        %v1626 = vmul.f32 %v1042, %v1330
        %v1627 = vmul.f32 %v1043, %v1331
        %v1628 = vmul.f32 %v1044, %v1332
        %v1629 = vmul.f32 %v1045, %v1333
        %v1630 = vmul.f32 %v1062, %v1358
        %v1631 = vmul.f32 %v1063, %v1359
        %v1632 = vmul.f32 %v1064, %v1360
        %v1633 = vmul.f32 %v1065, %v1361
        %v1634 = vmul.f32 %v1066, %v1362
        %v1635 = vmul.f32 %v1067, %v1363
        %v1636 = vmul.f32 %v1068, %v1364
        %v1637 = vmul.f32 %v1069, %v1365
        %v1638 = vsub.f32 %v1622, %v1630
        %v1639 = vsub.f32 %v1623, %v1631
        %v1640 = vsub.f32 %v1624, %v1632
        %v1641 = vsub.f32 %v1625, %v1633
        %v1642 = vsub.f32 %v1626, %v1634
        %v1643 = vsub.f32 %v1627, %v1635
        %v1644 = vsub.f32 %v1628, %v1636
        %v1645 = vsub.f32 %v1629, %v1637
        %v1646 = vmul.f32 %v1638, 1.25
        %v1647 = vmul.f32 %v1639, 1.25
        %v1648 = vmul.f32 %v1640, 1.25
        %v1649 = vmul.f32 %v1641, 1.25
        %v1650 = vmul.f32 %v1642, 1.25
        %v1651 = vmul.f32 %v1643, 1.25
        %v1652 = vmul.f32 %v1644, 1.25
        %v1653 = vmul.f32 %v1645, 1.25
        %v1654 = vmul.f32 %v1046, %v1358
        %v1655 = vmul.f32 %v1047, %v1359
        %v1656 = vmul.f32 %v1048, %v1360
        %v1657 = vmul.f32 %v1049, %v1361
        %v1658 = vmul.f32 %v1050, %v1362
        %v1659 = vmul.f32 %v1051, %v1363
        %v1660 = vmul.f32 %v1052, %v1364
        %v1661 = vmul.f32 %v1053, %v1365
        %v1662 = vmul.f32 %v1070, %v1390
        %v1663 = vmul.f32 %v1071, %v1391
        %v1664 = vmul.f32 %v1072, %v1392
        %v1665 = vmul.f32 %v1073, %v1393
        %v1666 = vmul.f32 %v1074, %v1394
        %v1667 = vmul.f32 %v1075, %v1395
        %v1668 = vmul.f32 %v1076, %v1396
        %v1669 = vmul.f32 %v1077, %v1397
        %v1670 = vsub.f32 %v1654, %v1662
        %v1671 = vsub.f32 %v1655, %v1663
        %v1672 = vsub.f32 %v1656, %v1664
        %v1673 = vsub.f32 %v1657, %v1665
        %v1674 = vsub.f32 %v1658, %v1666
        %v1675 = vsub.f32 %v1659, %v1667
        %v1676 = vsub.f32 %v1660, %v1668
        %v1677 = vsub.f32 %v1661, %v1669
        %v1678 = vmul.f32 %v1670, 1.25
        %v1679 = vmul.f32 %v1671, 1.25
        %v1680 = vmul.f32 %v1672, 1.25
        %v1681 = vmul.f32 %v1673, 1.25
        %v1682 = vmul.f32 %v1674, 1.25
        %v1683 = vmul.f32 %v1675, 1.25
        %v1684 = vmul.f32 %v1676, 1.25
        %v1685 = vmul.f32 %v1677, 1.25
        %v1686 = vmul.f32 %v982, %v1422
        %v1687 = vmul.f32 %v983, %v1423
        %v1688 = vmul.f32 %v984, %v1424
        %v1689 = vmul.f32 %v985, %v1425
        %v1690 = vmul.f32 %v986, %v1426
        %v1691 = vmul.f32 %v987, %v1427
        %v1692 = vmul.f32 %v988, %v1428
        %v1693 = vmul.f32 %v989, %v1429
        %v1694 = vmul.f32 %v1014, %v1454
        %v1695 = vmul.f32 %v1015, %v1455
        %v1696 = vmul.f32 %v1016, %v1456
        %v1697 = vmul.f32 %v1017, %v1457
        %v1698 = vmul.f32 %v1018, %v1458
        %v1699 = vmul.f32 %v1019, %v1459
        %v1700 = vmul.f32 %v1020, %v1460
        %v1701 = vmul.f32 %v1021, %v1461
        %v1702 = vsub.f32 %v1686, %v1694
        %v1703 = vsub.f32 %v1687, %v1695
        %v1704 = vsub.f32 %v1688, %v1696
        %v1705 = vsub.f32 %v1689, %v1697
        %v1706 = vsub.f32 %v1690, %v1698
        %v1707 = vsub.f32 %v1691, %v1699
        %v1708 = vsub.f32 %v1692, %v1700
        %v1709 = vsub.f32 %v1693, %v1701
        %v1710 = vmul.f32 %v1702, 0.8333333
        %v1711 = vmul.f32 %v1703, 0.8333333
        %v1712 = vmul.f32 %v1704, 0.8333333
        %v1713 = vmul.f32 %v1705, 0.8333333
        %v1714 = vmul.f32 %v1706, 0.8333333
        %v1715 = vmul.f32 %v1707, 0.8333333
        %v1716 = vmul.f32 %v1708, 0.8333333
        %v1717 = vmul.f32 %v1709, 0.8333333
        %v1718 = vmul.f32 %v990, %v1454
        %v1719 = vmul.f32 %v991, %v1455
        %v1720 = vmul.f32 %v992, %v1456
        %v1721 = vmul.f32 %v993, %v1457
        %v1722 = vmul.f32 %v994, %v1458
        %v1723 = vmul.f32 %v995, %v1459
        %v1724 = vmul.f32 %v996, %v1460
        %v1725 = vmul.f32 %v997, %v1461
        %v1726 = vmul.f32 %v1022, %v1486
        %v1727 = vmul.f32 %v1023, %v1487
        %v1728 = vmul.f32 %v1024, %v1488
        %v1729 = vmul.f32 %v1025, %v1489
        %v1730 = vmul.f32 %v1026, %v1490
        %v1731 = vmul.f32 %v1027, %v1491
        %v1732 = vmul.f32 %v1028, %v1492
        %v1733 = vmul.f32 %v1029, %v1493
        %v1734 = vsub.f32 %v1718, %v1726
        %v1735 = vsub.f32 %v1719, %v1727
        %v1736 = vsub.f32 %v1720, %v1728
        %v1737 = vsub.f32 %v1721, %v1729
        %v1738 = vsub.f32 %v1722, %v1730
        %v1739 = vsub.f32 %v1723, %v1731
        %v1740 = vsub.f32 %v1724, %v1732
        %v1741 = vsub.f32 %v1725, %v1733
        %v1742 = vmul.f32 %v1734, 0.8333333
        %v1743 = vmul.f32 %v1735, 0.8333333
        %v1744 = vmul.f32 %v1736, 0.8333333
        %v1745 = vmul.f32 %v1737, 0.8333333
        %v1746 = vmul.f32 %v1738, 0.8333333
        %v1747 = vmul.f32 %v1739, 0.8333333
        %v1748 = vmul.f32 %v1740, 0.8333333
        %v1749 = vmul.f32 %v1741, 0.8333333
        %v1750 = vmul.f32 %v998, %v1486
        %v1751 = vmul.f32 %v999, %v1487
        %v1752 = vmul.f32 %v1000, %v1488
        %v1753 = vmul.f32 %v1001, %v1489
        %v1754 = vmul.f32 %v1002, %v1490
        %v1755 = vmul.f32 %v1003, %v1491
        %v1756 = vmul.f32 %v1004, %v1492
        %v1757 = vmul.f32 %v1005, %v1493
        %v1758 = vmul.f32 %v1030, %v1518
        %v1759 = vmul.f32 %v1031, %v1519
        %v1760 = vmul.f32 %v1032, %v1520
        %v1761 = vmul.f32 %v1033, %v1521
        %v1762 = vmul.f32 %v1034, %v1522
        %v1763 = vmul.f32 %v1035, %v1523
        %v1764 = vmul.f32 %v1036, %v1524
        %v1765 = vmul.f32 %v1037, %v1525
        %v1766 = vsub.f32 %v1750, %v1758
        %v1767 = vsub.f32 %v1751, %v1759
        %v1768 = vsub.f32 %v1752, %v1760
        %v1769 = vsub.f32 %v1753, %v1761
        %v1770 = vsub.f32 %v1754, %v1762
        %v1771 = vsub.f32 %v1755, %v1763
        %v1772 = vsub.f32 %v1756, %v1764
        %v1773 = vsub.f32 %v1757, %v1765
        %v1774 = vmul.f32 %v1766, 0.8333333
        %v1775 = vmul.f32 %v1767, 0.8333333
        %v1776 = vmul.f32 %v1768, 0.8333333
        %v1777 = vmul.f32 %v1769, 0.8333333
        %v1778 = vmul.f32 %v1770, 0.8333333
        %v1779 = vmul.f32 %v1771, 0.8333333
        %v1780 = vmul.f32 %v1772, 0.8333333
        %v1781 = vmul.f32 %v1773, 0.8333333
        %v1782 = vmul.f32 %v1006, %v1518
        %v1783 = vmul.f32 %v1007, %v1519
        %v1784 = vmul.f32 %v1008, %v1520
        %v1785 = vmul.f32 %v1009, %v1521
        %v1786 = vmul.f32 %v1010, %v1522
        %v1787 = vmul.f32 %v1011, %v1523
        %v1788 = vmul.f32 %v1012, %v1524
        %v1789 = vmul.f32 %v1013, %v1525
        %v1790 = vmul.f32 %v1038, %v1550
        %v1791 = vmul.f32 %v1039, %v1551
        %v1792 = vmul.f32 %v1040, %v1552
        %v1793 = vmul.f32 %v1041, %v1553
        %v1794 = vmul.f32 %v1042, %v1554
        %v1795 = vmul.f32 %v1043, %v1555
        %v1796 = vmul.f32 %v1044, %v1556
        %v1797 = vmul.f32 %v1045, %v1557
        %v1798 = vsub.f32 %v1782, %v1790
        %v1799 = vsub.f32 %v1783, %v1791
        %v1800 = vsub.f32 %v1784, %v1792
        %v1801 = vsub.f32 %v1785, %v1793
        %v1802 = vsub.f32 %v1786, %v1794
        %v1803 = vsub.f32 %v1787, %v1795
        %v1804 = vsub.f32 %v1788, %v1796
        %v1805 = vsub.f32 %v1789, %v1797
        %v1806 = vmul.f32 %v1798, 0.8333333
        %v1807 = vmul.f32 %v1799, 0.8333333
        %v1808 = vmul.f32 %v1800, 0.8333333
        %v1809 = vmul.f32 %v1801, 0.8333333
        %v1810 = vmul.f32 %v1802, 0.8333333
        %v1811 = vmul.f32 %v1803, 0.8333333
        %v1812 = vmul.f32 %v1804, 0.8333333
        %v1813 = vmul.f32 %v1805, 0.8333333
        %v1814 = vmul.f32 %v1014, %v1550
        %v1815 = vmul.f32 %v1015, %v1551
        %v1816 = vmul.f32 %v1016, %v1552
        %v1817 = vmul.f32 %v1017, %v1553
        %v1818 = vmul.f32 %v1018, %v1554
        %v1819 = vmul.f32 %v1019, %v1555
        %v1820 = vmul.f32 %v1020, %v1556
        %v1821 = vmul.f32 %v1021, %v1557
        %v1822 = vmul.f32 %v1046, %v1582
        %v1823 = vmul.f32 %v1047, %v1583
        %v1824 = vmul.f32 %v1048, %v1584
        %v1825 = vmul.f32 %v1049, %v1585
        %v1826 = vmul.f32 %v1050, %v1586
        %v1827 = vmul.f32 %v1051, %v1587
        %v1828 = vmul.f32 %v1052, %v1588
        %v1829 = vmul.f32 %v1053, %v1589
        %v1830 = vsub.f32 %v1814, %v1822
        %v1831 = vsub.f32 %v1815, %v1823
        %v1832 = vsub.f32 %v1816, %v1824
        %v1833 = vsub.f32 %v1817, %v1825
        %v1834 = vsub.f32 %v1818, %v1826
        %v1835 = vsub.f32 %v1819, %v1827
        %v1836 = vsub.f32 %v1820, %v1828
        %v1837 = vsub.f32 %v1821, %v1829
        %v1838 = vmul.f32 %v1830, 0.8333333
        %v1839 = vmul.f32 %v1831, 0.8333333
        %v1840 = vmul.f32 %v1832, 0.8333333
        %v1841 = vmul.f32 %v1833, 0.8333333
        %v1842 = vmul.f32 %v1834, 0.8333333
        %v1843 = vmul.f32 %v1835, 0.8333333
        %v1844 = vmul.f32 %v1836, 0.8333333
        %v1845 = vmul.f32 %v1837, 0.8333333
        %v1846 = vmul.f32 %v1022, %v1582
        %v1847 = vmul.f32 %v1023, %v1583
        %v1848 = vmul.f32 %v1024, %v1584
        %v1849 = vmul.f32 %v1025, %v1585
        %v1850 = vmul.f32 %v1026, %v1586
        %v1851 = vmul.f32 %v1027, %v1587
        %v1852 = vmul.f32 %v1028, %v1588
        %v1853 = vmul.f32 %v1029, %v1589
        %v1854 = vmul.f32 %v1054, %v1614
        %v1855 = vmul.f32 %v1055, %v1615
        %v1856 = vmul.f32 %v1056, %v1616
        %v1857 = vmul.f32 %v1057, %v1617
        %v1858 = vmul.f32 %v1058, %v1618
        %v1859 = vmul.f32 %v1059, %v1619
        %v1860 = vmul.f32 %v1060, %v1620
        %v1861 = vmul.f32 %v1061, %v1621
        %v1862 = vsub.f32 %v1846, %v1854
        %v1863 = vsub.f32 %v1847, %v1855
        %v1864 = vsub.f32 %v1848, %v1856
        %v1865 = vsub.f32 %v1849, %v1857
        %v1866 = vsub.f32 %v1850, %v1858
        %v1867 = vsub.f32 %v1851, %v1859
        %v1868 = vsub.f32 %v1852, %v1860
        %v1869 = vsub.f32 %v1853, %v1861
        %v1870 = vmul.f32 %v1862, 0.8333333
        %v1871 = vmul.f32 %v1863, 0.8333333
        %v1872 = vmul.f32 %v1864, 0.8333333
        %v1873 = vmul.f32 %v1865, 0.8333333
        %v1874 = vmul.f32 %v1866, 0.8333333
        %v1875 = vmul.f32 %v1867, 0.8333333
        %v1876 = vmul.f32 %v1868, 0.8333333
        %v1877 = vmul.f32 %v1869, 0.8333333
        %v1878 = vmul.f32 %v1030, %v1614
        %v1879 = vmul.f32 %v1031, %v1615
        %v1880 = vmul.f32 %v1032, %v1616
        %v1881 = vmul.f32 %v1033, %v1617
        %v1882 = vmul.f32 %v1034, %v1618
        %v1883 = vmul.f32 %v1035, %v1619
        %v1884 = vmul.f32 %v1036, %v1620
        %v1885 = vmul.f32 %v1037, %v1621
        %v1886 = vmul.f32 %v1062, %v1646
        %v1887 = vmul.f32 %v1063, %v1647
        %v1888 = vmul.f32 %v1064, %v1648
        %v1889 = vmul.f32 %v1065, %v1649
        %v1890 = vmul.f32 %v1066, %v1650
        %v1891 = vmul.f32 %v1067, %v1651
        %v1892 = vmul.f32 %v1068, %v1652
        %v1893 = vmul.f32 %v1069, %v1653
        %v1894 = vsub.f32 %v1878, %v1886
        %v1895 = vsub.f32 %v1879, %v1887
        %v1896 = vsub.f32 %v1880, %v1888
        %v1897 = vsub.f32 %v1881, %v1889
        %v1898 = vsub.f32 %v1882, %v1890
        %v1899 = vsub.f32 %v1883, %v1891
        %v1900 = vsub.f32 %v1884, %v1892
        %v1901 = vsub.f32 %v1885, %v1893
        %v1902 = vmul.f32 %v1894, 0.8333333
        %v1903 = vmul.f32 %v1895, 0.8333333
        %v1904 = vmul.f32 %v1896, 0.8333333
        %v1905 = vmul.f32 %v1897, 0.8333333
        %v1906 = vmul.f32 %v1898, 0.8333333
        %v1907 = vmul.f32 %v1899, 0.8333333
        %v1908 = vmul.f32 %v1900, 0.8333333
        %v1909 = vmul.f32 %v1901, 0.8333333
        %v1910 = vmul.f32 %v1038, %v1646
        %v1911 = vmul.f32 %v1039, %v1647
        %v1912 = vmul.f32 %v1040, %v1648
        %v1913 = vmul.f32 %v1041, %v1649
        %v1914 = vmul.f32 %v1042, %v1650
        %v1915 = vmul.f32 %v1043, %v1651
        %v1916 = vmul.f32 %v1044, %v1652
        %v1917 = vmul.f32 %v1045, %v1653
        %v1918 = vmul.f32 %v1070, %v1678
        %v1919 = vmul.f32 %v1071, %v1679
        %v1920 = vmul.f32 %v1072, %v1680
        %v1921 = vmul.f32 %v1073, %v1681
        %v1922 = vmul.f32 %v1074, %v1682
        %v1923 = vmul.f32 %v1075, %v1683
        %v1924 = vmul.f32 %v1076, %v1684
        %v1925 = vmul.f32 %v1077, %v1685
        %v1926 = vsub.f32 %v1910, %v1918
        %v1927 = vsub.f32 %v1911, %v1919
        %v1928 = vsub.f32 %v1912, %v1920
        %v1929 = vsub.f32 %v1913, %v1921
        %v1930 = vsub.f32 %v1914, %v1922
        %v1931 = vsub.f32 %v1915, %v1923
        %v1932 = vsub.f32 %v1916, %v1924
        %v1933 = vsub.f32 %v1917, %v1925
        %v1934 = vmul.f32 %v1926, 0.8333333
        %v1935 = vmul.f32 %v1927, 0.8333333
        %v1936 = vmul.f32 %v1928, 0.8333333
        %v1937 = vmul.f32 %v1929, 0.8333333
        %v1938 = vmul.f32 %v1930, 0.8333333
        %v1939 = vmul.f32 %v1931, 0.8333333
        %v1940 = vmul.f32 %v1932, 0.8333333
        %v1941 = vmul.f32 %v1933, 0.8333333
        %v1942 = vpack.c.bf16 %v1710, %v1710
        %v1943 = vpack.c.bf16 %v1711, %v1711
        %v1944 = vpack.c.bf16 %v1712, %v1712
        %v1945 = vpack.c.bf16 %v1713, %v1713
        %v1946 = vpack.c.bf16 %v1714, %v1714
        %v1947 = vpack.c.bf16 %v1715, %v1715
        %v1948 = vpack.c.bf16 %v1716, %v1716
        %v1949 = vpack.c.bf16 %v1717, %v1717
        %v1950 = vpack.c.bf16 %v1742, %v1742
        %v1951 = vpack.c.bf16 %v1743, %v1743
        %v1952 = vpack.c.bf16 %v1744, %v1744
        %v1953 = vpack.c.bf16 %v1745, %v1745
        %v1954 = vpack.c.bf16 %v1746, %v1746
        %v1955 = vpack.c.bf16 %v1747, %v1747
        %v1956 = vpack.c.bf16 %v1748, %v1748
        %v1957 = vpack.c.bf16 %v1749, %v1749
        %v1958 = vpack.c.bf16 %v1774, %v1774
        %v1959 = vpack.c.bf16 %v1775, %v1775
        %v1960 = vpack.c.bf16 %v1776, %v1776
        %v1961 = vpack.c.bf16 %v1777, %v1777
        %v1962 = vpack.c.bf16 %v1778, %v1778
        %v1963 = vpack.c.bf16 %v1779, %v1779
        %v1964 = vpack.c.bf16 %v1780, %v1780
        %v1965 = vpack.c.bf16 %v1781, %v1781
        %v1966 = vpack.c.bf16 %v1806, %v1806
        %v1967 = vpack.c.bf16 %v1807, %v1807
        %v1968 = vpack.c.bf16 %v1808, %v1808
        %v1969 = vpack.c.bf16 %v1809, %v1809
        %v1970 = vpack.c.bf16 %v1810, %v1810
        %v1971 = vpack.c.bf16 %v1811, %v1811
        %v1972 = vpack.c.bf16 %v1812, %v1812
        %v1973 = vpack.c.bf16 %v1813, %v1813
        %v1974 = vpack.c.bf16 %v1838, %v1838
        %v1975 = vpack.c.bf16 %v1839, %v1839
        %v1976 = vpack.c.bf16 %v1840, %v1840
        %v1977 = vpack.c.bf16 %v1841, %v1841
        %v1978 = vpack.c.bf16 %v1842, %v1842
        %v1979 = vpack.c.bf16 %v1843, %v1843
        %v1980 = vpack.c.bf16 %v1844, %v1844
        %v1981 = vpack.c.bf16 %v1845, %v1845
        %v1982 = vpack.c.bf16 %v1870, %v1870
        %v1983 = vpack.c.bf16 %v1871, %v1871
        %v1984 = vpack.c.bf16 %v1872, %v1872
        %v1985 = vpack.c.bf16 %v1873, %v1873
        %v1986 = vpack.c.bf16 %v1874, %v1874
        %v1987 = vpack.c.bf16 %v1875, %v1875
        %v1988 = vpack.c.bf16 %v1876, %v1876
        %v1989 = vpack.c.bf16 %v1877, %v1877
        %v1990 = vpack.c.bf16 %v1902, %v1902
        %v1991 = vpack.c.bf16 %v1903, %v1903
        %v1992 = vpack.c.bf16 %v1904, %v1904
        %v1993 = vpack.c.bf16 %v1905, %v1905
        %v1994 = vpack.c.bf16 %v1906, %v1906
        %v1995 = vpack.c.bf16 %v1907, %v1907
        %v1996 = vpack.c.bf16 %v1908, %v1908
        %v1997 = vpack.c.bf16 %v1909, %v1909
        %v1998 = vpack.c.bf16 %v1934, %v1934
        %v1999 = vpack.c.bf16 %v1935, %v1935
        %v2000 = vpack.c.bf16 %v1936, %v1936
        %v2001 = vpack.c.bf16 %v1937, %v1937
        %v2002 = vpack.c.bf16 %v1938, %v1938
        %v2003 = vpack.c.bf16 %v1939, %v1939
        %v2004 = vpack.c.bf16 %v1940, %v1940
        %v2005 = vpack.c.bf16 %v1941, %v1941
        %v2014 = vunpack.c.l.b16 %v598
        %v2015 = vunpack.c.l.b16 %v599
        %v2016 = vunpack.c.l.b16 %v600
        %v2017 = vunpack.c.l.b16 %v601
        %v2018 = vunpack.c.l.b16 %v602
        %v2019 = vunpack.c.l.b16 %v603
        %v2020 = vunpack.c.l.b16 %v604
        %v2021 = vunpack.c.l.b16 %v605
        %v2022 = vpack.c.b16 %v2015, %v2014
        %v2023 = vpack.c.b16 %v2017, %v2016
        %v2024 = vpack.c.b16 %v2019, %v2018
        %v2025 = vpack.c.b16 %v2021, %v2020
        %v2038 = vunpack.c.l.b16 %v1942
        %v2039 = vunpack.c.l.b16 %v1943
        %v2040 = vunpack.c.l.b16 %v1944
        %v2041 = vunpack.c.l.b16 %v1945
        %v2042 = vunpack.c.l.b16 %v1946
        %v2043 = vunpack.c.l.b16 %v1947
        %v2044 = vunpack.c.l.b16 %v1948
        %v2045 = vunpack.c.l.b16 %v1949
        %v2046 = vpack.c.b16 %v2039, %v2038
        %v2047 = vpack.c.b16 %v2041, %v2040
        %v2048 = vpack.c.b16 %v2043, %v2042
        %v2049 = vpack.c.b16 %v2045, %v2044
        %v2062 = vunpack.c.l.b16 %v1950
        %v2063 = vunpack.c.l.b16 %v1951
        %v2064 = vunpack.c.l.b16 %v1952
        %v2065 = vunpack.c.l.b16 %v1953
        %v2066 = vunpack.c.l.b16 %v1954
        %v2067 = vunpack.c.l.b16 %v1955
        %v2068 = vunpack.c.l.b16 %v1956
        %v2069 = vunpack.c.l.b16 %v1957
        %v2070 = vpack.c.b16 %v2063, %v2062
        %v2071 = vpack.c.b16 %v2065, %v2064
        %v2072 = vpack.c.b16 %v2067, %v2066
        %v2073 = vpack.c.b16 %v2069, %v2068
        %v2086 = vunpack.c.l.b16 %v1958
        %v2087 = vunpack.c.l.b16 %v1959
        %v2088 = vunpack.c.l.b16 %v1960
        %v2089 = vunpack.c.l.b16 %v1961
        %v2090 = vunpack.c.l.b16 %v1962
        %v2091 = vunpack.c.l.b16 %v1963
        %v2092 = vunpack.c.l.b16 %v1964
        %v2093 = vunpack.c.l.b16 %v1965
        %v2094 = vpack.c.b16 %v2087, %v2086
        %v2095 = vpack.c.b16 %v2089, %v2088
        %v2096 = vpack.c.b16 %v2091, %v2090
        %v2097 = vpack.c.b16 %v2093, %v2092
        %v2110 = vunpack.c.l.b16 %v1966
        %v2111 = vunpack.c.l.b16 %v1967
        %v2112 = vunpack.c.l.b16 %v1968
        %v2113 = vunpack.c.l.b16 %v1969
        %v2114 = vunpack.c.l.b16 %v1970
        %v2115 = vunpack.c.l.b16 %v1971
        %v2116 = vunpack.c.l.b16 %v1972
        %v2117 = vunpack.c.l.b16 %v1973
        %v2118 = vpack.c.b16 %v2111, %v2110
        %v2119 = vpack.c.b16 %v2113, %v2112
        %v2120 = vpack.c.b16 %v2115, %v2114
        %v2121 = vpack.c.b16 %v2117, %v2116
        %v2134 = vunpack.c.l.b16 %v1974
        %v2135 = vunpack.c.l.b16 %v1975
        %v2136 = vunpack.c.l.b16 %v1976
        %v2137 = vunpack.c.l.b16 %v1977
        %v2138 = vunpack.c.l.b16 %v1978
        %v2139 = vunpack.c.l.b16 %v1979
        %v2140 = vunpack.c.l.b16 %v1980
        %v2141 = vunpack.c.l.b16 %v1981
        %v2142 = vpack.c.b16 %v2135, %v2134
        %v2143 = vpack.c.b16 %v2137, %v2136
        %v2144 = vpack.c.b16 %v2139, %v2138
        %v2145 = vpack.c.b16 %v2141, %v2140
        %v2158 = vunpack.c.l.b16 %v1982
        %v2159 = vunpack.c.l.b16 %v1983
        %v2160 = vunpack.c.l.b16 %v1984
        %v2161 = vunpack.c.l.b16 %v1985
        %v2162 = vunpack.c.l.b16 %v1986
        %v2163 = vunpack.c.l.b16 %v1987
        %v2164 = vunpack.c.l.b16 %v1988
        %v2165 = vunpack.c.l.b16 %v1989
        %v2166 = vpack.c.b16 %v2159, %v2158
        %v2167 = vpack.c.b16 %v2161, %v2160
        %v2168 = vpack.c.b16 %v2163, %v2162
        %v2169 = vpack.c.b16 %v2165, %v2164
        %v2182 = vunpack.c.l.b16 %v1990
        %v2183 = vunpack.c.l.b16 %v1991
        %v2184 = vunpack.c.l.b16 %v1992
        %v2185 = vunpack.c.l.b16 %v1993
        %v2186 = vunpack.c.l.b16 %v1994
        %v2187 = vunpack.c.l.b16 %v1995
        %v2188 = vunpack.c.l.b16 %v1996
        %v2189 = vunpack.c.l.b16 %v1997
        %v2190 = vpack.c.b16 %v2183, %v2182
        %v2191 = vpack.c.b16 %v2185, %v2184
        %v2192 = vpack.c.b16 %v2187, %v2186
        %v2193 = vpack.c.b16 %v2189, %v2188
        %v2206 = vunpack.c.l.b16 %v1998
        %v2207 = vunpack.c.l.b16 %v1999
        %v2208 = vunpack.c.l.b16 %v2000
        %v2209 = vunpack.c.l.b16 %v2001
        %v2210 = vunpack.c.l.b16 %v2002
        %v2211 = vunpack.c.l.b16 %v2003
        %v2212 = vunpack.c.l.b16 %v2004
        %v2213 = vunpack.c.l.b16 %v2005
        %v2214 = vpack.c.b16 %v2207, %v2206
        %v2215 = vpack.c.b16 %v2209, %v2208
        %v2216 = vpack.c.b16 %v2211, %v2210
        %v2217 = vpack.c.b16 %v2213, %v2212
        %v2222 = vld [vmem:[#allocation4] sm:$0xf]
        %v2223 = vld [vmem:[#allocation4 + $0x4] sm:$0xf]
        %v2224 = vld [vmem:[#allocation4 + $0x8] sm:$0xf]
        %v2225 = vld [vmem:[#allocation4 + $0xc] sm:$0xf]
        %v2226 = vld [vmem:[#allocation4 + $0x10] sm:$0xf]
        %v2227 = vld [vmem:[#allocation4 + $0x14] sm:$0xf]
        %v2228 = vld [vmem:[#allocation4 + $0x18] sm:$0xf]
        %v2229 = vld [vmem:[#allocation4 + $0x1c] sm:$0xf]
        %v2230 = vld [vmem:[#allocation4 + $0x20] sm:$0xf]
        %v2231 = vld [vmem:[#allocation4 + $0x24] sm:$0xf]
        %v2232 = vld [vmem:[#allocation4 + $0x28] sm:$0xf]
        %v2233 = vld [vmem:[#allocation4 + $0x2c] sm:$0xf]
        %v2234 = vld [vmem:[#allocation4 + $0x30] sm:$0xf]
        %v2235 = vld [vmem:[#allocation4 + $0x34] sm:$0xf]
        %v2236 = vld [vmem:[#allocation4 + $0x38] sm:$0xf]
        %v2237 = vld [vmem:[#allocation4 + $0x3c] sm:$0xf]
        %v2238 = vld [vmem:[#allocation4 + $0x40] sm:$0xf]
        %v2239 = vld [vmem:[#allocation4 + $0x44] sm:$0xf]
        %v2240 = vld [vmem:[#allocation4 + $0x48] sm:$0xf]
        %v2241 = vld [vmem:[#allocation4 + $0x4c] sm:$0xf]
        %v2242 = vld [vmem:[#allocation4 + $0x50] sm:$0xf]
        %v2243 = vld [vmem:[#allocation4 + $0x54] sm:$0xf]
        %v2244 = vld [vmem:[#allocation4 + $0x58] sm:$0xf]
        %v2245 = vld [vmem:[#allocation4 + $0x5c] sm:$0xf]
        %v2246 = vld [vmem:[#allocation4 + $0x60] sm:$0xf]
        %v2247 = vld [vmem:[#allocation4 + $0x64] sm:$0xf]
        %v2248 = vld [vmem:[#allocation4 + $0x68] sm:$0xf]
        %v2249 = vld [vmem:[#allocation4 + $0x6c] sm:$0xf]
        %v2250 = vld [vmem:[#allocation4 + $0x70] sm:$0xf]
        %v2251 = vld [vmem:[#allocation4 + $0x74] sm:$0xf]
        %v2252 = vld [vmem:[#allocation4 + $0x78] sm:$0xf]
        %v2253 = vld [vmem:[#allocation4 + $0x7c] sm:$0xf]
        %v2254 = vld [vmem:[#allocation4 + $0x80] sm:$0xf]
        %v2255 = vld [vmem:[#allocation4 + $0x84] sm:$0xf]
        %v2256 = vld [vmem:[#allocation4 + $0x88] sm:$0xf]
        %v2257 = vld [vmem:[#allocation4 + $0x8c] sm:$0xf]
        %v2258 = vld [vmem:[#allocation4 + $0x90] sm:$0xf]
        %v2259 = vld [vmem:[#allocation4 + $0x94] sm:$0xf]
        %v2260 = vld [vmem:[#allocation4 + $0x98] sm:$0xf]
        %v2261 = vld [vmem:[#allocation4 + $0x9c] sm:$0xf]
        %v2262 = vld [vmem:[#allocation4 + $0xa0] sm:$0xf]
        %v2263 = vld [vmem:[#allocation4 + $0xa4] sm:$0xf]
        %v2264 = vld [vmem:[#allocation4 + $0xa8] sm:$0xf]
        %v2265 = vld [vmem:[#allocation4 + $0xac] sm:$0xf]
        %v2266 = vld [vmem:[#allocation4 + $0xb0] sm:$0xf]
        %v2267 = vld [vmem:[#allocation4 + $0xb4] sm:$0xf]
        %v2268 = vld [vmem:[#allocation4 + $0xb8] sm:$0xf]
        %v2269 = vld [vmem:[#allocation4 + $0xbc] sm:$0xf]
        %v2270 = vld [vmem:[#allocation4 + $0xc0] sm:$0xf]
        %v2271 = vld [vmem:[#allocation4 + $0xc4] sm:$0xf]
        %v2272 = vld [vmem:[#allocation4 + $0xc8] sm:$0xf]
        %v2273 = vld [vmem:[#allocation4 + $0xcc] sm:$0xf]
        %v2274 = vld [vmem:[#allocation4 + $0xd0] sm:$0xf]
        %v2275 = vld [vmem:[#allocation4 + $0xd4] sm:$0xf]
        %v2276 = vld [vmem:[#allocation4 + $0xd8] sm:$0xf]
        %v2277 = vld [vmem:[#allocation4 + $0xdc] sm:$0xf]
        %v2278 = vld [vmem:[#allocation4 + $0xe0] sm:$0xf]
        %v2279 = vld [vmem:[#allocation4 + $0xe4] sm:$0xf]
        %v2280 = vld [vmem:[#allocation4 + $0xe8] sm:$0xf]
        %v2281 = vld [vmem:[#allocation4 + $0xec] sm:$0xf]
        %v2282 = vld [vmem:[#allocation4 + $0xf0] sm:$0xf]
        %v2283 = vld [vmem:[#allocation4 + $0xf4] sm:$0xf]
        %v2284 = vld [vmem:[#allocation4 + $0xf8] sm:$0xf]
        %v2285 = vld [vmem:[#allocation4 + $0xfc] sm:$0xf]
        %v2286 = vld [vmem:[#allocation4 + $0x100] sm:$0xf]
        %v2287 = vld [vmem:[#allocation4 + $0x104] sm:$0xf]
        %v2288 = vld [vmem:[#allocation4 + $0x108] sm:$0xf]
        %v2289 = vld [vmem:[#allocation4 + $0x10c] sm:$0xf]
        %v2290 = vld [vmem:[#allocation4 + $0x110] sm:$0xf]
        %v2291 = vld [vmem:[#allocation4 + $0x114] sm:$0xf]
        %v2292 = vld [vmem:[#allocation4 + $0x118] sm:$0xf]
        %v2293 = vld [vmem:[#allocation4 + $0x11c] sm:$0xf]
        %v2294 = vld [vmem:[#allocation4 + $0x120] sm:$0xf]
        %v2295 = vld [vmem:[#allocation4 + $0x124] sm:$0xf]
        %v2296 = vld [vmem:[#allocation4 + $0x128] sm:$0xf]
        %v2297 = vld [vmem:[#allocation4 + $0x12c] sm:$0xf]
        %v2298 = vld [vmem:[#allocation4 + $0x130] sm:$0xf]
        %v2299 = vld [vmem:[#allocation4 + $0x134] sm:$0xf]
        %v2300 = vld [vmem:[#allocation4 + $0x138] sm:$0xf]
        %v2301 = vld [vmem:[#allocation4 + $0x13c] sm:$0xf]
        %v2302 = vld [vmem:[#allocation4 + $0x140] sm:$0xf]
        %v2303 = vld [vmem:[#allocation4 + $0x144] sm:$0xf]
        %v2304 = vld [vmem:[#allocation4 + $0x148] sm:$0xf]
        %v2305 = vld [vmem:[#allocation4 + $0x14c] sm:$0xf]
        %v2306 = vld [vmem:[#allocation4 + $0x150] sm:$0xf]
        %v2307 = vld [vmem:[#allocation4 + $0x154] sm:$0xf]
        %v2308 = vld [vmem:[#allocation4 + $0x158] sm:$0xf]
        %v2309 = vld [vmem:[#allocation4 + $0x15c] sm:$0xf]
        %v2310 = vld [vmem:[#allocation4 + $0x160] sm:$0xf]
        %v2311 = vld [vmem:[#allocation4 + $0x164] sm:$0xf]
        %v2312 = vld [vmem:[#allocation4 + $0x168] sm:$0xf]
        %v2313 = vld [vmem:[#allocation4 + $0x16c] sm:$0xf]
        %v2314 = vld [vmem:[#allocation4 + $0x170] sm:$0xf]
        %v2315 = vld [vmem:[#allocation4 + $0x174] sm:$0xf]
        %v2316 = vld [vmem:[#allocation4 + $0x178] sm:$0xf]
        %v2317 = vld [vmem:[#allocation4 + $0x17c] sm:$0xf]
        %v2318 = vld [vmem:[#allocation4 + $0x180] sm:$0xf]
        %v2319 = vld [vmem:[#allocation4 + $0x184] sm:$0xf]
        %v2320 = vld [vmem:[#allocation4 + $0x188] sm:$0xf]
        %v2321 = vld [vmem:[#allocation4 + $0x18c] sm:$0xf]
        %v2322 = vld [vmem:[#allocation4 + $0x190] sm:$0xf]
        %v2323 = vld [vmem:[#allocation4 + $0x194] sm:$0xf]
        %v2324 = vld [vmem:[#allocation4 + $0x198] sm:$0xf]
        %v2325 = vld [vmem:[#allocation4 + $0x19c] sm:$0xf]
        %v2326 = vld [vmem:[#allocation4 + $0x1a0] sm:$0xf]
        %v2327 = vld [vmem:[#allocation4 + $0x1a4] sm:$0xf]
        %v2328 = vld [vmem:[#allocation4 + $0x1a8] sm:$0xf]
        %v2329 = vld [vmem:[#allocation4 + $0x1ac] sm:$0xf]
        %v2330 = vld [vmem:[#allocation4 + $0x1b0] sm:$0xf]
        %v2331 = vld [vmem:[#allocation4 + $0x1b4] sm:$0xf]
        %v2332 = vld [vmem:[#allocation4 + $0x1b8] sm:$0xf]
        %v2333 = vld [vmem:[#allocation4 + $0x1bc] sm:$0xf]
        %v2334 = vld [vmem:[#allocation4 + $0x1c0] sm:$0xf]
        %v2335 = vld [vmem:[#allocation4 + $0x1c4] sm:$0xf]
        %v2336 = vld [vmem:[#allocation4 + $0x1c8] sm:$0xf]
        %v2337 = vld [vmem:[#allocation4 + $0x1cc] sm:$0xf]
        %v2338 = vld [vmem:[#allocation4 + $0x1d0] sm:$0xf]
        %v2339 = vld [vmem:[#allocation4 + $0x1d4] sm:$0xf]
        %v2340 = vld [vmem:[#allocation4 + $0x1d8] sm:$0xf]
        %v2341 = vld [vmem:[#allocation4 + $0x1dc] sm:$0xf]
        %v2342 = vld [vmem:[#allocation4 + $0x1e0] sm:$0xf]
        %v2343 = vld [vmem:[#allocation4 + $0x1e4] sm:$0xf]
        %v2344 = vld [vmem:[#allocation4 + $0x1e8] sm:$0xf]
        %v2345 = vld [vmem:[#allocation4 + $0x1ec] sm:$0xf]
        %v2346 = vld [vmem:[#allocation4 + $0x1f0] sm:$0xf]
        %v2347 = vld [vmem:[#allocation4 + $0x1f4] sm:$0xf]
        %v2348 = vld [vmem:[#allocation4 + $0x1f8] sm:$0xf]
        %v2349 = vld [vmem:[#allocation4 + $0x1fc] sm:$0xf]
        %v2350 = vld [vmem:[#allocation4 + $0x200] sm:$0xf]
        %v2351 = vld [vmem:[#allocation4 + $0x204] sm:$0xf]
        %v2352 = vld [vmem:[#allocation4 + $0x208] sm:$0xf]
        %v2353 = vld [vmem:[#allocation4 + $0x20c] sm:$0xf]
        %v2354 = vld [vmem:[#allocation4 + $0x210] sm:$0xf]
        %v2355 = vld [vmem:[#allocation4 + $0x214] sm:$0xf]
        %v2356 = vld [vmem:[#allocation4 + $0x218] sm:$0xf]
        %v2357 = vld [vmem:[#allocation4 + $0x21c] sm:$0xf]
        %v2358 = vld [vmem:[#allocation4 + $0x220] sm:$0xf]
        %v2359 = vld [vmem:[#allocation4 + $0x224] sm:$0xf]
        %v2360 = vld [vmem:[#allocation4 + $0x228] sm:$0xf]
        %v2361 = vld [vmem:[#allocation4 + $0x22c] sm:$0xf]
        %v2362 = vld [vmem:[#allocation4 + $0x230] sm:$0xf]
        %v2363 = vld [vmem:[#allocation4 + $0x234] sm:$0xf]
        %v2364 = vld [vmem:[#allocation4 + $0x238] sm:$0xf]
        %v2365 = vld [vmem:[#allocation4 + $0x23c] sm:$0xf]
        %v2510 = vunpack.c.l.b16 %v2222
        %v2511 = vunpack.c.l.b16 %v2223
        %v2512 = vunpack.c.l.b16 %v2224
        %v2513 = vunpack.c.l.b16 %v2225
        %v2514 = vunpack.c.l.b16 %v2226
        %v2515 = vunpack.c.l.b16 %v2227
        %v2516 = vunpack.c.l.b16 %v2228
        %v2517 = vunpack.c.l.b16 %v2229
        %v2518 = vunpack.c.l.b16 %v2230
        %v2519 = vunpack.c.l.b16 %v2231
        %v2520 = vunpack.c.l.b16 %v2232
        %v2521 = vunpack.c.l.b16 %v2233
        %v2522 = vunpack.c.l.b16 %v2234
        %v2523 = vunpack.c.l.b16 %v2235
        %v2524 = vunpack.c.l.b16 %v2236
        %v2525 = vunpack.c.l.b16 %v2237
        %v2526 = vunpack.c.l.b16 %v2238
        %v2527 = vunpack.c.l.b16 %v2239
        %v2528 = vunpack.c.l.b16 %v2240
        %v2529 = vunpack.c.l.b16 %v2241
        %v2530 = vunpack.c.l.b16 %v2242
        %v2531 = vunpack.c.l.b16 %v2243
        %v2532 = vunpack.c.l.b16 %v2244
        %v2533 = vunpack.c.l.b16 %v2245
        %v2534 = vunpack.c.l.b16 %v2246
        %v2535 = vunpack.c.l.b16 %v2247
        %v2536 = vunpack.c.l.b16 %v2248
        %v2537 = vunpack.c.l.b16 %v2249
        %v2538 = vunpack.c.l.b16 %v2250
        %v2539 = vunpack.c.l.b16 %v2251
        %v2540 = vunpack.c.l.b16 %v2252
        %v2541 = vunpack.c.l.b16 %v2253
        %v2542 = vunpack.c.l.b16 %v2254
        %v2543 = vunpack.c.l.b16 %v2255
        %v2544 = vunpack.c.l.b16 %v2256
        %v2545 = vunpack.c.l.b16 %v2257
        %v2546 = vunpack.c.l.b16 %v2258
        %v2547 = vunpack.c.l.b16 %v2259
        %v2548 = vunpack.c.l.b16 %v2260
        %v2549 = vunpack.c.l.b16 %v2261
        %v2550 = vunpack.c.l.b16 %v2262
        %v2551 = vunpack.c.l.b16 %v2263
        %v2552 = vunpack.c.l.b16 %v2264
        %v2553 = vunpack.c.l.b16 %v2265
        %v2554 = vunpack.c.l.b16 %v2266
        %v2555 = vunpack.c.l.b16 %v2267
        %v2556 = vunpack.c.l.b16 %v2268
        %v2557 = vunpack.c.l.b16 %v2269
        %v2558 = vunpack.c.l.b16 %v2270
        %v2559 = vunpack.c.l.b16 %v2271
        %v2560 = vunpack.c.l.b16 %v2272
        %v2561 = vunpack.c.l.b16 %v2273
        %v2562 = vunpack.c.l.b16 %v2274
        %v2563 = vunpack.c.l.b16 %v2275
        %v2564 = vunpack.c.l.b16 %v2276
        %v2565 = vunpack.c.l.b16 %v2277
        %v2566 = vunpack.c.l.b16 %v2278
        %v2567 = vunpack.c.l.b16 %v2279
        %v2568 = vunpack.c.l.b16 %v2280
        %v2569 = vunpack.c.l.b16 %v2281
        %v2570 = vunpack.c.l.b16 %v2282
        %v2571 = vunpack.c.l.b16 %v2283
        %v2572 = vunpack.c.l.b16 %v2284
        %v2573 = vunpack.c.l.b16 %v2285
        %v2574 = vunpack.c.l.b16 %v2286
        %v2575 = vunpack.c.l.b16 %v2287
        %v2576 = vunpack.c.l.b16 %v2288
        %v2577 = vunpack.c.l.b16 %v2289
        %v2578 = vunpack.c.l.b16 %v2290
        %v2579 = vunpack.c.l.b16 %v2291
        %v2580 = vunpack.c.l.b16 %v2292
        %v2581 = vunpack.c.l.b16 %v2293
        %v2582 = vunpack.c.l.b16 %v2294
        %v2583 = vunpack.c.l.b16 %v2295
        %v2584 = vunpack.c.l.b16 %v2296
        %v2585 = vunpack.c.l.b16 %v2297
        %v2586 = vunpack.c.l.b16 %v2298
        %v2587 = vunpack.c.l.b16 %v2299
        %v2588 = vunpack.c.l.b16 %v2300
        %v2589 = vunpack.c.l.b16 %v2301
        %v2590 = vunpack.c.l.b16 %v2302
        %v2591 = vunpack.c.l.b16 %v2303
        %v2592 = vunpack.c.l.b16 %v2304
        %v2593 = vunpack.c.l.b16 %v2305
        %v2594 = vunpack.c.l.b16 %v2306
        %v2595 = vunpack.c.l.b16 %v2307
        %v2596 = vunpack.c.l.b16 %v2308
        %v2597 = vunpack.c.l.b16 %v2309
        %v2598 = vunpack.c.l.b16 %v2310
        %v2599 = vunpack.c.l.b16 %v2311
        %v2600 = vunpack.c.l.b16 %v2312
        %v2601 = vunpack.c.l.b16 %v2313
        %v2602 = vunpack.c.l.b16 %v2314
        %v2603 = vunpack.c.l.b16 %v2315
        %v2604 = vunpack.c.l.b16 %v2316
        %v2605 = vunpack.c.l.b16 %v2317
        %v2606 = vunpack.c.l.b16 %v2318
        %v2607 = vunpack.c.l.b16 %v2319
        %v2608 = vunpack.c.l.b16 %v2320
        %v2609 = vunpack.c.l.b16 %v2321
        %v2610 = vunpack.c.l.b16 %v2322
        %v2611 = vunpack.c.l.b16 %v2323
        %v2612 = vunpack.c.l.b16 %v2324
        %v2613 = vunpack.c.l.b16 %v2325
        %v2614 = vunpack.c.l.b16 %v2326
        %v2615 = vunpack.c.l.b16 %v2327
        %v2616 = vunpack.c.l.b16 %v2328
        %v2617 = vunpack.c.l.b16 %v2329
        %v2618 = vunpack.c.l.b16 %v2330
        %v2619 = vunpack.c.l.b16 %v2331
        %v2620 = vunpack.c.l.b16 %v2332
        %v2621 = vunpack.c.l.b16 %v2333
        %v2622 = vunpack.c.l.b16 %v2334
        %v2623 = vunpack.c.l.b16 %v2335
        %v2624 = vunpack.c.l.b16 %v2336
        %v2625 = vunpack.c.l.b16 %v2337
        %v2626 = vunpack.c.l.b16 %v2338
        %v2627 = vunpack.c.l.b16 %v2339
        %v2628 = vunpack.c.l.b16 %v2340
        %v2629 = vunpack.c.l.b16 %v2341
        %v2630 = vunpack.c.l.b16 %v2342
        %v2631 = vunpack.c.l.b16 %v2343
        %v2632 = vunpack.c.l.b16 %v2344
        %v2633 = vunpack.c.l.b16 %v2345
        %v2634 = vunpack.c.l.b16 %v2346
        %v2635 = vunpack.c.l.b16 %v2347
        %v2636 = vunpack.c.l.b16 %v2348
        %v2637 = vunpack.c.l.b16 %v2349
        %v2638 = vunpack.c.l.b16 %v2350
        %v2639 = vunpack.c.l.b16 %v2351
        %v2640 = vunpack.c.l.b16 %v2352
        %v2641 = vunpack.c.l.b16 %v2353
        %v2642 = vunpack.c.l.b16 %v2354
        %v2643 = vunpack.c.l.b16 %v2355
        %v2644 = vunpack.c.l.b16 %v2356
        %v2645 = vunpack.c.l.b16 %v2357
        %v2646 = vunpack.c.l.b16 %v2358
        %v2647 = vunpack.c.l.b16 %v2359
        %v2648 = vunpack.c.l.b16 %v2360
        %v2649 = vunpack.c.l.b16 %v2361
        %v2650 = vunpack.c.l.b16 %v2362
        %v2651 = vunpack.c.l.b16 %v2363
        %v2652 = vunpack.c.l.b16 %v2364
        %v2653 = vunpack.c.l.b16 %v2365
        %v2654 = vpack.c.b16 %v2511, %v2510
        %v2655 = vpack.c.b16 %v2513, %v2512
        %v2656 = vpack.c.b16 %v2515, %v2514
        %v2657 = vpack.c.b16 %v2517, %v2516
        %v2658 = vpack.c.b16 %v2519, %v2518
        %v2659 = vpack.c.b16 %v2521, %v2520
        %v2660 = vpack.c.b16 %v2523, %v2522
        %v2661 = vpack.c.b16 %v2525, %v2524
        %v2662 = vpack.c.b16 %v2527, %v2526
        %v2663 = vpack.c.b16 %v2529, %v2528
        %v2664 = vpack.c.b16 %v2531, %v2530
        %v2665 = vpack.c.b16 %v2533, %v2532
        %v2666 = vpack.c.b16 %v2535, %v2534
        %v2667 = vpack.c.b16 %v2537, %v2536
        %v2668 = vpack.c.b16 %v2539, %v2538
        %v2669 = vpack.c.b16 %v2541, %v2540
        %v2670 = vpack.c.b16 %v2543, %v2542
        %v2671 = vpack.c.b16 %v2545, %v2544
        %v2672 = vpack.c.b16 %v2547, %v2546
        %v2673 = vpack.c.b16 %v2549, %v2548
        %v2674 = vpack.c.b16 %v2551, %v2550
        %v2675 = vpack.c.b16 %v2553, %v2552
        %v2676 = vpack.c.b16 %v2555, %v2554
        %v2677 = vpack.c.b16 %v2557, %v2556
        %v2678 = vpack.c.b16 %v2559, %v2558
        %v2679 = vpack.c.b16 %v2561, %v2560
        %v2680 = vpack.c.b16 %v2563, %v2562
        %v2681 = vpack.c.b16 %v2565, %v2564
        %v2682 = vpack.c.b16 %v2567, %v2566
        %v2683 = vpack.c.b16 %v2569, %v2568
        %v2684 = vpack.c.b16 %v2571, %v2570
        %v2685 = vpack.c.b16 %v2573, %v2572
        %v2686 = vpack.c.b16 %v2575, %v2574
        %v2687 = vpack.c.b16 %v2577, %v2576
        %v2688 = vpack.c.b16 %v2579, %v2578
        %v2689 = vpack.c.b16 %v2581, %v2580
        %v2690 = vpack.c.b16 %v2583, %v2582
        %v2691 = vpack.c.b16 %v2585, %v2584
        %v2692 = vpack.c.b16 %v2587, %v2586
        %v2693 = vpack.c.b16 %v2589, %v2588
        %v2694 = vpack.c.b16 %v2591, %v2590
        %v2695 = vpack.c.b16 %v2593, %v2592
        %v2696 = vpack.c.b16 %v2595, %v2594
        %v2697 = vpack.c.b16 %v2597, %v2596
        %v2698 = vpack.c.b16 %v2599, %v2598
        %v2699 = vpack.c.b16 %v2601, %v2600
        %v2700 = vpack.c.b16 %v2603, %v2602
        %v2701 = vpack.c.b16 %v2605, %v2604
        %v2702 = vpack.c.b16 %v2607, %v2606
        %v2703 = vpack.c.b16 %v2609, %v2608
        %v2704 = vpack.c.b16 %v2611, %v2610
        %v2705 = vpack.c.b16 %v2613, %v2612
        %v2706 = vpack.c.b16 %v2615, %v2614
        %v2707 = vpack.c.b16 %v2617, %v2616
        %v2708 = vpack.c.b16 %v2619, %v2618
        %v2709 = vpack.c.b16 %v2621, %v2620
        %v2710 = vpack.c.b16 %v2623, %v2622
        %v2711 = vpack.c.b16 %v2625, %v2624
        %v2712 = vpack.c.b16 %v2627, %v2626
        %v2713 = vpack.c.b16 %v2629, %v2628
        %v2714 = vpack.c.b16 %v2631, %v2630
        %v2715 = vpack.c.b16 %v2633, %v2632
        %v2716 = vpack.c.b16 %v2635, %v2634
        %v2717 = vpack.c.b16 %v2637, %v2636
        %v2718 = vpack.c.b16 %v2639, %v2638
        %v2719 = vpack.c.b16 %v2641, %v2640
        %v2720 = vpack.c.b16 %v2643, %v2642
        %v2721 = vpack.c.b16 %v2645, %v2644
        %v2722 = vpack.c.b16 %v2647, %v2646
        %v2723 = vpack.c.b16 %v2649, %v2648
        %v2724 = vpack.c.b16 %v2651, %v2650
        %v2725 = vpack.c.b16 %v2653, %v2652
        %2798 = vmatpush.bf16.msra.mxu0 %v2661
        %2799 = vmatpush.bf16.msra.mxu0 %v2660
        %2800 = vmatpush.bf16.msra.mxu0 %v2659
        %2801 = vmatpush.bf16.msra.mxu0 %v2658
        %2802 = vmatpush.bf16.msra.mxu0 %v2657
        %2803 = vmatpush.bf16.msra.mxu0 %v2656
        %2804 = vmatpush.bf16.msra.mxu0 %v2655
        %2805 = vmatpush.bf16.msra.mxu0 %v2654
        %2806 = vmatmul.bf16.gmra.mxu0 %v2022
        %v2807 = vpop.f32.mrf.mxu0
        %v2808 = vadd.f32 0.0, %v2807
        %v2809 = vpop.f32.mrf.mxu0
        %v2810 = vadd.f32 0.0, %v2809
        %2811 = vmatmul.bf16.gmra.mxu0 %v2023
        %v2812 = vpop.f32.mrf.mxu0
        %v2813 = vadd.f32 0.0, %v2812
        %v2814 = vpop.f32.mrf.mxu0
        %v2815 = vadd.f32 0.0, %v2814
        %2816 = vmatmul.bf16.gmra.mxu0 %v2024
        %v2817 = vpop.f32.mrf.mxu0
        %v2818 = vadd.f32 0.0, %v2817
        %v2819 = vpop.f32.mrf.mxu0
        %v2820 = vadd.f32 0.0, %v2819
        %2821 = vmatmul.bf16.gmra.mxu0 %v2025
        %v2822 = vpop.f32.mrf.mxu0
        %v2823 = vadd.f32 0.0, %v2822
        %v2824 = vpop.f32.mrf.mxu0
        %v2825 = vadd.f32 0.0, %v2824
        %2826 = vdwg.mxu0
        %2827 = vmatpush.bf16.msra.mxu0 %v2669
        %2828 = vmatpush.bf16.msra.mxu0 %v2668
        %2829 = vmatpush.bf16.msra.mxu0 %v2667
        %2830 = vmatpush.bf16.msra.mxu0 %v2666
        %2831 = vmatpush.bf16.msra.mxu0 %v2665
        %2832 = vmatpush.bf16.msra.mxu0 %v2664
        %2833 = vmatpush.bf16.msra.mxu0 %v2663
        %2834 = vmatpush.bf16.msra.mxu0 %v2662
        %2835 = vmatmul.bf16.gmra.mxu0 %v2046
        %v2836 = vpop.f32.mrf.mxu0
        %v2837 = vadd.f32 %v2808, %v2836
        %v2838 = vpop.f32.mrf.mxu0
        %v2839 = vadd.f32 %v2810, %v2838
        %2840 = vmatmul.bf16.gmra.mxu0 %v2047
        %v2841 = vpop.f32.mrf.mxu0
        %v2842 = vadd.f32 %v2813, %v2841
        %v2843 = vpop.f32.mrf.mxu0
        %v2844 = vadd.f32 %v2815, %v2843
        %2845 = vmatmul.bf16.gmra.mxu0 %v2048
        %v2846 = vpop.f32.mrf.mxu0
        %v2847 = vadd.f32 %v2818, %v2846
        %v2848 = vpop.f32.mrf.mxu0
        %v2849 = vadd.f32 %v2820, %v2848
        %2850 = vmatmul.bf16.gmra.mxu0 %v2049
        %v2851 = vpop.f32.mrf.mxu0
        %v2852 = vadd.f32 %v2823, %v2851
        %v2853 = vpop.f32.mrf.mxu0
        %v2854 = vadd.f32 %v2825, %v2853
        %2855 = vdwg.mxu0
        %2856 = vmatpush.bf16.msra.mxu0 %v2677
        %2857 = vmatpush.bf16.msra.mxu0 %v2676
        %2858 = vmatpush.bf16.msra.mxu0 %v2675
        %2859 = vmatpush.bf16.msra.mxu0 %v2674
        %2860 = vmatpush.bf16.msra.mxu0 %v2673
        %2861 = vmatpush.bf16.msra.mxu0 %v2672
        %2862 = vmatpush.bf16.msra.mxu0 %v2671
        %2863 = vmatpush.bf16.msra.mxu0 %v2670
        %2864 = vmatmul.bf16.gmra.mxu0 %v2070
        %v2865 = vpop.f32.mrf.mxu0
        %v2866 = vadd.f32 %v2837, %v2865
        %v2867 = vpop.f32.mrf.mxu0
        %v2868 = vadd.f32 %v2839, %v2867
        %2869 = vmatmul.bf16.gmra.mxu0 %v2071
        %v2870 = vpop.f32.mrf.mxu0
        %v2871 = vadd.f32 %v2842, %v2870
        %v2872 = vpop.f32.mrf.mxu0
        %v2873 = vadd.f32 %v2844, %v2872
        %2874 = vmatmul.bf16.gmra.mxu0 %v2072
        %v2875 = vpop.f32.mrf.mxu0
        %v2876 = vadd.f32 %v2847, %v2875
        %v2877 = vpop.f32.mrf.mxu0
        %v2878 = vadd.f32 %v2849, %v2877
        %2879 = vmatmul.bf16.gmra.mxu0 %v2073
        %v2880 = vpop.f32.mrf.mxu0
        %v2881 = vadd.f32 %v2852, %v2880
        %v2882 = vpop.f32.mrf.mxu0
        %v2883 = vadd.f32 %v2854, %v2882
        %2884 = vdwg.mxu0
        %2885 = vmatpush.bf16.msra.mxu0 %v2685
        %2886 = vmatpush.bf16.msra.mxu0 %v2684
        %2887 = vmatpush.bf16.msra.mxu0 %v2683
        %2888 = vmatpush.bf16.msra.mxu0 %v2682
        %2889 = vmatpush.bf16.msra.mxu0 %v2681
        %2890 = vmatpush.bf16.msra.mxu0 %v2680
        %2891 = vmatpush.bf16.msra.mxu0 %v2679
        %2892 = vmatpush.bf16.msra.mxu0 %v2678
        %2893 = vmatmul.bf16.gmra.mxu0 %v2094
        %v2894 = vpop.f32.mrf.mxu0
        %v2895 = vadd.f32 %v2866, %v2894
        %v2896 = vpop.f32.mrf.mxu0
        %v2897 = vadd.f32 %v2868, %v2896
        %2898 = vmatmul.bf16.gmra.mxu0 %v2095
        %v2899 = vpop.f32.mrf.mxu0
        %v2900 = vadd.f32 %v2871, %v2899
        %v2901 = vpop.f32.mrf.mxu0
        %v2902 = vadd.f32 %v2873, %v2901
        %2903 = vmatmul.bf16.gmra.mxu0 %v2096
        %v2904 = vpop.f32.mrf.mxu0
        %v2905 = vadd.f32 %v2876, %v2904
        %v2906 = vpop.f32.mrf.mxu0
        %v2907 = vadd.f32 %v2878, %v2906
        %2908 = vmatmul.bf16.gmra.mxu0 %v2097
        %v2909 = vpop.f32.mrf.mxu0
        %v2910 = vadd.f32 %v2881, %v2909
        %v2911 = vpop.f32.mrf.mxu0
        %v2912 = vadd.f32 %v2883, %v2911
        %2913 = vdwg.mxu0
        %2914 = vmatpush.bf16.msra.mxu0 %v2693
        %2915 = vmatpush.bf16.msra.mxu0 %v2692
        %2916 = vmatpush.bf16.msra.mxu0 %v2691
        %2917 = vmatpush.bf16.msra.mxu0 %v2690
        %2918 = vmatpush.bf16.msra.mxu0 %v2689
        %2919 = vmatpush.bf16.msra.mxu0 %v2688
        %2920 = vmatpush.bf16.msra.mxu0 %v2687
        %2921 = vmatpush.bf16.msra.mxu0 %v2686
        %2922 = vmatmul.bf16.gmra.mxu0 %v2118
        %v2923 = vpop.f32.mrf.mxu0
        %v2924 = vadd.f32 %v2895, %v2923
        %v2925 = vpop.f32.mrf.mxu0
        %v2926 = vadd.f32 %v2897, %v2925
        %2927 = vmatmul.bf16.gmra.mxu0 %v2119
        %v2928 = vpop.f32.mrf.mxu0
        %v2929 = vadd.f32 %v2900, %v2928
        %v2930 = vpop.f32.mrf.mxu0
        %v2931 = vadd.f32 %v2902, %v2930
        %2932 = vmatmul.bf16.gmra.mxu0 %v2120
        %v2933 = vpop.f32.mrf.mxu0
        %v2934 = vadd.f32 %v2905, %v2933
        %v2935 = vpop.f32.mrf.mxu0
        %v2936 = vadd.f32 %v2907, %v2935
        %2937 = vmatmul.bf16.gmra.mxu0 %v2121
        %v2938 = vpop.f32.mrf.mxu0
        %v2939 = vadd.f32 %v2910, %v2938
        %v2940 = vpop.f32.mrf.mxu0
        %v2941 = vadd.f32 %v2912, %v2940
        %2942 = vdwg.mxu0
        %2943 = vmatpush.bf16.msra.mxu0 %v2701
        %2944 = vmatpush.bf16.msra.mxu0 %v2700
        %2945 = vmatpush.bf16.msra.mxu0 %v2699
        %2946 = vmatpush.bf16.msra.mxu0 %v2698
        %2947 = vmatpush.bf16.msra.mxu0 %v2697
        %2948 = vmatpush.bf16.msra.mxu0 %v2696
        %2949 = vmatpush.bf16.msra.mxu0 %v2695
        %2950 = vmatpush.bf16.msra.mxu0 %v2694
        %2951 = vmatmul.bf16.gmra.mxu0 %v2142
        %v2952 = vpop.f32.mrf.mxu0
        %v2953 = vadd.f32 %v2924, %v2952
        %v2954 = vpop.f32.mrf.mxu0
        %v2955 = vadd.f32 %v2926, %v2954
        %2956 = vmatmul.bf16.gmra.mxu0 %v2143
        %v2957 = vpop.f32.mrf.mxu0
        %v2958 = vadd.f32 %v2929, %v2957
        %v2959 = vpop.f32.mrf.mxu0
        %v2960 = vadd.f32 %v2931, %v2959
        %2961 = vmatmul.bf16.gmra.mxu0 %v2144
        %v2962 = vpop.f32.mrf.mxu0
        %v2963 = vadd.f32 %v2934, %v2962
        %v2964 = vpop.f32.mrf.mxu0
        %v2965 = vadd.f32 %v2936, %v2964
        %2966 = vmatmul.bf16.gmra.mxu0 %v2145
        %v2967 = vpop.f32.mrf.mxu0
        %v2968 = vadd.f32 %v2939, %v2967
        %v2969 = vpop.f32.mrf.mxu0
        %v2970 = vadd.f32 %v2941, %v2969
        %2971 = vdwg.mxu0
        %2972 = vmatpush.bf16.msra.mxu0 %v2709
        %2973 = vmatpush.bf16.msra.mxu0 %v2708
        %2974 = vmatpush.bf16.msra.mxu0 %v2707
        %2975 = vmatpush.bf16.msra.mxu0 %v2706
        %2976 = vmatpush.bf16.msra.mxu0 %v2705
        %2977 = vmatpush.bf16.msra.mxu0 %v2704
        %2978 = vmatpush.bf16.msra.mxu0 %v2703
        %2979 = vmatpush.bf16.msra.mxu0 %v2702
        %2980 = vmatmul.bf16.gmra.mxu0 %v2166
        %v2981 = vpop.f32.mrf.mxu0
        %v2982 = vadd.f32 %v2953, %v2981
        %v2983 = vpop.f32.mrf.mxu0
        %v2984 = vadd.f32 %v2955, %v2983
        %2985 = vmatmul.bf16.gmra.mxu0 %v2167
        %v2986 = vpop.f32.mrf.mxu0
        %v2987 = vadd.f32 %v2958, %v2986
        %v2988 = vpop.f32.mrf.mxu0
        %v2989 = vadd.f32 %v2960, %v2988
        %2990 = vmatmul.bf16.gmra.mxu0 %v2168
        %v2991 = vpop.f32.mrf.mxu0
        %v2992 = vadd.f32 %v2963, %v2991
        %v2993 = vpop.f32.mrf.mxu0
        %v2994 = vadd.f32 %v2965, %v2993
        %2995 = vmatmul.bf16.gmra.mxu0 %v2169
        %v2996 = vpop.f32.mrf.mxu0
        %v2997 = vadd.f32 %v2968, %v2996
        %v2998 = vpop.f32.mrf.mxu0
        %v2999 = vadd.f32 %v2970, %v2998
        %3000 = vdwg.mxu0
        %3001 = vmatpush.bf16.msra.mxu0 %v2717
        %3002 = vmatpush.bf16.msra.mxu0 %v2716
        %3003 = vmatpush.bf16.msra.mxu0 %v2715
        %3004 = vmatpush.bf16.msra.mxu0 %v2714
        %3005 = vmatpush.bf16.msra.mxu0 %v2713
        %3006 = vmatpush.bf16.msra.mxu0 %v2712
        %3007 = vmatpush.bf16.msra.mxu0 %v2711
        %3008 = vmatpush.bf16.msra.mxu0 %v2710
        %3009 = vmatmul.bf16.gmra.mxu0 %v2190
        %v3010 = vpop.f32.mrf.mxu0
        %v3011 = vadd.f32 %v2982, %v3010
        %v3012 = vpop.f32.mrf.mxu0
        %v3013 = vadd.f32 %v2984, %v3012
        %3014 = vmatmul.bf16.gmra.mxu0 %v2191
        %v3015 = vpop.f32.mrf.mxu0
        %v3016 = vadd.f32 %v2987, %v3015
        %v3017 = vpop.f32.mrf.mxu0
        %v3018 = vadd.f32 %v2989, %v3017
        %3019 = vmatmul.bf16.gmra.mxu0 %v2192
        %v3020 = vpop.f32.mrf.mxu0
        %v3021 = vadd.f32 %v2992, %v3020
        %v3022 = vpop.f32.mrf.mxu0
        %v3023 = vadd.f32 %v2994, %v3022
        %3024 = vmatmul.bf16.gmra.mxu0 %v2193
        %v3025 = vpop.f32.mrf.mxu0
        %v3026 = vadd.f32 %v2997, %v3025
        %v3027 = vpop.f32.mrf.mxu0
        %v3028 = vadd.f32 %v2999, %v3027
        %3029 = vdwg.mxu0
        %3030 = vmatpush.bf16.msra.mxu0 %v2725
        %3031 = vmatpush.bf16.msra.mxu0 %v2724
        %3032 = vmatpush.bf16.msra.mxu0 %v2723
        %3033 = vmatpush.bf16.msra.mxu0 %v2722
        %3034 = vmatpush.bf16.msra.mxu0 %v2721
        %3035 = vmatpush.bf16.msra.mxu0 %v2720
        %3036 = vmatpush.bf16.msra.mxu0 %v2719
        %3037 = vmatpush.bf16.msra.mxu0 %v2718
        %3038 = vmatmul.bf16.gmra.mxu0 %v2214
        %v3039 = vpop.f32.mrf.mxu0
        %v3040 = vadd.f32 %v3011, %v3039
        %v3041 = vpop.f32.mrf.mxu0
        %v3042 = vadd.f32 %v3013, %v3041
        %3043 = vmatmul.bf16.gmra.mxu0 %v2215
        %v3044 = vpop.f32.mrf.mxu0
        %v3045 = vadd.f32 %v3016, %v3044
        %v3046 = vpop.f32.mrf.mxu0
        %v3047 = vadd.f32 %v3018, %v3046
        %3048 = vmatmul.bf16.gmra.mxu0 %v2216
        %v3049 = vpop.f32.mrf.mxu0
        %v3050 = vadd.f32 %v3021, %v3049
        %v3051 = vpop.f32.mrf.mxu0
        %v3052 = vadd.f32 %v3023, %v3051
        %3053 = vmatmul.bf16.gmra.mxu0 %v2217
        %v3054 = vpop.f32.mrf.mxu0
        %v3055 = vadd.f32 %v3026, %v3054
        %v3056 = vpop.f32.mrf.mxu0
        %v3057 = vadd.f32 %v3028, %v3056
        %3058 = vdwg.mxu0
        %3059 = vst [vmem:[%s237] sm:$0xff] %v3040
        %3060 = vst [vmem:[%s237 + $0x8] sm:$0xff] %v3042
        %3061 = vst [vmem:[%s237 + $0x10] sm:$0xff] %v3045
        %3062 = vst [vmem:[%s237 + $0x18] sm:$0xff] %v3047
        %3063 = vst [vmem:[%s237 + $0x20] sm:$0xff] %v3050
        %3064 = vst [vmem:[%s237 + $0x28] sm:$0xff] %v3052
        %3065 = vst [vmem:[%s237 + $0x30] sm:$0xff] %v3055
        %3066 = vst [vmem:[%s237 + $0x38] sm:$0xff] %v3057
        %s3067 = smul.u32 8, %s19
        %p3068 = scmp.lt.s32.totalorder %s3067, 15
        %s3069 = scalar_select %p3068, %s3067, 15
        %s3070 = smul.addr %s3069, 8
        %s3071 = scalar_lea.vmem %s4, %s3070
        // Predicated region
        $region45: #{kan_block_forward.6} parent=35 // pred_check
          %p3072 = pneg %p126
        $region46: #{kan_block_forward.6} parent=35 // pred_check_branch
          %3074 = sbr.rel (%p3072) target = $region48
        $region47: #{kan_block_forward.6} parent=35 // pred_region
          %s3075 = smul.u32 8, %s19
        $region48: #{kan_block_forward.6} parent=35 // pred_fallthru
          _
      $region36: #{kan_block_forward.6} parent=5 // pred_fallthru
        _
      %p3076 = scmp.le.s32.totalorder 2, %s14
      // Predicated region
      $region49: #{kan_block_forward.6} parent=5 // pred_check
        %p3077 = pneg %p3076
      $region50: #{kan_block_forward.6} parent=5 // pred_check_branch
        %3079 = sbr.rel (%p3077) target = $region52
      $region51: #{kan_block_forward.6} parent=5 // pred_region
        %s3080 = ssub.s32 %s14, 2
        // Predicated region
        $region53: #{kan_block_forward.6} parent=51 // pred_check
          %p3081 = pneg %p132
        $region54: #{kan_block_forward.6} parent=51 // pred_check_branch
          %3083 = sbr.rel (%p3081) target = $region56
        $region55: #{kan_block_forward.6} parent=51 // pred_region
          %s3084 = smul.u32 8, %s20
          %p3085 = scmp.lt.s32.totalorder %s3084, 15
          %s3086 = scalar_select %p3085, %s3084, 15
          %s3087 = smul.addr %s3086, 8
          %s3088 = scalar_lea.vmem %s4, %s3087
        $region56: #{kan_block_forward.6} parent=51 // pred_fallthru
          _
      $region52: #{kan_block_forward.6} parent=5 // pred_fallthru
        _
    $region6: #{kan_block_forward.6} parent=1 // loop_footer
      %s18 = sadd.s32 1, %s14
    $region7: #{kan_block_forward.6} parent=1 // loop_footer_branch
      %13 = sbr.rel target = $region3
    $region8: #{kan_block_forward.6} parent=1 // loop_exit
      _
    %3089 = vsyncpa [#allocation3], 1
    %s3090 = scalar_lea.sflag [#allocation3], 1
    %3091 = vsyncpa %s3090, 1
    %3092 = vsyncpa [#allocation5], 1

// kernel: kan_block_forward.8
$region0: #{kan_block_forward.8}
  #allocation0 [shape = 'u32[]', space=smem, size = 0x4, offset = 0x4, fixed_abs, tag = 'smem constant byte address 0x4 - core index']
  #allocation1 [shape = 'u32[72,128]{1,0:T(1,128)}', space=vmem, size = 0x9000, scoped, tag = 'internal scratch']
  %s0 = inlined_call_operand.vmem [shape: f32[128,128], index: 0, kind: input, shape index: {}]
  %s1 = inlined_call_operand.vmem [shape: bf16[1152,128], index: 1, kind: input, shape index: {}]
  %s2 = inlined_call_operand.vmem [shape: f32[128,128], index: 2, kind: output, shape index: {}]
  %s3 = sld [smem:[#allocation0]]
  $region41: #{kan_block_forward.8} parent=0
    _
  %s5 = ssub.s32 1, %s3
  %s6 = scalar_select 0, %s5, %s3
  loop: start=0, step=1, limit=4
  $region2: #{kan_block_forward.8} parent=0 // loop_pre_header
    _
  $region3: #{kan_block_forward.8} parent=0 // loop_header
    %s8 = sphi 0, %s12
    %p9 = scmp.ge.s32.totalorder %s8, 4
    %s18 = sphi 0, %s20
    %s21 = sphi 0, %s18
    %s22 = sphi 0, %s21
    %s38 = sphi 0, %s22
    %s42 = sphi 0, %s42
    %s44 = sphi 0, %s42
    %s45 = sphi 0, %s44
    %s59 = sphi 0, %s45
    %s65 = sphi 0, %s67
    %s68 = sphi 0, %s65
    %s69 = sphi 0, %s68
    %s85 = sphi 0, %s69
  $region4: #{kan_block_forward.8} parent=0 // loop_header_branch
    %11 = sbr.rel (%p9) target = $region8
  $region5: #{kan_block_forward.8} parent=0 // loop_body
    %s13 = ssub.s32 %s8, 1
    %s14 = ssub.s32 %s8, 2
    %s15 = sadd.s32 %s8, 1
    %s16 = ssub.s32 %s8, %s15
    %p17 = scmp.eq.s32.totalorder %s16, 0
    %s19 = sadd.s32 %s18, 1
    %s20 = scalar_select %p17, %s18, %s19
    %p23 = pneg %p17
    %p24 = scmp.eq.s32.totalorder %s8, 1
    %p25 = por %p23, %p24
    %p26 = scmp.ne.s32.totalorder %s18, %s21
    %p27 = scmp.eq.s32.totalorder %s8, 0
    %p28 = por %p26, %p27
    %p29 = scmp.ne.s32.totalorder %s18, %s21
    %p30 = scmp.eq.s32.totalorder %s13, 1
    %p31 = por %p29, %p30
    %p32 = scmp.ne.s32.totalorder %s21, %s22
    %p33 = scmp.eq.s32.totalorder %s13, 0
    %p34 = por %p32, %p33
    %p35 = scmp.ne.s32.totalorder %s21, %s22
    %p36 = scmp.eq.s32.totalorder %s14, 1
    %p37 = por %p35, %p36
    %p39 = scmp.ne.s32.totalorder %s22, %s38
    %p40 = scmp.eq.s32.totalorder %s14, 0
    %p41 = por %p39, %p40
    %s43 = sadd.s32 %s42, 1
    %p46 = scmp.eq.s32.totalorder %s8, 1
    %p47 = scmp.ne.s32.totalorder %s42, %s44
    %p48 = scmp.eq.s32.totalorder %s8, 0
    %p49 = por %p47, %p48
    %p50 = scmp.ne.s32.totalorder %s42, %s44
    %p51 = scmp.eq.s32.totalorder %s13, 1
    %p52 = por %p50, %p51
    %p53 = scmp.ne.s32.totalorder %s44, %s45
    %p54 = scmp.eq.s32.totalorder %s13, 0
    %p55 = por %p53, %p54
    %p56 = scmp.ne.s32.totalorder %s44, %s45
    %p57 = scmp.eq.s32.totalorder %s14, 1
    %p58 = por %p56, %p57
    %p60 = scmp.ne.s32.totalorder %s45, %s59
    %p61 = scmp.eq.s32.totalorder %s14, 0
    %p62 = por %p60, %p61
    %s63 = ssub.s32 %s8, %s15
    %p64 = scmp.eq.s32.totalorder %s63, 0
    %s66 = sadd.s32 %s65, 1
    %s67 = scalar_select %p64, %s65, %s66
    %p70 = pneg %p64
    %p71 = scmp.eq.s32.totalorder %s8, 1
    %p72 = por %p70, %p71
    %p73 = scmp.ne.s32.totalorder %s65, %s68
    %p74 = scmp.eq.s32.totalorder %s8, 0
    %p75 = por %p73, %p74
    %p76 = scmp.ne.s32.totalorder %s65, %s68
    %p77 = scmp.eq.s32.totalorder %s13, 1
    %p78 = por %p76, %p77
    %p79 = scmp.ne.s32.totalorder %s68, %s69
    %p80 = scmp.eq.s32.totalorder %s13, 0
    %p81 = por %p79, %p80
    %p82 = scmp.ne.s32.totalorder %s68, %s69
    %p83 = scmp.eq.s32.totalorder %s14, 1
    %p84 = por %p82, %p83
    %p86 = scmp.ne.s32.totalorder %s69, %s85
    %p87 = scmp.eq.s32.totalorder %s14, 0
    %p88 = por %p86, %p87
    %p89 = scmp.le.s32.totalorder 1, %s8
    %p90 = scmp.lt.s32.totalorder %s8, 3
    %p91 = pnand %p89, %p90
    %p92 = pneg %p91
    // Predicated region
    $region9: #{kan_block_forward.8} parent=5 // pred_check
      _
    $region10: #{kan_block_forward.8} parent=5 // pred_check_branch
      %94 = sbr.rel (%p91) target = $region12
    $region11: #{kan_block_forward.8} parent=5 // pred_region
      %s95 = ssub.s32 %s8, 1
      // Predicated region
      $region13: #{kan_block_forward.8} parent=11 // pred_check
        %p96 = pneg %p55
      $region14: #{kan_block_forward.8} parent=11 // pred_check_branch
        %98 = sbr.rel (%p96) target = $region16
      $region15: #{kan_block_forward.8} parent=11 // pred_region
        _
      $region16: #{kan_block_forward.8} parent=11 // pred_fallthru
        _
    $region12: #{kan_block_forward.8} parent=5 // pred_fallthru
      _
    %p99 = scmp.lt.s32.totalorder %s8, 2
    // Predicated region
    $region17: #{kan_block_forward.8} parent=5 // pred_check
      %p100 = pneg %p99
    $region18: #{kan_block_forward.8} parent=5 // pred_check_branch
      %102 = sbr.rel (%p100) target = $region20
    $region19: #{kan_block_forward.8} parent=5 // pred_region
      // Predicated region
      $region21: #{kan_block_forward.8} parent=19 // pred_check
        %p103 = pneg %p28
      $region22: #{kan_block_forward.8} parent=19 // pred_check_branch
        %105 = sbr.rel (%p103) target = $region24
      $region23: #{kan_block_forward.8} parent=19 // pred_region
        %s106 = smul.u32 8, %s8
        %p107 = scmp.lt.s32.totalorder %s106, 15
        %s108 = scalar_select %p107, %s106, 15
        %s109 = smul.addr %s108, 8
        %s110 = scalar_lea.vmem %s0, %s109
        %s111 = smul.u32 8, %s8
      $region24: #{kan_block_forward.8} parent=19 // pred_fallthru
        _
    $region20: #{kan_block_forward.8} parent=5 // pred_fallthru
      _
    %p112 = scmp.le.s32.totalorder 1, %s8
    %p113 = scmp.lt.s32.totalorder %s8, 3
    %p114 = pnand %p112, %p113
    %p115 = pneg %p114
    // Predicated region
    $region25: #{kan_block_forward.8} parent=5 // pred_check
      _
    $region26: #{kan_block_forward.8} parent=5 // pred_check_branch
      %117 = sbr.rel (%p114) target = $region28
    $region27: #{kan_block_forward.8} parent=5 // pred_region
      %s118 = ssub.s32 %s8, 1
      %s119 = smul.u32 8, %s13
      %p120 = scmp.lt.s32.totalorder %s119, 15
      %s121 = scalar_select %p120, %s119, 15
      %s122 = smul.addr %s121, 8
      %s123 = scalar_lea.vmem %s0, %s122
      %p124 = pneg %p34
      %p125 = pneg %p31
      %p126 = pneg %p55
      %p127 = pneg %p52
      %p128 = pneg %p81
      %p129 = pneg %p78
      %s130 = smul.u32 8, %s13
      %p131 = scmp.lt.s32.totalorder %s130, 15
      %s132 = scalar_select %p131, %s130, 15
      %s133 = smul.addr %s132, 8
      %s134 = scalar_lea.vmem %s2, %s133
      %s135 = smul.u32 8, %s13
      %p136 = scmp.lt.s32.totalorder %s135, 15
      %s137 = scalar_select %p136, %s135, 15
      %s138 = smul.addr %s137, 8
      %s139 = scalar_lea.vmem %s0, %s138
      %s140 = smul.u32 8, %s13
      %s141 = smul.u32 8, %s13
      %p142 = scmp.lt.s32.totalorder %s141, 15
      %s143 = scalar_select %p142, %s141, 15
      %s144 = smul.addr %s143, 8
      %s145 = scalar_lea.vmem %s2, %s144
      %s146 = smul.u32 8, %s13
      %v147 = vld [vmem:[%s139] sm:$0xff]
      %v148 = vld [vmem:[%s139 + $0x8] sm:$0xff]
      %v149 = vld [vmem:[%s139 + $0x10] sm:$0xff]
      %v150 = vld [vmem:[%s139 + $0x18] sm:$0xff]
      %v151 = vld [vmem:[%s139 + $0x20] sm:$0xff]
      %v152 = vld [vmem:[%s139 + $0x28] sm:$0xff]
      %v153 = vld [vmem:[%s139 + $0x30] sm:$0xff]
      %v154 = vld [vmem:[%s139 + $0x38] sm:$0xff]
      %v155 = vxor.u32 %v147, 2147483648
      %v156 = vxor.u32 %v148, 2147483648
      %v157 = vxor.u32 %v149, 2147483648
      %v158 = vxor.u32 %v150, 2147483648
      %v159 = vxor.u32 %v151, 2147483648
      %v160 = vxor.u32 %v152, 2147483648
      %v161 = vxor.u32 %v153, 2147483648
      %v162 = vxor.u32 %v154, 2147483648
      %v163 = vmul.f32 %v155, 1.442695
      %v164 = vpow.pop %v163
      %v165 = vmul.f32 %v156, 1.442695
      %v166 = vpow.pop %v165
      %v167 = vmul.f32 %v157, 1.442695
      %v168 = vpow.pop %v167
      %v169 = vmul.f32 %v158, 1.442695
      %v170 = vpow.pop %v169
      %v171 = vmul.f32 %v159, 1.442695
      %v172 = vpow.pop %v171
      %v173 = vmul.f32 %v160, 1.442695
      %v174 = vpow.pop %v173
      %v175 = vmul.f32 %v161, 1.442695
      %v176 = vpow.pop %v175
      %v177 = vmul.f32 %v162, 1.442695
      %v178 = vpow.pop %v177
      %v179 = vadd.f32 %v164, 1.0
      %v180 = vadd.f32 %v166, 1.0
      %v181 = vadd.f32 %v168, 1.0
      %v182 = vadd.f32 %v170, 1.0
      %v183 = vadd.f32 %v172, 1.0
      %v184 = vadd.f32 %v174, 1.0
      %v185 = vadd.f32 %v176, 1.0
      %v186 = vadd.f32 %v178, 1.0
      %v187 = vrcp.pop %v179
      %v188 = vmul.f32 %v179, %v187
      %v189 = vsub.f32 1.0, %v188
      %v190 = vmul.f32 %v187, %v189
      %v191 = vadd.f32 %v187, %v190
      %vm192 = vweird.f32 %v179
      %vm193 = vweird.f32 %v187
      %vm194 = vmor %vm192, %vm193
      %v195 = vsel %vm194, %v187, %v191
      %v196 = vand.u32 2147483647, %v179
      %vm197 = vcmp.eq.f32.partialorder %v196, 8.507059e+37
      %v198 = vand.u32 %v179, 2147483648
      %v199 = vor.u32 1.1754944e-38, %v198
      %v200 = vsel %vm197, %v199, %v195
      %v201 = vmul.f32 1.0, %v200
      %v202 = vrcp.pop %v180
      %v203 = vmul.f32 %v180, %v202
      %v204 = vsub.f32 1.0, %v203
      %v205 = vmul.f32 %v202, %v204
      %v206 = vadd.f32 %v202, %v205
      %vm207 = vweird.f32 %v180
      %vm208 = vweird.f32 %v202
      %vm209 = vmor %vm207, %vm208
      %v210 = vsel %vm209, %v202, %v206
      %v211 = vand.u32 2147483647, %v180
      %vm212 = vcmp.eq.f32.partialorder %v211, 8.507059e+37
      %v213 = vand.u32 %v180, 2147483648
      %v214 = vor.u32 1.1754944e-38, %v213
      %v215 = vsel %vm212, %v214, %v210
      %v216 = vmul.f32 1.0, %v215
      %v217 = vrcp.pop %v181
      %v218 = vmul.f32 %v181, %v217
      %v219 = vsub.f32 1.0, %v218
      %v220 = vmul.f32 %v217, %v219
      %v221 = vadd.f32 %v217, %v220
      %vm222 = vweird.f32 %v181
      %vm223 = vweird.f32 %v217
      %vm224 = vmor %vm222, %vm223
      %v225 = vsel %vm224, %v217, %v221
      %v226 = vand.u32 2147483647, %v181
      %vm227 = vcmp.eq.f32.partialorder %v226, 8.507059e+37
      %v228 = vand.u32 %v181, 2147483648
      %v229 = vor.u32 1.1754944e-38, %v228
      %v230 = vsel %vm227, %v229, %v225
      %v231 = vmul.f32 1.0, %v230
      %v232 = vrcp.pop %v182
      %v233 = vmul.f32 %v182, %v232
      %v234 = vsub.f32 1.0, %v233
      %v235 = vmul.f32 %v232, %v234
      %v236 = vadd.f32 %v232, %v235
      %vm237 = vweird.f32 %v182
      %vm238 = vweird.f32 %v232
      %vm239 = vmor %vm237, %vm238
      %v240 = vsel %vm239, %v232, %v236
      %v241 = vand.u32 2147483647, %v182
      %vm242 = vcmp.eq.f32.partialorder %v241, 8.507059e+37
      %v243 = vand.u32 %v182, 2147483648
      %v244 = vor.u32 1.1754944e-38, %v243
      %v245 = vsel %vm242, %v244, %v240
      %v246 = vmul.f32 1.0, %v245
      %v247 = vrcp.pop %v183
      %v248 = vmul.f32 %v183, %v247
      %v249 = vsub.f32 1.0, %v248
      %v250 = vmul.f32 %v247, %v249
      %v251 = vadd.f32 %v247, %v250
      %vm252 = vweird.f32 %v183
      %vm253 = vweird.f32 %v247
      %vm254 = vmor %vm252, %vm253
      %v255 = vsel %vm254, %v247, %v251
      %v256 = vand.u32 2147483647, %v183
      %vm257 = vcmp.eq.f32.partialorder %v256, 8.507059e+37
      %v258 = vand.u32 %v183, 2147483648
      %v259 = vor.u32 1.1754944e-38, %v258
      %v260 = vsel %vm257, %v259, %v255
      %v261 = vmul.f32 1.0, %v260
      %v262 = vrcp.pop %v184
      %v263 = vmul.f32 %v184, %v262
      %v264 = vsub.f32 1.0, %v263
      %v265 = vmul.f32 %v262, %v264
      %v266 = vadd.f32 %v262, %v265
      %vm267 = vweird.f32 %v184
      %vm268 = vweird.f32 %v262
      %vm269 = vmor %vm267, %vm268
      %v270 = vsel %vm269, %v262, %v266
      %v271 = vand.u32 2147483647, %v184
      %vm272 = vcmp.eq.f32.partialorder %v271, 8.507059e+37
      %v273 = vand.u32 %v184, 2147483648
      %v274 = vor.u32 1.1754944e-38, %v273
      %v275 = vsel %vm272, %v274, %v270
      %v276 = vmul.f32 1.0, %v275
      %v277 = vrcp.pop %v185
      %v278 = vmul.f32 %v185, %v277
      %v279 = vsub.f32 1.0, %v278
      %v280 = vmul.f32 %v277, %v279
      %v281 = vadd.f32 %v277, %v280
      %vm282 = vweird.f32 %v185
      %vm283 = vweird.f32 %v277
      %vm284 = vmor %vm282, %vm283
      %v285 = vsel %vm284, %v277, %v281
      %v286 = vand.u32 2147483647, %v185
      %vm287 = vcmp.eq.f32.partialorder %v286, 8.507059e+37
      %v288 = vand.u32 %v185, 2147483648
      %v289 = vor.u32 1.1754944e-38, %v288
      %v290 = vsel %vm287, %v289, %v285
      %v291 = vmul.f32 1.0, %v290
      %v292 = vrcp.pop %v186
      %v293 = vmul.f32 %v186, %v292
      %v294 = vsub.f32 1.0, %v293
      %v295 = vmul.f32 %v292, %v294
      %v296 = vadd.f32 %v292, %v295
      %vm297 = vweird.f32 %v186
      %vm298 = vweird.f32 %v292
      %vm299 = vmor %vm297, %vm298
      %v300 = vsel %vm299, %v292, %v296
      %v301 = vand.u32 2147483647, %v186
      %vm302 = vcmp.eq.f32.partialorder %v301, 8.507059e+37
      %v303 = vand.u32 %v186, 2147483648
      %v304 = vor.u32 1.1754944e-38, %v303
      %v305 = vsel %vm302, %v304, %v300
      %v306 = vmul.f32 1.0, %v305
      %v307 = vmul.f32 %v147, %v201
      %v308 = vmul.f32 %v148, %v216
      %v309 = vmul.f32 %v149, %v231
      %v310 = vmul.f32 %v150, %v246
      %v311 = vmul.f32 %v151, %v261
      %v312 = vmul.f32 %v152, %v276
      %v313 = vmul.f32 %v153, %v291
      %v314 = vmul.f32 %v154, %v306
      %v315 = vpack.c.bf16 %v307, %v307
      %v316 = vpack.c.bf16 %v308, %v308
      %v317 = vpack.c.bf16 %v309, %v309
      %v318 = vpack.c.bf16 %v310, %v310
      %v319 = vpack.c.bf16 %v311, %v311
      %v320 = vpack.c.bf16 %v312, %v312
      %v321 = vpack.c.bf16 %v313, %v313
      %v322 = vpack.c.bf16 %v314, %v314
      %vm323 = vcmp.ge.f32.partialorder %v147, -2.2
      %vm324 = vcmp.ge.f32.partialorder %v148, -2.2
      %vm325 = vcmp.ge.f32.partialorder %v149, -2.2
      %vm326 = vcmp.ge.f32.partialorder %v150, -2.2
      %vm327 = vcmp.ge.f32.partialorder %v151, -2.2
      %vm328 = vcmp.ge.f32.partialorder %v152, -2.2
      %vm329 = vcmp.ge.f32.partialorder %v153, -2.2
      %vm330 = vcmp.ge.f32.partialorder %v154, -2.2
      %v331 = vsel %vm323, 1, 0
      %v332 = vsel %vm324, 1, 0
      %v333 = vsel %vm325, 1, 0
      %v334 = vsel %vm326, 1, 0
      %v335 = vsel %vm327, 1, 0
      %v336 = vsel %vm328, 1, 0
      %v337 = vsel %vm329, 1, 0
      %v338 = vsel %vm330, 1, 0
      %v339 = vcvt.s32.f32 %v331
      %v340 = vcvt.s32.f32 %v332
      %v341 = vcvt.s32.f32 %v333
      %v342 = vcvt.s32.f32 %v334
      %v343 = vcvt.s32.f32 %v335
      %v344 = vcvt.s32.f32 %v336
      %v345 = vcvt.s32.f32 %v337
      %v346 = vcvt.s32.f32 %v338
      %vm347 = vcmp.ge.f32.partialorder %v147, -1.8
      %vm348 = vcmp.ge.f32.partialorder %v148, -1.8
      %vm349 = vcmp.ge.f32.partialorder %v149, -1.8
      %vm350 = vcmp.ge.f32.partialorder %v150, -1.8
      %vm351 = vcmp.ge.f32.partialorder %v151, -1.8
      %vm352 = vcmp.ge.f32.partialorder %v152, -1.8
      %vm353 = vcmp.ge.f32.partialorder %v153, -1.8
      %vm354 = vcmp.ge.f32.partialorder %v154, -1.8
      %v355 = vsel %vm347, 1, 0
      %v356 = vsel %vm348, 1, 0
      %v357 = vsel %vm349, 1, 0
      %v358 = vsel %vm350, 1, 0
      %v359 = vsel %vm351, 1, 0
      %v360 = vsel %vm352, 1, 0
      %v361 = vsel %vm353, 1, 0
      %v362 = vsel %vm354, 1, 0
      %v363 = vcvt.s32.f32 %v355
      %v364 = vcvt.s32.f32 %v356
      %v365 = vcvt.s32.f32 %v357
      %v366 = vcvt.s32.f32 %v358
      %v367 = vcvt.s32.f32 %v359
      %v368 = vcvt.s32.f32 %v360
      %v369 = vcvt.s32.f32 %v361
      %v370 = vcvt.s32.f32 %v362
      %vm371 = vcmp.ge.f32.partialorder %v147, -1.4
      %vm372 = vcmp.ge.f32.partialorder %v148, -1.4
      %vm373 = vcmp.ge.f32.partialorder %v149, -1.4
      %vm374 = vcmp.ge.f32.partialorder %v150, -1.4
      %vm375 = vcmp.ge.f32.partialorder %v151, -1.4
      %vm376 = vcmp.ge.f32.partialorder %v152, -1.4
      %vm377 = vcmp.ge.f32.partialorder %v153, -1.4
      %vm378 = vcmp.ge.f32.partialorder %v154, -1.4
      %v379 = vsel %vm371, 1, 0
      %v380 = vsel %vm372, 1, 0
      %v381 = vsel %vm373, 1, 0
      %v382 = vsel %vm374, 1, 0
      %v383 = vsel %vm375, 1, 0
      %v384 = vsel %vm376, 1, 0
      %v385 = vsel %vm377, 1, 0
      %v386 = vsel %vm378, 1, 0
      %v387 = vcvt.s32.f32 %v379
      %v388 = vcvt.s32.f32 %v380
      %v389 = vcvt.s32.f32 %v381
      %v390 = vcvt.s32.f32 %v382
      %v391 = vcvt.s32.f32 %v383
      %v392 = vcvt.s32.f32 %v384
      %v393 = vcvt.s32.f32 %v385
      %v394 = vcvt.s32.f32 %v386
      %vm395 = vcmp.ge.f32.partialorder %v147, -1.0
      %vm396 = vcmp.ge.f32.partialorder %v148, -1.0
      %vm397 = vcmp.ge.f32.partialorder %v149, -1.0
      %vm398 = vcmp.ge.f32.partialorder %v150, -1.0
      %vm399 = vcmp.ge.f32.partialorder %v151, -1.0
      %vm400 = vcmp.ge.f32.partialorder %v152, -1.0
      %vm401 = vcmp.ge.f32.partialorder %v153, -1.0
      %vm402 = vcmp.ge.f32.partialorder %v154, -1.0
      %v403 = vsel %vm395, 1, 0
      %v404 = vsel %vm396, 1, 0
      %v405 = vsel %vm397, 1, 0
      %v406 = vsel %vm398, 1, 0
      %v407 = vsel %vm399, 1, 0
      %v408 = vsel %vm400, 1, 0
      %v409 = vsel %vm401, 1, 0
      %v410 = vsel %vm402, 1, 0
      %v411 = vcvt.s32.f32 %v403
      %v412 = vcvt.s32.f32 %v404
      %v413 = vcvt.s32.f32 %v405
      %v414 = vcvt.s32.f32 %v406
      %v415 = vcvt.s32.f32 %v407
      %v416 = vcvt.s32.f32 %v408
      %v417 = vcvt.s32.f32 %v409
      %v418 = vcvt.s32.f32 %v410
      %vm419 = vcmp.ge.f32.partialorder %v147, -0.6
      %vm420 = vcmp.ge.f32.partialorder %v148, -0.6
      %vm421 = vcmp.ge.f32.partialorder %v149, -0.6
      %vm422 = vcmp.ge.f32.partialorder %v150, -0.6
      %vm423 = vcmp.ge.f32.partialorder %v151, -0.6
      %vm424 = vcmp.ge.f32.partialorder %v152, -0.6
      %vm425 = vcmp.ge.f32.partialorder %v153, -0.6
      %vm426 = vcmp.ge.f32.partialorder %v154, -0.6
      %v427 = vsel %vm419, 1, 0
      %v428 = vsel %vm420, 1, 0
      %v429 = vsel %vm421, 1, 0
      %v430 = vsel %vm422, 1, 0
      %v431 = vsel %vm423, 1, 0
      %v432 = vsel %vm424, 1, 0
      %v433 = vsel %vm425, 1, 0
      %v434 = vsel %vm426, 1, 0
      %v435 = vcvt.s32.f32 %v427
      %v436 = vcvt.s32.f32 %v428
      %v437 = vcvt.s32.f32 %v429
      %v438 = vcvt.s32.f32 %v430
      %v439 = vcvt.s32.f32 %v431
      %v440 = vcvt.s32.f32 %v432
      %v441 = vcvt.s32.f32 %v433
      %v442 = vcvt.s32.f32 %v434
      %vm443 = vcmp.ge.f32.partialorder %v147, -0.2
      %vm444 = vcmp.ge.f32.partialorder %v148, -0.2
      %vm445 = vcmp.ge.f32.partialorder %v149, -0.2
      %vm446 = vcmp.ge.f32.partialorder %v150, -0.2
      %vm447 = vcmp.ge.f32.partialorder %v151, -0.2
      %vm448 = vcmp.ge.f32.partialorder %v152, -0.2
      %vm449 = vcmp.ge.f32.partialorder %v153, -0.2
      %vm450 = vcmp.ge.f32.partialorder %v154, -0.2
      %v451 = vsel %vm443, 1, 0
      %v452 = vsel %vm444, 1, 0
      %v453 = vsel %vm445, 1, 0
      %v454 = vsel %vm446, 1, 0
      %v455 = vsel %vm447, 1, 0
      %v456 = vsel %vm448, 1, 0
      %v457 = vsel %vm449, 1, 0
      %v458 = vsel %vm450, 1, 0
      %v459 = vcvt.s32.f32 %v451
      %v460 = vcvt.s32.f32 %v452
      %v461 = vcvt.s32.f32 %v453
      %v462 = vcvt.s32.f32 %v454
      %v463 = vcvt.s32.f32 %v455
      %v464 = vcvt.s32.f32 %v456
      %v465 = vcvt.s32.f32 %v457
      %v466 = vcvt.s32.f32 %v458
      %vm467 = vcmp.ge.f32.partialorder %v147, 0.2
      %vm468 = vcmp.ge.f32.partialorder %v148, 0.2
      %vm469 = vcmp.ge.f32.partialorder %v149, 0.2
      %vm470 = vcmp.ge.f32.partialorder %v150, 0.2
      %vm471 = vcmp.ge.f32.partialorder %v151, 0.2
      %vm472 = vcmp.ge.f32.partialorder %v152, 0.2
      %vm473 = vcmp.ge.f32.partialorder %v153, 0.2
      %vm474 = vcmp.ge.f32.partialorder %v154, 0.2
      %v475 = vsel %vm467, 1, 0
      %v476 = vsel %vm468, 1, 0
      %v477 = vsel %vm469, 1, 0
      %v478 = vsel %vm470, 1, 0
      %v479 = vsel %vm471, 1, 0
      %v480 = vsel %vm472, 1, 0
      %v481 = vsel %vm473, 1, 0
      %v482 = vsel %vm474, 1, 0
      %v483 = vcvt.s32.f32 %v475
      %v484 = vcvt.s32.f32 %v476
      %v485 = vcvt.s32.f32 %v477
      %v486 = vcvt.s32.f32 %v478
      %v487 = vcvt.s32.f32 %v479
      %v488 = vcvt.s32.f32 %v480
      %v489 = vcvt.s32.f32 %v481
      %v490 = vcvt.s32.f32 %v482
      %vm491 = vcmp.ge.f32.partialorder %v147, 0.6
      %vm492 = vcmp.ge.f32.partialorder %v148, 0.6
      %vm493 = vcmp.ge.f32.partialorder %v149, 0.6
      %vm494 = vcmp.ge.f32.partialorder %v150, 0.6
      %vm495 = vcmp.ge.f32.partialorder %v151, 0.6
      %vm496 = vcmp.ge.f32.partialorder %v152, 0.6
      %vm497 = vcmp.ge.f32.partialorder %v153, 0.6
      %vm498 = vcmp.ge.f32.partialorder %v154, 0.6
      %v499 = vsel %vm491, 1, 0
      %v500 = vsel %vm492, 1, 0
      %v501 = vsel %vm493, 1, 0
      %v502 = vsel %vm494, 1, 0
      %v503 = vsel %vm495, 1, 0
      %v504 = vsel %vm496, 1, 0
      %v505 = vsel %vm497, 1, 0
      %v506 = vsel %vm498, 1, 0
      %v507 = vcvt.s32.f32 %v499
      %v508 = vcvt.s32.f32 %v500
      %v509 = vcvt.s32.f32 %v501
      %v510 = vcvt.s32.f32 %v502
      %v511 = vcvt.s32.f32 %v503
      %v512 = vcvt.s32.f32 %v504
      %v513 = vcvt.s32.f32 %v505
      %v514 = vcvt.s32.f32 %v506
      %vm515 = vcmp.ge.f32.partialorder %v147, 1.0
      %vm516 = vcmp.ge.f32.partialorder %v148, 1.0
      %vm517 = vcmp.ge.f32.partialorder %v149, 1.0
      %vm518 = vcmp.ge.f32.partialorder %v150, 1.0
      %vm519 = vcmp.ge.f32.partialorder %v151, 1.0
      %vm520 = vcmp.ge.f32.partialorder %v152, 1.0
      %vm521 = vcmp.ge.f32.partialorder %v153, 1.0
      %vm522 = vcmp.ge.f32.partialorder %v154, 1.0
      %v523 = vsel %vm515, 1, 0
      %v524 = vsel %vm516, 1, 0
      %v525 = vsel %vm517, 1, 0
      %v526 = vsel %vm518, 1, 0
      %v527 = vsel %vm519, 1, 0
      %v528 = vsel %vm520, 1, 0
      %v529 = vsel %vm521, 1, 0
      %v530 = vsel %vm522, 1, 0
      %v531 = vcvt.s32.f32 %v523
      %v532 = vcvt.s32.f32 %v524
      %v533 = vcvt.s32.f32 %v525
      %v534 = vcvt.s32.f32 %v526
      %v535 = vcvt.s32.f32 %v527
      %v536 = vcvt.s32.f32 %v528
      %v537 = vcvt.s32.f32 %v529
      %v538 = vcvt.s32.f32 %v530
      %vm539 = vcmp.ge.f32.partialorder %v147, 1.4
      %vm540 = vcmp.ge.f32.partialorder %v148, 1.4
      %vm541 = vcmp.ge.f32.partialorder %v149, 1.4
      %vm542 = vcmp.ge.f32.partialorder %v150, 1.4
      %vm543 = vcmp.ge.f32.partialorder %v151, 1.4
      %vm544 = vcmp.ge.f32.partialorder %v152, 1.4
      %vm545 = vcmp.ge.f32.partialorder %v153, 1.4
      %vm546 = vcmp.ge.f32.partialorder %v154, 1.4
      %v547 = vsel %vm539, 1, 0
      %v548 = vsel %vm540, 1, 0
      %v549 = vsel %vm541, 1, 0
      %v550 = vsel %vm542, 1, 0
      %v551 = vsel %vm543, 1, 0
      %v552 = vsel %vm544, 1, 0
      %v553 = vsel %vm545, 1, 0
      %v554 = vsel %vm546, 1, 0
      %v555 = vcvt.s32.f32 %v547
      %v556 = vcvt.s32.f32 %v548
      %v557 = vcvt.s32.f32 %v549
      %v558 = vcvt.s32.f32 %v550
      %v559 = vcvt.s32.f32 %v551
      %v560 = vcvt.s32.f32 %v552
      %v561 = vcvt.s32.f32 %v553
      %v562 = vcvt.s32.f32 %v554
      %vm563 = vcmp.ge.f32.partialorder %v147, 1.8
      %vm564 = vcmp.ge.f32.partialorder %v148, 1.8
      %vm565 = vcmp.ge.f32.partialorder %v149, 1.8
      %vm566 = vcmp.ge.f32.partialorder %v150, 1.8
      %vm567 = vcmp.ge.f32.partialorder %v151, 1.8
      %vm568 = vcmp.ge.f32.partialorder %v152, 1.8
      %vm569 = vcmp.ge.f32.partialorder %v153, 1.8
      %vm570 = vcmp.ge.f32.partialorder %v154, 1.8
      %v571 = vsel %vm563, 1, 0
      %v572 = vsel %vm564, 1, 0
      %v573 = vsel %vm565, 1, 0
      %v574 = vsel %vm566, 1, 0
      %v575 = vsel %vm567, 1, 0
      %v576 = vsel %vm568, 1, 0
      %v577 = vsel %vm569, 1, 0
      %v578 = vsel %vm570, 1, 0
      %v579 = vcvt.s32.f32 %v571
      %v580 = vcvt.s32.f32 %v572
      %v581 = vcvt.s32.f32 %v573
      %v582 = vcvt.s32.f32 %v574
      %v583 = vcvt.s32.f32 %v575
      %v584 = vcvt.s32.f32 %v576
      %v585 = vcvt.s32.f32 %v577
      %v586 = vcvt.s32.f32 %v578
      %vm587 = vcmp.ge.f32.partialorder %v147, 2.2
      %vm588 = vcmp.ge.f32.partialorder %v148, 2.2
      %vm589 = vcmp.ge.f32.partialorder %v149, 2.2
      %vm590 = vcmp.ge.f32.partialorder %v150, 2.2
      %vm591 = vcmp.ge.f32.partialorder %v151, 2.2
      %vm592 = vcmp.ge.f32.partialorder %v152, 2.2
      %vm593 = vcmp.ge.f32.partialorder %v153, 2.2
      %vm594 = vcmp.ge.f32.partialorder %v154, 2.2
      %v595 = vsel %vm587, 1, 0
      %v596 = vsel %vm588, 1, 0
      %v597 = vsel %vm589, 1, 0
      %v598 = vsel %vm590, 1, 0
      %v599 = vsel %vm591, 1, 0
      %v600 = vsel %vm592, 1, 0
      %v601 = vsel %vm593, 1, 0
      %v602 = vsel %vm594, 1, 0
      %v603 = vcvt.s32.f32 %v595
      %v604 = vcvt.s32.f32 %v596
      %v605 = vcvt.s32.f32 %v597
      %v606 = vcvt.s32.f32 %v598
      %v607 = vcvt.s32.f32 %v599
      %v608 = vcvt.s32.f32 %v600
      %v609 = vcvt.s32.f32 %v601
      %v610 = vcvt.s32.f32 %v602
      %v611 = vsub.f32 %v339, %v363
      %v612 = vsub.f32 %v340, %v364
      %v613 = vsub.f32 %v341, %v365
      %v614 = vsub.f32 %v342, %v366
      %v615 = vsub.f32 %v343, %v367
      %v616 = vsub.f32 %v344, %v368
      %v617 = vsub.f32 %v345, %v369
      %v618 = vsub.f32 %v346, %v370
      %v619 = vsub.f32 %v363, %v387
      %v620 = vsub.f32 %v364, %v388
      %v621 = vsub.f32 %v365, %v389
      %v622 = vsub.f32 %v366, %v390
      %v623 = vsub.f32 %v367, %v391
      %v624 = vsub.f32 %v368, %v392
      %v625 = vsub.f32 %v369, %v393
      %v626 = vsub.f32 %v370, %v394
      %v627 = vsub.f32 %v387, %v411
      %v628 = vsub.f32 %v388, %v412
      %v629 = vsub.f32 %v389, %v413
      %v630 = vsub.f32 %v390, %v414
      %v631 = vsub.f32 %v391, %v415
      %v632 = vsub.f32 %v392, %v416
      %v633 = vsub.f32 %v393, %v417
      %v634 = vsub.f32 %v394, %v418
      %v635 = vsub.f32 %v411, %v435
      %v636 = vsub.f32 %v412, %v436
      %v637 = vsub.f32 %v413, %v437
      %v638 = vsub.f32 %v414, %v438
      %v639 = vsub.f32 %v415, %v439
      %v640 = vsub.f32 %v416, %v440
      %v641 = vsub.f32 %v417, %v441
      %v642 = vsub.f32 %v418, %v442
      %v643 = vsub.f32 %v435, %v459
      %v644 = vsub.f32 %v436, %v460
      %v645 = vsub.f32 %v437, %v461
      %v646 = vsub.f32 %v438, %v462
      %v647 = vsub.f32 %v439, %v463
      %v648 = vsub.f32 %v440, %v464
      %v649 = vsub.f32 %v441, %v465
      %v650 = vsub.f32 %v442, %v466
      %v651 = vsub.f32 %v459, %v483
      %v652 = vsub.f32 %v460, %v484
      %v653 = vsub.f32 %v461, %v485
      %v654 = vsub.f32 %v462, %v486
      %v655 = vsub.f32 %v463, %v487
      %v656 = vsub.f32 %v464, %v488
      %v657 = vsub.f32 %v465, %v489
      %v658 = vsub.f32 %v466, %v490
      %v659 = vsub.f32 %v483, %v507
      %v660 = vsub.f32 %v484, %v508
      %v661 = vsub.f32 %v485, %v509
      %v662 = vsub.f32 %v486, %v510
      %v663 = vsub.f32 %v487, %v511
      %v664 = vsub.f32 %v488, %v512
      %v665 = vsub.f32 %v489, %v513
      %v666 = vsub.f32 %v490, %v514
      %v667 = vsub.f32 %v507, %v531
      %v668 = vsub.f32 %v508, %v532
      %v669 = vsub.f32 %v509, %v533
      %v670 = vsub.f32 %v510, %v534
      %v671 = vsub.f32 %v511, %v535
      %v672 = vsub.f32 %v512, %v536
      %v673 = vsub.f32 %v513, %v537
      %v674 = vsub.f32 %v514, %v538
      %v675 = vsub.f32 %v531, %v555
      %v676 = vsub.f32 %v532, %v556
      %v677 = vsub.f32 %v533, %v557
      %v678 = vsub.f32 %v534, %v558
      %v679 = vsub.f32 %v535, %v559
      %v680 = vsub.f32 %v536, %v560
      %v681 = vsub.f32 %v537, %v561
      %v682 = vsub.f32 %v538, %v562
      %v683 = vsub.f32 %v555, %v579
      %v684 = vsub.f32 %v556, %v580
      %v685 = vsub.f32 %v557, %v581
      %v686 = vsub.f32 %v558, %v582
      %v687 = vsub.f32 %v559, %v583
      %v688 = vsub.f32 %v560, %v584
      %v689 = vsub.f32 %v561, %v585
      %v690 = vsub.f32 %v562, %v586
      %v691 = vsub.f32 %v579, %v603
      %v692 = vsub.f32 %v580, %v604
      %v693 = vsub.f32 %v581, %v605
      %v694 = vsub.f32 %v582, %v606
      %v695 = vsub.f32 %v583, %v607
      %v696 = vsub.f32 %v584, %v608
      %v697 = vsub.f32 %v585, %v609
      %v698 = vsub.f32 %v586, %v610
      %v699 = vsub.f32 %v147, -2.2
      %v700 = vsub.f32 %v148, -2.2
      %v701 = vsub.f32 %v149, -2.2
      %v702 = vsub.f32 %v150, -2.2
      %v703 = vsub.f32 %v151, -2.2
      %v704 = vsub.f32 %v152, -2.2
      %v705 = vsub.f32 %v153, -2.2
      %v706 = vsub.f32 %v154, -2.2
      %v707 = vsub.f32 %v147, -1.8
      %v708 = vsub.f32 %v148, -1.8
      %v709 = vsub.f32 %v149, -1.8
      %v710 = vsub.f32 %v150, -1.8
      %v711 = vsub.f32 %v151, -1.8
      %v712 = vsub.f32 %v152, -1.8
      %v713 = vsub.f32 %v153, -1.8
      %v714 = vsub.f32 %v154, -1.8
      %v715 = vsub.f32 %v147, -1.4
      %v716 = vsub.f32 %v148, -1.4
      %v717 = vsub.f32 %v149, -1.4
      %v718 = vsub.f32 %v150, -1.4
      %v719 = vsub.f32 %v151, -1.4
      %v720 = vsub.f32 %v152, -1.4
      %v721 = vsub.f32 %v153, -1.4
      %v722 = vsub.f32 %v154, -1.4
      %v723 = vsub.f32 %v147, -1.0
      %v724 = vsub.f32 %v148, -1.0
      %v725 = vsub.f32 %v149, -1.0
      %v726 = vsub.f32 %v150, -1.0
      %v727 = vsub.f32 %v151, -1.0
      %v728 = vsub.f32 %v152, -1.0
      %v729 = vsub.f32 %v153, -1.0
      %v730 = vsub.f32 %v154, -1.0
      %v731 = vsub.f32 %v147, -0.6
      %v732 = vsub.f32 %v148, -0.6
      %v733 = vsub.f32 %v149, -0.6
      %v734 = vsub.f32 %v150, -0.6
      %v735 = vsub.f32 %v151, -0.6
      %v736 = vsub.f32 %v152, -0.6
      %v737 = vsub.f32 %v153, -0.6
      %v738 = vsub.f32 %v154, -0.6
      %v739 = vsub.f32 %v147, -0.2
      %v740 = vsub.f32 %v148, -0.2
      %v741 = vsub.f32 %v149, -0.2
      %v742 = vsub.f32 %v150, -0.2
      %v743 = vsub.f32 %v151, -0.2
      %v744 = vsub.f32 %v152, -0.2
      %v745 = vsub.f32 %v153, -0.2
      %v746 = vsub.f32 %v154, -0.2
      %v747 = vsub.f32 %v147, 0.2
      %v748 = vsub.f32 %v148, 0.2
      %v749 = vsub.f32 %v149, 0.2
      %v750 = vsub.f32 %v150, 0.2
      %v751 = vsub.f32 %v151, 0.2
      %v752 = vsub.f32 %v152, 0.2
      %v753 = vsub.f32 %v153, 0.2
      %v754 = vsub.f32 %v154, 0.2
      %v755 = vsub.f32 %v147, 0.6
      %v756 = vsub.f32 %v148, 0.6
      %v757 = vsub.f32 %v149, 0.6
      %v758 = vsub.f32 %v150, 0.6
      %v759 = vsub.f32 %v151, 0.6
      %v760 = vsub.f32 %v152, 0.6
      %v761 = vsub.f32 %v153, 0.6
      %v762 = vsub.f32 %v154, 0.6
      %v763 = vsub.f32 %v147, 1.0
      %v764 = vsub.f32 %v148, 1.0
      %v765 = vsub.f32 %v149, 1.0
      %v766 = vsub.f32 %v150, 1.0
      %v767 = vsub.f32 %v151, 1.0
      %v768 = vsub.f32 %v152, 1.0
      %v769 = vsub.f32 %v153, 1.0
      %v770 = vsub.f32 %v154, 1.0
      %v771 = vsub.f32 %v147, 1.4
      %v772 = vsub.f32 %v148, 1.4
      %v773 = vsub.f32 %v149, 1.4
      %v774 = vsub.f32 %v150, 1.4
      %v775 = vsub.f32 %v151, 1.4
      %v776 = vsub.f32 %v152, 1.4
      %v777 = vsub.f32 %v153, 1.4
      %v778 = vsub.f32 %v154, 1.4
      %v779 = vsub.f32 %v147, 1.8
      %v780 = vsub.f32 %v148, 1.8
      %v781 = vsub.f32 %v149, 1.8
      %v782 = vsub.f32 %v150, 1.8
      %v783 = vsub.f32 %v151, 1.8
      %v784 = vsub.f32 %v152, 1.8
      %v785 = vsub.f32 %v153, 1.8
      %v786 = vsub.f32 %v154, 1.8
      %v787 = vsub.f32 %v147, 2.2
      %v788 = vsub.f32 %v148, 2.2
      %v789 = vsub.f32 %v149, 2.2
      %v790 = vsub.f32 %v150, 2.2
      %v791 = vsub.f32 %v151, 2.2
      %v792 = vsub.f32 %v152, 2.2
      %v793 = vsub.f32 %v153, 2.2
      %v794 = vsub.f32 %v154, 2.2
      %v795 = vmul.f32 %v699, %v611
      %v796 = vmul.f32 %v700, %v612
      %v797 = vmul.f32 %v701, %v613
      %v798 = vmul.f32 %v702, %v614
      %v799 = vmul.f32 %v703, %v615
      %v800 = vmul.f32 %v704, %v616
      %v801 = vmul.f32 %v705, %v617
      %v802 = vmul.f32 %v706, %v618
      %v803 = vmul.f32 %v715, %v619
      %v804 = vmul.f32 %v716, %v620
      %v805 = vmul.f32 %v717, %v621
      %v806 = vmul.f32 %v718, %v622
      %v807 = vmul.f32 %v719, %v623
      %v808 = vmul.f32 %v720, %v624
      %v809 = vmul.f32 %v721, %v625
      %v810 = vmul.f32 %v722, %v626
      %v811 = vsub.f32 %v795, %v803
      %v812 = vsub.f32 %v796, %v804
      %v813 = vsub.f32 %v797, %v805
      %v814 = vsub.f32 %v798, %v806
      %v815 = vsub.f32 %v799, %v807
      %v816 = vsub.f32 %v800, %v808
      %v817 = vsub.f32 %v801, %v809
      %v818 = vsub.f32 %v802, %v810
      %v819 = vmul.f32 %v811, 2.5
      %v820 = vmul.f32 %v812, 2.5
      %v821 = vmul.f32 %v813, 2.5
      %v822 = vmul.f32 %v814, 2.5
      %v823 = vmul.f32 %v815, 2.5
      %v824 = vmul.f32 %v816, 2.5
      %v825 = vmul.f32 %v817, 2.5
      %v826 = vmul.f32 %v818, 2.5
      %v827 = vmul.f32 %v707, %v619
      %v828 = vmul.f32 %v708, %v620
      %v829 = vmul.f32 %v709, %v621
      %v830 = vmul.f32 %v710, %v622
      %v831 = vmul.f32 %v711, %v623
      %v832 = vmul.f32 %v712, %v624
      %v833 = vmul.f32 %v713, %v625
      %v834 = vmul.f32 %v714, %v626
      %v835 = vmul.f32 %v723, %v627
      %v836 = vmul.f32 %v724, %v628
      %v837 = vmul.f32 %v725, %v629
      %v838 = vmul.f32 %v726, %v630
      %v839 = vmul.f32 %v727, %v631
      %v840 = vmul.f32 %v728, %v632
      %v841 = vmul.f32 %v729, %v633
      %v842 = vmul.f32 %v730, %v634
      %v843 = vsub.f32 %v827, %v835
      %v844 = vsub.f32 %v828, %v836
      %v845 = vsub.f32 %v829, %v837
      %v846 = vsub.f32 %v830, %v838
      %v847 = vsub.f32 %v831, %v839
      %v848 = vsub.f32 %v832, %v840
      %v849 = vsub.f32 %v833, %v841
      %v850 = vsub.f32 %v834, %v842
      %v851 = vmul.f32 %v843, 2.5
      %v852 = vmul.f32 %v844, 2.5
      %v853 = vmul.f32 %v845, 2.5
      %v854 = vmul.f32 %v846, 2.5
      %v855 = vmul.f32 %v847, 2.5
      %v856 = vmul.f32 %v848, 2.5
      %v857 = vmul.f32 %v849, 2.5
      %v858 = vmul.f32 %v850, 2.5
      %v859 = vmul.f32 %v715, %v627
      %v860 = vmul.f32 %v716, %v628
      %v861 = vmul.f32 %v717, %v629
      %v862 = vmul.f32 %v718, %v630
      %v863 = vmul.f32 %v719, %v631
      %v864 = vmul.f32 %v720, %v632
      %v865 = vmul.f32 %v721, %v633
      %v866 = vmul.f32 %v722, %v634
      %v867 = vmul.f32 %v731, %v635
      %v868 = vmul.f32 %v732, %v636
      %v869 = vmul.f32 %v733, %v637
      %v870 = vmul.f32 %v734, %v638
      %v871 = vmul.f32 %v735, %v639
      %v872 = vmul.f32 %v736, %v640
      %v873 = vmul.f32 %v737, %v641
      %v874 = vmul.f32 %v738, %v642
      %v875 = vsub.f32 %v859, %v867
      %v876 = vsub.f32 %v860, %v868
      %v877 = vsub.f32 %v861, %v869
      %v878 = vsub.f32 %v862, %v870
      %v879 = vsub.f32 %v863, %v871
      %v880 = vsub.f32 %v864, %v872
      %v881 = vsub.f32 %v865, %v873
      %v882 = vsub.f32 %v866, %v874
      %v883 = vmul.f32 %v875, 2.5
      %v884 = vmul.f32 %v876, 2.5
      %v885 = vmul.f32 %v877, 2.5
      %v886 = vmul.f32 %v878, 2.5
      %v887 = vmul.f32 %v879, 2.5
      %v888 = vmul.f32 %v880, 2.5
      %v889 = vmul.f32 %v881, 2.5
      %v890 = vmul.f32 %v882, 2.5
      %v891 = vmul.f32 %v723, %v635
      %v892 = vmul.f32 %v724, %v636
      %v893 = vmul.f32 %v725, %v637
      %v894 = vmul.f32 %v726, %v638
      %v895 = vmul.f32 %v727, %v639
      %v896 = vmul.f32 %v728, %v640
      %v897 = vmul.f32 %v729, %v641
      %v898 = vmul.f32 %v730, %v642
      %v899 = vmul.f32 %v739, %v643
      %v900 = vmul.f32 %v740, %v644
      %v901 = vmul.f32 %v741, %v645
      %v902 = vmul.f32 %v742, %v646
      %v903 = vmul.f32 %v743, %v647
      %v904 = vmul.f32 %v744, %v648
      %v905 = vmul.f32 %v745, %v649
      %v906 = vmul.f32 %v746, %v650
      %v907 = vsub.f32 %v891, %v899
      %v908 = vsub.f32 %v892, %v900
      %v909 = vsub.f32 %v893, %v901
      %v910 = vsub.f32 %v894, %v902
      %v911 = vsub.f32 %v895, %v903
      %v912 = vsub.f32 %v896, %v904
      %v913 = vsub.f32 %v897, %v905
      %v914 = vsub.f32 %v898, %v906
      %v915 = vmul.f32 %v907, 2.5
      %v916 = vmul.f32 %v908, 2.5
      %v917 = vmul.f32 %v909, 2.5
      %v918 = vmul.f32 %v910, 2.5
      %v919 = vmul.f32 %v911, 2.5
      %v920 = vmul.f32 %v912, 2.5
      %v921 = vmul.f32 %v913, 2.5
      %v922 = vmul.f32 %v914, 2.5
      %v923 = vmul.f32 %v731, %v643
      %v924 = vmul.f32 %v732, %v644
      %v925 = vmul.f32 %v733, %v645
      %v926 = vmul.f32 %v734, %v646
      %v927 = vmul.f32 %v735, %v647
      %v928 = vmul.f32 %v736, %v648
      %v929 = vmul.f32 %v737, %v649
      %v930 = vmul.f32 %v738, %v650
      %v931 = vmul.f32 %v747, %v651
      %v932 = vmul.f32 %v748, %v652
      %v933 = vmul.f32 %v749, %v653
      %v934 = vmul.f32 %v750, %v654
      %v935 = vmul.f32 %v751, %v655
      %v936 = vmul.f32 %v752, %v656
      %v937 = vmul.f32 %v753, %v657
      %v938 = vmul.f32 %v754, %v658
      %v939 = vsub.f32 %v923, %v931
      %v940 = vsub.f32 %v924, %v932
      %v941 = vsub.f32 %v925, %v933
      %v942 = vsub.f32 %v926, %v934
      %v943 = vsub.f32 %v927, %v935
      %v944 = vsub.f32 %v928, %v936
      %v945 = vsub.f32 %v929, %v937
      %v946 = vsub.f32 %v930, %v938
      %v947 = vmul.f32 %v939, 2.5
      %v948 = vmul.f32 %v940, 2.5
      %v949 = vmul.f32 %v941, 2.5
      %v950 = vmul.f32 %v942, 2.5
      %v951 = vmul.f32 %v943, 2.5
      %v952 = vmul.f32 %v944, 2.5
      %v953 = vmul.f32 %v945, 2.5
      %v954 = vmul.f32 %v946, 2.5
      %v955 = vmul.f32 %v739, %v651
      %v956 = vmul.f32 %v740, %v652
      %v957 = vmul.f32 %v741, %v653
      %v958 = vmul.f32 %v742, %v654
      %v959 = vmul.f32 %v743, %v655
      %v960 = vmul.f32 %v744, %v656
      %v961 = vmul.f32 %v745, %v657
      %v962 = vmul.f32 %v746, %v658
      %v963 = vmul.f32 %v755, %v659
      %v964 = vmul.f32 %v756, %v660
      %v965 = vmul.f32 %v757, %v661
      %v966 = vmul.f32 %v758, %v662
      %v967 = vmul.f32 %v759, %v663
      %v968 = vmul.f32 %v760, %v664
      %v969 = vmul.f32 %v761, %v665
      %v970 = vmul.f32 %v762, %v666
      %v971 = vsub.f32 %v955, %v963
      %v972 = vsub.f32 %v956, %v964
      %v973 = vsub.f32 %v957, %v965
      %v974 = vsub.f32 %v958, %v966
      %v975 = vsub.f32 %v959, %v967
      %v976 = vsub.f32 %v960, %v968
      %v977 = vsub.f32 %v961, %v969
      %v978 = vsub.f32 %v962, %v970
      %v979 = vmul.f32 %v971, 2.5
      %v980 = vmul.f32 %v972, 2.5
      %v981 = vmul.f32 %v973, 2.5
      %v982 = vmul.f32 %v974, 2.5
      %v983 = vmul.f32 %v975, 2.5
      %v984 = vmul.f32 %v976, 2.5
      %v985 = vmul.f32 %v977, 2.5
      %v986 = vmul.f32 %v978, 2.5
      %v987 = vmul.f32 %v747, %v659
      %v988 = vmul.f32 %v748, %v660
      %v989 = vmul.f32 %v749, %v661
      %v990 = vmul.f32 %v750, %v662
      %v991 = vmul.f32 %v751, %v663
      %v992 = vmul.f32 %v752, %v664
      %v993 = vmul.f32 %v753, %v665
      %v994 = vmul.f32 %v754, %v666
      %v995 = vmul.f32 %v763, %v667
      %v996 = vmul.f32 %v764, %v668
      %v997 = vmul.f32 %v765, %v669
      %v998 = vmul.f32 %v766, %v670
      %v999 = vmul.f32 %v767, %v671
      %v1000 = vmul.f32 %v768, %v672
      %v1001 = vmul.f32 %v769, %v673
      %v1002 = vmul.f32 %v770, %v674
      %v1003 = vsub.f32 %v987, %v995
      %v1004 = vsub.f32 %v988, %v996
      %v1005 = vsub.f32 %v989, %v997
      %v1006 = vsub.f32 %v990, %v998
      %v1007 = vsub.f32 %v991, %v999
      %v1008 = vsub.f32 %v992, %v1000
      %v1009 = vsub.f32 %v993, %v1001
      %v1010 = vsub.f32 %v994, %v1002
      %v1011 = vmul.f32 %v1003, 2.5
      %v1012 = vmul.f32 %v1004, 2.5
      %v1013 = vmul.f32 %v1005, 2.5
      %v1014 = vmul.f32 %v1006, 2.5
      %v1015 = vmul.f32 %v1007, 2.5
      %v1016 = vmul.f32 %v1008, 2.5
      %v1017 = vmul.f32 %v1009, 2.5
      %v1018 = vmul.f32 %v1010, 2.5
      %v1019 = vmul.f32 %v755, %v667
      %v1020 = vmul.f32 %v756, %v668
      %v1021 = vmul.f32 %v757, %v669
      %v1022 = vmul.f32 %v758, %v670
      %v1023 = vmul.f32 %v759, %v671
      %v1024 = vmul.f32 %v760, %v672
      %v1025 = vmul.f32 %v761, %v673
      %v1026 = vmul.f32 %v762, %v674
      %v1027 = vmul.f32 %v771, %v675
      %v1028 = vmul.f32 %v772, %v676
      %v1029 = vmul.f32 %v773, %v677
      %v1030 = vmul.f32 %v774, %v678
      %v1031 = vmul.f32 %v775, %v679
      %v1032 = vmul.f32 %v776, %v680
      %v1033 = vmul.f32 %v777, %v681
      %v1034 = vmul.f32 %v778, %v682
      %v1035 = vsub.f32 %v1019, %v1027
      %v1036 = vsub.f32 %v1020, %v1028
      %v1037 = vsub.f32 %v1021, %v1029
      %v1038 = vsub.f32 %v1022, %v1030
      %v1039 = vsub.f32 %v1023, %v1031
      %v1040 = vsub.f32 %v1024, %v1032
      %v1041 = vsub.f32 %v1025, %v1033
      %v1042 = vsub.f32 %v1026, %v1034
      %v1043 = vmul.f32 %v1035, 2.5
      %v1044 = vmul.f32 %v1036, 2.5
      %v1045 = vmul.f32 %v1037, 2.5
      %v1046 = vmul.f32 %v1038, 2.5
      %v1047 = vmul.f32 %v1039, 2.5
      %v1048 = vmul.f32 %v1040, 2.5
      %v1049 = vmul.f32 %v1041, 2.5
      %v1050 = vmul.f32 %v1042, 2.5
      %v1051 = vmul.f32 %v763, %v675
      %v1052 = vmul.f32 %v764, %v676
      %v1053 = vmul.f32 %v765, %v677
      %v1054 = vmul.f32 %v766, %v678
      %v1055 = vmul.f32 %v767, %v679
      %v1056 = vmul.f32 %v768, %v680
      %v1057 = vmul.f32 %v769, %v681
      %v1058 = vmul.f32 %v770, %v682
      %v1059 = vmul.f32 %v779, %v683
      %v1060 = vmul.f32 %v780, %v684
      %v1061 = vmul.f32 %v781, %v685
      %v1062 = vmul.f32 %v782, %v686
      %v1063 = vmul.f32 %v783, %v687
      %v1064 = vmul.f32 %v784, %v688
      %v1065 = vmul.f32 %v785, %v689
      %v1066 = vmul.f32 %v786, %v690
      %v1067 = vsub.f32 %v1051, %v1059
      %v1068 = vsub.f32 %v1052, %v1060
      %v1069 = vsub.f32 %v1053, %v1061
      %v1070 = vsub.f32 %v1054, %v1062
      %v1071 = vsub.f32 %v1055, %v1063
      %v1072 = vsub.f32 %v1056, %v1064
      %v1073 = vsub.f32 %v1057, %v1065
      %v1074 = vsub.f32 %v1058, %v1066
      %v1075 = vmul.f32 %v1067, 2.5
      %v1076 = vmul.f32 %v1068, 2.5
      %v1077 = vmul.f32 %v1069, 2.5
      %v1078 = vmul.f32 %v1070, 2.5
      %v1079 = vmul.f32 %v1071, 2.5
      %v1080 = vmul.f32 %v1072, 2.5
      %v1081 = vmul.f32 %v1073, 2.5
      %v1082 = vmul.f32 %v1074, 2.5
      %v1083 = vmul.f32 %v771, %v683
      %v1084 = vmul.f32 %v772, %v684
      %v1085 = vmul.f32 %v773, %v685
      %v1086 = vmul.f32 %v774, %v686
      %v1087 = vmul.f32 %v775, %v687
      %v1088 = vmul.f32 %v776, %v688
      %v1089 = vmul.f32 %v777, %v689
      %v1090 = vmul.f32 %v778, %v690
      %v1091 = vmul.f32 %v787, %v691
      %v1092 = vmul.f32 %v788, %v692
      %v1093 = vmul.f32 %v789, %v693
      %v1094 = vmul.f32 %v790, %v694
      %v1095 = vmul.f32 %v791, %v695
      %v1096 = vmul.f32 %v792, %v696
      %v1097 = vmul.f32 %v793, %v697
      %v1098 = vmul.f32 %v794, %v698
      %v1099 = vsub.f32 %v1083, %v1091
      %v1100 = vsub.f32 %v1084, %v1092
      %v1101 = vsub.f32 %v1085, %v1093
      %v1102 = vsub.f32 %v1086, %v1094
      %v1103 = vsub.f32 %v1087, %v1095
      %v1104 = vsub.f32 %v1088, %v1096
      %v1105 = vsub.f32 %v1089, %v1097
      %v1106 = vsub.f32 %v1090, %v1098
      %v1107 = vmul.f32 %v1099, 2.5
      %v1108 = vmul.f32 %v1100, 2.5
      %v1109 = vmul.f32 %v1101, 2.5
      %v1110 = vmul.f32 %v1102, 2.5
      %v1111 = vmul.f32 %v1103, 2.5
      %v1112 = vmul.f32 %v1104, 2.5
      %v1113 = vmul.f32 %v1105, 2.5
      %v1114 = vmul.f32 %v1106, 2.5
      %v1115 = vmul.f32 %v699, %v819
      %v1116 = vmul.f32 %v700, %v820
      %v1117 = vmul.f32 %v701, %v821
      %v1118 = vmul.f32 %v702, %v822
      %v1119 = vmul.f32 %v703, %v823
      %v1120 = vmul.f32 %v704, %v824
      %v1121 = vmul.f32 %v705, %v825
      %v1122 = vmul.f32 %v706, %v826
      %v1123 = vmul.f32 %v723, %v851
      %v1124 = vmul.f32 %v724, %v852
      %v1125 = vmul.f32 %v725, %v853
      %v1126 = vmul.f32 %v726, %v854
      %v1127 = vmul.f32 %v727, %v855
      %v1128 = vmul.f32 %v728, %v856
      %v1129 = vmul.f32 %v729, %v857
      %v1130 = vmul.f32 %v730, %v858
      %v1131 = vsub.f32 %v1115, %v1123
      %v1132 = vsub.f32 %v1116, %v1124
      %v1133 = vsub.f32 %v1117, %v1125
      %v1134 = vsub.f32 %v1118, %v1126
      %v1135 = vsub.f32 %v1119, %v1127
      %v1136 = vsub.f32 %v1120, %v1128
      %v1137 = vsub.f32 %v1121, %v1129
      %v1138 = vsub.f32 %v1122, %v1130
      %v1139 = vmul.f32 %v1131, 1.25
      %v1140 = vmul.f32 %v1132, 1.25
      %v1141 = vmul.f32 %v1133, 1.25
      %v1142 = vmul.f32 %v1134, 1.25
      %v1143 = vmul.f32 %v1135, 1.25
      %v1144 = vmul.f32 %v1136, 1.25
      %v1145 = vmul.f32 %v1137, 1.25
      %v1146 = vmul.f32 %v1138, 1.25
      %v1147 = vmul.f32 %v707, %v851
      %v1148 = vmul.f32 %v708, %v852
      %v1149 = vmul.f32 %v709, %v853
      %v1150 = vmul.f32 %v710, %v854
      %v1151 = vmul.f32 %v711, %v855
      %v1152 = vmul.f32 %v712, %v856
      %v1153 = vmul.f32 %v713, %v857
      %v1154 = vmul.f32 %v714, %v858
      %v1155 = vmul.f32 %v731, %v883
      %v1156 = vmul.f32 %v732, %v884
      %v1157 = vmul.f32 %v733, %v885
      %v1158 = vmul.f32 %v734, %v886
      %v1159 = vmul.f32 %v735, %v887
      %v1160 = vmul.f32 %v736, %v888
      %v1161 = vmul.f32 %v737, %v889
      %v1162 = vmul.f32 %v738, %v890
      %v1163 = vsub.f32 %v1147, %v1155
      %v1164 = vsub.f32 %v1148, %v1156
      %v1165 = vsub.f32 %v1149, %v1157
      %v1166 = vsub.f32 %v1150, %v1158
      %v1167 = vsub.f32 %v1151, %v1159
      %v1168 = vsub.f32 %v1152, %v1160
      %v1169 = vsub.f32 %v1153, %v1161
      %v1170 = vsub.f32 %v1154, %v1162
      %v1171 = vmul.f32 %v1163, 1.25
      %v1172 = vmul.f32 %v1164, 1.25
      %v1173 = vmul.f32 %v1165, 1.25
      %v1174 = vmul.f32 %v1166, 1.25
      %v1175 = vmul.f32 %v1167, 1.25
      %v1176 = vmul.f32 %v1168, 1.25
      %v1177 = vmul.f32 %v1169, 1.25
      %v1178 = vmul.f32 %v1170, 1.25
      %v1179 = vmul.f32 %v715, %v883
      %v1180 = vmul.f32 %v716, %v884
      %v1181 = vmul.f32 %v717, %v885
      %v1182 = vmul.f32 %v718, %v886
      %v1183 = vmul.f32 %v719, %v887
      %v1184 = vmul.f32 %v720, %v888
      %v1185 = vmul.f32 %v721, %v889
      %v1186 = vmul.f32 %v722, %v890
      %v1187 = vmul.f32 %v739, %v915
      %v1188 = vmul.f32 %v740, %v916
      %v1189 = vmul.f32 %v741, %v917
      %v1190 = vmul.f32 %v742, %v918
      %v1191 = vmul.f32 %v743, %v919
      %v1192 = vmul.f32 %v744, %v920
      %v1193 = vmul.f32 %v745, %v921
      %v1194 = vmul.f32 %v746, %v922
      %v1195 = vsub.f32 %v1179, %v1187
      %v1196 = vsub.f32 %v1180, %v1188
      %v1197 = vsub.f32 %v1181, %v1189
      %v1198 = vsub.f32 %v1182, %v1190
      %v1199 = vsub.f32 %v1183, %v1191
      %v1200 = vsub.f32 %v1184, %v1192
      %v1201 = vsub.f32 %v1185, %v1193
      %v1202 = vsub.f32 %v1186, %v1194
      %v1203 = vmul.f32 %v1195, 1.25
      %v1204 = vmul.f32 %v1196, 1.25
      %v1205 = vmul.f32 %v1197, 1.25
      %v1206 = vmul.f32 %v1198, 1.25
      %v1207 = vmul.f32 %v1199, 1.25
      %v1208 = vmul.f32 %v1200, 1.25
      %v1209 = vmul.f32 %v1201, 1.25
      %v1210 = vmul.f32 %v1202, 1.25
      %v1211 = vmul.f32 %v723, %v915
      %v1212 = vmul.f32 %v724, %v916
      %v1213 = vmul.f32 %v725, %v917
      %v1214 = vmul.f32 %v726, %v918
      %v1215 = vmul.f32 %v727, %v919
      %v1216 = vmul.f32 %v728, %v920
      %v1217 = vmul.f32 %v729, %v921
      %v1218 = vmul.f32 %v730, %v922
      %v1219 = vmul.f32 %v747, %v947
      %v1220 = vmul.f32 %v748, %v948
      %v1221 = vmul.f32 %v749, %v949
      %v1222 = vmul.f32 %v750, %v950
      %v1223 = vmul.f32 %v751, %v951
      %v1224 = vmul.f32 %v752, %v952
      %v1225 = vmul.f32 %v753, %v953
      %v1226 = vmul.f32 %v754, %v954
      %v1227 = vsub.f32 %v1211, %v1219
      %v1228 = vsub.f32 %v1212, %v1220
      %v1229 = vsub.f32 %v1213, %v1221
      %v1230 = vsub.f32 %v1214, %v1222
      %v1231 = vsub.f32 %v1215, %v1223
      %v1232 = vsub.f32 %v1216, %v1224
      %v1233 = vsub.f32 %v1217, %v1225
      %v1234 = vsub.f32 %v1218, %v1226
      %v1235 = vmul.f32 %v1227, 1.25
      %v1236 = vmul.f32 %v1228, 1.25
      %v1237 = vmul.f32 %v1229, 1.25
      %v1238 = vmul.f32 %v1230, 1.25
      %v1239 = vmul.f32 %v1231, 1.25
      %v1240 = vmul.f32 %v1232, 1.25
      %v1241 = vmul.f32 %v1233, 1.25
      %v1242 = vmul.f32 %v1234, 1.25
      %v1243 = vmul.f32 %v731, %v947
      %v1244 = vmul.f32 %v732, %v948
      %v1245 = vmul.f32 %v733, %v949
      %v1246 = vmul.f32 %v734, %v950
      %v1247 = vmul.f32 %v735, %v951
      %v1248 = vmul.f32 %v736, %v952
      %v1249 = vmul.f32 %v737, %v953
      %v1250 = vmul.f32 %v738, %v954
      %v1251 = vmul.f32 %v755, %v979
      %v1252 = vmul.f32 %v756, %v980
      %v1253 = vmul.f32 %v757, %v981
      %v1254 = vmul.f32 %v758, %v982
      %v1255 = vmul.f32 %v759, %v983
      %v1256 = vmul.f32 %v760, %v984
      %v1257 = vmul.f32 %v761, %v985
      %v1258 = vmul.f32 %v762, %v986
      %v1259 = vsub.f32 %v1243, %v1251
      %v1260 = vsub.f32 %v1244, %v1252
      %v1261 = vsub.f32 %v1245, %v1253
      %v1262 = vsub.f32 %v1246, %v1254
      %v1263 = vsub.f32 %v1247, %v1255
      %v1264 = vsub.f32 %v1248, %v1256
      %v1265 = vsub.f32 %v1249, %v1257
      %v1266 = vsub.f32 %v1250, %v1258
      %v1267 = vmul.f32 %v1259, 1.25
      %v1268 = vmul.f32 %v1260, 1.25
      %v1269 = vmul.f32 %v1261, 1.25
      %v1270 = vmul.f32 %v1262, 1.25
      %v1271 = vmul.f32 %v1263, 1.25
      %v1272 = vmul.f32 %v1264, 1.25
      %v1273 = vmul.f32 %v1265, 1.25
      %v1274 = vmul.f32 %v1266, 1.25
      %v1275 = vmul.f32 %v739, %v979
      %v1276 = vmul.f32 %v740, %v980
      %v1277 = vmul.f32 %v741, %v981
      %v1278 = vmul.f32 %v742, %v982
      %v1279 = vmul.f32 %v743, %v983
      %v1280 = vmul.f32 %v744, %v984
      %v1281 = vmul.f32 %v745, %v985
      %v1282 = vmul.f32 %v746, %v986
      %v1283 = vmul.f32 %v763, %v1011
      %v1284 = vmul.f32 %v764, %v1012
      %v1285 = vmul.f32 %v765, %v1013
      %v1286 = vmul.f32 %v766, %v1014
      %v1287 = vmul.f32 %v767, %v1015
      %v1288 = vmul.f32 %v768, %v1016
      %v1289 = vmul.f32 %v769, %v1017
      %v1290 = vmul.f32 %v770, %v1018
      %v1291 = vsub.f32 %v1275, %v1283
      %v1292 = vsub.f32 %v1276, %v1284
      %v1293 = vsub.f32 %v1277, %v1285
      %v1294 = vsub.f32 %v1278, %v1286
      %v1295 = vsub.f32 %v1279, %v1287
      %v1296 = vsub.f32 %v1280, %v1288
      %v1297 = vsub.f32 %v1281, %v1289
      %v1298 = vsub.f32 %v1282, %v1290
      %v1299 = vmul.f32 %v1291, 1.25
      %v1300 = vmul.f32 %v1292, 1.25
      %v1301 = vmul.f32 %v1293, 1.25
      %v1302 = vmul.f32 %v1294, 1.25
      %v1303 = vmul.f32 %v1295, 1.25
      %v1304 = vmul.f32 %v1296, 1.25
      %v1305 = vmul.f32 %v1297, 1.25
      %v1306 = vmul.f32 %v1298, 1.25
      %v1307 = vmul.f32 %v747, %v1011
      %v1308 = vmul.f32 %v748, %v1012
      %v1309 = vmul.f32 %v749, %v1013
      %v1310 = vmul.f32 %v750, %v1014
      %v1311 = vmul.f32 %v751, %v1015
      %v1312 = vmul.f32 %v752, %v1016
      %v1313 = vmul.f32 %v753, %v1017
      %v1314 = vmul.f32 %v754, %v1018
      %v1315 = vmul.f32 %v771, %v1043
      %v1316 = vmul.f32 %v772, %v1044
      %v1317 = vmul.f32 %v773, %v1045
      %v1318 = vmul.f32 %v774, %v1046
      %v1319 = vmul.f32 %v775, %v1047
      %v1320 = vmul.f32 %v776, %v1048
      %v1321 = vmul.f32 %v777, %v1049
      %v1322 = vmul.f32 %v778, %v1050
      %v1323 = vsub.f32 %v1307, %v1315
      %v1324 = vsub.f32 %v1308, %v1316
      %v1325 = vsub.f32 %v1309, %v1317
      %v1326 = vsub.f32 %v1310, %v1318
      %v1327 = vsub.f32 %v1311, %v1319
      %v1328 = vsub.f32 %v1312, %v1320
      %v1329 = vsub.f32 %v1313, %v1321
      %v1330 = vsub.f32 %v1314, %v1322
      %v1331 = vmul.f32 %v1323, 1.25
      %v1332 = vmul.f32 %v1324, 1.25
      %v1333 = vmul.f32 %v1325, 1.25
      %v1334 = vmul.f32 %v1326, 1.25
      %v1335 = vmul.f32 %v1327, 1.25
      %v1336 = vmul.f32 %v1328, 1.25
      %v1337 = vmul.f32 %v1329, 1.25
      %v1338 = vmul.f32 %v1330, 1.25
      %v1339 = vmul.f32 %v755, %v1043
      %v1340 = vmul.f32 %v756, %v1044
      %v1341 = vmul.f32 %v757, %v1045
      %v1342 = vmul.f32 %v758, %v1046
      %v1343 = vmul.f32 %v759, %v1047
      %v1344 = vmul.f32 %v760, %v1048
      %v1345 = vmul.f32 %v761, %v1049
      %v1346 = vmul.f32 %v762, %v1050
      %v1347 = vmul.f32 %v779, %v1075
      %v1348 = vmul.f32 %v780, %v1076
      %v1349 = vmul.f32 %v781, %v1077
      %v1350 = vmul.f32 %v782, %v1078
      %v1351 = vmul.f32 %v783, %v1079
      %v1352 = vmul.f32 %v784, %v1080
      %v1353 = vmul.f32 %v785, %v1081
      %v1354 = vmul.f32 %v786, %v1082
      %v1355 = vsub.f32 %v1339, %v1347
      %v1356 = vsub.f32 %v1340, %v1348
      %v1357 = vsub.f32 %v1341, %v1349
      %v1358 = vsub.f32 %v1342, %v1350
      %v1359 = vsub.f32 %v1343, %v1351
      %v1360 = vsub.f32 %v1344, %v1352
      %v1361 = vsub.f32 %v1345, %v1353
      %v1362 = vsub.f32 %v1346, %v1354
      %v1363 = vmul.f32 %v1355, 1.25
      %v1364 = vmul.f32 %v1356, 1.25
      %v1365 = vmul.f32 %v1357, 1.25
      %v1366 = vmul.f32 %v1358, 1.25
      %v1367 = vmul.f32 %v1359, 1.25
      %v1368 = vmul.f32 %v1360, 1.25
      %v1369 = vmul.f32 %v1361, 1.25
      %v1370 = vmul.f32 %v1362, 1.25
      %v1371 = vmul.f32 %v763, %v1075
      %v1372 = vmul.f32 %v764, %v1076
      %v1373 = vmul.f32 %v765, %v1077
      %v1374 = vmul.f32 %v766, %v1078
      %v1375 = vmul.f32 %v767, %v1079
      %v1376 = vmul.f32 %v768, %v1080
      %v1377 = vmul.f32 %v769, %v1081
      %v1378 = vmul.f32 %v770, %v1082
      %v1379 = vmul.f32 %v787, %v1107
      %v1380 = vmul.f32 %v788, %v1108
      %v1381 = vmul.f32 %v789, %v1109
      %v1382 = vmul.f32 %v790, %v1110
      %v1383 = vmul.f32 %v791, %v1111
      %v1384 = vmul.f32 %v792, %v1112
      %v1385 = vmul.f32 %v793, %v1113
      %v1386 = vmul.f32 %v794, %v1114
      %v1387 = vsub.f32 %v1371, %v1379
      %v1388 = vsub.f32 %v1372, %v1380
      %v1389 = vsub.f32 %v1373, %v1381
      %v1390 = vsub.f32 %v1374, %v1382
      %v1391 = vsub.f32 %v1375, %v1383
      %v1392 = vsub.f32 %v1376, %v1384
      %v1393 = vsub.f32 %v1377, %v1385
      %v1394 = vsub.f32 %v1378, %v1386
      %v1395 = vmul.f32 %v1387, 1.25
      %v1396 = vmul.f32 %v1388, 1.25
      %v1397 = vmul.f32 %v1389, 1.25
      %v1398 = vmul.f32 %v1390, 1.25
      %v1399 = vmul.f32 %v1391, 1.25
      %v1400 = vmul.f32 %v1392, 1.25
      %v1401 = vmul.f32 %v1393, 1.25
      %v1402 = vmul.f32 %v1394, 1.25
      %v1403 = vmul.f32 %v699, %v1139
      %v1404 = vmul.f32 %v700, %v1140
      %v1405 = vmul.f32 %v701, %v1141
      %v1406 = vmul.f32 %v702, %v1142
      %v1407 = vmul.f32 %v703, %v1143
      %v1408 = vmul.f32 %v704, %v1144
      %v1409 = vmul.f32 %v705, %v1145
      %v1410 = vmul.f32 %v706, %v1146
      %v1411 = vmul.f32 %v731, %v1171
      %v1412 = vmul.f32 %v732, %v1172
      %v1413 = vmul.f32 %v733, %v1173
      %v1414 = vmul.f32 %v734, %v1174
      %v1415 = vmul.f32 %v735, %v1175
      %v1416 = vmul.f32 %v736, %v1176
      %v1417 = vmul.f32 %v737, %v1177
      %v1418 = vmul.f32 %v738, %v1178
      %v1419 = vsub.f32 %v1403, %v1411
      %v1420 = vsub.f32 %v1404, %v1412
      %v1421 = vsub.f32 %v1405, %v1413
      %v1422 = vsub.f32 %v1406, %v1414
      %v1423 = vsub.f32 %v1407, %v1415
      %v1424 = vsub.f32 %v1408, %v1416
      %v1425 = vsub.f32 %v1409, %v1417
      %v1426 = vsub.f32 %v1410, %v1418
      %v1427 = vmul.f32 %v1419, 0.8333333
      %v1428 = vmul.f32 %v1420, 0.8333333
      %v1429 = vmul.f32 %v1421, 0.8333333
      %v1430 = vmul.f32 %v1422, 0.8333333
      %v1431 = vmul.f32 %v1423, 0.8333333
      %v1432 = vmul.f32 %v1424, 0.8333333
      %v1433 = vmul.f32 %v1425, 0.8333333
      %v1434 = vmul.f32 %v1426, 0.8333333
      %v1435 = vmul.f32 %v707, %v1171
      %v1436 = vmul.f32 %v708, %v1172
      %v1437 = vmul.f32 %v709, %v1173
      %v1438 = vmul.f32 %v710, %v1174
      %v1439 = vmul.f32 %v711, %v1175
      %v1440 = vmul.f32 %v712, %v1176
      %v1441 = vmul.f32 %v713, %v1177
      %v1442 = vmul.f32 %v714, %v1178
      %v1443 = vmul.f32 %v739, %v1203
      %v1444 = vmul.f32 %v740, %v1204
      %v1445 = vmul.f32 %v741, %v1205
      %v1446 = vmul.f32 %v742, %v1206
      %v1447 = vmul.f32 %v743, %v1207
      %v1448 = vmul.f32 %v744, %v1208
      %v1449 = vmul.f32 %v745, %v1209
      %v1450 = vmul.f32 %v746, %v1210
      %v1451 = vsub.f32 %v1435, %v1443
      %v1452 = vsub.f32 %v1436, %v1444
      %v1453 = vsub.f32 %v1437, %v1445
      %v1454 = vsub.f32 %v1438, %v1446
      %v1455 = vsub.f32 %v1439, %v1447
      %v1456 = vsub.f32 %v1440, %v1448
      %v1457 = vsub.f32 %v1441, %v1449
      %v1458 = vsub.f32 %v1442, %v1450
      %v1459 = vmul.f32 %v1451, 0.8333333
      %v1460 = vmul.f32 %v1452, 0.8333333
      %v1461 = vmul.f32 %v1453, 0.8333333
      %v1462 = vmul.f32 %v1454, 0.8333333
      %v1463 = vmul.f32 %v1455, 0.8333333
      %v1464 = vmul.f32 %v1456, 0.8333333
      %v1465 = vmul.f32 %v1457, 0.8333333
      %v1466 = vmul.f32 %v1458, 0.8333333
      %v1467 = vmul.f32 %v715, %v1203
      %v1468 = vmul.f32 %v716, %v1204
      %v1469 = vmul.f32 %v717, %v1205
      %v1470 = vmul.f32 %v718, %v1206
      %v1471 = vmul.f32 %v719, %v1207
      %v1472 = vmul.f32 %v720, %v1208
      %v1473 = vmul.f32 %v721, %v1209
      %v1474 = vmul.f32 %v722, %v1210
      %v1475 = vmul.f32 %v747, %v1235
      %v1476 = vmul.f32 %v748, %v1236
      %v1477 = vmul.f32 %v749, %v1237
      %v1478 = vmul.f32 %v750, %v1238
      %v1479 = vmul.f32 %v751, %v1239
      %v1480 = vmul.f32 %v752, %v1240
      %v1481 = vmul.f32 %v753, %v1241
      %v1482 = vmul.f32 %v754, %v1242
      %v1483 = vsub.f32 %v1467, %v1475
      %v1484 = vsub.f32 %v1468, %v1476
      %v1485 = vsub.f32 %v1469, %v1477
      %v1486 = vsub.f32 %v1470, %v1478
      %v1487 = vsub.f32 %v1471, %v1479
      %v1488 = vsub.f32 %v1472, %v1480
      %v1489 = vsub.f32 %v1473, %v1481
      %v1490 = vsub.f32 %v1474, %v1482
      %v1491 = vmul.f32 %v1483, 0.8333333
      %v1492 = vmul.f32 %v1484, 0.8333333
      %v1493 = vmul.f32 %v1485, 0.8333333
      %v1494 = vmul.f32 %v1486, 0.8333333
      %v1495 = vmul.f32 %v1487, 0.8333333
      %v1496 = vmul.f32 %v1488, 0.8333333
      %v1497 = vmul.f32 %v1489, 0.8333333
      %v1498 = vmul.f32 %v1490, 0.8333333
      %v1499 = vmul.f32 %v723, %v1235
      %v1500 = vmul.f32 %v724, %v1236
      %v1501 = vmul.f32 %v725, %v1237
      %v1502 = vmul.f32 %v726, %v1238
      %v1503 = vmul.f32 %v727, %v1239
      %v1504 = vmul.f32 %v728, %v1240
      %v1505 = vmul.f32 %v729, %v1241
      %v1506 = vmul.f32 %v730, %v1242
      %v1507 = vmul.f32 %v755, %v1267
      %v1508 = vmul.f32 %v756, %v1268
      %v1509 = vmul.f32 %v757, %v1269
      %v1510 = vmul.f32 %v758, %v1270
      %v1511 = vmul.f32 %v759, %v1271
      %v1512 = vmul.f32 %v760, %v1272
      %v1513 = vmul.f32 %v761, %v1273
      %v1514 = vmul.f32 %v762, %v1274
      %v1515 = vsub.f32 %v1499, %v1507
      %v1516 = vsub.f32 %v1500, %v1508
      %v1517 = vsub.f32 %v1501, %v1509
      %v1518 = vsub.f32 %v1502, %v1510
      %v1519 = vsub.f32 %v1503, %v1511
      %v1520 = vsub.f32 %v1504, %v1512
      %v1521 = vsub.f32 %v1505, %v1513
      %v1522 = vsub.f32 %v1506, %v1514
      %v1523 = vmul.f32 %v1515, 0.8333333
      %v1524 = vmul.f32 %v1516, 0.8333333
      %v1525 = vmul.f32 %v1517, 0.8333333
      %v1526 = vmul.f32 %v1518, 0.8333333
      %v1527 = vmul.f32 %v1519, 0.8333333
      %v1528 = vmul.f32 %v1520, 0.8333333
      %v1529 = vmul.f32 %v1521, 0.8333333
      %v1530 = vmul.f32 %v1522, 0.8333333
      %v1531 = vmul.f32 %v731, %v1267
      %v1532 = vmul.f32 %v732, %v1268
      %v1533 = vmul.f32 %v733, %v1269
      %v1534 = vmul.f32 %v734, %v1270
      %v1535 = vmul.f32 %v735, %v1271
      %v1536 = vmul.f32 %v736, %v1272
      %v1537 = vmul.f32 %v737, %v1273
      %v1538 = vmul.f32 %v738, %v1274
      %v1539 = vmul.f32 %v763, %v1299
      %v1540 = vmul.f32 %v764, %v1300
      %v1541 = vmul.f32 %v765, %v1301
      %v1542 = vmul.f32 %v766, %v1302
      %v1543 = vmul.f32 %v767, %v1303
      %v1544 = vmul.f32 %v768, %v1304
      %v1545 = vmul.f32 %v769, %v1305
      %v1546 = vmul.f32 %v770, %v1306
      %v1547 = vsub.f32 %v1531, %v1539
      %v1548 = vsub.f32 %v1532, %v1540
      %v1549 = vsub.f32 %v1533, %v1541
      %v1550 = vsub.f32 %v1534, %v1542
      %v1551 = vsub.f32 %v1535, %v1543
      %v1552 = vsub.f32 %v1536, %v1544
      %v1553 = vsub.f32 %v1537, %v1545
      %v1554 = vsub.f32 %v1538, %v1546
      %v1555 = vmul.f32 %v1547, 0.8333333
      %v1556 = vmul.f32 %v1548, 0.8333333
      %v1557 = vmul.f32 %v1549, 0.8333333
      %v1558 = vmul.f32 %v1550, 0.8333333
      %v1559 = vmul.f32 %v1551, 0.8333333
      %v1560 = vmul.f32 %v1552, 0.8333333
      %v1561 = vmul.f32 %v1553, 0.8333333
      %v1562 = vmul.f32 %v1554, 0.8333333
      %v1563 = vmul.f32 %v739, %v1299
      %v1564 = vmul.f32 %v740, %v1300
      %v1565 = vmul.f32 %v741, %v1301
      %v1566 = vmul.f32 %v742, %v1302
      %v1567 = vmul.f32 %v743, %v1303
      %v1568 = vmul.f32 %v744, %v1304
      %v1569 = vmul.f32 %v745, %v1305
      %v1570 = vmul.f32 %v746, %v1306
      %v1571 = vmul.f32 %v771, %v1331
      %v1572 = vmul.f32 %v772, %v1332
      %v1573 = vmul.f32 %v773, %v1333
      %v1574 = vmul.f32 %v774, %v1334
      %v1575 = vmul.f32 %v775, %v1335
      %v1576 = vmul.f32 %v776, %v1336
      %v1577 = vmul.f32 %v777, %v1337
      %v1578 = vmul.f32 %v778, %v1338
      %v1579 = vsub.f32 %v1563, %v1571
      %v1580 = vsub.f32 %v1564, %v1572
      %v1581 = vsub.f32 %v1565, %v1573
      %v1582 = vsub.f32 %v1566, %v1574
      %v1583 = vsub.f32 %v1567, %v1575
      %v1584 = vsub.f32 %v1568, %v1576
      %v1585 = vsub.f32 %v1569, %v1577
      %v1586 = vsub.f32 %v1570, %v1578
      %v1587 = vmul.f32 %v1579, 0.8333333
      %v1588 = vmul.f32 %v1580, 0.8333333
      %v1589 = vmul.f32 %v1581, 0.8333333
      %v1590 = vmul.f32 %v1582, 0.8333333
      %v1591 = vmul.f32 %v1583, 0.8333333
      %v1592 = vmul.f32 %v1584, 0.8333333
      %v1593 = vmul.f32 %v1585, 0.8333333
      %v1594 = vmul.f32 %v1586, 0.8333333
      %v1595 = vmul.f32 %v747, %v1331
      %v1596 = vmul.f32 %v748, %v1332
      %v1597 = vmul.f32 %v749, %v1333
      %v1598 = vmul.f32 %v750, %v1334
      %v1599 = vmul.f32 %v751, %v1335
      %v1600 = vmul.f32 %v752, %v1336
      %v1601 = vmul.f32 %v753, %v1337
      %v1602 = vmul.f32 %v754, %v1338
      %v1603 = vmul.f32 %v779, %v1363
      %v1604 = vmul.f32 %v780, %v1364
      %v1605 = vmul.f32 %v781, %v1365
      %v1606 = vmul.f32 %v782, %v1366
      %v1607 = vmul.f32 %v783, %v1367
      %v1608 = vmul.f32 %v784, %v1368
      %v1609 = vmul.f32 %v785, %v1369
      %v1610 = vmul.f32 %v786, %v1370
      %v1611 = vsub.f32 %v1595, %v1603
      %v1612 = vsub.f32 %v1596, %v1604
      %v1613 = vsub.f32 %v1597, %v1605
      %v1614 = vsub.f32 %v1598, %v1606
      %v1615 = vsub.f32 %v1599, %v1607
      %v1616 = vsub.f32 %v1600, %v1608
      %v1617 = vsub.f32 %v1601, %v1609
      %v1618 = vsub.f32 %v1602, %v1610
      %v1619 = vmul.f32 %v1611, 0.8333333
      %v1620 = vmul.f32 %v1612, 0.8333333
      %v1621 = vmul.f32 %v1613, 0.8333333
      %v1622 = vmul.f32 %v1614, 0.8333333
      %v1623 = vmul.f32 %v1615, 0.8333333
      %v1624 = vmul.f32 %v1616, 0.8333333
      %v1625 = vmul.f32 %v1617, 0.8333333
      %v1626 = vmul.f32 %v1618, 0.8333333
      %v1627 = vmul.f32 %v755, %v1363
      %v1628 = vmul.f32 %v756, %v1364
      %v1629 = vmul.f32 %v757, %v1365
      %v1630 = vmul.f32 %v758, %v1366
      %v1631 = vmul.f32 %v759, %v1367
      %v1632 = vmul.f32 %v760, %v1368
      %v1633 = vmul.f32 %v761, %v1369
      %v1634 = vmul.f32 %v762, %v1370
      %v1635 = vmul.f32 %v787, %v1395
      %v1636 = vmul.f32 %v788, %v1396
      %v1637 = vmul.f32 %v789, %v1397
      %v1638 = vmul.f32 %v790, %v1398
      %v1639 = vmul.f32 %v791, %v1399
      %v1640 = vmul.f32 %v792, %v1400
      %v1641 = vmul.f32 %v793, %v1401
      %v1642 = vmul.f32 %v794, %v1402
      %v1643 = vsub.f32 %v1627, %v1635
      %v1644 = vsub.f32 %v1628, %v1636
      %v1645 = vsub.f32 %v1629, %v1637
      %v1646 = vsub.f32 %v1630, %v1638
      %v1647 = vsub.f32 %v1631, %v1639
      %v1648 = vsub.f32 %v1632, %v1640
      %v1649 = vsub.f32 %v1633, %v1641
      %v1650 = vsub.f32 %v1634, %v1642
      %v1651 = vmul.f32 %v1643, 0.8333333
      %v1652 = vmul.f32 %v1644, 0.8333333
      %v1653 = vmul.f32 %v1645, 0.8333333
      %v1654 = vmul.f32 %v1646, 0.8333333
      %v1655 = vmul.f32 %v1647, 0.8333333
      %v1656 = vmul.f32 %v1648, 0.8333333
      %v1657 = vmul.f32 %v1649, 0.8333333
      %v1658 = vmul.f32 %v1650, 0.8333333
      %v1659 = vpack.c.bf16 %v1427, %v1427
      %v1660 = vpack.c.bf16 %v1428, %v1428
      %v1661 = vpack.c.bf16 %v1429, %v1429
      %v1662 = vpack.c.bf16 %v1430, %v1430
      %v1663 = vpack.c.bf16 %v1431, %v1431
      %v1664 = vpack.c.bf16 %v1432, %v1432
      %v1665 = vpack.c.bf16 %v1433, %v1433
      %v1666 = vpack.c.bf16 %v1434, %v1434
      %v1667 = vpack.c.bf16 %v1459, %v1459
      %v1668 = vpack.c.bf16 %v1460, %v1460
      %v1669 = vpack.c.bf16 %v1461, %v1461
      %v1670 = vpack.c.bf16 %v1462, %v1462
      %v1671 = vpack.c.bf16 %v1463, %v1463
      %v1672 = vpack.c.bf16 %v1464, %v1464
      %v1673 = vpack.c.bf16 %v1465, %v1465
      %v1674 = vpack.c.bf16 %v1466, %v1466
      %v1675 = vpack.c.bf16 %v1491, %v1491
      %v1676 = vpack.c.bf16 %v1492, %v1492
      %v1677 = vpack.c.bf16 %v1493, %v1493
      %v1678 = vpack.c.bf16 %v1494, %v1494
      %v1679 = vpack.c.bf16 %v1495, %v1495
      %v1680 = vpack.c.bf16 %v1496, %v1496
      %v1681 = vpack.c.bf16 %v1497, %v1497
      %v1682 = vpack.c.bf16 %v1498, %v1498
      %v1683 = vpack.c.bf16 %v1523, %v1523
      %v1684 = vpack.c.bf16 %v1524, %v1524
      %v1685 = vpack.c.bf16 %v1525, %v1525
      %v1686 = vpack.c.bf16 %v1526, %v1526
      %v1687 = vpack.c.bf16 %v1527, %v1527
      %v1688 = vpack.c.bf16 %v1528, %v1528
      %v1689 = vpack.c.bf16 %v1529, %v1529
      %v1690 = vpack.c.bf16 %v1530, %v1530
      %v1691 = vpack.c.bf16 %v1555, %v1555
      %v1692 = vpack.c.bf16 %v1556, %v1556
      %v1693 = vpack.c.bf16 %v1557, %v1557
      %v1694 = vpack.c.bf16 %v1558, %v1558
      %v1695 = vpack.c.bf16 %v1559, %v1559
      %v1696 = vpack.c.bf16 %v1560, %v1560
      %v1697 = vpack.c.bf16 %v1561, %v1561
      %v1698 = vpack.c.bf16 %v1562, %v1562
      %v1699 = vpack.c.bf16 %v1587, %v1587
      %v1700 = vpack.c.bf16 %v1588, %v1588
      %v1701 = vpack.c.bf16 %v1589, %v1589
      %v1702 = vpack.c.bf16 %v1590, %v1590
      %v1703 = vpack.c.bf16 %v1591, %v1591
      %v1704 = vpack.c.bf16 %v1592, %v1592
      %v1705 = vpack.c.bf16 %v1593, %v1593
      %v1706 = vpack.c.bf16 %v1594, %v1594
      %v1707 = vpack.c.bf16 %v1619, %v1619
      %v1708 = vpack.c.bf16 %v1620, %v1620
      %v1709 = vpack.c.bf16 %v1621, %v1621
      %v1710 = vpack.c.bf16 %v1622, %v1622
      %v1711 = vpack.c.bf16 %v1623, %v1623
      %v1712 = vpack.c.bf16 %v1624, %v1624
      %v1713 = vpack.c.bf16 %v1625, %v1625
      %v1714 = vpack.c.bf16 %v1626, %v1626
      %v1715 = vpack.c.bf16 %v1651, %v1651
      %v1716 = vpack.c.bf16 %v1652, %v1652
      %v1717 = vpack.c.bf16 %v1653, %v1653
      %v1718 = vpack.c.bf16 %v1654, %v1654
      %v1719 = vpack.c.bf16 %v1655, %v1655
      %v1720 = vpack.c.bf16 %v1656, %v1656
      %v1721 = vpack.c.bf16 %v1657, %v1657
      %v1722 = vpack.c.bf16 %v1658, %v1658
      %v1731 = vunpack.c.l.b16 %v315
      %v1732 = vunpack.c.l.b16 %v316
      %v1733 = vunpack.c.l.b16 %v317
      %v1734 = vunpack.c.l.b16 %v318
      %v1735 = vunpack.c.l.b16 %v319
      %v1736 = vunpack.c.l.b16 %v320
      %v1737 = vunpack.c.l.b16 %v321
      %v1738 = vunpack.c.l.b16 %v322
      %v1739 = vpack.c.b16 %v1732, %v1731
      %v1740 = vpack.c.b16 %v1734, %v1733
      %v1741 = vpack.c.b16 %v1736, %v1735
      %v1742 = vpack.c.b16 %v1738, %v1737
      %v1755 = vunpack.c.l.b16 %v1659
      %v1756 = vunpack.c.l.b16 %v1660
      %v1757 = vunpack.c.l.b16 %v1661
      %v1758 = vunpack.c.l.b16 %v1662
      %v1759 = vunpack.c.l.b16 %v1663
      %v1760 = vunpack.c.l.b16 %v1664
      %v1761 = vunpack.c.l.b16 %v1665
      %v1762 = vunpack.c.l.b16 %v1666
      %v1763 = vpack.c.b16 %v1756, %v1755
      %v1764 = vpack.c.b16 %v1758, %v1757
      %v1765 = vpack.c.b16 %v1760, %v1759
      %v1766 = vpack.c.b16 %v1762, %v1761
      %v1779 = vunpack.c.l.b16 %v1667
      %v1780 = vunpack.c.l.b16 %v1668
      %v1781 = vunpack.c.l.b16 %v1669
      %v1782 = vunpack.c.l.b16 %v1670
      %v1783 = vunpack.c.l.b16 %v1671
      %v1784 = vunpack.c.l.b16 %v1672
      %v1785 = vunpack.c.l.b16 %v1673
      %v1786 = vunpack.c.l.b16 %v1674
      %v1787 = vpack.c.b16 %v1780, %v1779
      %v1788 = vpack.c.b16 %v1782, %v1781
      %v1789 = vpack.c.b16 %v1784, %v1783
      %v1790 = vpack.c.b16 %v1786, %v1785
      %v1803 = vunpack.c.l.b16 %v1675
      %v1804 = vunpack.c.l.b16 %v1676
      %v1805 = vunpack.c.l.b16 %v1677
      %v1806 = vunpack.c.l.b16 %v1678
      %v1807 = vunpack.c.l.b16 %v1679
      %v1808 = vunpack.c.l.b16 %v1680
      %v1809 = vunpack.c.l.b16 %v1681
      %v1810 = vunpack.c.l.b16 %v1682
      %v1811 = vpack.c.b16 %v1804, %v1803
      %v1812 = vpack.c.b16 %v1806, %v1805
      %v1813 = vpack.c.b16 %v1808, %v1807
      %v1814 = vpack.c.b16 %v1810, %v1809
      %v1827 = vunpack.c.l.b16 %v1683
      %v1828 = vunpack.c.l.b16 %v1684
      %v1829 = vunpack.c.l.b16 %v1685
      %v1830 = vunpack.c.l.b16 %v1686
      %v1831 = vunpack.c.l.b16 %v1687
      %v1832 = vunpack.c.l.b16 %v1688
      %v1833 = vunpack.c.l.b16 %v1689
      %v1834 = vunpack.c.l.b16 %v1690
      %v1835 = vpack.c.b16 %v1828, %v1827
      %v1836 = vpack.c.b16 %v1830, %v1829
      %v1837 = vpack.c.b16 %v1832, %v1831
      %v1838 = vpack.c.b16 %v1834, %v1833
      %v1851 = vunpack.c.l.b16 %v1691
      %v1852 = vunpack.c.l.b16 %v1692
      %v1853 = vunpack.c.l.b16 %v1693
      %v1854 = vunpack.c.l.b16 %v1694
      %v1855 = vunpack.c.l.b16 %v1695
      %v1856 = vunpack.c.l.b16 %v1696
      %v1857 = vunpack.c.l.b16 %v1697
      %v1858 = vunpack.c.l.b16 %v1698
      %v1859 = vpack.c.b16 %v1852, %v1851
      %v1860 = vpack.c.b16 %v1854, %v1853
      %v1861 = vpack.c.b16 %v1856, %v1855
      %v1862 = vpack.c.b16 %v1858, %v1857
      %v1875 = vunpack.c.l.b16 %v1699
      %v1876 = vunpack.c.l.b16 %v1700
      %v1877 = vunpack.c.l.b16 %v1701
      %v1878 = vunpack.c.l.b16 %v1702
      %v1879 = vunpack.c.l.b16 %v1703
      %v1880 = vunpack.c.l.b16 %v1704
      %v1881 = vunpack.c.l.b16 %v1705
      %v1882 = vunpack.c.l.b16 %v1706
      %v1883 = vpack.c.b16 %v1876, %v1875
      %v1884 = vpack.c.b16 %v1878, %v1877
      %v1885 = vpack.c.b16 %v1880, %v1879
      %v1886 = vpack.c.b16 %v1882, %v1881
      %v1899 = vunpack.c.l.b16 %v1707
      %v1900 = vunpack.c.l.b16 %v1708
      %v1901 = vunpack.c.l.b16 %v1709
      %v1902 = vunpack.c.l.b16 %v1710
      %v1903 = vunpack.c.l.b16 %v1711
      %v1904 = vunpack.c.l.b16 %v1712
      %v1905 = vunpack.c.l.b16 %v1713
      %v1906 = vunpack.c.l.b16 %v1714
      %v1907 = vpack.c.b16 %v1900, %v1899
      %v1908 = vpack.c.b16 %v1902, %v1901
      %v1909 = vpack.c.b16 %v1904, %v1903
      %v1910 = vpack.c.b16 %v1906, %v1905
      %v1923 = vunpack.c.l.b16 %v1715
      %v1924 = vunpack.c.l.b16 %v1716
      %v1925 = vunpack.c.l.b16 %v1717
      %v1926 = vunpack.c.l.b16 %v1718
      %v1927 = vunpack.c.l.b16 %v1719
      %v1928 = vunpack.c.l.b16 %v1720
      %v1929 = vunpack.c.l.b16 %v1721
      %v1930 = vunpack.c.l.b16 %v1722
      %v1931 = vpack.c.b16 %v1924, %v1923
      %v1932 = vpack.c.b16 %v1926, %v1925
      %v1933 = vpack.c.b16 %v1928, %v1927
      %v1934 = vpack.c.b16 %v1930, %v1929
      %v1939 = vld [vmem:[%s1] sm:$0xf]
      %v1940 = vld [vmem:[%s1 + $0x4] sm:$0xf]
      %v1941 = vld [vmem:[%s1 + $0x8] sm:$0xf]
      %v1942 = vld [vmem:[%s1 + $0xc] sm:$0xf]
      %v1943 = vld [vmem:[%s1 + $0x10] sm:$0xf]
      %v1944 = vld [vmem:[%s1 + $0x14] sm:$0xf]
      %v1945 = vld [vmem:[%s1 + $0x18] sm:$0xf]
      %v1946 = vld [vmem:[%s1 + $0x1c] sm:$0xf]
      %v1947 = vld [vmem:[%s1 + $0x20] sm:$0xf]
      %v1948 = vld [vmem:[%s1 + $0x24] sm:$0xf]
      %v1949 = vld [vmem:[%s1 + $0x28] sm:$0xf]
      %v1950 = vld [vmem:[%s1 + $0x2c] sm:$0xf]
      %v1951 = vld [vmem:[%s1 + $0x30] sm:$0xf]
      %v1952 = vld [vmem:[%s1 + $0x34] sm:$0xf]
      %v1953 = vld [vmem:[%s1 + $0x38] sm:$0xf]
      %v1954 = vld [vmem:[%s1 + $0x3c] sm:$0xf]
      %v1955 = vld [vmem:[%s1 + $0x40] sm:$0xf]
      %v1956 = vld [vmem:[%s1 + $0x44] sm:$0xf]
      %v1957 = vld [vmem:[%s1 + $0x48] sm:$0xf]
      %v1958 = vld [vmem:[%s1 + $0x4c] sm:$0xf]
      %v1959 = vld [vmem:[%s1 + $0x50] sm:$0xf]
      %v1960 = vld [vmem:[%s1 + $0x54] sm:$0xf]
      %v1961 = vld [vmem:[%s1 + $0x58] sm:$0xf]
      %v1962 = vld [vmem:[%s1 + $0x5c] sm:$0xf]
      %v1963 = vld [vmem:[%s1 + $0x60] sm:$0xf]
      %v1964 = vld [vmem:[%s1 + $0x64] sm:$0xf]
      %v1965 = vld [vmem:[%s1 + $0x68] sm:$0xf]
      %v1966 = vld [vmem:[%s1 + $0x6c] sm:$0xf]
      %v1967 = vld [vmem:[%s1 + $0x70] sm:$0xf]
      %v1968 = vld [vmem:[%s1 + $0x74] sm:$0xf]
      %v1969 = vld [vmem:[%s1 + $0x78] sm:$0xf]
      %v1970 = vld [vmem:[%s1 + $0x7c] sm:$0xf]
      %v1971 = vld [vmem:[%s1 + $0x80] sm:$0xf]
      %v1972 = vld [vmem:[%s1 + $0x84] sm:$0xf]
      %v1973 = vld [vmem:[%s1 + $0x88] sm:$0xf]
      %v1974 = vld [vmem:[%s1 + $0x8c] sm:$0xf]
      %v1975 = vld [vmem:[%s1 + $0x90] sm:$0xf]
      %v1976 = vld [vmem:[%s1 + $0x94] sm:$0xf]
      %v1977 = vld [vmem:[%s1 + $0x98] sm:$0xf]
      %v1978 = vld [vmem:[%s1 + $0x9c] sm:$0xf]
      %v1979 = vld [vmem:[%s1 + $0xa0] sm:$0xf]
      %v1980 = vld [vmem:[%s1 + $0xa4] sm:$0xf]
      %v1981 = vld [vmem:[%s1 + $0xa8] sm:$0xf]
      %v1982 = vld [vmem:[%s1 + $0xac] sm:$0xf]
      %v1983 = vld [vmem:[%s1 + $0xb0] sm:$0xf]
      %v1984 = vld [vmem:[%s1 + $0xb4] sm:$0xf]
      %v1985 = vld [vmem:[%s1 + $0xb8] sm:$0xf]
      %v1986 = vld [vmem:[%s1 + $0xbc] sm:$0xf]
      %v1987 = vld [vmem:[%s1 + $0xc0] sm:$0xf]
      %v1988 = vld [vmem:[%s1 + $0xc4] sm:$0xf]
      %v1989 = vld [vmem:[%s1 + $0xc8] sm:$0xf]
      %v1990 = vld [vmem:[%s1 + $0xcc] sm:$0xf]
      %v1991 = vld [vmem:[%s1 + $0xd0] sm:$0xf]
      %v1992 = vld [vmem:[%s1 + $0xd4] sm:$0xf]
      %v1993 = vld [vmem:[%s1 + $0xd8] sm:$0xf]
      %v1994 = vld [vmem:[%s1 + $0xdc] sm:$0xf]
      %v1995 = vld [vmem:[%s1 + $0xe0] sm:$0xf]
      %v1996 = vld [vmem:[%s1 + $0xe4] sm:$0xf]
      %v1997 = vld [vmem:[%s1 + $0xe8] sm:$0xf]
      %v1998 = vld [vmem:[%s1 + $0xec] sm:$0xf]
      %v1999 = vld [vmem:[%s1 + $0xf0] sm:$0xf]
      %v2000 = vld [vmem:[%s1 + $0xf4] sm:$0xf]
      %v2001 = vld [vmem:[%s1 + $0xf8] sm:$0xf]
      %v2002 = vld [vmem:[%s1 + $0xfc] sm:$0xf]
      %v2003 = vld [vmem:[%s1 + $0x100] sm:$0xf]
      %v2004 = vld [vmem:[%s1 + $0x104] sm:$0xf]
      %v2005 = vld [vmem:[%s1 + $0x108] sm:$0xf]
      %v2006 = vld [vmem:[%s1 + $0x10c] sm:$0xf]
      %v2007 = vld [vmem:[%s1 + $0x110] sm:$0xf]
      %v2008 = vld [vmem:[%s1 + $0x114] sm:$0xf]
      %v2009 = vld [vmem:[%s1 + $0x118] sm:$0xf]
      %v2010 = vld [vmem:[%s1 + $0x11c] sm:$0xf]
      %v2011 = vld [vmem:[%s1 + $0x120] sm:$0xf]
      %v2012 = vld [vmem:[%s1 + $0x124] sm:$0xf]
      %v2013 = vld [vmem:[%s1 + $0x128] sm:$0xf]
      %v2014 = vld [vmem:[%s1 + $0x12c] sm:$0xf]
      %v2015 = vld [vmem:[%s1 + $0x130] sm:$0xf]
      %v2016 = vld [vmem:[%s1 + $0x134] sm:$0xf]
      %v2017 = vld [vmem:[%s1 + $0x138] sm:$0xf]
      %v2018 = vld [vmem:[%s1 + $0x13c] sm:$0xf]
      %v2019 = vld [vmem:[%s1 + $0x140] sm:$0xf]
      %v2020 = vld [vmem:[%s1 + $0x144] sm:$0xf]
      %v2021 = vld [vmem:[%s1 + $0x148] sm:$0xf]
      %v2022 = vld [vmem:[%s1 + $0x14c] sm:$0xf]
      %v2023 = vld [vmem:[%s1 + $0x150] sm:$0xf]
      %v2024 = vld [vmem:[%s1 + $0x154] sm:$0xf]
      %v2025 = vld [vmem:[%s1 + $0x158] sm:$0xf]
      %v2026 = vld [vmem:[%s1 + $0x15c] sm:$0xf]
      %v2027 = vld [vmem:[%s1 + $0x160] sm:$0xf]
      %v2028 = vld [vmem:[%s1 + $0x164] sm:$0xf]
      %v2029 = vld [vmem:[%s1 + $0x168] sm:$0xf]
      %v2030 = vld [vmem:[%s1 + $0x16c] sm:$0xf]
      %v2031 = vld [vmem:[%s1 + $0x170] sm:$0xf]
      %v2032 = vld [vmem:[%s1 + $0x174] sm:$0xf]
      %v2033 = vld [vmem:[%s1 + $0x178] sm:$0xf]
      %v2034 = vld [vmem:[%s1 + $0x17c] sm:$0xf]
      %v2035 = vld [vmem:[%s1 + $0x180] sm:$0xf]
      %v2036 = vld [vmem:[%s1 + $0x184] sm:$0xf]
      %v2037 = vld [vmem:[%s1 + $0x188] sm:$0xf]
      %v2038 = vld [vmem:[%s1 + $0x18c] sm:$0xf]
      %v2039 = vld [vmem:[%s1 + $0x190] sm:$0xf]
      %v2040 = vld [vmem:[%s1 + $0x194] sm:$0xf]
      %v2041 = vld [vmem:[%s1 + $0x198] sm:$0xf]
      %v2042 = vld [vmem:[%s1 + $0x19c] sm:$0xf]
      %v2043 = vld [vmem:[%s1 + $0x1a0] sm:$0xf]
      %v2044 = vld [vmem:[%s1 + $0x1a4] sm:$0xf]
      %v2045 = vld [vmem:[%s1 + $0x1a8] sm:$0xf]
      %v2046 = vld [vmem:[%s1 + $0x1ac] sm:$0xf]
      %v2047 = vld [vmem:[%s1 + $0x1b0] sm:$0xf]
      %v2048 = vld [vmem:[%s1 + $0x1b4] sm:$0xf]
      %v2049 = vld [vmem:[%s1 + $0x1b8] sm:$0xf]
      %v2050 = vld [vmem:[%s1 + $0x1bc] sm:$0xf]
      %v2051 = vld [vmem:[%s1 + $0x1c0] sm:$0xf]
      %v2052 = vld [vmem:[%s1 + $0x1c4] sm:$0xf]
      %v2053 = vld [vmem:[%s1 + $0x1c8] sm:$0xf]
      %v2054 = vld [vmem:[%s1 + $0x1cc] sm:$0xf]
      %v2055 = vld [vmem:[%s1 + $0x1d0] sm:$0xf]
      %v2056 = vld [vmem:[%s1 + $0x1d4] sm:$0xf]
      %v2057 = vld [vmem:[%s1 + $0x1d8] sm:$0xf]
      %v2058 = vld [vmem:[%s1 + $0x1dc] sm:$0xf]
      %v2059 = vld [vmem:[%s1 + $0x1e0] sm:$0xf]
      %v2060 = vld [vmem:[%s1 + $0x1e4] sm:$0xf]
      %v2061 = vld [vmem:[%s1 + $0x1e8] sm:$0xf]
      %v2062 = vld [vmem:[%s1 + $0x1ec] sm:$0xf]
      %v2063 = vld [vmem:[%s1 + $0x1f0] sm:$0xf]
      %v2064 = vld [vmem:[%s1 + $0x1f4] sm:$0xf]
      %v2065 = vld [vmem:[%s1 + $0x1f8] sm:$0xf]
      %v2066 = vld [vmem:[%s1 + $0x1fc] sm:$0xf]
      %v2067 = vld [vmem:[%s1 + $0x200] sm:$0xf]
      %v2068 = vld [vmem:[%s1 + $0x204] sm:$0xf]
      %v2069 = vld [vmem:[%s1 + $0x208] sm:$0xf]
      %v2070 = vld [vmem:[%s1 + $0x20c] sm:$0xf]
      %v2071 = vld [vmem:[%s1 + $0x210] sm:$0xf]
      %v2072 = vld [vmem:[%s1 + $0x214] sm:$0xf]
      %v2073 = vld [vmem:[%s1 + $0x218] sm:$0xf]
      %v2074 = vld [vmem:[%s1 + $0x21c] sm:$0xf]
      %v2075 = vld [vmem:[%s1 + $0x220] sm:$0xf]
      %v2076 = vld [vmem:[%s1 + $0x224] sm:$0xf]
      %v2077 = vld [vmem:[%s1 + $0x228] sm:$0xf]
      %v2078 = vld [vmem:[%s1 + $0x22c] sm:$0xf]
      %v2079 = vld [vmem:[%s1 + $0x230] sm:$0xf]
      %v2080 = vld [vmem:[%s1 + $0x234] sm:$0xf]
      %v2081 = vld [vmem:[%s1 + $0x238] sm:$0xf]
      %v2082 = vld [vmem:[%s1 + $0x23c] sm:$0xf]
      %v2227 = vunpack.c.l.b16 %v1939
      %v2228 = vunpack.c.l.b16 %v1940
      %v2229 = vunpack.c.l.b16 %v1941
      %v2230 = vunpack.c.l.b16 %v1942
      %v2231 = vunpack.c.l.b16 %v1943
      %v2232 = vunpack.c.l.b16 %v1944
      %v2233 = vunpack.c.l.b16 %v1945
      %v2234 = vunpack.c.l.b16 %v1946
      %v2235 = vunpack.c.l.b16 %v1947
      %v2236 = vunpack.c.l.b16 %v1948
      %v2237 = vunpack.c.l.b16 %v1949
      %v2238 = vunpack.c.l.b16 %v1950
      %v2239 = vunpack.c.l.b16 %v1951
      %v2240 = vunpack.c.l.b16 %v1952
      %v2241 = vunpack.c.l.b16 %v1953
      %v2242 = vunpack.c.l.b16 %v1954
      %v2243 = vunpack.c.l.b16 %v1955
      %v2244 = vunpack.c.l.b16 %v1956
      %v2245 = vunpack.c.l.b16 %v1957
      %v2246 = vunpack.c.l.b16 %v1958
      %v2247 = vunpack.c.l.b16 %v1959
      %v2248 = vunpack.c.l.b16 %v1960
      %v2249 = vunpack.c.l.b16 %v1961
      %v2250 = vunpack.c.l.b16 %v1962
      %v2251 = vunpack.c.l.b16 %v1963
      %v2252 = vunpack.c.l.b16 %v1964
      %v2253 = vunpack.c.l.b16 %v1965
      %v2254 = vunpack.c.l.b16 %v1966
      %v2255 = vunpack.c.l.b16 %v1967
      %v2256 = vunpack.c.l.b16 %v1968
      %v2257 = vunpack.c.l.b16 %v1969
      %v2258 = vunpack.c.l.b16 %v1970
      %v2259 = vunpack.c.l.b16 %v1971
      %v2260 = vunpack.c.l.b16 %v1972
      %v2261 = vunpack.c.l.b16 %v1973
      %v2262 = vunpack.c.l.b16 %v1974
      %v2263 = vunpack.c.l.b16 %v1975
      %v2264 = vunpack.c.l.b16 %v1976
      %v2265 = vunpack.c.l.b16 %v1977
      %v2266 = vunpack.c.l.b16 %v1978
      %v2267 = vunpack.c.l.b16 %v1979
      %v2268 = vunpack.c.l.b16 %v1980
      %v2269 = vunpack.c.l.b16 %v1981
      %v2270 = vunpack.c.l.b16 %v1982
      %v2271 = vunpack.c.l.b16 %v1983
      %v2272 = vunpack.c.l.b16 %v1984
      %v2273 = vunpack.c.l.b16 %v1985
      %v2274 = vunpack.c.l.b16 %v1986
      %v2275 = vunpack.c.l.b16 %v1987
      %v2276 = vunpack.c.l.b16 %v1988
      %v2277 = vunpack.c.l.b16 %v1989
      %v2278 = vunpack.c.l.b16 %v1990
      %v2279 = vunpack.c.l.b16 %v1991
      %v2280 = vunpack.c.l.b16 %v1992
      %v2281 = vunpack.c.l.b16 %v1993
      %v2282 = vunpack.c.l.b16 %v1994
      %v2283 = vunpack.c.l.b16 %v1995
      %v2284 = vunpack.c.l.b16 %v1996
      %v2285 = vunpack.c.l.b16 %v1997
      %v2286 = vunpack.c.l.b16 %v1998
      %v2287 = vunpack.c.l.b16 %v1999
      %v2288 = vunpack.c.l.b16 %v2000
      %v2289 = vunpack.c.l.b16 %v2001
      %v2290 = vunpack.c.l.b16 %v2002
      %v2291 = vunpack.c.l.b16 %v2003
      %v2292 = vunpack.c.l.b16 %v2004
      %v2293 = vunpack.c.l.b16 %v2005
      %v2294 = vunpack.c.l.b16 %v2006
      %v2295 = vunpack.c.l.b16 %v2007
      %v2296 = vunpack.c.l.b16 %v2008
      %v2297 = vunpack.c.l.b16 %v2009
      %v2298 = vunpack.c.l.b16 %v2010
      %v2299 = vunpack.c.l.b16 %v2011
      %v2300 = vunpack.c.l.b16 %v2012
      %v2301 = vunpack.c.l.b16 %v2013
      %v2302 = vunpack.c.l.b16 %v2014
      %v2303 = vunpack.c.l.b16 %v2015
      %v2304 = vunpack.c.l.b16 %v2016
      %v2305 = vunpack.c.l.b16 %v2017
      %v2306 = vunpack.c.l.b16 %v2018
      %v2307 = vunpack.c.l.b16 %v2019
      %v2308 = vunpack.c.l.b16 %v2020
      %v2309 = vunpack.c.l.b16 %v2021
      %v2310 = vunpack.c.l.b16 %v2022
      %v2311 = vunpack.c.l.b16 %v2023
      %v2312 = vunpack.c.l.b16 %v2024
      %v2313 = vunpack.c.l.b16 %v2025
      %v2314 = vunpack.c.l.b16 %v2026
      %v2315 = vunpack.c.l.b16 %v2027
      %v2316 = vunpack.c.l.b16 %v2028
      %v2317 = vunpack.c.l.b16 %v2029
      %v2318 = vunpack.c.l.b16 %v2030
      %v2319 = vunpack.c.l.b16 %v2031
      %v2320 = vunpack.c.l.b16 %v2032
      %v2321 = vunpack.c.l.b16 %v2033
      %v2322 = vunpack.c.l.b16 %v2034
      %v2323 = vunpack.c.l.b16 %v2035
      %v2324 = vunpack.c.l.b16 %v2036
      %v2325 = vunpack.c.l.b16 %v2037
      %v2326 = vunpack.c.l.b16 %v2038
      %v2327 = vunpack.c.l.b16 %v2039
      %v2328 = vunpack.c.l.b16 %v2040
      %v2329 = vunpack.c.l.b16 %v2041
      %v2330 = vunpack.c.l.b16 %v2042
      %v2331 = vunpack.c.l.b16 %v2043
      %v2332 = vunpack.c.l.b16 %v2044
      %v2333 = vunpack.c.l.b16 %v2045
      %v2334 = vunpack.c.l.b16 %v2046
      %v2335 = vunpack.c.l.b16 %v2047
      %v2336 = vunpack.c.l.b16 %v2048
      %v2337 = vunpack.c.l.b16 %v2049
      %v2338 = vunpack.c.l.b16 %v2050
      %v2339 = vunpack.c.l.b16 %v2051
      %v2340 = vunpack.c.l.b16 %v2052
      %v2341 = vunpack.c.l.b16 %v2053
      %v2342 = vunpack.c.l.b16 %v2054
      %v2343 = vunpack.c.l.b16 %v2055
      %v2344 = vunpack.c.l.b16 %v2056
      %v2345 = vunpack.c.l.b16 %v2057
      %v2346 = vunpack.c.l.b16 %v2058
      %v2347 = vunpack.c.l.b16 %v2059
      %v2348 = vunpack.c.l.b16 %v2060
      %v2349 = vunpack.c.l.b16 %v2061
      %v2350 = vunpack.c.l.b16 %v2062
      %v2351 = vunpack.c.l.b16 %v2063
      %v2352 = vunpack.c.l.b16 %v2064
      %v2353 = vunpack.c.l.b16 %v2065
      %v2354 = vunpack.c.l.b16 %v2066
      %v2355 = vunpack.c.l.b16 %v2067
      %v2356 = vunpack.c.l.b16 %v2068
      %v2357 = vunpack.c.l.b16 %v2069
      %v2358 = vunpack.c.l.b16 %v2070
      %v2359 = vunpack.c.l.b16 %v2071
      %v2360 = vunpack.c.l.b16 %v2072
      %v2361 = vunpack.c.l.b16 %v2073
      %v2362 = vunpack.c.l.b16 %v2074
      %v2363 = vunpack.c.l.b16 %v2075
      %v2364 = vunpack.c.l.b16 %v2076
      %v2365 = vunpack.c.l.b16 %v2077
      %v2366 = vunpack.c.l.b16 %v2078
      %v2367 = vunpack.c.l.b16 %v2079
      %v2368 = vunpack.c.l.b16 %v2080
      %v2369 = vunpack.c.l.b16 %v2081
      %v2370 = vunpack.c.l.b16 %v2082
      %v2371 = vpack.c.b16 %v2228, %v2227
      %v2372 = vpack.c.b16 %v2230, %v2229
      %v2373 = vpack.c.b16 %v2232, %v2231
      %v2374 = vpack.c.b16 %v2234, %v2233
      %v2375 = vpack.c.b16 %v2236, %v2235
      %v2376 = vpack.c.b16 %v2238, %v2237
      %v2377 = vpack.c.b16 %v2240, %v2239
      %v2378 = vpack.c.b16 %v2242, %v2241
      %v2379 = vpack.c.b16 %v2244, %v2243
      %v2380 = vpack.c.b16 %v2246, %v2245
      %v2381 = vpack.c.b16 %v2248, %v2247
      %v2382 = vpack.c.b16 %v2250, %v2249
      %v2383 = vpack.c.b16 %v2252, %v2251
      %v2384 = vpack.c.b16 %v2254, %v2253
      %v2385 = vpack.c.b16 %v2256, %v2255
      %v2386 = vpack.c.b16 %v2258, %v2257
      %v2387 = vpack.c.b16 %v2260, %v2259
      %v2388 = vpack.c.b16 %v2262, %v2261
      %v2389 = vpack.c.b16 %v2264, %v2263
      %v2390 = vpack.c.b16 %v2266, %v2265
      %v2391 = vpack.c.b16 %v2268, %v2267
      %v2392 = vpack.c.b16 %v2270, %v2269
      %v2393 = vpack.c.b16 %v2272, %v2271
      %v2394 = vpack.c.b16 %v2274, %v2273
      %v2395 = vpack.c.b16 %v2276, %v2275
      %v2396 = vpack.c.b16 %v2278, %v2277
      %v2397 = vpack.c.b16 %v2280, %v2279
      %v2398 = vpack.c.b16 %v2282, %v2281
      %v2399 = vpack.c.b16 %v2284, %v2283
      %v2400 = vpack.c.b16 %v2286, %v2285
      %v2401 = vpack.c.b16 %v2288, %v2287
      %v2402 = vpack.c.b16 %v2290, %v2289
      %v2403 = vpack.c.b16 %v2292, %v2291
      %v2404 = vpack.c.b16 %v2294, %v2293
      %v2405 = vpack.c.b16 %v2296, %v2295
      %v2406 = vpack.c.b16 %v2298, %v2297
      %v2407 = vpack.c.b16 %v2300, %v2299
      %v2408 = vpack.c.b16 %v2302, %v2301
      %v2409 = vpack.c.b16 %v2304, %v2303
      %v2410 = vpack.c.b16 %v2306, %v2305
      %v2411 = vpack.c.b16 %v2308, %v2307
      %v2412 = vpack.c.b16 %v2310, %v2309
      %v2413 = vpack.c.b16 %v2312, %v2311
      %v2414 = vpack.c.b16 %v2314, %v2313
      %v2415 = vpack.c.b16 %v2316, %v2315
      %v2416 = vpack.c.b16 %v2318, %v2317
      %v2417 = vpack.c.b16 %v2320, %v2319
      %v2418 = vpack.c.b16 %v2322, %v2321
      %v2419 = vpack.c.b16 %v2324, %v2323
      %v2420 = vpack.c.b16 %v2326, %v2325
      %v2421 = vpack.c.b16 %v2328, %v2327
      %v2422 = vpack.c.b16 %v2330, %v2329
      %v2423 = vpack.c.b16 %v2332, %v2331
      %v2424 = vpack.c.b16 %v2334, %v2333
      %v2425 = vpack.c.b16 %v2336, %v2335
      %v2426 = vpack.c.b16 %v2338, %v2337
      %v2427 = vpack.c.b16 %v2340, %v2339
      %v2428 = vpack.c.b16 %v2342, %v2341
      %v2429 = vpack.c.b16 %v2344, %v2343
      %v2430 = vpack.c.b16 %v2346, %v2345
      %v2431 = vpack.c.b16 %v2348, %v2347
      %v2432 = vpack.c.b16 %v2350, %v2349
      %v2433 = vpack.c.b16 %v2352, %v2351
      %v2434 = vpack.c.b16 %v2354, %v2353
      %v2435 = vpack.c.b16 %v2356, %v2355
      %v2436 = vpack.c.b16 %v2358, %v2357
      %v2437 = vpack.c.b16 %v2360, %v2359
      %v2438 = vpack.c.b16 %v2362, %v2361
      %v2439 = vpack.c.b16 %v2364, %v2363
      %v2440 = vpack.c.b16 %v2366, %v2365
      %v2441 = vpack.c.b16 %v2368, %v2367
      %v2442 = vpack.c.b16 %v2370, %v2369
      %2515 = vmatpush.bf16.msra.mxu0 %v2378
      %2516 = vmatpush.bf16.msra.mxu0 %v2377
      %2517 = vmatpush.bf16.msra.mxu0 %v2376
      %2518 = vmatpush.bf16.msra.mxu0 %v2375
      %2519 = vmatpush.bf16.msra.mxu0 %v2374
      %2520 = vmatpush.bf16.msra.mxu0 %v2373
      %2521 = vmatpush.bf16.msra.mxu0 %v2372
      %2522 = vmatpush.bf16.msra.mxu0 %v2371
      %2523 = vmatmul.bf16.gmra.mxu0 %v1739
      %v2524 = vpop.f32.mrf.mxu0
      %v2525 = vadd.f32 0.0, %v2524
      %v2526 = vpop.f32.mrf.mxu0
      %v2527 = vadd.f32 0.0, %v2526
      %2528 = vmatmul.bf16.gmra.mxu0 %v1740
      %v2529 = vpop.f32.mrf.mxu0
      %v2530 = vadd.f32 0.0, %v2529
      %v2531 = vpop.f32.mrf.mxu0
      %v2532 = vadd.f32 0.0, %v2531
      %2533 = vmatmul.bf16.gmra.mxu0 %v1741
      %v2534 = vpop.f32.mrf.mxu0
      %v2535 = vadd.f32 0.0, %v2534
      %v2536 = vpop.f32.mrf.mxu0
      %v2537 = vadd.f32 0.0, %v2536
      %2538 = vmatmul.bf16.gmra.mxu0 %v1742
      %v2539 = vpop.f32.mrf.mxu0
      %v2540 = vadd.f32 0.0, %v2539
      %v2541 = vpop.f32.mrf.mxu0
      %v2542 = vadd.f32 0.0, %v2541
      %2543 = vdwg.mxu0
      %2544 = vmatpush.bf16.msra.mxu0 %v2386
      %2545 = vmatpush.bf16.msra.mxu0 %v2385
      %2546 = vmatpush.bf16.msra.mxu0 %v2384
      %2547 = vmatpush.bf16.msra.mxu0 %v2383
      %2548 = vmatpush.bf16.msra.mxu0 %v2382
      %2549 = vmatpush.bf16.msra.mxu0 %v2381
      %2550 = vmatpush.bf16.msra.mxu0 %v2380
      %2551 = vmatpush.bf16.msra.mxu0 %v2379
      %2552 = vmatmul.bf16.gmra.mxu0 %v1763
      %v2553 = vpop.f32.mrf.mxu0
      %v2554 = vadd.f32 %v2525, %v2553
      %v2555 = vpop.f32.mrf.mxu0
      %v2556 = vadd.f32 %v2527, %v2555
      %2557 = vmatmul.bf16.gmra.mxu0 %v1764
      %v2558 = vpop.f32.mrf.mxu0
      %v2559 = vadd.f32 %v2530, %v2558
      %v2560 = vpop.f32.mrf.mxu0
      %v2561 = vadd.f32 %v2532, %v2560
      %2562 = vmatmul.bf16.gmra.mxu0 %v1765
      %v2563 = vpop.f32.mrf.mxu0
      %v2564 = vadd.f32 %v2535, %v2563
      %v2565 = vpop.f32.mrf.mxu0
      %v2566 = vadd.f32 %v2537, %v2565
      %2567 = vmatmul.bf16.gmra.mxu0 %v1766
      %v2568 = vpop.f32.mrf.mxu0
      %v2569 = vadd.f32 %v2540, %v2568
      %v2570 = vpop.f32.mrf.mxu0
      %v2571 = vadd.f32 %v2542, %v2570
      %2572 = vdwg.mxu0
      %2573 = vmatpush.bf16.msra.mxu0 %v2394
      %2574 = vmatpush.bf16.msra.mxu0 %v2393
      %2575 = vmatpush.bf16.msra.mxu0 %v2392
      %2576 = vmatpush.bf16.msra.mxu0 %v2391
      %2577 = vmatpush.bf16.msra.mxu0 %v2390
      %2578 = vmatpush.bf16.msra.mxu0 %v2389
      %2579 = vmatpush.bf16.msra.mxu0 %v2388
      %2580 = vmatpush.bf16.msra.mxu0 %v2387
      %2581 = vmatmul.bf16.gmra.mxu0 %v1787
      %v2582 = vpop.f32.mrf.mxu0
      %v2583 = vadd.f32 %v2554, %v2582
      %v2584 = vpop.f32.mrf.mxu0
      %v2585 = vadd.f32 %v2556, %v2584
      %2586 = vmatmul.bf16.gmra.mxu0 %v1788
      %v2587 = vpop.f32.mrf.mxu0
      %v2588 = vadd.f32 %v2559, %v2587
      %v2589 = vpop.f32.mrf.mxu0
      %v2590 = vadd.f32 %v2561, %v2589
      %2591 = vmatmul.bf16.gmra.mxu0 %v1789
      %v2592 = vpop.f32.mrf.mxu0
      %v2593 = vadd.f32 %v2564, %v2592
      %v2594 = vpop.f32.mrf.mxu0
      %v2595 = vadd.f32 %v2566, %v2594
      %2596 = vmatmul.bf16.gmra.mxu0 %v1790
      %v2597 = vpop.f32.mrf.mxu0
      %v2598 = vadd.f32 %v2569, %v2597
      %v2599 = vpop.f32.mrf.mxu0
      %v2600 = vadd.f32 %v2571, %v2599
      %2601 = vdwg.mxu0
      %2602 = vmatpush.bf16.msra.mxu0 %v2402
      %2603 = vmatpush.bf16.msra.mxu0 %v2401
      %2604 = vmatpush.bf16.msra.mxu0 %v2400
      %2605 = vmatpush.bf16.msra.mxu0 %v2399
      %2606 = vmatpush.bf16.msra.mxu0 %v2398
      %2607 = vmatpush.bf16.msra.mxu0 %v2397
      %2608 = vmatpush.bf16.msra.mxu0 %v2396
      %2609 = vmatpush.bf16.msra.mxu0 %v2395
      %2610 = vmatmul.bf16.gmra.mxu0 %v1811
      %v2611 = vpop.f32.mrf.mxu0
      %v2612 = vadd.f32 %v2583, %v2611
      %v2613 = vpop.f32.mrf.mxu0
      %v2614 = vadd.f32 %v2585, %v2613
      %2615 = vmatmul.bf16.gmra.mxu0 %v1812
      %v2616 = vpop.f32.mrf.mxu0
      %v2617 = vadd.f32 %v2588, %v2616
      %v2618 = vpop.f32.mrf.mxu0
      %v2619 = vadd.f32 %v2590, %v2618
      %2620 = vmatmul.bf16.gmra.mxu0 %v1813
      %v2621 = vpop.f32.mrf.mxu0
      %v2622 = vadd.f32 %v2593, %v2621
      %v2623 = vpop.f32.mrf.mxu0
      %v2624 = vadd.f32 %v2595, %v2623
      %2625 = vmatmul.bf16.gmra.mxu0 %v1814
      %v2626 = vpop.f32.mrf.mxu0
      %v2627 = vadd.f32 %v2598, %v2626
      %v2628 = vpop.f32.mrf.mxu0
      %v2629 = vadd.f32 %v2600, %v2628
      %2630 = vdwg.mxu0
      %2631 = vmatpush.bf16.msra.mxu0 %v2410
      %2632 = vmatpush.bf16.msra.mxu0 %v2409
      %2633 = vmatpush.bf16.msra.mxu0 %v2408
      %2634 = vmatpush.bf16.msra.mxu0 %v2407
      %2635 = vmatpush.bf16.msra.mxu0 %v2406
      %2636 = vmatpush.bf16.msra.mxu0 %v2405
      %2637 = vmatpush.bf16.msra.mxu0 %v2404
      %2638 = vmatpush.bf16.msra.mxu0 %v2403
      %2639 = vmatmul.bf16.gmra.mxu0 %v1835
      %v2640 = vpop.f32.mrf.mxu0
      %v2641 = vadd.f32 %v2612, %v2640
      %v2642 = vpop.f32.mrf.mxu0
      %v2643 = vadd.f32 %v2614, %v2642
      %2644 = vmatmul.bf16.gmra.mxu0 %v1836
      %v2645 = vpop.f32.mrf.mxu0
      %v2646 = vadd.f32 %v2617, %v2645
      %v2647 = vpop.f32.mrf.mxu0
      %v2648 = vadd.f32 %v2619, %v2647
      %2649 = vmatmul.bf16.gmra.mxu0 %v1837
      %v2650 = vpop.f32.mrf.mxu0
      %v2651 = vadd.f32 %v2622, %v2650
      %v2652 = vpop.f32.mrf.mxu0
      %v2653 = vadd.f32 %v2624, %v2652
      %2654 = vmatmul.bf16.gmra.mxu0 %v1838
      %v2655 = vpop.f32.mrf.mxu0
      %v2656 = vadd.f32 %v2627, %v2655
      %v2657 = vpop.f32.mrf.mxu0
      %v2658 = vadd.f32 %v2629, %v2657
      %2659 = vdwg.mxu0
      %2660 = vmatpush.bf16.msra.mxu0 %v2418
      %2661 = vmatpush.bf16.msra.mxu0 %v2417
      %2662 = vmatpush.bf16.msra.mxu0 %v2416
      %2663 = vmatpush.bf16.msra.mxu0 %v2415
      %2664 = vmatpush.bf16.msra.mxu0 %v2414
      %2665 = vmatpush.bf16.msra.mxu0 %v2413
      %2666 = vmatpush.bf16.msra.mxu0 %v2412
      %2667 = vmatpush.bf16.msra.mxu0 %v2411
      %2668 = vmatmul.bf16.gmra.mxu0 %v1859
      %v2669 = vpop.f32.mrf.mxu0
      %v2670 = vadd.f32 %v2641, %v2669
      %v2671 = vpop.f32.mrf.mxu0
      %v2672 = vadd.f32 %v2643, %v2671
      %2673 = vmatmul.bf16.gmra.mxu0 %v1860
      %v2674 = vpop.f32.mrf.mxu0
      %v2675 = vadd.f32 %v2646, %v2674
      %v2676 = vpop.f32.mrf.mxu0
      %v2677 = vadd.f32 %v2648, %v2676
      %2678 = vmatmul.bf16.gmra.mxu0 %v1861
      %v2679 = vpop.f32.mrf.mxu0
      %v2680 = vadd.f32 %v2651, %v2679
      %v2681 = vpop.f32.mrf.mxu0
      %v2682 = vadd.f32 %v2653, %v2681
      %2683 = vmatmul.bf16.gmra.mxu0 %v1862
      %v2684 = vpop.f32.mrf.mxu0
      %v2685 = vadd.f32 %v2656, %v2684
      %v2686 = vpop.f32.mrf.mxu0
      %v2687 = vadd.f32 %v2658, %v2686
      %2688 = vdwg.mxu0
      %2689 = vmatpush.bf16.msra.mxu0 %v2426
      %2690 = vmatpush.bf16.msra.mxu0 %v2425
      %2691 = vmatpush.bf16.msra.mxu0 %v2424
      %2692 = vmatpush.bf16.msra.mxu0 %v2423
      %2693 = vmatpush.bf16.msra.mxu0 %v2422
      %2694 = vmatpush.bf16.msra.mxu0 %v2421
      %2695 = vmatpush.bf16.msra.mxu0 %v2420
      %2696 = vmatpush.bf16.msra.mxu0 %v2419
      %2697 = vmatmul.bf16.gmra.mxu0 %v1883
      %v2698 = vpop.f32.mrf.mxu0
      %v2699 = vadd.f32 %v2670, %v2698
      %v2700 = vpop.f32.mrf.mxu0
      %v2701 = vadd.f32 %v2672, %v2700
      %2702 = vmatmul.bf16.gmra.mxu0 %v1884
      %v2703 = vpop.f32.mrf.mxu0
      %v2704 = vadd.f32 %v2675, %v2703
      %v2705 = vpop.f32.mrf.mxu0
      %v2706 = vadd.f32 %v2677, %v2705
      %2707 = vmatmul.bf16.gmra.mxu0 %v1885
      %v2708 = vpop.f32.mrf.mxu0
      %v2709 = vadd.f32 %v2680, %v2708
      %v2710 = vpop.f32.mrf.mxu0
      %v2711 = vadd.f32 %v2682, %v2710
      %2712 = vmatmul.bf16.gmra.mxu0 %v1886
      %v2713 = vpop.f32.mrf.mxu0
      %v2714 = vadd.f32 %v2685, %v2713
      %v2715 = vpop.f32.mrf.mxu0
      %v2716 = vadd.f32 %v2687, %v2715
      %2717 = vdwg.mxu0
      %2718 = vmatpush.bf16.msra.mxu0 %v2434
      %2719 = vmatpush.bf16.msra.mxu0 %v2433
      %2720 = vmatpush.bf16.msra.mxu0 %v2432
      %2721 = vmatpush.bf16.msra.mxu0 %v2431
      %2722 = vmatpush.bf16.msra.mxu0 %v2430
      %2723 = vmatpush.bf16.msra.mxu0 %v2429
      %2724 = vmatpush.bf16.msra.mxu0 %v2428
      %2725 = vmatpush.bf16.msra.mxu0 %v2427
      %2726 = vmatmul.bf16.gmra.mxu0 %v1907
      %v2727 = vpop.f32.mrf.mxu0
      %v2728 = vadd.f32 %v2699, %v2727
      %v2729 = vpop.f32.mrf.mxu0
      %v2730 = vadd.f32 %v2701, %v2729
      %2731 = vmatmul.bf16.gmra.mxu0 %v1908
      %v2732 = vpop.f32.mrf.mxu0
      %v2733 = vadd.f32 %v2704, %v2732
      %v2734 = vpop.f32.mrf.mxu0
      %v2735 = vadd.f32 %v2706, %v2734
      %2736 = vmatmul.bf16.gmra.mxu0 %v1909
      %v2737 = vpop.f32.mrf.mxu0
      %v2738 = vadd.f32 %v2709, %v2737
      %v2739 = vpop.f32.mrf.mxu0
      %v2740 = vadd.f32 %v2711, %v2739
      %2741 = vmatmul.bf16.gmra.mxu0 %v1910
      %v2742 = vpop.f32.mrf.mxu0
      %v2743 = vadd.f32 %v2714, %v2742
      %v2744 = vpop.f32.mrf.mxu0
      %v2745 = vadd.f32 %v2716, %v2744
      %2746 = vdwg.mxu0
      %2747 = vmatpush.bf16.msra.mxu0 %v2442
      %2748 = vmatpush.bf16.msra.mxu0 %v2441
      %2749 = vmatpush.bf16.msra.mxu0 %v2440
      %2750 = vmatpush.bf16.msra.mxu0 %v2439
      %2751 = vmatpush.bf16.msra.mxu0 %v2438
      %2752 = vmatpush.bf16.msra.mxu0 %v2437
      %2753 = vmatpush.bf16.msra.mxu0 %v2436
      %2754 = vmatpush.bf16.msra.mxu0 %v2435
      %2755 = vmatmul.bf16.gmra.mxu0 %v1931
      %v2756 = vpop.f32.mrf.mxu0
      %v2757 = vadd.f32 %v2728, %v2756
      %v2758 = vpop.f32.mrf.mxu0
      %v2759 = vadd.f32 %v2730, %v2758
      %2760 = vmatmul.bf16.gmra.mxu0 %v1932
      %v2761 = vpop.f32.mrf.mxu0
      %v2762 = vadd.f32 %v2733, %v2761
      %v2763 = vpop.f32.mrf.mxu0
      %v2764 = vadd.f32 %v2735, %v2763
      %2765 = vmatmul.bf16.gmra.mxu0 %v1933
      %v2766 = vpop.f32.mrf.mxu0
      %v2767 = vadd.f32 %v2738, %v2766
      %v2768 = vpop.f32.mrf.mxu0
      %v2769 = vadd.f32 %v2740, %v2768
      %2770 = vmatmul.bf16.gmra.mxu0 %v1934
      %v2771 = vpop.f32.mrf.mxu0
      %v2772 = vadd.f32 %v2743, %v2771
      %v2773 = vpop.f32.mrf.mxu0
      %v2774 = vadd.f32 %v2745, %v2773
      %2775 = vdwg.mxu0
      %2776 = vst [vmem:[%s145] sm:$0xff] %v2757
      %2777 = vst [vmem:[%s145 + $0x8] sm:$0xff] %v2759
      %2778 = vst [vmem:[%s145 + $0x10] sm:$0xff] %v2762
      %2779 = vst [vmem:[%s145 + $0x18] sm:$0xff] %v2764
      %2780 = vst [vmem:[%s145 + $0x20] sm:$0xff] %v2767
      %2781 = vst [vmem:[%s145 + $0x28] sm:$0xff] %v2769
      %2782 = vst [vmem:[%s145 + $0x30] sm:$0xff] %v2772
      %2783 = vst [vmem:[%s145 + $0x38] sm:$0xff] %v2774
      %s2784 = smul.u32 8, %s13
      %p2785 = scmp.lt.s32.totalorder %s2784, 15
      %s2786 = scalar_select %p2785, %s2784, 15
      %s2787 = smul.addr %s2786, 8
      %s2788 = scalar_lea.vmem %s2, %s2787
      // Predicated region
      $region29: #{kan_block_forward.8} parent=27 // pred_check
        %p2789 = pneg %p78
      $region30: #{kan_block_forward.8} parent=27 // pred_check_branch
        %2791 = sbr.rel (%p2789) target = $region32
      $region31: #{kan_block_forward.8} parent=27 // pred_region
        %s2792 = smul.u32 8, %s13
      $region32: #{kan_block_forward.8} parent=27 // pred_fallthru
        _
    $region28: #{kan_block_forward.8} parent=5 // pred_fallthru
      _
    %p2793 = scmp.le.s32.totalorder 2, %s8
    // Predicated region
    $region33: #{kan_block_forward.8} parent=5 // pred_check
      %p2794 = pneg %p2793
    $region34: #{kan_block_forward.8} parent=5 // pred_check_branch
      %2796 = sbr.rel (%p2794) target = $region36
    $region35: #{kan_block_forward.8} parent=5 // pred_region
      %s2797 = ssub.s32 %s8, 2
      // Predicated region
      $region37: #{kan_block_forward.8} parent=35 // pred_check
        %p2798 = pneg %p84
      $region38: #{kan_block_forward.8} parent=35 // pred_check_branch
        %2800 = sbr.rel (%p2798) target = $region40
      $region39: #{kan_block_forward.8} parent=35 // pred_region
        %s2801 = smul.u32 8, %s14
        %p2802 = scmp.lt.s32.totalorder %s2801, 15
        %s2803 = scalar_select %p2802, %s2801, 15
        %s2804 = smul.addr %s2803, 8
        %s2805 = scalar_lea.vmem %s2, %s2804
      $region40: #{kan_block_forward.8} parent=35 // pred_fallthru
        _
    $region36: #{kan_block_forward.8} parent=5 // pred_fallthru
      _
  $region6: #{kan_block_forward.8} parent=0 // loop_footer
    %s12 = sadd.s32 1, %s8
  $region7: #{kan_block_forward.8} parent=0 // loop_footer_branch
    %7 = sbr.rel target = $region3
  $region8: #{kan_block_forward.8} parent=0 // loop_exit
    _

</llo_original>
